<compile_context>
chip_gen: v7x
topology: tpu7x:2x2x1
jax: 0.10.0
libtpu: 0.0.40
codegen_flags: <defaults>
</compile_context>

<pallas_src>
import math

import jax
import jax.numpy as jnp
import numpy as np
from jax.experimental import pallas as pl
from jax.experimental.pallas import tpu as pltpu

# ----------------------- configuration (module-consistent) -------------------------
BATCH = 2
SEQ = 8                      # peptide sequence length
HIDDEN = 128                 # Model_RT_Bert default hidden
NLAYERS = 4                  # Model_RT_Bert default nlayers
NHEADS = 8                   # Hidden_HFace_Transformer default nheads
HEAD_DIM = HIDDEN // NHEADS
FFN = 4 * HIDDEN             # intermediate_size = hidden * 4
AA_VOCAB = 27                # AAEmbedding vocab (padding_idx = 0)
MOD_FEATS = 109              # peptdeep mod feature size
MOD_FIX_K = 6                # Mod_Embedding_FixFirstK passes first 6 features through
MOD_HIDDEN = 8               # mod embedding width inside AATransformerEncoding
LN_EPS = 1e-12               # BertConfig layer_norm_eps

ROWS = BATCH * SEQ           # 16  (flattened batch*seq)
REP = BATCH * NHEADS * SEQ   # 128 (head-replicated rows for attention)


# ----------------------------- in-kernel math helpers ------------------------------
def _erf(x):
    # Abramowitz-Stegun 7.1.26 rational approximation (|err| < 1.5e-7).
    # Mosaic-safe replacement for lax.erf; matches HF exact GELU to ~f32 precision.
    a1, a2, a3, a4, a5 = 0.254829592, -0.284496736, 1.421413741, -1.453152027, 1.061405429
    p = 0.3275911
    ax = jnp.abs(x)
    t = 1.0 / (1.0 + p * ax)
    poly = ((((a5 * t + a4) * t + a3) * t + a2) * t + a1) * t
    y = 1.0 - poly * jnp.exp(-ax * ax)
    return jnp.where(x >= 0, y, -y)


def _gelu(x):
    return 0.5 * x * (1.0 + _erf(x * 0.7071067811865476))


def _layer_norm(x, gamma, beta):
    mu = jnp.mean(x, axis=-1, keepdims=True)
    var = jnp.mean((x - mu) ** 2, axis=-1, keepdims=True)
    return (x - mu) * jax.lax.rsqrt(var + LN_EPS) * gamma + beta


# ----------------------- fused encoder + output-head kernel ------------------------
def fused_rt_bert_kernel(x_ref,        # (ROWS, HIDDEN)               f32   input encoding
                         w_qkv_ref,    # (NLAYERS, HIDDEN, 3H)        bf16
                         w_ao_ref,     # (NLAYERS, HIDDEN, H)         bf16  attn output dense
                         w_fi_ref,     # (NLAYERS, HIDDEN, FFN)       bf16  intermediate dense
                         w_fo_ref,     # (NLAYERS, FFN, HIDDEN)       bf16  output dense
                         b_qkv_ref,    # (NLAYERS, 1, 3H)             f32   fused q/k/v bias row
                         vec_ref,      # (NLAYERS, 6, HIDDEN)         f32   bo,g1,b1,bo2,g2,b2
                         b_fi_ref,     # (NLAYERS, 1, FFN)            f32   intermediate bias
                         rep_ref,      # (REP, ROWS)                  bf16  replication mat (scale folded)
                         hmask_ref,    # (REP, HIDDEN)                bf16  per-replica head lane mask
                         smat_ref,     # (ROWS, REP)                  bf16  head-sum matrix
                         bbias_ref,    # (REP, ROWS)                  f32   cross-batch softmax bias
                         head_ref,     # (3, HIDDEN)                  f32   w_attn / w_out / [prelu,b_out]
                         out_ref):     # (BATCH, 1)                   f32
    # constants (loaded once, bf16 to keep vreg pressure low across the unrolled layers)
    rep = rep_ref[...]        # (128, 16)
    hmask = hmask_ref[...]    # (128, 128)
    smat = smat_ref[...]      # (16, 128)
    bbias = bbias_ref[...]    # (128, 16)

    x0 = x_ref[...]           # (16,128) f32, kept for the 0.2*x residual
    h = x0

    # --------------------------- NLAYERS x BertLayer -------------------------------
    for l in range(NLAYERS):                          # static unroll (NLAYERS=4)
        vec = vec_ref[l]                              # (6,128) f32
        bo, g1, b1 = vec[0:1], vec[1:2], vec[2:3]
        bo2, g2, b2 = vec[3:4], vec[4:5], vec[5:6]

        # fused QKV projection: one (16,128)@(128,384) bf16 matmul, f32 acc, fused bias row
        qkv = jnp.dot(h.astype(jnp.bfloat16), w_qkv_ref[l],
                      preferred_element_type=jnp.float32) + b_qkv_ref[l]       # (16,384)
        q = qkv[:, 0:HIDDEN]
        k = qkv[:, HIDDEN:2 * HIDDEN].astype(jnp.bfloat16)
        v = qkv[:, 2 * HIDDEN:3 * HIDDEN].astype(jnp.bfloat16)

        # All heads / batches at once: head-replicated, pre-scaled, head-masked Q rows.
        # rep already carries the 1/sqrt(HEAD_DIM) factor.
        qrep = (jnp.dot(rep, q.astype(jnp.bfloat16),
                        preferred_element_type=jnp.float32)
                .astype(jnp.bfloat16) * hmask)                                  # (128,128) bf16

        # scores[b*64+h*8+i, b'*8+j] = <Q_bhi, K_b'hj> / sqrt(d); cross-batch masked via bbias
        scores = jax.lax.dot_general(qrep, k, (((1,), (1,)), ((), ())),
                                     preferred_element_type=jnp.float32) + bbias  # (128,16)
        scores = scores - jnp.max(scores, axis=-1, keepdims=True)
        p = jnp.exp(scores)
        p = p * pl.reciprocal(jnp.sum(p, axis=-1, keepdims=True), approx=True)

        # context: P is block-diagonal in batch, so one (128,16)@(16,128) bf16 matmul;
        # head reduction collapses to a single static (16,128)@(128,128) sum matmul.
        ctx_rep = (jnp.dot(p.astype(jnp.bfloat16), v,
                           preferred_element_type=jnp.float32)
                   .astype(jnp.bfloat16) * hmask)                               # (128,128) bf16
        ctx = jnp.dot(smat, ctx_rep, preferred_element_type=jnp.float32)        # (16,128) f32

        # BertSelfOutput: dense + residual + LayerNorm
        attn = jnp.dot(ctx.astype(jnp.bfloat16), w_ao_ref[l],
                       preferred_element_type=jnp.float32) + bo
        h1 = _layer_norm(attn + h, g1, b1)

        # BertIntermediate (GELU) + BertOutput: residual + LayerNorm
        inter = _gelu(jnp.dot(h1.astype(jnp.bfloat16), w_fi_ref[l],
                              preferred_element_type=jnp.float32) + b_fi_ref[l])  # (16,512)
        ffn = jnp.dot(inter.astype(jnp.bfloat16), w_fo_ref[l],
                      preferred_element_type=jnp.float32) + bo2
        h = _layer_norm(ffn + h1, g2, b2)

    # -------- output head: residual + SeqAttentionSum + PReLU + Linear(H,1) --------
    hp = head_ref[...]                               # (3,128)
    w_attn_row = hp[0:1, :]                          # SeqAttentionSum Linear(H,1,no bias) weight row
    w_out_row = hp[1:2, :]                           # final Linear(H,1) weight row
    slope = hp[2:3, 0:1]                             # PReLU slope (1,1)
    b_out = hp[2:3, 1:2]                             # final bias   (1,1)

    z = h + 0.2 * x0                                 # (16,128)
    z3 = z.reshape(BATCH, SEQ, HIDDEN)               # free sublane-split reshape
    # attention logits via VPU lane-reduce (no width-1 MXU matmul), softmax over sequence
    logits = jnp.sum(z3 * w_attn_row, axis=-1, keepdims=True)                   # (2,8,1)
    logits = logits - jnp.max(logits, axis=1, keepdims=True)
    e = jnp.exp(logits)
    a = e * pl.reciprocal(jnp.sum(e, axis=1, keepdims=True), approx=True)
    pooled = jnp.sum(a * z3, axis=1)                                            # (2,128)
    y = jnp.where(pooled >= 0, pooled, slope * pooled)                          # PReLU
    out = jnp.sum(y * w_out_row, axis=-1, keepdims=True) + b_out                # (2,1)
    out_ref[...] = out


def fused_forward_core(x_flat, params):
    full = lambda shape: pl.BlockSpec(shape, lambda i, s=shape: (0,) * len(s))
    return pl.pallas_call(
        fused_rt_bert_kernel,
        out_shape=jax.ShapeDtypeStruct((BATCH, 1), jnp.float32),
        grid_spec=pltpu.PrefetchScalarGridSpec(
            num_scalar_prefetch=0,
            grid=(1,),                                # single step: everything VMEM-resident
            in_specs=[
                full((ROWS, HIDDEN)),
                full((NLAYERS, HIDDEN, 3 * HIDDEN)),
                full((NLAYERS, HIDDEN, HIDDEN)),
                full((NLAYERS, HIDDEN, FFN)),
                full((NLAYERS, FFN, HIDDEN)),
                full((NLAYERS, 1, 3 * HIDDEN)),
                full((NLAYERS, 6, HIDDEN)),
                full((NLAYERS, 1, FFN)),
                full((REP, ROWS)),
                full((REP, HIDDEN)),
                full((ROWS, REP)),
                full((REP, ROWS)),
                full((3, HIDDEN)),
            ],
            out_specs=full((BATCH, 1)),
        ),
        # ~1.5 MiB bf16 weights + ~50 KiB constants + small activations: fits every
        # generation's scoped VMEM default with large headroom.
        compiler_params=pltpu.CompilerParams(dimension_semantics=("arbitrary",)),
    )(x_flat, params["w_qkv"], params["w_ao"], params["w_fi"], params["w_fo"],
      params["b_qkv"], params["vec_h"], params["b_fi"],
      params["rep_mat"], params["head_mask"], params["sum_mat"], params["batch_bias"],
      params["head_pack"])


# --------------------------------- JAX glue ----------------------------------------
def positional_encoding(seq_len, d_model):
    # peptdeep PositionalEncoding: interleaved sin/cos, batch_first buffer
    position = np.arange(seq_len)[:, None].astype(np.float32)
    div_term = np.exp(np.arange(0, d_model, 2).astype(np.float32)
                      * (-math.log(10000.0) / d_model))
    pe = np.zeros((seq_len, d_model), np.float32)
    pe[:, 0::2] = np.sin(position * div_term)
    pe[:, 1::2] = np.cos(position * div_term)
    return jnp.asarray(pe)


def input_encoding(aa_indices, mod_x, p):
    # TODO(synk): AATransformerEncoding (embedding gather + mod-feature linear +
    # positional encoding) kept in plain JAX: data-dependent gather, negligible compute.
    mod_lin = jnp.einsum('bsf,of->bso', mod_x[:, :, MOD_FIX_K:], p["w_mod"])
    mod_feat = jnp.concatenate([mod_x[:, :, :MOD_FIX_K], mod_lin], axis=-1)   # (B,S,8)
    aa = p["aa_emb"][aa_indices]                                              # (B,S,H-8)
    x = jnp.concatenate([aa, mod_feat], axis=-1)                              # (B,S,H)
    return x + p["pos_enc"][None, :aa_indices.shape[1], :]


def make_attention_constants():
    """Static replication / mask / sum matrices for the head-replication attention trick."""
    scale = 1.0 / math.sqrt(HEAD_DIM)
    r = np.arange(REP)
    b_of_r = r // (NHEADS * SEQ)                       # batch of replicated row
    h_of_r = (r // SEQ) % NHEADS                       # head of replicated row
    src = b_of_r * SEQ + (r % SEQ)                     # source row in the (16,H) slab

    rep = np.zeros((REP, ROWS), np.float32)            # qrep = (rep @ q); scale folded in
    rep[np.arange(REP), src] = scale

    lanes = np.arange(HIDDEN)
    hmask = (h_of_r[:, None] == (lanes[None, :] // HEAD_DIM)).astype(np.float32)  # (128,128)

    smat = np.zeros((ROWS, REP), np.float32)           # ctx = smat @ (ctx_rep * hmask)
    smat[src, np.arange(REP)] = 1.0

    cb = np.arange(ROWS)
    bbias = np.where(b_of_r[:, None] == (cb[None, :] // SEQ),
                     np.float32(0.0), np.float32(-1e9))                            # (128,16)

    return (jnp.asarray(rep, jnp.bfloat16), jnp.asarray(hmask, jnp.bfloat16),
            jnp.asarray(smat, jnp.bfloat16), jnp.asarray(bbias, jnp.float32))


def init_params(key):
    ks = jax.random.split(key, 8)

    def nrm(k, shape, scale=0.02):
        return scale * jax.random.normal(k, shape, jnp.float32)

    params = {}
    aa_emb = nrm(ks[0], (AA_VOCAB, HIDDEN - MOD_HIDDEN))
    params["aa_emb"] = aa_emb.at[0].set(0.0)                      # padding_idx = 0
    params["w_mod"] = nrm(ks[1], (MOD_HIDDEN - MOD_FIX_K, MOD_FEATS - MOD_FIX_K))
    params["pos_enc"] = positional_encoding(SEQ, HIDDEN)

    w_qkv, w_ao, w_fi, w_fo, b_qkv, vec_h, b_fi = [], [], [], [], [], [], []
    layer_keys = jax.random.split(ks[2], NLAYERS)
    for l in range(NLAYERS):
        k0, k1, k2, k3, k4, k5, k6 = jax.random.split(layer_keys[l], 7)
        wq = nrm(k0, (HIDDEN, HIDDEN))                # stored (in, out)
        wk = nrm(k1, (HIDDEN, HIDDEN))
        wv = nrm(k2, (HIDDEN, HIDDEN))
        w_qkv.append(jnp.concatenate([wq, wk, wv], axis=1))       # (H, 3H)
        w_ao.append(nrm(k3, (HIDDEN, HIDDEN)))
        w_fi.append(nrm(k4, (HIDDEN, FFN)))
        w_fo.append(nrm(k5, (FFN, HIDDEN)))
        bk = jax.random.split(k6, 6)
        # fused q/k/v bias row (1, 3H)
        b_qkv.append(nrm(bk[0], (1, 3 * HIDDEN), 0.01))
        # packed per-layer vectors: bo, g1, b1, bo2, g2, b2
        vec_h.append(jnp.stack([
            nrm(bk[1], (HIDDEN,), 0.01), jnp.ones(HIDDEN, jnp.float32),
            jnp.zeros(HIDDEN, jnp.float32),
            nrm(bk[2], (HIDDEN,), 0.01), jnp.ones(HIDDEN, jnp.float32),
            jnp.zeros(HIDDEN, jnp.float32),
        ], axis=0))
        b_fi.append(nrm(bk[3], (1, FFN), 0.01))

    params["w_qkv"] = jnp.stack(w_qkv).astype(jnp.bfloat16)       # bf16 weights, f32 acc
    params["w_ao"] = jnp.stack(w_ao).astype(jnp.bfloat16)
    params["w_fi"] = jnp.stack(w_fi).astype(jnp.bfloat16)
    params["w_fo"] = jnp.stack(w_fo).astype(jnp.bfloat16)
    params["b_qkv"] = jnp.stack(b_qkv)
    params["vec_h"] = jnp.stack(vec_h)
    params["b_fi"] = jnp.stack(b_fi)

    # output head packing (row0: SeqAttentionSum weight, row1: final Linear weight,
    # row2: [prelu slope, final bias, 0...]). Keep consistent with any checkpoint loader.
    w_attn = nrm(ks[3], (HIDDEN,))
    w_out = nrm(ks[4], (HIDDEN,))
    b_out = 0.01 * jax.random.normal(ks[5], ())
    misc = jnp.zeros((HIDDEN,), jnp.float32).at[0].set(0.25).at[1].set(b_out)
    params["head_pack"] = jnp.stack([w_attn, w_out, misc], axis=0)

    rep_mat, head_mask, sum_mat, batch_bias = make_attention_constants()
    params["rep_mat"] = rep_mat
    params["head_mask"] = head_mask
    params["sum_mat"] = sum_mat
    params["batch_bias"] = batch_bias
    return params


def model_rt_bert_forward(aa_indices, mod_x, params):
    # dropout layers are identity at inference
    x_enc = input_encoding(aa_indices, mod_x, params)             # (B,S,H)
    x_flat = x_enc.reshape(ROWS, HIDDEN)
    out = fused_forward_core(x_flat, params)                      # (B,1)
    return out[:, 0]                                              # .squeeze(1) -> (B,)


if __name__ == "__main__":
    key = jax.random.PRNGKey(0)
    k_aa, k_mod, k_par = jax.random.split(key, 3)
    aa_indices = jax.random.randint(k_aa, (BATCH, SEQ), 1, AA_VOCAB)          # int aa ids
    mod_x = 0.1 * jax.random.normal(k_mod, (BATCH, SEQ, MOD_FEATS), jnp.float32)
    params = init_params(k_par)

    fwd = jax.jit(model_rt_bert_forward)
    out = fwd(aa_indices, mod_x, params)
    out = jax.block_until_ready(out)
    assert out.shape == (BATCH,) and out.dtype == jnp.float32
    assert bool(jnp.all(jnp.isfinite(out)))
    print("KERNEL_OK")
</pallas_src>

<mosaic_0001>
module attributes {stable_mosaic.version = 11 : i64} {
  func.func @fused_rt_bert_kernel(%arg0: i32, %arg1: memref<16x128xf32, #tpu.memory_space<vmem>>, %arg2: memref<4x128x384xbf16, #tpu.memory_space<vmem>>, %arg3: memref<4x128x128xbf16, #tpu.memory_space<vmem>>, %arg4: memref<4x128x512xbf16, #tpu.memory_space<vmem>>, %arg5: memref<4x512x128xbf16, #tpu.memory_space<vmem>>, %arg6: memref<4x1x384xf32, #tpu.memory_space<vmem>>, %arg7: memref<4x6x128xf32, #tpu.memory_space<vmem>>, %arg8: memref<4x1x512xf32, #tpu.memory_space<vmem>>, %arg9: memref<128x16xbf16, #tpu.memory_space<vmem>>, %arg10: memref<128x128xbf16, #tpu.memory_space<vmem>>, %arg11: memref<16x128xbf16, #tpu.memory_space<vmem>>, %arg12: memref<128x16xf32, #tpu.memory_space<vmem>>, %arg13: memref<3x128xf32, #tpu.memory_space<vmem>>, %arg14: memref<2x1xf32, #tpu.memory_space<vmem>>) attributes {dimension_semantics = [#tpu.dimension_semantics<arbitrary>], iteration_bounds = array<i64: 1>, scalar_prefetch = 0 : i64, scratch_operands = 0 : i64, tpu.core_type = #tpu.core_type<tc>, window_params = [{pipeline_mode = #tpu.pipeline_mode<synchronous>, transform_indices = @transform_0, window_bounds = array<i64: 16, 128>}, {pipeline_mode = #tpu.pipeline_mode<synchronous>, transform_indices = @transform_1, window_bounds = array<i64: 4, 128, 384>}, {pipeline_mode = #tpu.pipeline_mode<synchronous>, transform_indices = @transform_2, window_bounds = array<i64: 4, 128, 128>}, {pipeline_mode = #tpu.pipeline_mode<synchronous>, transform_indices = @transform_3, window_bounds = array<i64: 4, 128, 512>}, {pipeline_mode = #tpu.pipeline_mode<synchronous>, transform_indices = @transform_4, window_bounds = array<i64: 4, 512, 128>}, {pipeline_mode = #tpu.pipeline_mode<synchronous>, transform_indices = @transform_5, window_bounds = array<i64: 4, 1, 384>}, {pipeline_mode = #tpu.pipeline_mode<synchronous>, transform_indices = @transform_6, window_bounds = array<i64: 4, 6, 128>}, {pipeline_mode = #tpu.pipeline_mode<synchronous>, transform_indices = @transform_7, window_bounds = array<i64: 4, 1, 512>}, {pipeline_mode = #tpu.pipeline_mode<synchronous>, transform_indices = @transform_8, window_bounds = array<i64: 128, 16>}, {pipeline_mode = #tpu.pipeline_mode<synchronous>, transform_indices = @transform_9, window_bounds = array<i64: 128, 128>}, {pipeline_mode = #tpu.pipeline_mode<synchronous>, transform_indices = @transform_10, window_bounds = array<i64: 16, 128>}, {pipeline_mode = #tpu.pipeline_mode<synchronous>, transform_indices = @transform_11, window_bounds = array<i64: 128, 16>}, {pipeline_mode = #tpu.pipeline_mode<synchronous>, transform_indices = @transform_12, window_bounds = array<i64: 3, 128>}, {pipeline_mode = #tpu.pipeline_mode<synchronous>, transform_indices = @transform_13, window_bounds = array<i64: 2, 1>}]} {
    %c0 = arith.constant 0 : index
    %c0_0 = arith.constant 0 : index
    %0 = vector.load %arg9[%c0, %c0_0] : memref<128x16xbf16, #tpu.memory_space<vmem>>, vector<128x16xbf16>
    %c0_1 = arith.constant 0 : index
    %c0_2 = arith.constant 0 : index
    %1 = vector.load %arg10[%c0_1, %c0_2] : memref<128x128xbf16, #tpu.memory_space<vmem>>, vector<128x128xbf16>
    %c0_3 = arith.constant 0 : index
    %c0_4 = arith.constant 0 : index
    %2 = vector.load %arg11[%c0_3, %c0_4] : memref<16x128xbf16, #tpu.memory_space<vmem>>, vector<16x128xbf16>
    %c0_5 = arith.constant 0 : index
    %c0_6 = arith.constant 0 : index
    %3 = vector.load %arg12[%c0_5, %c0_6] : memref<128x16xf32, #tpu.memory_space<vmem>>, vector<128x16xf32>
    %c0_7 = arith.constant 0 : index
    %c0_8 = arith.constant 0 : index
    %4 = vector.load %arg1[%c0_7, %c0_8] : memref<16x128xf32, #tpu.memory_space<vmem>>, vector<16x128xf32>
    %c0_9 = arith.constant 0 : index
    %c0_10 = arith.constant 0 : index
    %c0_11 = arith.constant 0 : index
    %5 = vector.load %arg7[%c0_9, %c0_10, %c0_11] : memref<4x6x128xf32, #tpu.memory_space<vmem>>, vector<1x6x128xf32>
    %6 = vector.shape_cast %5 : vector<1x6x128xf32> to vector<6x128xf32>
    %7 = vector.extract_strided_slice %6 {offsets = [0, 0], sizes = [1, 128], strides = [1, 1]} : vector<6x128xf32> to vector<1x128xf32>
    %8 = vector.extract_strided_slice %6 {offsets = [1, 0], sizes = [1, 128], strides = [1, 1]} : vector<6x128xf32> to vector<1x128xf32>
    %9 = vector.extract_strided_slice %6 {offsets = [2, 0], sizes = [1, 128], strides = [1, 1]} : vector<6x128xf32> to vector<1x128xf32>
    %10 = vector.extract_strided_slice %6 {offsets = [3, 0], sizes = [1, 128], strides = [1, 1]} : vector<6x128xf32> to vector<1x128xf32>
    %11 = vector.extract_strided_slice %6 {offsets = [4, 0], sizes = [1, 128], strides = [1, 1]} : vector<6x128xf32> to vector<1x128xf32>
    %12 = vector.extract_strided_slice %6 {offsets = [5, 0], sizes = [1, 128], strides = [1, 1]} : vector<6x128xf32> to vector<1x128xf32>
    %13 = arith.truncf %4 : vector<16x128xf32> to vector<16x128xbf16>
    %c0_12 = arith.constant 0 : index
    %c0_13 = arith.constant 0 : index
    %c0_14 = arith.constant 0 : index
    %14 = vector.load %arg2[%c0_12, %c0_13, %c0_14] : memref<4x128x384xbf16, #tpu.memory_space<vmem>>, vector<1x128x384xbf16>
    %15 = vector.shape_cast %14 : vector<1x128x384xbf16> to vector<128x384xbf16>
    %cst = arith.constant dense<0.000000e+00> : vector<16x384xf32>
    %16 = tpu.matmul %13, %15, %cst {dimension_numbers = #tpu.dot_dimension_numbers<[1], [0], [0], [1], [0, 0, 1, 1], [], []>} : vector<16x128xbf16>, vector<128x384xbf16>, vector<16x384xf32> -> vector<16x384xf32>
    %c0_15 = arith.constant 0 : index
    %c0_16 = arith.constant 0 : index
    %c0_17 = arith.constant 0 : index
    %17 = vector.load %arg6[%c0_15, %c0_16, %c0_17] : memref<4x1x384xf32, #tpu.memory_space<vmem>>, vector<1x1x384xf32>
    %18 = vector.shape_cast %17 : vector<1x1x384xf32> to vector<1x384xf32>
    %19 = vector.broadcast %18 : vector<1x384xf32> to vector<16x384xf32>
    %20 = arith.addf %16, %19 : vector<16x384xf32>
    %21 = vector.extract_strided_slice %20 {offsets = [0, 0], sizes = [16, 128], strides = [1, 1]} : vector<16x384xf32> to vector<16x128xf32>
    %22 = vector.extract_strided_slice %20 {offsets = [0, 128], sizes = [16, 128], strides = [1, 1]} : vector<16x384xf32> to vector<16x128xf32>
    %23 = arith.truncf %22 : vector<16x128xf32> to vector<16x128xbf16>
    %24 = vector.extract_strided_slice %20 {offsets = [0, 256], sizes = [16, 128], strides = [1, 1]} : vector<16x384xf32> to vector<16x128xf32>
    %25 = arith.truncf %24 : vector<16x128xf32> to vector<16x128xbf16>
    %26 = arith.truncf %21 : vector<16x128xf32> to vector<16x128xbf16>
    %cst_18 = arith.constant dense<0.000000e+00> : vector<128x128xf32>
    %27 = tpu.matmul %0, %26, %cst_18 {dimension_numbers = #tpu.dot_dimension_numbers<[1], [0], [0], [1], [0, 0, 1, 1], [], []>} : vector<128x16xbf16>, vector<16x128xbf16>, vector<128x128xf32> -> vector<128x128xf32>
    %28 = arith.truncf %27 : vector<128x128xf32> to vector<128x128xbf16>
    %29 = arith.mulf %28, %1 : vector<128x128xbf16>
    %cst_19 = arith.constant dense<0.000000e+00> : vector<128x16xf32>
    %30 = tpu.matmul %29, %23, %cst_19 {dimension_numbers = #tpu.dot_dimension_numbers<[1], [1], [0], [0], [0, 0, 1, 0], [], []>} : vector<128x128xbf16>, vector<16x128xbf16>, vector<128x16xf32> -> vector<128x16xf32>
    %31 = arith.addf %30, %3 : vector<128x16xf32>
    %cst_20 = arith.constant dense<0xFF800000> : vector<128xf32>
    %32 = vector.multi_reduction <maximumf>, %31, %cst_20 [1] : vector<128x16xf32> to vector<128xf32>
    %33 = vector.shape_cast %32 : vector<128xf32> to vector<128x1xf32>
    %34 = vector.broadcast %33 : vector<128x1xf32> to vector<128x16xf32>
    %35 = arith.subf %31, %34 : vector<128x16xf32>
    %36 = math.exp %35 : vector<128x16xf32>
    %cst_21 = arith.constant dense<0.000000e+00> : vector<128xf32>
    %37 = vector.multi_reduction <add>, %36, %cst_21 [1] : vector<128x16xf32> to vector<128xf32>
    %38 = vector.shape_cast %37 : vector<128xf32> to vector<128x1xf32>
    %39 = tpu.reciprocal %38 {approx = true} : vector<128x1xf32> -> vector<128x1xf32>
    %40 = vector.broadcast %39 : vector<128x1xf32> to vector<128x16xf32>
    %41 = arith.mulf %36, %40 : vector<128x16xf32>
    %42 = arith.truncf %41 : vector<128x16xf32> to vector<128x16xbf16>
    %cst_22 = arith.constant dense<0.000000e+00> : vector<128x128xf32>
    %43 = tpu.matmul %42, %25, %cst_22 {dimension_numbers = #tpu.dot_dimension_numbers<[1], [0], [0], [1], [0, 0, 1, 1], [], []>} : vector<128x16xbf16>, vector<16x128xbf16>, vector<128x128xf32> -> vector<128x128xf32>
    %44 = arith.truncf %43 : vector<128x128xf32> to vector<128x128xbf16>
    %45 = arith.mulf %44, %1 : vector<128x128xbf16>
    %cst_23 = arith.constant dense<0.000000e+00> : vector<16x128xf32>
    %46 = tpu.matmul %2, %45, %cst_23 {dimension_numbers = #tpu.dot_dimension_numbers<[1], [0], [0], [1], [0, 0, 1, 1], [], []>} : vector<16x128xbf16>, vector<128x128xbf16>, vector<16x128xf32> -> vector<16x128xf32>
    %47 = arith.truncf %46 : vector<16x128xf32> to vector<16x128xbf16>
    %c0_24 = arith.constant 0 : index
    %c0_25 = arith.constant 0 : index
    %c0_26 = arith.constant 0 : index
    %48 = vector.load %arg3[%c0_24, %c0_25, %c0_26] : memref<4x128x128xbf16, #tpu.memory_space<vmem>>, vector<1x128x128xbf16>
    %49 = vector.shape_cast %48 : vector<1x128x128xbf16> to vector<128x128xbf16>
    %cst_27 = arith.constant dense<0.000000e+00> : vector<16x128xf32>
    %50 = tpu.matmul %47, %49, %cst_27 {dimension_numbers = #tpu.dot_dimension_numbers<[1], [0], [0], [1], [0, 0, 1, 1], [], []>} : vector<16x128xbf16>, vector<128x128xbf16>, vector<16x128xf32> -> vector<16x128xf32>
    %51 = vector.broadcast %7 : vector<1x128xf32> to vector<16x128xf32>
    %52 = arith.addf %50, %51 : vector<16x128xf32>
    %53 = arith.addf %52, %4 : vector<16x128xf32>
    %cst_28 = arith.constant dense<0.000000e+00> : vector<16xf32>
    %54 = vector.multi_reduction <add>, %53, %cst_28 [1] : vector<16x128xf32> to vector<16xf32>
    %55 = vector.shape_cast %54 : vector<16xf32> to vector<16x1xf32>
    %cst_29 = arith.constant 1.280000e+02 : f32
    %56 = vector.broadcast %cst_29 : f32 to vector<16x1xf32>
    %57 = arith.divf %55, %56 : vector<16x1xf32>
    %58 = vector.broadcast %57 : vector<16x1xf32> to vector<16x128xf32>
    %59 = arith.subf %53, %58 : vector<16x128xf32>
    %60 = arith.mulf %59, %59 : vector<16x128xf32>
    %cst_30 = arith.constant dense<0.000000e+00> : vector<16xf32>
    %61 = vector.multi_reduction <add>, %60, %cst_30 [1] : vector<16x128xf32> to vector<16xf32>
    %62 = vector.shape_cast %61 : vector<16xf32> to vector<16x1xf32>
    %cst_31 = arith.constant 1.280000e+02 : f32
    %63 = vector.broadcast %cst_31 : f32 to vector<16x1xf32>
    %64 = arith.divf %62, %63 : vector<16x1xf32>
    %65 = vector.broadcast %57 : vector<16x1xf32> to vector<16x128xf32>
    %66 = arith.subf %53, %65 : vector<16x128xf32>
    %cst_32 = arith.constant 9.99999996E-13 : f32
    %67 = vector.broadcast %cst_32 : f32 to vector<16x1xf32>
    %68 = arith.addf %64, %67 : vector<16x1xf32>
    %69 = math.rsqrt %68 : vector<16x1xf32>
    %70 = vector.broadcast %69 : vector<16x1xf32> to vector<16x128xf32>
    %71 = arith.mulf %66, %70 : vector<16x128xf32>
    %72 = vector.broadcast %8 : vector<1x128xf32> to vector<16x128xf32>
    %73 = arith.mulf %71, %72 : vector<16x128xf32>
    %74 = vector.broadcast %9 : vector<1x128xf32> to vector<16x128xf32>
    %75 = arith.addf %73, %74 : vector<16x128xf32>
    %76 = arith.truncf %75 : vector<16x128xf32> to vector<16x128xbf16>
    %c0_33 = arith.constant 0 : index
    %c0_34 = arith.constant 0 : index
    %c0_35 = arith.constant 0 : index
    %77 = vector.load %arg4[%c0_33, %c0_34, %c0_35] : memref<4x128x512xbf16, #tpu.memory_space<vmem>>, vector<1x128x512xbf16>
    %78 = vector.shape_cast %77 : vector<1x128x512xbf16> to vector<128x512xbf16>
    %cst_36 = arith.constant dense<0.000000e+00> : vector<16x512xf32>
    %79 = tpu.matmul %76, %78, %cst_36 {dimension_numbers = #tpu.dot_dimension_numbers<[1], [0], [0], [1], [0, 0, 1, 1], [], []>} : vector<16x128xbf16>, vector<128x512xbf16>, vector<16x512xf32> -> vector<16x512xf32>
    %c0_37 = arith.constant 0 : index
    %c0_38 = arith.constant 0 : index
    %c0_39 = arith.constant 0 : index
    %80 = vector.load %arg8[%c0_37, %c0_38, %c0_39] : memref<4x1x512xf32, #tpu.memory_space<vmem>>, vector<1x1x512xf32>
    %81 = vector.shape_cast %80 : vector<1x1x512xf32> to vector<1x512xf32>
    %82 = vector.broadcast %81 : vector<1x512xf32> to vector<16x512xf32>
    %83 = arith.addf %79, %82 : vector<16x512xf32>
    %cst_40 = arith.constant 5.000000e-01 : f32
    %84 = vector.broadcast %cst_40 : f32 to vector<16x512xf32>
    %85 = arith.mulf %84, %83 : vector<16x512xf32>
    %cst_41 = arith.constant 0.707106769 : f32
    %86 = vector.broadcast %cst_41 : f32 to vector<16x512xf32>
    %87 = arith.mulf %83, %86 : vector<16x512xf32>
    %88 = math.absf %87 : vector<16x512xf32>
    %cst_42 = arith.constant 0.327591091 : f32
    %89 = vector.broadcast %cst_42 : f32 to vector<16x512xf32>
    %90 = arith.mulf %89, %88 : vector<16x512xf32>
    %cst_43 = arith.constant 1.000000e+00 : f32
    %91 = vector.broadcast %cst_43 : f32 to vector<16x512xf32>
    %92 = arith.addf %91, %90 : vector<16x512xf32>
    %cst_44 = arith.constant 1.000000e+00 : f32
    %93 = vector.broadcast %cst_44 : f32 to vector<16x512xf32>
    %94 = arith.divf %93, %92 : vector<16x512xf32>
    %cst_45 = arith.constant 1.06140542 : f32
    %95 = vector.broadcast %cst_45 : f32 to vector<16x512xf32>
    %96 = arith.mulf %95, %94 : vector<16x512xf32>
    %cst_46 = arith.constant -1.45315206 : f32
    %97 = vector.broadcast %cst_46 : f32 to vector<16x512xf32>
    %98 = arith.addf %96, %97 : vector<16x512xf32>
    %99 = arith.mulf %98, %94 : vector<16x512xf32>
    %cst_47 = arith.constant 1.42141378 : f32
    %100 = vector.broadcast %cst_47 : f32 to vector<16x512xf32>
    %101 = arith.addf %99, %100 : vector<16x512xf32>
    %102 = arith.mulf %101, %94 : vector<16x512xf32>
    %cst_48 = arith.constant -0.284496725 : f32
    %103 = vector.broadcast %cst_48 : f32 to vector<16x512xf32>
    %104 = arith.addf %102, %103 : vector<16x512xf32>
    %105 = arith.mulf %104, %94 : vector<16x512xf32>
    %cst_49 = arith.constant 0.254829586 : f32
    %106 = vector.broadcast %cst_49 : f32 to vector<16x512xf32>
    %107 = arith.addf %105, %106 : vector<16x512xf32>
    %108 = arith.mulf %107, %94 : vector<16x512xf32>
    %cst_50 = arith.constant 0.000000e+00 : f32
    %109 = vector.broadcast %cst_50 : f32 to vector<16x512xf32>
    %110 = arith.subf %109, %88 : vector<16x512xf32>
    %111 = arith.mulf %110, %88 : vector<16x512xf32>
    %112 = math.exp %111 : vector<16x512xf32>
    %113 = arith.mulf %108, %112 : vector<16x512xf32>
    %cst_51 = arith.constant 1.000000e+00 : f32
    %114 = vector.broadcast %cst_51 : f32 to vector<16x512xf32>
    %115 = arith.subf %114, %113 : vector<16x512xf32>
    %cst_52 = arith.constant 0.000000e+00 : f32
    %116 = vector.broadcast %cst_52 : f32 to vector<16x512xf32>
    %117 = arith.cmpf oge, %87, %116 : vector<16x512xf32>
    %cst_53 = arith.constant 0.000000e+00 : f32
    %118 = vector.broadcast %cst_53 : f32 to vector<16x512xf32>
    %119 = arith.subf %118, %115 : vector<16x512xf32>
    %120 = arith.select %117, %115, %119 : vector<16x512xi1>, vector<16x512xf32>
    %cst_54 = arith.constant 1.000000e+00 : f32
    %121 = vector.broadcast %cst_54 : f32 to vector<16x512xf32>
    %122 = arith.addf %121, %120 : vector<16x512xf32>
    %123 = arith.mulf %85, %122 : vector<16x512xf32>
    %124 = arith.truncf %123 : vector<16x512xf32> to vector<16x512xbf16>
    %c0_55 = arith.constant 0 : index
    %c0_56 = arith.constant 0 : index
    %c0_57 = arith.constant 0 : index
    %125 = vector.load %arg5[%c0_55, %c0_56, %c0_57] : memref<4x512x128xbf16, #tpu.memory_space<vmem>>, vector<1x512x128xbf16>
    %126 = vector.shape_cast %125 : vector<1x512x128xbf16> to vector<512x128xbf16>
    %cst_58 = arith.constant dense<0.000000e+00> : vector<16x128xf32>
    %127 = tpu.matmul %124, %126, %cst_58 {dimension_numbers = #tpu.dot_dimension_numbers<[1], [0], [0], [1], [0, 0, 1, 1], [], []>} : vector<16x512xbf16>, vector<512x128xbf16>, vector<16x128xf32> -> vector<16x128xf32>
    %128 = vector.broadcast %10 : vector<1x128xf32> to vector<16x128xf32>
    %129 = arith.addf %127, %128 : vector<16x128xf32>
    %130 = arith.addf %129, %75 : vector<16x128xf32>
    %cst_59 = arith.constant dense<0.000000e+00> : vector<16xf32>
    %131 = vector.multi_reduction <add>, %130, %cst_59 [1] : vector<16x128xf32> to vector<16xf32>
    %132 = vector.shape_cast %131 : vector<16xf32> to vector<16x1xf32>
    %cst_60 = arith.constant 1.280000e+02 : f32
    %133 = vector.broadcast %cst_60 : f32 to vector<16x1xf32>
    %134 = arith.divf %132, %133 : vector<16x1xf32>
    %135 = vector.broadcast %134 : vector<16x1xf32> to vector<16x128xf32>
    %136 = arith.subf %130, %135 : vector<16x128xf32>
    %137 = arith.mulf %136, %136 : vector<16x128xf32>
    %cst_61 = arith.constant dense<0.000000e+00> : vector<16xf32>
    %138 = vector.multi_reduction <add>, %137, %cst_61 [1] : vector<16x128xf32> to vector<16xf32>
    %139 = vector.shape_cast %138 : vector<16xf32> to vector<16x1xf32>
    %cst_62 = arith.constant 1.280000e+02 : f32
    %140 = vector.broadcast %cst_62 : f32 to vector<16x1xf32>
    %141 = arith.divf %139, %140 : vector<16x1xf32>
    %142 = vector.broadcast %134 : vector<16x1xf32> to vector<16x128xf32>
    %143 = arith.subf %130, %142 : vector<16x128xf32>
    %cst_63 = arith.constant 9.99999996E-13 : f32
    %144 = vector.broadcast %cst_63 : f32 to vector<16x1xf32>
    %145 = arith.addf %141, %144 : vector<16x1xf32>
    %146 = math.rsqrt %145 : vector<16x1xf32>
    %147 = vector.broadcast %146 : vector<16x1xf32> to vector<16x128xf32>
    %148 = arith.mulf %143, %147 : vector<16x128xf32>
    %149 = vector.broadcast %11 : vector<1x128xf32> to vector<16x128xf32>
    %150 = arith.mulf %148, %149 : vector<16x128xf32>
    %151 = vector.broadcast %12 : vector<1x128xf32> to vector<16x128xf32>
    %152 = arith.addf %150, %151 : vector<16x128xf32>
    %c1 = arith.constant 1 : index
    %c0_64 = arith.constant 0 : index
    %c0_65 = arith.constant 0 : index
    %153 = vector.load %arg7[%c1, %c0_64, %c0_65] : memref<4x6x128xf32, #tpu.memory_space<vmem>>, vector<1x6x128xf32>
    %154 = vector.shape_cast %153 : vector<1x6x128xf32> to vector<6x128xf32>
    %155 = vector.extract_strided_slice %154 {offsets = [0, 0], sizes = [1, 128], strides = [1, 1]} : vector<6x128xf32> to vector<1x128xf32>
    %156 = vector.extract_strided_slice %154 {offsets = [1, 0], sizes = [1, 128], strides = [1, 1]} : vector<6x128xf32> to vector<1x128xf32>
    %157 = vector.extract_strided_slice %154 {offsets = [2, 0], sizes = [1, 128], strides = [1, 1]} : vector<6x128xf32> to vector<1x128xf32>
    %158 = vector.extract_strided_slice %154 {offsets = [3, 0], sizes = [1, 128], strides = [1, 1]} : vector<6x128xf32> to vector<1x128xf32>
    %159 = vector.extract_strided_slice %154 {offsets = [4, 0], sizes = [1, 128], strides = [1, 1]} : vector<6x128xf32> to vector<1x128xf32>
    %160 = vector.extract_strided_slice %154 {offsets = [5, 0], sizes = [1, 128], strides = [1, 1]} : vector<6x128xf32> to vector<1x128xf32>
    %161 = arith.truncf %152 : vector<16x128xf32> to vector<16x128xbf16>
    %c1_66 = arith.constant 1 : index
    %c0_67 = arith.constant 0 : index
    %c0_68 = arith.constant 0 : index
    %162 = vector.load %arg2[%c1_66, %c0_67, %c0_68] : memref<4x128x384xbf16, #tpu.memory_space<vmem>>, vector<1x128x384xbf16>
    %163 = vector.shape_cast %162 : vector<1x128x384xbf16> to vector<128x384xbf16>
    %cst_69 = arith.constant dense<0.000000e+00> : vector<16x384xf32>
    %164 = tpu.matmul %161, %163, %cst_69 {dimension_numbers = #tpu.dot_dimension_numbers<[1], [0], [0], [1], [0, 0, 1, 1], [], []>} : vector<16x128xbf16>, vector<128x384xbf16>, vector<16x384xf32> -> vector<16x384xf32>
    %c1_70 = arith.constant 1 : index
    %c0_71 = arith.constant 0 : index
    %c0_72 = arith.constant 0 : index
    %165 = vector.load %arg6[%c1_70, %c0_71, %c0_72] : memref<4x1x384xf32, #tpu.memory_space<vmem>>, vector<1x1x384xf32>
    %166 = vector.shape_cast %165 : vector<1x1x384xf32> to vector<1x384xf32>
    %167 = vector.broadcast %166 : vector<1x384xf32> to vector<16x384xf32>
    %168 = arith.addf %164, %167 : vector<16x384xf32>
    %169 = vector.extract_strided_slice %168 {offsets = [0, 0], sizes = [16, 128], strides = [1, 1]} : vector<16x384xf32> to vector<16x128xf32>
    %170 = vector.extract_strided_slice %168 {offsets = [0, 128], sizes = [16, 128], strides = [1, 1]} : vector<16x384xf32> to vector<16x128xf32>
    %171 = arith.truncf %170 : vector<16x128xf32> to vector<16x128xbf16>
    %172 = vector.extract_strided_slice %168 {offsets = [0, 256], sizes = [16, 128], strides = [1, 1]} : vector<16x384xf32> to vector<16x128xf32>
    %173 = arith.truncf %172 : vector<16x128xf32> to vector<16x128xbf16>
    %174 = arith.truncf %169 : vector<16x128xf32> to vector<16x128xbf16>
    %cst_73 = arith.constant dense<0.000000e+00> : vector<128x128xf32>
    %175 = tpu.matmul %0, %174, %cst_73 {dimension_numbers = #tpu.dot_dimension_numbers<[1], [0], [0], [1], [0, 0, 1, 1], [], []>} : vector<128x16xbf16>, vector<16x128xbf16>, vector<128x128xf32> -> vector<128x128xf32>
    %176 = arith.truncf %175 : vector<128x128xf32> to vector<128x128xbf16>
    %177 = arith.mulf %176, %1 : vector<128x128xbf16>
    %cst_74 = arith.constant dense<0.000000e+00> : vector<128x16xf32>
    %178 = tpu.matmul %177, %171, %cst_74 {dimension_numbers = #tpu.dot_dimension_numbers<[1], [1], [0], [0], [0, 0, 1, 0], [], []>} : vector<128x128xbf16>, vector<16x128xbf16>, vector<128x16xf32> -> vector<128x16xf32>
    %179 = arith.addf %178, %3 : vector<128x16xf32>
    %cst_75 = arith.constant dense<0xFF800000> : vector<128xf32>
    %180 = vector.multi_reduction <maximumf>, %179, %cst_75 [1] : vector<128x16xf32> to vector<128xf32>
    %181 = vector.shape_cast %180 : vector<128xf32> to vector<128x1xf32>
    %182 = vector.broadcast %181 : vector<128x1xf32> to vector<128x16xf32>
    %183 = arith.subf %179, %182 : vector<128x16xf32>
    %184 = math.exp %183 : vector<128x16xf32>
    %cst_76 = arith.constant dense<0.000000e+00> : vector<128xf32>
    %185 = vector.multi_reduction <add>, %184, %cst_76 [1] : vector<128x16xf32> to vector<128xf32>
    %186 = vector.shape_cast %185 : vector<128xf32> to vector<128x1xf32>
    %187 = tpu.reciprocal %186 {approx = true} : vector<128x1xf32> -> vector<128x1xf32>
    %188 = vector.broadcast %187 : vector<128x1xf32> to vector<128x16xf32>
    %189 = arith.mulf %184, %188 : vector<128x16xf32>
    %190 = arith.truncf %189 : vector<128x16xf32> to vector<128x16xbf16>
    %cst_77 = arith.constant dense<0.000000e+00> : vector<128x128xf32>
    %191 = tpu.matmul %190, %173, %cst_77 {dimension_numbers = #tpu.dot_dimension_numbers<[1], [0], [0], [1], [0, 0, 1, 1], [], []>} : vector<128x16xbf16>, vector<16x128xbf16>, vector<128x128xf32> -> vector<128x128xf32>
    %192 = arith.truncf %191 : vector<128x128xf32> to vector<128x128xbf16>
    %193 = arith.mulf %192, %1 : vector<128x128xbf16>
    %cst_78 = arith.constant dense<0.000000e+00> : vector<16x128xf32>
    %194 = tpu.matmul %2, %193, %cst_78 {dimension_numbers = #tpu.dot_dimension_numbers<[1], [0], [0], [1], [0, 0, 1, 1], [], []>} : vector<16x128xbf16>, vector<128x128xbf16>, vector<16x128xf32> -> vector<16x128xf32>
    %195 = arith.truncf %194 : vector<16x128xf32> to vector<16x128xbf16>
    %c1_79 = arith.constant 1 : index
    %c0_80 = arith.constant 0 : index
    %c0_81 = arith.constant 0 : index
    %196 = vector.load %arg3[%c1_79, %c0_80, %c0_81] : memref<4x128x128xbf16, #tpu.memory_space<vmem>>, vector<1x128x128xbf16>
    %197 = vector.shape_cast %196 : vector<1x128x128xbf16> to vector<128x128xbf16>
    %cst_82 = arith.constant dense<0.000000e+00> : vector<16x128xf32>
    %198 = tpu.matmul %195, %197, %cst_82 {dimension_numbers = #tpu.dot_dimension_numbers<[1], [0], [0], [1], [0, 0, 1, 1], [], []>} : vector<16x128xbf16>, vector<128x128xbf16>, vector<16x128xf32> -> vector<16x128xf32>
    %199 = vector.broadcast %155 : vector<1x128xf32> to vector<16x128xf32>
    %200 = arith.addf %198, %199 : vector<16x128xf32>
    %201 = arith.addf %200, %152 : vector<16x128xf32>
    %cst_83 = arith.constant dense<0.000000e+00> : vector<16xf32>
    %202 = vector.multi_reduction <add>, %201, %cst_83 [1] : vector<16x128xf32> to vector<16xf32>
    %203 = vector.shape_cast %202 : vector<16xf32> to vector<16x1xf32>
    %cst_84 = arith.constant 1.280000e+02 : f32
    %204 = vector.broadcast %cst_84 : f32 to vector<16x1xf32>
    %205 = arith.divf %203, %204 : vector<16x1xf32>
    %206 = vector.broadcast %205 : vector<16x1xf32> to vector<16x128xf32>
    %207 = arith.subf %201, %206 : vector<16x128xf32>
    %208 = arith.mulf %207, %207 : vector<16x128xf32>
    %cst_85 = arith.constant dense<0.000000e+00> : vector<16xf32>
    %209 = vector.multi_reduction <add>, %208, %cst_85 [1] : vector<16x128xf32> to vector<16xf32>
    %210 = vector.shape_cast %209 : vector<16xf32> to vector<16x1xf32>
    %cst_86 = arith.constant 1.280000e+02 : f32
    %211 = vector.broadcast %cst_86 : f32 to vector<16x1xf32>
    %212 = arith.divf %210, %211 : vector<16x1xf32>
    %213 = vector.broadcast %205 : vector<16x1xf32> to vector<16x128xf32>
    %214 = arith.subf %201, %213 : vector<16x128xf32>
    %cst_87 = arith.constant 9.99999996E-13 : f32
    %215 = vector.broadcast %cst_87 : f32 to vector<16x1xf32>
    %216 = arith.addf %212, %215 : vector<16x1xf32>
    %217 = math.rsqrt %216 : vector<16x1xf32>
    %218 = vector.broadcast %217 : vector<16x1xf32> to vector<16x128xf32>
    %219 = arith.mulf %214, %218 : vector<16x128xf32>
    %220 = vector.broadcast %156 : vector<1x128xf32> to vector<16x128xf32>
    %221 = arith.mulf %219, %220 : vector<16x128xf32>
    %222 = vector.broadcast %157 : vector<1x128xf32> to vector<16x128xf32>
    %223 = arith.addf %221, %222 : vector<16x128xf32>
    %224 = arith.truncf %223 : vector<16x128xf32> to vector<16x128xbf16>
    %c1_88 = arith.constant 1 : index
    %c0_89 = arith.constant 0 : index
    %c0_90 = arith.constant 0 : index
    %225 = vector.load %arg4[%c1_88, %c0_89, %c0_90] : memref<4x128x512xbf16, #tpu.memory_space<vmem>>, vector<1x128x512xbf16>
    %226 = vector.shape_cast %225 : vector<1x128x512xbf16> to vector<128x512xbf16>
    %cst_91 = arith.constant dense<0.000000e+00> : vector<16x512xf32>
    %227 = tpu.matmul %224, %226, %cst_91 {dimension_numbers = #tpu.dot_dimension_numbers<[1], [0], [0], [1], [0, 0, 1, 1], [], []>} : vector<16x128xbf16>, vector<128x512xbf16>, vector<16x512xf32> -> vector<16x512xf32>
    %c1_92 = arith.constant 1 : index
    %c0_93 = arith.constant 0 : index
    %c0_94 = arith.constant 0 : index
    %228 = vector.load %arg8[%c1_92, %c0_93, %c0_94] : memref<4x1x512xf32, #tpu.memory_space<vmem>>, vector<1x1x512xf32>
    %229 = vector.shape_cast %228 : vector<1x1x512xf32> to vector<1x512xf32>
    %230 = vector.broadcast %229 : vector<1x512xf32> to vector<16x512xf32>
    %231 = arith.addf %227, %230 : vector<16x512xf32>
    %cst_95 = arith.constant 5.000000e-01 : f32
    %232 = vector.broadcast %cst_95 : f32 to vector<16x512xf32>
    %233 = arith.mulf %232, %231 : vector<16x512xf32>
    %cst_96 = arith.constant 0.707106769 : f32
    %234 = vector.broadcast %cst_96 : f32 to vector<16x512xf32>
    %235 = arith.mulf %231, %234 : vector<16x512xf32>
    %236 = math.absf %235 : vector<16x512xf32>
    %cst_97 = arith.constant 0.327591091 : f32
    %237 = vector.broadcast %cst_97 : f32 to vector<16x512xf32>
    %238 = arith.mulf %237, %236 : vector<16x512xf32>
    %cst_98 = arith.constant 1.000000e+00 : f32
    %239 = vector.broadcast %cst_98 : f32 to vector<16x512xf32>
    %240 = arith.addf %239, %238 : vector<16x512xf32>
    %cst_99 = arith.constant 1.000000e+00 : f32
    %241 = vector.broadcast %cst_99 : f32 to vector<16x512xf32>
    %242 = arith.divf %241, %240 : vector<16x512xf32>
    %cst_100 = arith.constant 1.06140542 : f32
    %243 = vector.broadcast %cst_100 : f32 to vector<16x512xf32>
    %244 = arith.mulf %243, %242 : vector<16x512xf32>
    %cst_101 = arith.constant -1.45315206 : f32
    %245 = vector.broadcast %cst_101 : f32 to vector<16x512xf32>
    %246 = arith.addf %244, %245 : vector<16x512xf32>
    %247 = arith.mulf %246, %242 : vector<16x512xf32>
    %cst_102 = arith.constant 1.42141378 : f32
    %248 = vector.broadcast %cst_102 : f32 to vector<16x512xf32>
    %249 = arith.addf %247, %248 : vector<16x512xf32>
    %250 = arith.mulf %249, %242 : vector<16x512xf32>
    %cst_103 = arith.constant -0.284496725 : f32
    %251 = vector.broadcast %cst_103 : f32 to vector<16x512xf32>
    %252 = arith.addf %250, %251 : vector<16x512xf32>
    %253 = arith.mulf %252, %242 : vector<16x512xf32>
    %cst_104 = arith.constant 0.254829586 : f32
    %254 = vector.broadcast %cst_104 : f32 to vector<16x512xf32>
    %255 = arith.addf %253, %254 : vector<16x512xf32>
    %256 = arith.mulf %255, %242 : vector<16x512xf32>
    %cst_105 = arith.constant 0.000000e+00 : f32
    %257 = vector.broadcast %cst_105 : f32 to vector<16x512xf32>
    %258 = arith.subf %257, %236 : vector<16x512xf32>
    %259 = arith.mulf %258, %236 : vector<16x512xf32>
    %260 = math.exp %259 : vector<16x512xf32>
    %261 = arith.mulf %256, %260 : vector<16x512xf32>
    %cst_106 = arith.constant 1.000000e+00 : f32
    %262 = vector.broadcast %cst_106 : f32 to vector<16x512xf32>
    %263 = arith.subf %262, %261 : vector<16x512xf32>
    %cst_107 = arith.constant 0.000000e+00 : f32
    %264 = vector.broadcast %cst_107 : f32 to vector<16x512xf32>
    %265 = arith.cmpf oge, %235, %264 : vector<16x512xf32>
    %cst_108 = arith.constant 0.000000e+00 : f32
    %266 = vector.broadcast %cst_108 : f32 to vector<16x512xf32>
    %267 = arith.subf %266, %263 : vector<16x512xf32>
    %268 = arith.select %265, %263, %267 : vector<16x512xi1>, vector<16x512xf32>
    %cst_109 = arith.constant 1.000000e+00 : f32
    %269 = vector.broadcast %cst_109 : f32 to vector<16x512xf32>
    %270 = arith.addf %269, %268 : vector<16x512xf32>
    %271 = arith.mulf %233, %270 : vector<16x512xf32>
    %272 = arith.truncf %271 : vector<16x512xf32> to vector<16x512xbf16>
    %c1_110 = arith.constant 1 : index
    %c0_111 = arith.constant 0 : index
    %c0_112 = arith.constant 0 : index
    %273 = vector.load %arg5[%c1_110, %c0_111, %c0_112] : memref<4x512x128xbf16, #tpu.memory_space<vmem>>, vector<1x512x128xbf16>
    %274 = vector.shape_cast %273 : vector<1x512x128xbf16> to vector<512x128xbf16>
    %cst_113 = arith.constant dense<0.000000e+00> : vector<16x128xf32>
    %275 = tpu.matmul %272, %274, %cst_113 {dimension_numbers = #tpu.dot_dimension_numbers<[1], [0], [0], [1], [0, 0, 1, 1], [], []>} : vector<16x512xbf16>, vector<512x128xbf16>, vector<16x128xf32> -> vector<16x128xf32>
    %276 = vector.broadcast %158 : vector<1x128xf32> to vector<16x128xf32>
    %277 = arith.addf %275, %276 : vector<16x128xf32>
    %278 = arith.addf %277, %223 : vector<16x128xf32>
    %cst_114 = arith.constant dense<0.000000e+00> : vector<16xf32>
    %279 = vector.multi_reduction <add>, %278, %cst_114 [1] : vector<16x128xf32> to vector<16xf32>
    %280 = vector.shape_cast %279 : vector<16xf32> to vector<16x1xf32>
    %cst_115 = arith.constant 1.280000e+02 : f32
    %281 = vector.broadcast %cst_115 : f32 to vector<16x1xf32>
    %282 = arith.divf %280, %281 : vector<16x1xf32>
    %283 = vector.broadcast %282 : vector<16x1xf32> to vector<16x128xf32>
    %284 = arith.subf %278, %283 : vector<16x128xf32>
    %285 = arith.mulf %284, %284 : vector<16x128xf32>
    %cst_116 = arith.constant dense<0.000000e+00> : vector<16xf32>
    %286 = vector.multi_reduction <add>, %285, %cst_116 [1] : vector<16x128xf32> to vector<16xf32>
    %287 = vector.shape_cast %286 : vector<16xf32> to vector<16x1xf32>
    %cst_117 = arith.constant 1.280000e+02 : f32
    %288 = vector.broadcast %cst_117 : f32 to vector<16x1xf32>
    %289 = arith.divf %287, %288 : vector<16x1xf32>
    %290 = vector.broadcast %282 : vector<16x1xf32> to vector<16x128xf32>
    %291 = arith.subf %278, %290 : vector<16x128xf32>
    %cst_118 = arith.constant 9.99999996E-13 : f32
    %292 = vector.broadcast %cst_118 : f32 to vector<16x1xf32>
    %293 = arith.addf %289, %292 : vector<16x1xf32>
    %294 = math.rsqrt %293 : vector<16x1xf32>
    %295 = vector.broadcast %294 : vector<16x1xf32> to vector<16x128xf32>
    %296 = arith.mulf %291, %295 : vector<16x128xf32>
    %297 = vector.broadcast %159 : vector<1x128xf32> to vector<16x128xf32>
    %298 = arith.mulf %296, %297 : vector<16x128xf32>
    %299 = vector.broadcast %160 : vector<1x128xf32> to vector<16x128xf32>
    %300 = arith.addf %298, %299 : vector<16x128xf32>
    %c2 = arith.constant 2 : index
    %c0_119 = arith.constant 0 : index
    %c0_120 = arith.constant 0 : index
    %301 = vector.load %arg7[%c2, %c0_119, %c0_120] : memref<4x6x128xf32, #tpu.memory_space<vmem>>, vector<1x6x128xf32>
    %302 = vector.shape_cast %301 : vector<1x6x128xf32> to vector<6x128xf32>
    %303 = vector.extract_strided_slice %302 {offsets = [0, 0], sizes = [1, 128], strides = [1, 1]} : vector<6x128xf32> to vector<1x128xf32>
    %304 = vector.extract_strided_slice %302 {offsets = [1, 0], sizes = [1, 128], strides = [1, 1]} : vector<6x128xf32> to vector<1x128xf32>
    %305 = vector.extract_strided_slice %302 {offsets = [2, 0], sizes = [1, 128], strides = [1, 1]} : vector<6x128xf32> to vector<1x128xf32>
    %306 = vector.extract_strided_slice %302 {offsets = [3, 0], sizes = [1, 128], strides = [1, 1]} : vector<6x128xf32> to vector<1x128xf32>
    %307 = vector.extract_strided_slice %302 {offsets = [4, 0], sizes = [1, 128], strides = [1, 1]} : vector<6x128xf32> to vector<1x128xf32>
    %308 = vector.extract_strided_slice %302 {offsets = [5, 0], sizes = [1, 128], strides = [1, 1]} : vector<6x128xf32> to vector<1x128xf32>
    %309 = arith.truncf %300 : vector<16x128xf32> to vector<16x128xbf16>
    %c2_121 = arith.constant 2 : index
    %c0_122 = arith.constant 0 : index
    %c0_123 = arith.constant 0 : index
    %310 = vector.load %arg2[%c2_121, %c0_122, %c0_123] : memref<4x128x384xbf16, #tpu.memory_space<vmem>>, vector<1x128x384xbf16>
    %311 = vector.shape_cast %310 : vector<1x128x384xbf16> to vector<128x384xbf16>
    %cst_124 = arith.constant dense<0.000000e+00> : vector<16x384xf32>
    %312 = tpu.matmul %309, %311, %cst_124 {dimension_numbers = #tpu.dot_dimension_numbers<[1], [0], [0], [1], [0, 0, 1, 1], [], []>} : vector<16x128xbf16>, vector<128x384xbf16>, vector<16x384xf32> -> vector<16x384xf32>
    %c2_125 = arith.constant 2 : index
    %c0_126 = arith.constant 0 : index
    %c0_127 = arith.constant 0 : index
    %313 = vector.load %arg6[%c2_125, %c0_126, %c0_127] : memref<4x1x384xf32, #tpu.memory_space<vmem>>, vector<1x1x384xf32>
    %314 = vector.shape_cast %313 : vector<1x1x384xf32> to vector<1x384xf32>
    %315 = vector.broadcast %314 : vector<1x384xf32> to vector<16x384xf32>
    %316 = arith.addf %312, %315 : vector<16x384xf32>
    %317 = vector.extract_strided_slice %316 {offsets = [0, 0], sizes = [16, 128], strides = [1, 1]} : vector<16x384xf32> to vector<16x128xf32>
    %318 = vector.extract_strided_slice %316 {offsets = [0, 128], sizes = [16, 128], strides = [1, 1]} : vector<16x384xf32> to vector<16x128xf32>
    %319 = arith.truncf %318 : vector<16x128xf32> to vector<16x128xbf16>
    %320 = vector.extract_strided_slice %316 {offsets = [0, 256], sizes = [16, 128], strides = [1, 1]} : vector<16x384xf32> to vector<16x128xf32>
    %321 = arith.truncf %320 : vector<16x128xf32> to vector<16x128xbf16>
    %322 = arith.truncf %317 : vector<16x128xf32> to vector<16x128xbf16>
    %cst_128 = arith.constant dense<0.000000e+00> : vector<128x128xf32>
    %323 = tpu.matmul %0, %322, %cst_128 {dimension_numbers = #tpu.dot_dimension_numbers<[1], [0], [0], [1], [0, 0, 1, 1], [], []>} : vector<128x16xbf16>, vector<16x128xbf16>, vector<128x128xf32> -> vector<128x128xf32>
    %324 = arith.truncf %323 : vector<128x128xf32> to vector<128x128xbf16>
    %325 = arith.mulf %324, %1 : vector<128x128xbf16>
    %cst_129 = arith.constant dense<0.000000e+00> : vector<128x16xf32>
    %326 = tpu.matmul %325, %319, %cst_129 {dimension_numbers = #tpu.dot_dimension_numbers<[1], [1], [0], [0], [0, 0, 1, 0], [], []>} : vector<128x128xbf16>, vector<16x128xbf16>, vector<128x16xf32> -> vector<128x16xf32>
    %327 = arith.addf %326, %3 : vector<128x16xf32>
    %cst_130 = arith.constant dense<0xFF800000> : vector<128xf32>
    %328 = vector.multi_reduction <maximumf>, %327, %cst_130 [1] : vector<128x16xf32> to vector<128xf32>
    %329 = vector.shape_cast %328 : vector<128xf32> to vector<128x1xf32>
    %330 = vector.broadcast %329 : vector<128x1xf32> to vector<128x16xf32>
    %331 = arith.subf %327, %330 : vector<128x16xf32>
    %332 = math.exp %331 : vector<128x16xf32>
    %cst_131 = arith.constant dense<0.000000e+00> : vector<128xf32>
    %333 = vector.multi_reduction <add>, %332, %cst_131 [1] : vector<128x16xf32> to vector<128xf32>
    %334 = vector.shape_cast %333 : vector<128xf32> to vector<128x1xf32>
    %335 = tpu.reciprocal %334 {approx = true} : vector<128x1xf32> -> vector<128x1xf32>
    %336 = vector.broadcast %335 : vector<128x1xf32> to vector<128x16xf32>
    %337 = arith.mulf %332, %336 : vector<128x16xf32>
    %338 = arith.truncf %337 : vector<128x16xf32> to vector<128x16xbf16>
    %cst_132 = arith.constant dense<0.000000e+00> : vector<128x128xf32>
    %339 = tpu.matmul %338, %321, %cst_132 {dimension_numbers = #tpu.dot_dimension_numbers<[1], [0], [0], [1], [0, 0, 1, 1], [], []>} : vector<128x16xbf16>, vector<16x128xbf16>, vector<128x128xf32> -> vector<128x128xf32>
    %340 = arith.truncf %339 : vector<128x128xf32> to vector<128x128xbf16>
    %341 = arith.mulf %340, %1 : vector<128x128xbf16>
    %cst_133 = arith.constant dense<0.000000e+00> : vector<16x128xf32>
    %342 = tpu.matmul %2, %341, %cst_133 {dimension_numbers = #tpu.dot_dimension_numbers<[1], [0], [0], [1], [0, 0, 1, 1], [], []>} : vector<16x128xbf16>, vector<128x128xbf16>, vector<16x128xf32> -> vector<16x128xf32>
    %343 = arith.truncf %342 : vector<16x128xf32> to vector<16x128xbf16>
    %c2_134 = arith.constant 2 : index
    %c0_135 = arith.constant 0 : index
    %c0_136 = arith.constant 0 : index
    %344 = vector.load %arg3[%c2_134, %c0_135, %c0_136] : memref<4x128x128xbf16, #tpu.memory_space<vmem>>, vector<1x128x128xbf16>
    %345 = vector.shape_cast %344 : vector<1x128x128xbf16> to vector<128x128xbf16>
    %cst_137 = arith.constant dense<0.000000e+00> : vector<16x128xf32>
    %346 = tpu.matmul %343, %345, %cst_137 {dimension_numbers = #tpu.dot_dimension_numbers<[1], [0], [0], [1], [0, 0, 1, 1], [], []>} : vector<16x128xbf16>, vector<128x128xbf16>, vector<16x128xf32> -> vector<16x128xf32>
    %347 = vector.broadcast %303 : vector<1x128xf32> to vector<16x128xf32>
    %348 = arith.addf %346, %347 : vector<16x128xf32>
    %349 = arith.addf %348, %300 : vector<16x128xf32>
    %cst_138 = arith.constant dense<0.000000e+00> : vector<16xf32>
    %350 = vector.multi_reduction <add>, %349, %cst_138 [1] : vector<16x128xf32> to vector<16xf32>
    %351 = vector.shape_cast %350 : vector<16xf32> to vector<16x1xf32>
    %cst_139 = arith.constant 1.280000e+02 : f32
    %352 = vector.broadcast %cst_139 : f32 to vector<16x1xf32>
    %353 = arith.divf %351, %352 : vector<16x1xf32>
    %354 = vector.broadcast %353 : vector<16x1xf32> to vector<16x128xf32>
    %355 = arith.subf %349, %354 : vector<16x128xf32>
    %356 = arith.mulf %355, %355 : vector<16x128xf32>
    %cst_140 = arith.constant dense<0.000000e+00> : vector<16xf32>
    %357 = vector.multi_reduction <add>, %356, %cst_140 [1] : vector<16x128xf32> to vector<16xf32>
    %358 = vector.shape_cast %357 : vector<16xf32> to vector<16x1xf32>
    %cst_141 = arith.constant 1.280000e+02 : f32
    %359 = vector.broadcast %cst_141 : f32 to vector<16x1xf32>
    %360 = arith.divf %358, %359 : vector<16x1xf32>
    %361 = vector.broadcast %353 : vector<16x1xf32> to vector<16x128xf32>
    %362 = arith.subf %349, %361 : vector<16x128xf32>
    %cst_142 = arith.constant 9.99999996E-13 : f32
    %363 = vector.broadcast %cst_142 : f32 to vector<16x1xf32>
    %364 = arith.addf %360, %363 : vector<16x1xf32>
    %365 = math.rsqrt %364 : vector<16x1xf32>
    %366 = vector.broadcast %365 : vector<16x1xf32> to vector<16x128xf32>
    %367 = arith.mulf %362, %366 : vector<16x128xf32>
    %368 = vector.broadcast %304 : vector<1x128xf32> to vector<16x128xf32>
    %369 = arith.mulf %367, %368 : vector<16x128xf32>
    %370 = vector.broadcast %305 : vector<1x128xf32> to vector<16x128xf32>
    %371 = arith.addf %369, %370 : vector<16x128xf32>
    %372 = arith.truncf %371 : vector<16x128xf32> to vector<16x128xbf16>
    %c2_143 = arith.constant 2 : index
    %c0_144 = arith.constant 0 : index
    %c0_145 = arith.constant 0 : index
    %373 = vector.load %arg4[%c2_143, %c0_144, %c0_145] : memref<4x128x512xbf16, #tpu.memory_space<vmem>>, vector<1x128x512xbf16>
    %374 = vector.shape_cast %373 : vector<1x128x512xbf16> to vector<128x512xbf16>
    %cst_146 = arith.constant dense<0.000000e+00> : vector<16x512xf32>
    %375 = tpu.matmul %372, %374, %cst_146 {dimension_numbers = #tpu.dot_dimension_numbers<[1], [0], [0], [1], [0, 0, 1, 1], [], []>} : vector<16x128xbf16>, vector<128x512xbf16>, vector<16x512xf32> -> vector<16x512xf32>
    %c2_147 = arith.constant 2 : index
    %c0_148 = arith.constant 0 : index
    %c0_149 = arith.constant 0 : index
    %376 = vector.load %arg8[%c2_147, %c0_148, %c0_149] : memref<4x1x512xf32, #tpu.memory_space<vmem>>, vector<1x1x512xf32>
    %377 = vector.shape_cast %376 : vector<1x1x512xf32> to vector<1x512xf32>
    %378 = vector.broadcast %377 : vector<1x512xf32> to vector<16x512xf32>
    %379 = arith.addf %375, %378 : vector<16x512xf32>
    %cst_150 = arith.constant 5.000000e-01 : f32
    %380 = vector.broadcast %cst_150 : f32 to vector<16x512xf32>
    %381 = arith.mulf %380, %379 : vector<16x512xf32>
    %cst_151 = arith.constant 0.707106769 : f32
    %382 = vector.broadcast %cst_151 : f32 to vector<16x512xf32>
    %383 = arith.mulf %379, %382 : vector<16x512xf32>
    %384 = math.absf %383 : vector<16x512xf32>
    %cst_152 = arith.constant 0.327591091 : f32
    %385 = vector.broadcast %cst_152 : f32 to vector<16x512xf32>
    %386 = arith.mulf %385, %384 : vector<16x512xf32>
    %cst_153 = arith.constant 1.000000e+00 : f32
    %387 = vector.broadcast %cst_153 : f32 to vector<16x512xf32>
    %388 = arith.addf %387, %386 : vector<16x512xf32>
    %cst_154 = arith.constant 1.000000e+00 : f32
    %389 = vector.broadcast %cst_154 : f32 to vector<16x512xf32>
    %390 = arith.divf %389, %388 : vector<16x512xf32>
    %cst_155 = arith.constant 1.06140542 : f32
    %391 = vector.broadcast %cst_155 : f32 to vector<16x512xf32>
    %392 = arith.mulf %391, %390 : vector<16x512xf32>
    %cst_156 = arith.constant -1.45315206 : f32
    %393 = vector.broadcast %cst_156 : f32 to vector<16x512xf32>
    %394 = arith.addf %392, %393 : vector<16x512xf32>
    %395 = arith.mulf %394, %390 : vector<16x512xf32>
    %cst_157 = arith.constant 1.42141378 : f32
    %396 = vector.broadcast %cst_157 : f32 to vector<16x512xf32>
    %397 = arith.addf %395, %396 : vector<16x512xf32>
    %398 = arith.mulf %397, %390 : vector<16x512xf32>
    %cst_158 = arith.constant -0.284496725 : f32
    %399 = vector.broadcast %cst_158 : f32 to vector<16x512xf32>
    %400 = arith.addf %398, %399 : vector<16x512xf32>
    %401 = arith.mulf %400, %390 : vector<16x512xf32>
    %cst_159 = arith.constant 0.254829586 : f32
    %402 = vector.broadcast %cst_159 : f32 to vector<16x512xf32>
    %403 = arith.addf %401, %402 : vector<16x512xf32>
    %404 = arith.mulf %403, %390 : vector<16x512xf32>
    %cst_160 = arith.constant 0.000000e+00 : f32
    %405 = vector.broadcast %cst_160 : f32 to vector<16x512xf32>
    %406 = arith.subf %405, %384 : vector<16x512xf32>
    %407 = arith.mulf %406, %384 : vector<16x512xf32>
    %408 = math.exp %407 : vector<16x512xf32>
    %409 = arith.mulf %404, %408 : vector<16x512xf32>
    %cst_161 = arith.constant 1.000000e+00 : f32
    %410 = vector.broadcast %cst_161 : f32 to vector<16x512xf32>
    %411 = arith.subf %410, %409 : vector<16x512xf32>
    %cst_162 = arith.constant 0.000000e+00 : f32
    %412 = vector.broadcast %cst_162 : f32 to vector<16x512xf32>
    %413 = arith.cmpf oge, %383, %412 : vector<16x512xf32>
    %cst_163 = arith.constant 0.000000e+00 : f32
    %414 = vector.broadcast %cst_163 : f32 to vector<16x512xf32>
    %415 = arith.subf %414, %411 : vector<16x512xf32>
    %416 = arith.select %413, %411, %415 : vector<16x512xi1>, vector<16x512xf32>
    %cst_164 = arith.constant 1.000000e+00 : f32
    %417 = vector.broadcast %cst_164 : f32 to vector<16x512xf32>
    %418 = arith.addf %417, %416 : vector<16x512xf32>
    %419 = arith.mulf %381, %418 : vector<16x512xf32>
    %420 = arith.truncf %419 : vector<16x512xf32> to vector<16x512xbf16>
    %c2_165 = arith.constant 2 : index
    %c0_166 = arith.constant 0 : index
    %c0_167 = arith.constant 0 : index
    %421 = vector.load %arg5[%c2_165, %c0_166, %c0_167] : memref<4x512x128xbf16, #tpu.memory_space<vmem>>, vector<1x512x128xbf16>
    %422 = vector.shape_cast %421 : vector<1x512x128xbf16> to vector<512x128xbf16>
    %cst_168 = arith.constant dense<0.000000e+00> : vector<16x128xf32>
    %423 = tpu.matmul %420, %422, %cst_168 {dimension_numbers = #tpu.dot_dimension_numbers<[1], [0], [0], [1], [0, 0, 1, 1], [], []>} : vector<16x512xbf16>, vector<512x128xbf16>, vector<16x128xf32> -> vector<16x128xf32>
    %424 = vector.broadcast %306 : vector<1x128xf32> to vector<16x128xf32>
    %425 = arith.addf %423, %424 : vector<16x128xf32>
    %426 = arith.addf %425, %371 : vector<16x128xf32>
    %cst_169 = arith.constant dense<0.000000e+00> : vector<16xf32>
    %427 = vector.multi_reduction <add>, %426, %cst_169 [1] : vector<16x128xf32> to vector<16xf32>
    %428 = vector.shape_cast %427 : vector<16xf32> to vector<16x1xf32>
    %cst_170 = arith.constant 1.280000e+02 : f32
    %429 = vector.broadcast %cst_170 : f32 to vector<16x1xf32>
    %430 = arith.divf %428, %429 : vector<16x1xf32>
    %431 = vector.broadcast %430 : vector<16x1xf32> to vector<16x128xf32>
    %432 = arith.subf %426, %431 : vector<16x128xf32>
    %433 = arith.mulf %432, %432 : vector<16x128xf32>
    %cst_171 = arith.constant dense<0.000000e+00> : vector<16xf32>
    %434 = vector.multi_reduction <add>, %433, %cst_171 [1] : vector<16x128xf32> to vector<16xf32>
    %435 = vector.shape_cast %434 : vector<16xf32> to vector<16x1xf32>
    %cst_172 = arith.constant 1.280000e+02 : f32
    %436 = vector.broadcast %cst_172 : f32 to vector<16x1xf32>
    %437 = arith.divf %435, %436 : vector<16x1xf32>
    %438 = vector.broadcast %430 : vector<16x1xf32> to vector<16x128xf32>
    %439 = arith.subf %426, %438 : vector<16x128xf32>
    %cst_173 = arith.constant 9.99999996E-13 : f32
    %440 = vector.broadcast %cst_173 : f32 to vector<16x1xf32>
    %441 = arith.addf %437, %440 : vector<16x1xf32>
    %442 = math.rsqrt %441 : vector<16x1xf32>
    %443 = vector.broadcast %442 : vector<16x1xf32> to vector<16x128xf32>
    %444 = arith.mulf %439, %443 : vector<16x128xf32>
    %445 = vector.broadcast %307 : vector<1x128xf32> to vector<16x128xf32>
    %446 = arith.mulf %444, %445 : vector<16x128xf32>
    %447 = vector.broadcast %308 : vector<1x128xf32> to vector<16x128xf32>
    %448 = arith.addf %446, %447 : vector<16x128xf32>
    %c3 = arith.constant 3 : index
    %c0_174 = arith.constant 0 : index
    %c0_175 = arith.constant 0 : index
    %449 = vector.load %arg7[%c3, %c0_174, %c0_175] : memref<4x6x128xf32, #tpu.memory_space<vmem>>, vector<1x6x128xf32>
    %450 = vector.shape_cast %449 : vector<1x6x128xf32> to vector<6x128xf32>
    %451 = vector.extract_strided_slice %450 {offsets = [0, 0], sizes = [1, 128], strides = [1, 1]} : vector<6x128xf32> to vector<1x128xf32>
    %452 = vector.extract_strided_slice %450 {offsets = [1, 0], sizes = [1, 128], strides = [1, 1]} : vector<6x128xf32> to vector<1x128xf32>
    %453 = vector.extract_strided_slice %450 {offsets = [2, 0], sizes = [1, 128], strides = [1, 1]} : vector<6x128xf32> to vector<1x128xf32>
    %454 = vector.extract_strided_slice %450 {offsets = [3, 0], sizes = [1, 128], strides = [1, 1]} : vector<6x128xf32> to vector<1x128xf32>
    %455 = vector.extract_strided_slice %450 {offsets = [4, 0], sizes = [1, 128], strides = [1, 1]} : vector<6x128xf32> to vector<1x128xf32>
    %456 = vector.extract_strided_slice %450 {offsets = [5, 0], sizes = [1, 128], strides = [1, 1]} : vector<6x128xf32> to vector<1x128xf32>
    %457 = arith.truncf %448 : vector<16x128xf32> to vector<16x128xbf16>
    %c3_176 = arith.constant 3 : index
    %c0_177 = arith.constant 0 : index
    %c0_178 = arith.constant 0 : index
    %458 = vector.load %arg2[%c3_176, %c0_177, %c0_178] : memref<4x128x384xbf16, #tpu.memory_space<vmem>>, vector<1x128x384xbf16>
    %459 = vector.shape_cast %458 : vector<1x128x384xbf16> to vector<128x384xbf16>
    %cst_179 = arith.constant dense<0.000000e+00> : vector<16x384xf32>
    %460 = tpu.matmul %457, %459, %cst_179 {dimension_numbers = #tpu.dot_dimension_numbers<[1], [0], [0], [1], [0, 0, 1, 1], [], []>} : vector<16x128xbf16>, vector<128x384xbf16>, vector<16x384xf32> -> vector<16x384xf32>
    %c3_180 = arith.constant 3 : index
    %c0_181 = arith.constant 0 : index
    %c0_182 = arith.constant 0 : index
    %461 = vector.load %arg6[%c3_180, %c0_181, %c0_182] : memref<4x1x384xf32, #tpu.memory_space<vmem>>, vector<1x1x384xf32>
    %462 = vector.shape_cast %461 : vector<1x1x384xf32> to vector<1x384xf32>
    %463 = vector.broadcast %462 : vector<1x384xf32> to vector<16x384xf32>
    %464 = arith.addf %460, %463 : vector<16x384xf32>
    %465 = vector.extract_strided_slice %464 {offsets = [0, 0], sizes = [16, 128], strides = [1, 1]} : vector<16x384xf32> to vector<16x128xf32>
    %466 = vector.extract_strided_slice %464 {offsets = [0, 128], sizes = [16, 128], strides = [1, 1]} : vector<16x384xf32> to vector<16x128xf32>
    %467 = arith.truncf %466 : vector<16x128xf32> to vector<16x128xbf16>
    %468 = vector.extract_strided_slice %464 {offsets = [0, 256], sizes = [16, 128], strides = [1, 1]} : vector<16x384xf32> to vector<16x128xf32>
    %469 = arith.truncf %468 : vector<16x128xf32> to vector<16x128xbf16>
    %470 = arith.truncf %465 : vector<16x128xf32> to vector<16x128xbf16>
    %cst_183 = arith.constant dense<0.000000e+00> : vector<128x128xf32>
    %471 = tpu.matmul %0, %470, %cst_183 {dimension_numbers = #tpu.dot_dimension_numbers<[1], [0], [0], [1], [0, 0, 1, 1], [], []>} : vector<128x16xbf16>, vector<16x128xbf16>, vector<128x128xf32> -> vector<128x128xf32>
    %472 = arith.truncf %471 : vector<128x128xf32> to vector<128x128xbf16>
    %473 = arith.mulf %472, %1 : vector<128x128xbf16>
    %cst_184 = arith.constant dense<0.000000e+00> : vector<128x16xf32>
    %474 = tpu.matmul %473, %467, %cst_184 {dimension_numbers = #tpu.dot_dimension_numbers<[1], [1], [0], [0], [0, 0, 1, 0], [], []>} : vector<128x128xbf16>, vector<16x128xbf16>, vector<128x16xf32> -> vector<128x16xf32>
    %475 = arith.addf %474, %3 : vector<128x16xf32>
    %cst_185 = arith.constant dense<0xFF800000> : vector<128xf32>
    %476 = vector.multi_reduction <maximumf>, %475, %cst_185 [1] : vector<128x16xf32> to vector<128xf32>
    %477 = vector.shape_cast %476 : vector<128xf32> to vector<128x1xf32>
    %478 = vector.broadcast %477 : vector<128x1xf32> to vector<128x16xf32>
    %479 = arith.subf %475, %478 : vector<128x16xf32>
    %480 = math.exp %479 : vector<128x16xf32>
    %cst_186 = arith.constant dense<0.000000e+00> : vector<128xf32>
    %481 = vector.multi_reduction <add>, %480, %cst_186 [1] : vector<128x16xf32> to vector<128xf32>
    %482 = vector.shape_cast %481 : vector<128xf32> to vector<128x1xf32>
    %483 = tpu.reciprocal %482 {approx = true} : vector<128x1xf32> -> vector<128x1xf32>
    %484 = vector.broadcast %483 : vector<128x1xf32> to vector<128x16xf32>
    %485 = arith.mulf %480, %484 : vector<128x16xf32>
    %486 = arith.truncf %485 : vector<128x16xf32> to vector<128x16xbf16>
    %cst_187 = arith.constant dense<0.000000e+00> : vector<128x128xf32>
    %487 = tpu.matmul %486, %469, %cst_187 {dimension_numbers = #tpu.dot_dimension_numbers<[1], [0], [0], [1], [0, 0, 1, 1], [], []>} : vector<128x16xbf16>, vector<16x128xbf16>, vector<128x128xf32> -> vector<128x128xf32>
    %488 = arith.truncf %487 : vector<128x128xf32> to vector<128x128xbf16>
    %489 = arith.mulf %488, %1 : vector<128x128xbf16>
    %cst_188 = arith.constant dense<0.000000e+00> : vector<16x128xf32>
    %490 = tpu.matmul %2, %489, %cst_188 {dimension_numbers = #tpu.dot_dimension_numbers<[1], [0], [0], [1], [0, 0, 1, 1], [], []>} : vector<16x128xbf16>, vector<128x128xbf16>, vector<16x128xf32> -> vector<16x128xf32>
    %491 = arith.truncf %490 : vector<16x128xf32> to vector<16x128xbf16>
    %c3_189 = arith.constant 3 : index
    %c0_190 = arith.constant 0 : index
    %c0_191 = arith.constant 0 : index
    %492 = vector.load %arg3[%c3_189, %c0_190, %c0_191] : memref<4x128x128xbf16, #tpu.memory_space<vmem>>, vector<1x128x128xbf16>
    %493 = vector.shape_cast %492 : vector<1x128x128xbf16> to vector<128x128xbf16>
    %cst_192 = arith.constant dense<0.000000e+00> : vector<16x128xf32>
    %494 = tpu.matmul %491, %493, %cst_192 {dimension_numbers = #tpu.dot_dimension_numbers<[1], [0], [0], [1], [0, 0, 1, 1], [], []>} : vector<16x128xbf16>, vector<128x128xbf16>, vector<16x128xf32> -> vector<16x128xf32>
    %495 = vector.broadcast %451 : vector<1x128xf32> to vector<16x128xf32>
    %496 = arith.addf %494, %495 : vector<16x128xf32>
    %497 = arith.addf %496, %448 : vector<16x128xf32>
    %cst_193 = arith.constant dense<0.000000e+00> : vector<16xf32>
    %498 = vector.multi_reduction <add>, %497, %cst_193 [1] : vector<16x128xf32> to vector<16xf32>
    %499 = vector.shape_cast %498 : vector<16xf32> to vector<16x1xf32>
    %cst_194 = arith.constant 1.280000e+02 : f32
    %500 = vector.broadcast %cst_194 : f32 to vector<16x1xf32>
    %501 = arith.divf %499, %500 : vector<16x1xf32>
    %502 = vector.broadcast %501 : vector<16x1xf32> to vector<16x128xf32>
    %503 = arith.subf %497, %502 : vector<16x128xf32>
    %504 = arith.mulf %503, %503 : vector<16x128xf32>
    %cst_195 = arith.constant dense<0.000000e+00> : vector<16xf32>
    %505 = vector.multi_reduction <add>, %504, %cst_195 [1] : vector<16x128xf32> to vector<16xf32>
    %506 = vector.shape_cast %505 : vector<16xf32> to vector<16x1xf32>
    %cst_196 = arith.constant 1.280000e+02 : f32
    %507 = vector.broadcast %cst_196 : f32 to vector<16x1xf32>
    %508 = arith.divf %506, %507 : vector<16x1xf32>
    %509 = vector.broadcast %501 : vector<16x1xf32> to vector<16x128xf32>
    %510 = arith.subf %497, %509 : vector<16x128xf32>
    %cst_197 = arith.constant 9.99999996E-13 : f32
    %511 = vector.broadcast %cst_197 : f32 to vector<16x1xf32>
    %512 = arith.addf %508, %511 : vector<16x1xf32>
    %513 = math.rsqrt %512 : vector<16x1xf32>
    %514 = vector.broadcast %513 : vector<16x1xf32> to vector<16x128xf32>
    %515 = arith.mulf %510, %514 : vector<16x128xf32>
    %516 = vector.broadcast %452 : vector<1x128xf32> to vector<16x128xf32>
    %517 = arith.mulf %515, %516 : vector<16x128xf32>
    %518 = vector.broadcast %453 : vector<1x128xf32> to vector<16x128xf32>
    %519 = arith.addf %517, %518 : vector<16x128xf32>
    %520 = arith.truncf %519 : vector<16x128xf32> to vector<16x128xbf16>
    %c3_198 = arith.constant 3 : index
    %c0_199 = arith.constant 0 : index
    %c0_200 = arith.constant 0 : index
    %521 = vector.load %arg4[%c3_198, %c0_199, %c0_200] : memref<4x128x512xbf16, #tpu.memory_space<vmem>>, vector<1x128x512xbf16>
    %522 = vector.shape_cast %521 : vector<1x128x512xbf16> to vector<128x512xbf16>
    %cst_201 = arith.constant dense<0.000000e+00> : vector<16x512xf32>
    %523 = tpu.matmul %520, %522, %cst_201 {dimension_numbers = #tpu.dot_dimension_numbers<[1], [0], [0], [1], [0, 0, 1, 1], [], []>} : vector<16x128xbf16>, vector<128x512xbf16>, vector<16x512xf32> -> vector<16x512xf32>
    %c3_202 = arith.constant 3 : index
    %c0_203 = arith.constant 0 : index
    %c0_204 = arith.constant 0 : index
    %524 = vector.load %arg8[%c3_202, %c0_203, %c0_204] : memref<4x1x512xf32, #tpu.memory_space<vmem>>, vector<1x1x512xf32>
    %525 = vector.shape_cast %524 : vector<1x1x512xf32> to vector<1x512xf32>
    %526 = vector.broadcast %525 : vector<1x512xf32> to vector<16x512xf32>
    %527 = arith.addf %523, %526 : vector<16x512xf32>
    %cst_205 = arith.constant 5.000000e-01 : f32
    %528 = vector.broadcast %cst_205 : f32 to vector<16x512xf32>
    %529 = arith.mulf %528, %527 : vector<16x512xf32>
    %cst_206 = arith.constant 0.707106769 : f32
    %530 = vector.broadcast %cst_206 : f32 to vector<16x512xf32>
    %531 = arith.mulf %527, %530 : vector<16x512xf32>
    %532 = math.absf %531 : vector<16x512xf32>
    %cst_207 = arith.constant 0.327591091 : f32
    %533 = vector.broadcast %cst_207 : f32 to vector<16x512xf32>
    %534 = arith.mulf %533, %532 : vector<16x512xf32>
    %cst_208 = arith.constant 1.000000e+00 : f32
    %535 = vector.broadcast %cst_208 : f32 to vector<16x512xf32>
    %536 = arith.addf %535, %534 : vector<16x512xf32>
    %cst_209 = arith.constant 1.000000e+00 : f32
    %537 = vector.broadcast %cst_209 : f32 to vector<16x512xf32>
    %538 = arith.divf %537, %536 : vector<16x512xf32>
    %cst_210 = arith.constant 1.06140542 : f32
    %539 = vector.broadcast %cst_210 : f32 to vector<16x512xf32>
    %540 = arith.mulf %539, %538 : vector<16x512xf32>
    %cst_211 = arith.constant -1.45315206 : f32
    %541 = vector.broadcast %cst_211 : f32 to vector<16x512xf32>
    %542 = arith.addf %540, %541 : vector<16x512xf32>
    %543 = arith.mulf %542, %538 : vector<16x512xf32>
    %cst_212 = arith.constant 1.42141378 : f32
    %544 = vector.broadcast %cst_212 : f32 to vector<16x512xf32>
    %545 = arith.addf %543, %544 : vector<16x512xf32>
    %546 = arith.mulf %545, %538 : vector<16x512xf32>
    %cst_213 = arith.constant -0.284496725 : f32
    %547 = vector.broadcast %cst_213 : f32 to vector<16x512xf32>
    %548 = arith.addf %546, %547 : vector<16x512xf32>
    %549 = arith.mulf %548, %538 : vector<16x512xf32>
    %cst_214 = arith.constant 0.254829586 : f32
    %550 = vector.broadcast %cst_214 : f32 to vector<16x512xf32>
    %551 = arith.addf %549, %550 : vector<16x512xf32>
    %552 = arith.mulf %551, %538 : vector<16x512xf32>
    %cst_215 = arith.constant 0.000000e+00 : f32
    %553 = vector.broadcast %cst_215 : f32 to vector<16x512xf32>
    %554 = arith.subf %553, %532 : vector<16x512xf32>
    %555 = arith.mulf %554, %532 : vector<16x512xf32>
    %556 = math.exp %555 : vector<16x512xf32>
    %557 = arith.mulf %552, %556 : vector<16x512xf32>
    %cst_216 = arith.constant 1.000000e+00 : f32
    %558 = vector.broadcast %cst_216 : f32 to vector<16x512xf32>
    %559 = arith.subf %558, %557 : vector<16x512xf32>
    %cst_217 = arith.constant 0.000000e+00 : f32
    %560 = vector.broadcast %cst_217 : f32 to vector<16x512xf32>
    %561 = arith.cmpf oge, %531, %560 : vector<16x512xf32>
    %cst_218 = arith.constant 0.000000e+00 : f32
    %562 = vector.broadcast %cst_218 : f32 to vector<16x512xf32>
    %563 = arith.subf %562, %559 : vector<16x512xf32>
    %564 = arith.select %561, %559, %563 : vector<16x512xi1>, vector<16x512xf32>
    %cst_219 = arith.constant 1.000000e+00 : f32
    %565 = vector.broadcast %cst_219 : f32 to vector<16x512xf32>
    %566 = arith.addf %565, %564 : vector<16x512xf32>
    %567 = arith.mulf %529, %566 : vector<16x512xf32>
    %568 = arith.truncf %567 : vector<16x512xf32> to vector<16x512xbf16>
    %c3_220 = arith.constant 3 : index
    %c0_221 = arith.constant 0 : index
    %c0_222 = arith.constant 0 : index
    %569 = vector.load %arg5[%c3_220, %c0_221, %c0_222] : memref<4x512x128xbf16, #tpu.memory_space<vmem>>, vector<1x512x128xbf16>
    %570 = vector.shape_cast %569 : vector<1x512x128xbf16> to vector<512x128xbf16>
    %cst_223 = arith.constant dense<0.000000e+00> : vector<16x128xf32>
    %571 = tpu.matmul %568, %570, %cst_223 {dimension_numbers = #tpu.dot_dimension_numbers<[1], [0], [0], [1], [0, 0, 1, 1], [], []>} : vector<16x512xbf16>, vector<512x128xbf16>, vector<16x128xf32> -> vector<16x128xf32>
    %572 = vector.broadcast %454 : vector<1x128xf32> to vector<16x128xf32>
    %573 = arith.addf %571, %572 : vector<16x128xf32>
    %574 = arith.addf %573, %519 : vector<16x128xf32>
    %cst_224 = arith.constant dense<0.000000e+00> : vector<16xf32>
    %575 = vector.multi_reduction <add>, %574, %cst_224 [1] : vector<16x128xf32> to vector<16xf32>
    %576 = vector.shape_cast %575 : vector<16xf32> to vector<16x1xf32>
    %cst_225 = arith.constant 1.280000e+02 : f32
    %577 = vector.broadcast %cst_225 : f32 to vector<16x1xf32>
    %578 = arith.divf %576, %577 : vector<16x1xf32>
    %579 = vector.broadcast %578 : vector<16x1xf32> to vector<16x128xf32>
    %580 = arith.subf %574, %579 : vector<16x128xf32>
    %581 = arith.mulf %580, %580 : vector<16x128xf32>
    %cst_226 = arith.constant dense<0.000000e+00> : vector<16xf32>
    %582 = vector.multi_reduction <add>, %581, %cst_226 [1] : vector<16x128xf32> to vector<16xf32>
    %583 = vector.shape_cast %582 : vector<16xf32> to vector<16x1xf32>
    %cst_227 = arith.constant 1.280000e+02 : f32
    %584 = vector.broadcast %cst_227 : f32 to vector<16x1xf32>
    %585 = arith.divf %583, %584 : vector<16x1xf32>
    %586 = vector.broadcast %578 : vector<16x1xf32> to vector<16x128xf32>
    %587 = arith.subf %574, %586 : vector<16x128xf32>
    %cst_228 = arith.constant 9.99999996E-13 : f32
    %588 = vector.broadcast %cst_228 : f32 to vector<16x1xf32>
    %589 = arith.addf %585, %588 : vector<16x1xf32>
    %590 = math.rsqrt %589 : vector<16x1xf32>
    %591 = vector.broadcast %590 : vector<16x1xf32> to vector<16x128xf32>
    %592 = arith.mulf %587, %591 : vector<16x128xf32>
    %593 = vector.broadcast %455 : vector<1x128xf32> to vector<16x128xf32>
    %594 = arith.mulf %592, %593 : vector<16x128xf32>
    %595 = vector.broadcast %456 : vector<1x128xf32> to vector<16x128xf32>
    %596 = arith.addf %594, %595 : vector<16x128xf32>
    %c0_229 = arith.constant 0 : index
    %c0_230 = arith.constant 0 : index
    %597 = vector.load %arg13[%c0_229, %c0_230] : memref<3x128xf32, #tpu.memory_space<vmem>>, vector<3x128xf32>
    %598 = vector.extract_strided_slice %597 {offsets = [0, 0], sizes = [1, 128], strides = [1, 1]} : vector<3x128xf32> to vector<1x128xf32>
    %599 = vector.extract_strided_slice %597 {offsets = [1, 0], sizes = [1, 128], strides = [1, 1]} : vector<3x128xf32> to vector<1x128xf32>
    %600 = vector.extract_strided_slice %597 {offsets = [2, 0], sizes = [1, 1], strides = [1, 1]} : vector<3x128xf32> to vector<1x1xf32>
    %601 = vector.extract_strided_slice %597 {offsets = [2, 1], sizes = [1, 1], strides = [1, 1]} : vector<3x128xf32> to vector<1x1xf32>
    %cst_231 = arith.constant 2.000000e-01 : f32
    %602 = vector.broadcast %cst_231 : f32 to vector<16x128xf32>
    %603 = arith.mulf %602, %4 : vector<16x128xf32>
    %604 = arith.addf %596, %603 : vector<16x128xf32>
    %605 = vector.shape_cast %604 : vector<16x128xf32> to vector<2x8x128xf32>
    %606 = vector.shape_cast %598 : vector<1x128xf32> to vector<1x1x128xf32>
    %607 = vector.broadcast %606 : vector<1x1x128xf32> to vector<2x8x128xf32>
    %608 = arith.mulf %605, %607 : vector<2x8x128xf32>
    %cst_232 = arith.constant dense<0.000000e+00> : vector<2x8xf32>
    %609 = vector.multi_reduction <add>, %608, %cst_232 [2] : vector<2x8x128xf32> to vector<2x8xf32>
    %610 = vector.shape_cast %609 : vector<2x8xf32> to vector<2x8x1xf32>
    %cst_233 = arith.constant dense<0xFF800000> : vector<2x1xf32>
    %611 = vector.multi_reduction <maximumf>, %610, %cst_233 [1] : vector<2x8x1xf32> to vector<2x1xf32>
    %612 = vector.shape_cast %611 : vector<2x1xf32> to vector<2x1x1xf32>
    %613 = vector.broadcast %612 : vector<2x1x1xf32> to vector<2x8x1xf32>
    %614 = arith.subf %610, %613 : vector<2x8x1xf32>
    %615 = math.exp %614 : vector<2x8x1xf32>
    %cst_234 = arith.constant dense<0.000000e+00> : vector<2x1xf32>
    %616 = vector.multi_reduction <add>, %615, %cst_234 [1] : vector<2x8x1xf32> to vector<2x1xf32>
    %617 = vector.shape_cast %616 : vector<2x1xf32> to vector<2x1x1xf32>
    %618 = tpu.reciprocal %617 {approx = true} : vector<2x1x1xf32> -> vector<2x1x1xf32>
    %619 = vector.broadcast %618 : vector<2x1x1xf32> to vector<2x8x1xf32>
    %620 = arith.mulf %615, %619 : vector<2x8x1xf32>
    %621 = vector.broadcast %620 : vector<2x8x1xf32> to vector<2x8x128xf32>
    %622 = arith.mulf %621, %605 : vector<2x8x128xf32>
    %cst_235 = arith.constant dense<0.000000e+00> : vector<2x128xf32>
    %623 = vector.multi_reduction <add>, %622, %cst_235 [1] : vector<2x8x128xf32> to vector<2x128xf32>
    %cst_236 = arith.constant 0.000000e+00 : f32
    %624 = vector.broadcast %cst_236 : f32 to vector<2x128xf32>
    %625 = arith.cmpf oge, %623, %624 : vector<2x128xf32>
    %626 = vector.broadcast %600 : vector<1x1xf32> to vector<2x128xf32>
    %627 = arith.mulf %626, %623 : vector<2x128xf32>
    %628 = arith.select %625, %623, %627 : vector<2x128xi1>, vector<2x128xf32>
    %629 = vector.broadcast %599 : vector<1x128xf32> to vector<2x128xf32>
    %630 = arith.mulf %628, %629 : vector<2x128xf32>
    %cst_237 = arith.constant dense<0.000000e+00> : vector<2xf32>
    %631 = vector.multi_reduction <add>, %630, %cst_237 [1] : vector<2x128xf32> to vector<2xf32>
    %632 = vector.shape_cast %631 : vector<2xf32> to vector<2x1xf32>
    %633 = vector.broadcast %601 : vector<1x1xf32> to vector<2x1xf32>
    %634 = arith.addf %632, %633 : vector<2x1xf32>
    %c0_238 = arith.constant 0 : index
    %c0_239 = arith.constant 0 : index
    %635 = vector.load %arg14[%c0_238, %c0_239] : memref<2x1xf32, #tpu.memory_space<vmem>>, vector<2x1xf32>
    tpu.vector_store %arg14[%c0_238, %c0_239], %634 {strides = array<i32>} : memref<2x1xf32, #tpu.memory_space<vmem>>, vector<2x1xf32>,
    return
  }
  func.func @transform_0(%arg0: i32) -> (i32, i32) {
    %c0_i32 = arith.constant 0 : i32
    %c0_i32_0 = arith.constant 0 : i32
    %c0_i32_1 = arith.constant 0 : i32
    return %c0_i32, %c0_i32_0 : i32, i32
  }
  func.func @transform_1(%arg0: i32) -> (i32, i32, i32) {
    %c0_i32 = arith.constant 0 : i32
    %c0_i32_0 = arith.constant 0 : i32
    %c0_i32_1 = arith.constant 0 : i32
    %c0_i32_2 = arith.constant 0 : i32
    return %c0_i32, %c0_i32_0, %c0_i32_1 : i32, i32, i32
  }
  func.func @transform_2(%arg0: i32) -> (i32, i32, i32) {
    %c0_i32 = arith.constant 0 : i32
    %c0_i32_0 = arith.constant 0 : i32
    %c0_i32_1 = arith.constant 0 : i32
    %c0_i32_2 = arith.constant 0 : i32
    return %c0_i32, %c0_i32_0, %c0_i32_1 : i32, i32, i32
  }
  func.func @transform_3(%arg0: i32) -> (i32, i32, i32) {
    %c0_i32 = arith.constant 0 : i32
    %c0_i32_0 = arith.constant 0 : i32
    %c0_i32_1 = arith.constant 0 : i32
    %c0_i32_2 = arith.constant 0 : i32
    return %c0_i32, %c0_i32_0, %c0_i32_1 : i32, i32, i32
  }
  func.func @transform_4(%arg0: i32) -> (i32, i32, i32) {
    %c0_i32 = arith.constant 0 : i32
    %c0_i32_0 = arith.constant 0 : i32
    %c0_i32_1 = arith.constant 0 : i32
    %c0_i32_2 = arith.constant 0 : i32
    return %c0_i32, %c0_i32_0, %c0_i32_1 : i32, i32, i32
  }
  func.func @transform_5(%arg0: i32) -> (i32, i32, i32) {
    %c0_i32 = arith.constant 0 : i32
    %c0_i32_0 = arith.constant 0 : i32
    %c0_i32_1 = arith.constant 0 : i32
    %c0_i32_2 = arith.constant 0 : i32
    return %c0_i32, %c0_i32_0, %c0_i32_1 : i32, i32, i32
  }
  func.func @transform_6(%arg0: i32) -> (i32, i32, i32) {
    %c0_i32 = arith.constant 0 : i32
    %c0_i32_0 = arith.constant 0 : i32
    %c0_i32_1 = arith.constant 0 : i32
    %c0_i32_2 = arith.constant 0 : i32
    return %c0_i32, %c0_i32_0, %c0_i32_1 : i32, i32, i32
  }
  func.func @transform_7(%arg0: i32) -> (i32, i32, i32) {
    %c0_i32 = arith.constant 0 : i32
    %c0_i32_0 = arith.constant 0 : i32
    %c0_i32_1 = arith.constant 0 : i32
    %c0_i32_2 = arith.constant 0 : i32
    return %c0_i32, %c0_i32_0, %c0_i32_1 : i32, i32, i32
  }
  func.func @transform_8(%arg0: i32) -> (i32, i32) {
    %c0_i32 = arith.constant 0 : i32
    %c0_i32_0 = arith.constant 0 : i32
    %c0_i32_1 = arith.constant 0 : i32
    return %c0_i32, %c0_i32_0 : i32, i32
  }
  func.func @transform_9(%arg0: i32) -> (i32, i32) {
    %c0_i32 = arith.constant 0 : i32
    %c0_i32_0 = arith.constant 0 : i32
    %c0_i32_1 = arith.constant 0 : i32
    return %c0_i32, %c0_i32_0 : i32, i32
  }
  func.func @transform_10(%arg0: i32) -> (i32, i32) {
    %c0_i32 = arith.constant 0 : i32
    %c0_i32_0 = arith.constant 0 : i32
    %c0_i32_1 = arith.constant 0 : i32
    return %c0_i32, %c0_i32_0 : i32, i32
  }
  func.func @transform_11(%arg0: i32) -> (i32, i32) {
    %c0_i32 = arith.constant 0 : i32
    %c0_i32_0 = arith.constant 0 : i32
    %c0_i32_1 = arith.constant 0 : i32
    return %c0_i32, %c0_i32_0 : i32, i32
  }
  func.func @transform_12(%arg0: i32) -> (i32, i32) {
    %c0_i32 = arith.constant 0 : i32
    %c0_i32_0 = arith.constant 0 : i32
    %c0_i32_1 = arith.constant 0 : i32
    return %c0_i32, %c0_i32_0 : i32, i32
  }
  func.func @transform_13(%arg0: i32) -> (i32, i32) {
    %c0_i32 = arith.constant 0 : i32
    %c0_i32_0 = arith.constant 0 : i32
    %c0_i32_1 = arith.constant 0 : i32
    return %c0_i32, %c0_i32_0 : i32, i32
  }
}

</mosaic_0001>

<llo_original>
// kernel: model_rt_bert_forward.1
$region0: #{model_rt_bert_forward.1}
  #allocation0 [shape = 'u32[]', space=smem, size = 0x4, offset = 0x4, fixed_abs, tag = 'smem constant byte address 0x4 - core index']
  #allocation1 [shape = 'u32[144,128]{1,0:T(1,128)}', space=vmem, size = 0x12000, scoped, tag = 'internal scratch']
  %s0 = inlined_call_operand.vmem [shape: f32[16,128], index: 0, kind: input, shape index: {}]
  %s1 = inlined_call_operand.hbm [shape: bf16[4,128,384], index: 1, kind: input, shape index: {}]
  %s2 = inlined_call_operand.vmem [shape: bf16[4,128,128], index: 2, kind: input, shape index: {}]
  %s3 = inlined_call_operand.hbm [shape: bf16[4,128,512], index: 3, kind: input, shape index: {}]
  %s4 = inlined_call_operand.hbm [shape: bf16[4,512,128], index: 4, kind: input, shape index: {}]
  %s5 = inlined_call_operand.vmem [shape: f32[4,1,384], index: 5, kind: input, shape index: {}]
  %s6 = inlined_call_operand.vmem [shape: f32[4,6,128], index: 6, kind: input, shape index: {}]
  %s7 = inlined_call_operand.vmem [shape: f32[4,1,512], index: 7, kind: input, shape index: {}]
  %s8 = inlined_call_operand.vmem [shape: bf16[128,16], index: 8, kind: input, shape index: {}]
  %s9 = inlined_call_operand.vmem [shape: bf16[128,128], index: 9, kind: input, shape index: {}]
  %s10 = inlined_call_operand.vmem [shape: bf16[16,128], index: 10, kind: input, shape index: {}]
  %s11 = inlined_call_operand.vmem [shape: f32[128,16], index: 11, kind: input, shape index: {}]
  %s12 = inlined_call_operand.vmem [shape: f32[3,128], index: 12, kind: input, shape index: {}]
  %s13 = inlined_call_operand.vmem [shape: f32[2,1], index: 13, kind: output, shape index: {}]
  %s14 = sld [smem:[#allocation0]]
  $region74: #{model_rt_bert_forward.1} parent=0
    _
  %s16 = ssub.s32 1, %s14
  %s17 = scalar_select 0, %s16, %s14
  $region1: #{model_rt_bert_forward.1} parent=0
    #allocation2 [shape = 'u8[393216]{0}', space=vmem, size = 0x60000, scoped, tag = 'input window, operand 1, single buffered']
    #allocation3 [shape = 's32[1]{0}', space=sflag, size = 0x4, scoped, tag = 'scoped memory for model_rt_bert_forward.1']
    #allocation4 [shape = 'u8[524288]{0}', space=vmem, size = 0x80000, scoped, tag = 'input window, operand 3, single buffered']
    #allocation5 [shape = 's32[1]{0}', space=sflag, size = 0x4, scoped, tag = 'scoped memory for model_rt_bert_forward.1']
    #allocation6 [shape = 'u8[524288]{0}', space=vmem, size = 0x80000, scoped, tag = 'input window, operand 4, single buffered']
    %18 = vsyncpa [#allocation3], 0
    %19 = vsyncpa [#allocation5], 0
    // Predicated region
    $region2: #{model_rt_bert_forward.1} parent=1 // pred_check
      _
    $region3: #{model_rt_bert_forward.1} parent=1 // pred_check_branch
      %21 = sbr.rel (0) target = $region5
    $region4: #{model_rt_bert_forward.1} parent=1 // pred_region
      _
    $region5: #{model_rt_bert_forward.1} parent=1 // pred_fallthru
      _
    // Predicated region
    $region6: #{model_rt_bert_forward.1} parent=1 // pred_check
      _
    $region7: #{model_rt_bert_forward.1} parent=1 // pred_check_branch
      %23 = sbr.rel (0) target = $region9
    $region8: #{model_rt_bert_forward.1} parent=1 // pred_region
      %s25 = ssub.s32 12288, 12288
      %26 = vsyncadd [#allocation3], %s25
      %s27 = sshll.u32 [#allocation2], 4
      %s28 = int_to_ptr.vmem [resolvable:$true] %s27
      %33 = dma.hbm_to_vmem [thread:$0]  %s1, 12288, %s28, [#allocation3], 192, 192, 12
    $region9: #{model_rt_bert_forward.1} parent=1 // pred_fallthru
      _
    // Predicated region
    $region10: #{model_rt_bert_forward.1} parent=1 // pred_check
      _
    $region11: #{model_rt_bert_forward.1} parent=1 // pred_check_branch
      %35 = sbr.rel (0) target = $region13
    $region12: #{model_rt_bert_forward.1} parent=1 // pred_region
      _
    $region13: #{model_rt_bert_forward.1} parent=1 // pred_fallthru
      _
    // Predicated region
    $region14: #{model_rt_bert_forward.1} parent=1 // pred_check
      _
    $region15: #{model_rt_bert_forward.1} parent=1 // pred_check_branch
      %37 = sbr.rel (0) target = $region17
    $region16: #{model_rt_bert_forward.1} parent=1 // pred_region
      %s39 = ssub.s32 16384, 16384
      %40 = vsyncadd [#allocation5], %s39
      %s41 = sshll.u32 [#allocation4], 4
      %s42 = int_to_ptr.vmem [resolvable:$true] %s41
      %47 = dma.hbm_to_vmem [thread:$0]  %s3, 16384, %s42, [#allocation5], 256, 256, 16
    $region17: #{model_rt_bert_forward.1} parent=1 // pred_fallthru
      _
    // Predicated region
    $region18: #{model_rt_bert_forward.1} parent=1 // pred_check
      _
    $region19: #{model_rt_bert_forward.1} parent=1 // pred_check_branch
      %49 = sbr.rel (0) target = $region21
    $region20: #{model_rt_bert_forward.1} parent=1 // pred_region
      %s51 = ssub.s32 16384, 16384
      %52 = vsyncadd [#allocation5], %s51
      %s53 = sshll.u32 [#allocation6], 4
      %s54 = int_to_ptr.vmem [resolvable:$true] %s53
      %59 = dma.hbm_to_vmem [thread:$0]  %s4, 16384, %s54, [#allocation5], 64, 64, 4
    $region21: #{model_rt_bert_forward.1} parent=1 // pred_fallthru
      _
    // Predicated region
    $region22: #{model_rt_bert_forward.1} parent=1 // pred_check
      _
    $region23: #{model_rt_bert_forward.1} parent=1 // pred_check_branch
      %61 = sbr.rel (0) target = $region25
    $region24: #{model_rt_bert_forward.1} parent=1 // pred_region
      _
    $region25: #{model_rt_bert_forward.1} parent=1 // pred_fallthru
      _
    // Predicated region
    $region26: #{model_rt_bert_forward.1} parent=1 // pred_check
      _
    $region27: #{model_rt_bert_forward.1} parent=1 // pred_check_branch
      %63 = sbr.rel (0) target = $region29
    $region28: #{model_rt_bert_forward.1} parent=1 // pred_region
      _
    $region29: #{model_rt_bert_forward.1} parent=1 // pred_fallthru
      _
    // Predicated region
    $region30: #{model_rt_bert_forward.1} parent=1 // pred_check
      _
    $region31: #{model_rt_bert_forward.1} parent=1 // pred_check_branch
      %65 = sbr.rel (0) target = $region33
    $region32: #{model_rt_bert_forward.1} parent=1 // pred_region
      _
    $region33: #{model_rt_bert_forward.1} parent=1 // pred_fallthru
      _
    // Predicated region
    $region34: #{model_rt_bert_forward.1} parent=1 // pred_check
      _
    $region35: #{model_rt_bert_forward.1} parent=1 // pred_check_branch
      %67 = sbr.rel (0) target = $region37
    $region36: #{model_rt_bert_forward.1} parent=1 // pred_region
      _
    $region37: #{model_rt_bert_forward.1} parent=1 // pred_fallthru
      _
    // Predicated region
    $region38: #{model_rt_bert_forward.1} parent=1 // pred_check
      _
    $region39: #{model_rt_bert_forward.1} parent=1 // pred_check_branch
      %69 = sbr.rel (0) target = $region41
    $region40: #{model_rt_bert_forward.1} parent=1 // pred_region
      _
    $region41: #{model_rt_bert_forward.1} parent=1 // pred_fallthru
      _
    // Predicated region
    $region42: #{model_rt_bert_forward.1} parent=1 // pred_check
      _
    $region43: #{model_rt_bert_forward.1} parent=1 // pred_check_branch
      %71 = sbr.rel (0) target = $region45
    $region44: #{model_rt_bert_forward.1} parent=1 // pred_region
      _
    $region45: #{model_rt_bert_forward.1} parent=1 // pred_fallthru
      _
    // Predicated region
    $region46: #{model_rt_bert_forward.1} parent=1 // pred_check
      _
    $region47: #{model_rt_bert_forward.1} parent=1 // pred_check_branch
      %73 = sbr.rel (0) target = $region49
    $region48: #{model_rt_bert_forward.1} parent=1 // pred_region
      _
    $region49: #{model_rt_bert_forward.1} parent=1 // pred_fallthru
      _
    // Predicated region
    $region50: #{model_rt_bert_forward.1} parent=1 // pred_check
      _
    $region51: #{model_rt_bert_forward.1} parent=1 // pred_check_branch
      %75 = sbr.rel (0) target = $region53
    $region52: #{model_rt_bert_forward.1} parent=1 // pred_region
      _
    $region53: #{model_rt_bert_forward.1} parent=1 // pred_fallthru
      _
    // Predicated region
    $region54: #{model_rt_bert_forward.1} parent=1 // pred_check
      _
    $region55: #{model_rt_bert_forward.1} parent=1 // pred_check_branch
      %77 = sbr.rel (0) target = $region57
    $region56: #{model_rt_bert_forward.1} parent=1 // pred_region
      %78 = dma.done [#allocation3], 12288
    $region57: #{model_rt_bert_forward.1} parent=1 // pred_fallthru
      _
    // Predicated region
    $region58: #{model_rt_bert_forward.1} parent=1 // pred_check
      _
    $region59: #{model_rt_bert_forward.1} parent=1 // pred_check_branch
      %80 = sbr.rel (0) target = $region61
    $region60: #{model_rt_bert_forward.1} parent=1 // pred_region
      %81 = dma.done [#allocation5], 16384
    $region61: #{model_rt_bert_forward.1} parent=1 // pred_fallthru
      _
    // Predicated region
    $region62: #{model_rt_bert_forward.1} parent=1 // pred_check
      _
    $region63: #{model_rt_bert_forward.1} parent=1 // pred_check_branch
      %83 = sbr.rel (0) target = $region65
    $region64: #{model_rt_bert_forward.1} parent=1 // pred_region
      %84 = dma.done [#allocation5], 16384
    $region65: #{model_rt_bert_forward.1} parent=1 // pred_fallthru
      _
    %v86 = vld [vmem:[%s8] sm:$0xf]
    %v87 = vld [vmem:[%s8 + $0x4] sm:$0xf]
    %v88 = vld [vmem:[%s8 + $0x8] sm:$0xf]
    %v89 = vld [vmem:[%s8 + $0xc] sm:$0xf]
    %v90 = vld [vmem:[%s8 + $0x10] sm:$0xf]
    %v91 = vld [vmem:[%s8 + $0x14] sm:$0xf]
    %v92 = vld [vmem:[%s8 + $0x18] sm:$0xf]
    %v93 = vld [vmem:[%s8 + $0x1c] sm:$0xf]
    %v94 = vld [vmem:[%s8 + $0x20] sm:$0xf]
    %v95 = vld [vmem:[%s8 + $0x24] sm:$0xf]
    %v96 = vld [vmem:[%s8 + $0x28] sm:$0xf]
    %v97 = vld [vmem:[%s8 + $0x2c] sm:$0xf]
    %v98 = vld [vmem:[%s8 + $0x30] sm:$0xf]
    %v99 = vld [vmem:[%s8 + $0x34] sm:$0xf]
    %v100 = vld [vmem:[%s8 + $0x38] sm:$0xf]
    %v101 = vld [vmem:[%s8 + $0x3c] sm:$0xf]
    %v102 = vld [vmem:[%s9] sm:$0xf]
    %v103 = vld [vmem:[%s9 + $0x4] sm:$0xf]
    %v104 = vld [vmem:[%s9 + $0x8] sm:$0xf]
    %v105 = vld [vmem:[%s9 + $0xc] sm:$0xf]
    %v106 = vld [vmem:[%s9 + $0x10] sm:$0xf]
    %v107 = vld [vmem:[%s9 + $0x14] sm:$0xf]
    %v108 = vld [vmem:[%s9 + $0x18] sm:$0xf]
    %v109 = vld [vmem:[%s9 + $0x1c] sm:$0xf]
    %v110 = vld [vmem:[%s9 + $0x20] sm:$0xf]
    %v111 = vld [vmem:[%s9 + $0x24] sm:$0xf]
    %v112 = vld [vmem:[%s9 + $0x28] sm:$0xf]
    %v113 = vld [vmem:[%s9 + $0x2c] sm:$0xf]
    %v114 = vld [vmem:[%s9 + $0x30] sm:$0xf]
    %v115 = vld [vmem:[%s9 + $0x34] sm:$0xf]
    %v116 = vld [vmem:[%s9 + $0x38] sm:$0xf]
    %v117 = vld [vmem:[%s9 + $0x3c] sm:$0xf]
    %v118 = vld [vmem:[%s10] sm:$0xf]
    %v119 = vld [vmem:[%s10 + $0x4] sm:$0xf]
    %v120 = vld [vmem:[%s11] sm:$0xff]
    %v121 = vld [vmem:[%s11 + $0x8] sm:$0xff]
    %v122 = vld [vmem:[%s11 + $0x10] sm:$0xff]
    %v123 = vld [vmem:[%s11 + $0x18] sm:$0xff]
    %v124 = vld [vmem:[%s11 + $0x20] sm:$0xff]
    %v125 = vld [vmem:[%s11 + $0x28] sm:$0xff]
    %v126 = vld [vmem:[%s11 + $0x30] sm:$0xff]
    %v127 = vld [vmem:[%s11 + $0x38] sm:$0xff]
    %v128 = vld [vmem:[%s11 + $0x40] sm:$0xff]
    %v129 = vld [vmem:[%s11 + $0x48] sm:$0xff]
    %v130 = vld [vmem:[%s11 + $0x50] sm:$0xff]
    %v131 = vld [vmem:[%s11 + $0x58] sm:$0xff]
    %v132 = vld [vmem:[%s11 + $0x60] sm:$0xff]
    %v133 = vld [vmem:[%s11 + $0x68] sm:$0xff]
    %v134 = vld [vmem:[%s11 + $0x70] sm:$0xff]
    %v135 = vld [vmem:[%s11 + $0x78] sm:$0xff]
    %v136 = vld [vmem:[%s0] sm:$0xff]
    %v137 = vld [vmem:[%s0 + $0x8] sm:$0xff]
    %v138 = vld [vmem:[%s6] sm:$0x3f]
    %v139 = vpack.c.bf16 %v137, %v136
    %v140 = vld [vmem:[#allocation2] sm:$0xff]
    %v141 = vld [vmem:[#allocation2 + $0x8] sm:$0xf]
    %v142 = vld [vmem:[#allocation2 + $0xc] sm:$0xff]
    %v143 = vld [vmem:[#allocation2 + $0x14] sm:$0xf]
    %v144 = vld [vmem:[#allocation2 + $0x18] sm:$0xff]
    %v145 = vld [vmem:[#allocation2 + $0x20] sm:$0xf]
    %v146 = vld [vmem:[#allocation2 + $0x24] sm:$0xff]
    %v147 = vld [vmem:[#allocation2 + $0x2c] sm:$0xf]
    %v148 = vld [vmem:[#allocation2 + $0x30] sm:$0xff]
    %v149 = vld [vmem:[#allocation2 + $0x38] sm:$0xf]
    %v150 = vld [vmem:[#allocation2 + $0x3c] sm:$0xff]
    %v151 = vld [vmem:[#allocation2 + $0x44] sm:$0xf]
    %v152 = vld [vmem:[#allocation2 + $0x48] sm:$0xff]
    %v153 = vld [vmem:[#allocation2 + $0x50] sm:$0xf]
    %v154 = vld [vmem:[#allocation2 + $0x54] sm:$0xff]
    %v155 = vld [vmem:[#allocation2 + $0x5c] sm:$0xf]
    %v156 = vld [vmem:[#allocation2 + $0x60] sm:$0xff]
    %v157 = vld [vmem:[#allocation2 + $0x68] sm:$0xf]
    %v158 = vld [vmem:[#allocation2 + $0x6c] sm:$0xff]
    %v159 = vld [vmem:[#allocation2 + $0x74] sm:$0xf]
    %v160 = vld [vmem:[#allocation2 + $0x78] sm:$0xff]
    %v161 = vld [vmem:[#allocation2 + $0x80] sm:$0xf]
    %v162 = vld [vmem:[#allocation2 + $0x84] sm:$0xff]
    %v163 = vld [vmem:[#allocation2 + $0x8c] sm:$0xf]
    %v164 = vld [vmem:[#allocation2 + $0x90] sm:$0xff]
    %v165 = vld [vmem:[#allocation2 + $0x98] sm:$0xf]
    %v166 = vld [vmem:[#allocation2 + $0x9c] sm:$0xff]
    %v167 = vld [vmem:[#allocation2 + $0xa4] sm:$0xf]
    %v168 = vld [vmem:[#allocation2 + $0xa8] sm:$0xff]
    %v169 = vld [vmem:[#allocation2 + $0xb0] sm:$0xf]
    %v170 = vld [vmem:[#allocation2 + $0xb4] sm:$0xff]
    %v171 = vld [vmem:[#allocation2 + $0xbc] sm:$0xf]
    %v172 = vld [vmem:[%s5] sm:$0x7]
    %v174 = vlaneseq
    %v175 = vshrl.u32 %v174, 7
    %v176 = vsub.s32 0, %v175
    %v177 = vrot.slane %v172, %v176
    %v178 = vlaneseq
    %v179 = vshrl.u32 %v178, 7
    %v180 = vsub.s32 1, %v179
    %v181 = vrot.slane %v172, %v180
    %v182 = vlaneseq
    %v183 = vshrl.u32 %v182, 7
    %v184 = vsub.s32 2, %v183
    %v185 = vrot.slane %v172, %v184
    %v221 = vunpack.c.l.b16 %v140
    %v222 = vunpack.c.h.b16 %v140
    %v223 = vunpack.c.l.b16 %v141
    %v224 = vunpack.c.l.b16 %v142
    %v225 = vunpack.c.h.b16 %v142
    %v226 = vunpack.c.l.b16 %v143
    %v227 = vunpack.c.l.b16 %v144
    %v228 = vunpack.c.h.b16 %v144
    %v229 = vunpack.c.l.b16 %v145
    %v230 = vunpack.c.l.b16 %v146
    %v231 = vunpack.c.h.b16 %v146
    %v232 = vunpack.c.l.b16 %v147
    %v233 = vunpack.c.l.b16 %v148
    %v234 = vunpack.c.h.b16 %v148
    %v235 = vunpack.c.l.b16 %v149
    %v236 = vunpack.c.l.b16 %v150
    %v237 = vunpack.c.h.b16 %v150
    %v238 = vunpack.c.l.b16 %v151
    %v239 = vunpack.c.l.b16 %v152
    %v240 = vunpack.c.h.b16 %v152
    %v241 = vunpack.c.l.b16 %v153
    %v242 = vunpack.c.l.b16 %v154
    %v243 = vunpack.c.h.b16 %v154
    %v244 = vunpack.c.l.b16 %v155
    %v245 = vunpack.c.l.b16 %v156
    %v246 = vunpack.c.h.b16 %v156
    %v247 = vunpack.c.l.b16 %v157
    %v248 = vunpack.c.l.b16 %v158
    %v249 = vunpack.c.h.b16 %v158
    %v250 = vunpack.c.l.b16 %v159
    %v251 = vunpack.c.l.b16 %v160
    %v252 = vunpack.c.h.b16 %v160
    %v253 = vunpack.c.l.b16 %v161
    %v254 = vunpack.c.l.b16 %v162
    %v255 = vunpack.c.h.b16 %v162
    %v256 = vunpack.c.l.b16 %v163
    %v257 = vunpack.c.l.b16 %v164
    %v258 = vunpack.c.h.b16 %v164
    %v259 = vunpack.c.l.b16 %v165
    %v260 = vunpack.c.l.b16 %v166
    %v261 = vunpack.c.h.b16 %v166
    %v262 = vunpack.c.l.b16 %v167
    %v263 = vunpack.c.l.b16 %v168
    %v264 = vunpack.c.h.b16 %v168
    %v265 = vunpack.c.l.b16 %v169
    %v266 = vunpack.c.l.b16 %v170
    %v267 = vunpack.c.h.b16 %v170
    %v268 = vunpack.c.l.b16 %v171
    %v269 = vpack.c.b16 %v224, %v221
    %v270 = vpack.c.b16 %v225, %v222
    %v271 = vpack.c.b16 %v226, %v223
    %v272 = vpack.c.b16 %v230, %v227
    %v273 = vpack.c.b16 %v231, %v228
    %v274 = vpack.c.b16 %v232, %v229
    %v275 = vpack.c.b16 %v236, %v233
    %v276 = vpack.c.b16 %v237, %v234
    %v277 = vpack.c.b16 %v238, %v235
    %v278 = vpack.c.b16 %v242, %v239
    %v279 = vpack.c.b16 %v243, %v240
    %v280 = vpack.c.b16 %v244, %v241
    %v281 = vpack.c.b16 %v248, %v245
    %v282 = vpack.c.b16 %v249, %v246
    %v283 = vpack.c.b16 %v250, %v247
    %v284 = vpack.c.b16 %v254, %v251
    %v285 = vpack.c.b16 %v255, %v252
    %v286 = vpack.c.b16 %v256, %v253
    %v287 = vpack.c.b16 %v260, %v257
    %v288 = vpack.c.b16 %v261, %v258
    %v289 = vpack.c.b16 %v262, %v259
    %v290 = vpack.c.b16 %v266, %v263
    %v291 = vpack.c.b16 %v267, %v264
    %v292 = vpack.c.b16 %v268, %v265
    %317 = vmatprep.subr.bf16.mxu0 %v270
    %318 = vmatpush1.bf16.msra.mxu0 %v269
    %319 = vmatprep.subr.bf16.mxu0 %v273
    %320 = vmatpush1.bf16.msra.mxu0 %v272
    %321 = vmatprep.subr.bf16.mxu0 %v276
    %322 = vmatpush1.bf16.msra.mxu0 %v275
    %323 = vmatprep.subr.bf16.mxu0 %v279
    %324 = vmatpush1.bf16.msra.mxu0 %v278
    %325 = vmatprep.subr.bf16.mxu0 %v282
    %326 = vmatpush1.bf16.msra.mxu0 %v281
    %327 = vmatprep.subr.bf16.mxu0 %v285
    %328 = vmatpush1.bf16.msra.mxu0 %v284
    %329 = vmatprep.subr.bf16.mxu0 %v288
    %330 = vmatpush1.bf16.msra.mxu0 %v287
    %331 = vmatprep.subr.bf16.mxu0 %v291
    %332 = vmatpush1.bf16.msra.mxu0 %v290
    %333 = vmatprep.subr.bf16.mxu0 0
    %334 = vmatpush1.bf16.msra.mxu0 0
    %335 = vmatprep.subr.bf16.mxu0 0
    %336 = vmatpush1.bf16.msra.mxu0 0
    %337 = vmatprep.subr.bf16.mxu0 0
    %338 = vmatpush1.bf16.msra.mxu0 0
    %339 = vmatprep.subr.bf16.mxu0 0
    %340 = vmatpush1.bf16.msra.mxu0 0
    %341 = vmatprep.subr.bf16.mxu0 0
    %342 = vmatpush1.bf16.msra.mxu0 0
    %343 = vmatprep.subr.bf16.mxu0 0
    %344 = vmatpush1.bf16.msra.mxu0 0
    %345 = vmatprep.subr.bf16.mxu0 0
    %346 = vmatpush1.bf16.msra.mxu0 0
    %347 = vmatprep.subr.bf16.mxu0 0
    %348 = vmatpush1.bf16.msra.mxu0 0
    %349 = vmatprep.mubr.bf16.mxu0 0
    %350 = vmatmul.mubr.bf16.gmra.mrb[0].mxu0 %v139
    %v351 = vpop.f32.mrb[0].mxu0
    %v352 = vadd.f32 %v177, %v351
    %v353 = vpop.f32.mrb[0].mxu0
    %v354 = vadd.f32 %v181, %v353
    %v355 = vpop.f32.mrb[0].mxu0
    %v356 = vadd.f32 %v177, %v355
    %v357 = vpop.f32.mrb[0].mxu0
    %v358 = vadd.f32 %v181, %v357
    %359 = vdwg.mxu0
    %360 = vmatprep.subr.bf16.mxu0 0
    %361 = vmatpush1.bf16.msra.mxu0 %v271
    %362 = vmatprep.subr.bf16.mxu0 0
    %363 = vmatpush1.bf16.msra.mxu0 %v274
    %364 = vmatprep.subr.bf16.mxu0 0
    %365 = vmatpush1.bf16.msra.mxu0 %v277
    %366 = vmatprep.subr.bf16.mxu0 0
    %367 = vmatpush1.bf16.msra.mxu0 %v280
    %368 = vmatprep.subr.bf16.mxu0 0
    %369 = vmatpush1.bf16.msra.mxu0 %v283
    %370 = vmatprep.subr.bf16.mxu0 0
    %371 = vmatpush1.bf16.msra.mxu0 %v286
    %372 = vmatprep.subr.bf16.mxu0 0
    %373 = vmatpush1.bf16.msra.mxu0 %v289
    %374 = vmatprep.subr.bf16.mxu0 0
    %375 = vmatpush1.bf16.msra.mxu0 %v292
    %376 = vmatprep.subr.bf16.mxu0 0
    %377 = vmatpush1.bf16.msra.mxu0 0
    %378 = vmatprep.subr.bf16.mxu0 0
    %379 = vmatpush1.bf16.msra.mxu0 0
    %380 = vmatprep.subr.bf16.mxu0 0
    %381 = vmatpush1.bf16.msra.mxu0 0
    %382 = vmatprep.subr.bf16.mxu0 0
    %383 = vmatpush1.bf16.msra.mxu0 0
    %384 = vmatprep.subr.bf16.mxu0 0
    %385 = vmatpush1.bf16.msra.mxu0 0
    %386 = vmatprep.subr.bf16.mxu0 0
    %387 = vmatpush1.bf16.msra.mxu0 0
    %388 = vmatprep.subr.bf16.mxu0 0
    %389 = vmatpush1.bf16.msra.mxu0 0
    %390 = vmatprep.subr.bf16.mxu0 0
    %391 = vmatpush1.bf16.msra.mxu0 0
    %392 = vmatprep.mubr.bf16.mxu0 0
    %393 = vmatmul.mubr.bf16.gmra.mrb[0].mxu0 %v139
    %v394 = vpop.f32.mrb[0].mxu0
    %v395 = vadd.f32 %v185, %v394
    %v396 = vpop.f32.mrb[0].mxu0
    %v397 = vpop.f32.mrb[0].mxu0
    %v398 = vadd.f32 %v185, %v397
    %v399 = vpop.f32.mrb[0].mxu0
    %400 = vdwg.mxu0
    %v401 = vpack.c.bf16 %v358, %v354
    %v402 = vpack.c.bf16 %v398, %v395
    %v403 = vpack.c.bf16 %v356, %v352
    %v420 = vunpack.c.l.b16 %v86
    %v421 = vunpack.c.l.b16 %v87
    %v422 = vunpack.c.l.b16 %v88
    %v423 = vunpack.c.l.b16 %v89
    %v424 = vunpack.c.l.b16 %v90
    %v425 = vunpack.c.l.b16 %v91
    %v426 = vunpack.c.l.b16 %v92
    %v427 = vunpack.c.l.b16 %v93
    %v428 = vunpack.c.l.b16 %v94
    %v429 = vunpack.c.l.b16 %v95
    %v430 = vunpack.c.l.b16 %v96
    %v431 = vunpack.c.l.b16 %v97
    %v432 = vunpack.c.l.b16 %v98
    %v433 = vunpack.c.l.b16 %v99
    %v434 = vunpack.c.l.b16 %v100
    %v435 = vunpack.c.l.b16 %v101
    %v436 = vpack.c.b16 %v421, %v420
    %v437 = vpack.c.b16 %v423, %v422
    %v438 = vpack.c.b16 %v425, %v424
    %v439 = vpack.c.b16 %v427, %v426
    %v440 = vpack.c.b16 %v429, %v428
    %v441 = vpack.c.b16 %v431, %v430
    %v442 = vpack.c.b16 %v433, %v432
    %v443 = vpack.c.b16 %v435, %v434
    %vm444 = vcmask 130048
    %v446 = vsel %vm444, %v436, 0
    %v449 = vsel %vm444, %v437, 0
    %v452 = vsel %vm444, %v438, 0
    %v455 = vsel %vm444, %v439, 0
    %v458 = vsel %vm444, %v440, 0
    %v461 = vsel %vm444, %v441, 0
    %v464 = vsel %vm444, %v442, 0
    %v467 = vsel %vm444, %v443, 0
    %469 = vmatprep.subr.bf16.mxu0 0
    %470 = vmatpush1.bf16.msra.mxu0 %v403
    %471 = vmatprep.subr.bf16.mxu0 0
    %472 = vmatpush1.bf16.msra.mxu0 0
    %473 = vmatprep.subr.bf16.mxu0 0
    %474 = vmatpush1.bf16.msra.mxu0 0
    %475 = vmatprep.subr.bf16.mxu0 0
    %476 = vmatpush1.bf16.msra.mxu0 0
    %477 = vmatprep.subr.bf16.mxu0 0
    %478 = vmatpush1.bf16.msra.mxu0 0
    %479 = vmatprep.subr.bf16.mxu0 0
    %480 = vmatpush1.bf16.msra.mxu0 0
    %481 = vmatprep.subr.bf16.mxu0 0
    %482 = vmatpush1.bf16.msra.mxu0 0
    %483 = vmatprep.subr.bf16.mxu0 0
    %484 = vmatpush1.bf16.msra.mxu0 0
    %485 = vmatprep.subr.bf16.mxu0 0
    %486 = vmatpush1.bf16.msra.mxu0 0
    %487 = vmatprep.subr.bf16.mxu0 0
    %488 = vmatpush1.bf16.msra.mxu0 0
    %489 = vmatprep.subr.bf16.mxu0 0
    %490 = vmatpush1.bf16.msra.mxu0 0
    %491 = vmatprep.subr.bf16.mxu0 0
    %492 = vmatpush1.bf16.msra.mxu0 0
    %493 = vmatprep.subr.bf16.mxu0 0
    %494 = vmatpush1.bf16.msra.mxu0 0
    %495 = vmatprep.subr.bf16.mxu0 0
    %496 = vmatpush1.bf16.msra.mxu0 0
    %497 = vmatprep.subr.bf16.mxu0 0
    %498 = vmatpush1.bf16.msra.mxu0 0
    %499 = vmatprep.subr.bf16.mxu0 0
    %500 = vmatpush1.bf16.msra.mxu0 0
    %501 = vmatprep.mubr.bf16.mxu0 0
    %502 = vmatmul.mubr.bf16.gmra.mrb[0].mxu0 %v446
    %v503 = vpop.f32.mrb[0].mxu0
    %v504 = vadd.f32 0.0, %v503
    %v505 = vpop.f32.mrb[0].mxu0
    %v506 = vpop.f32.mrb[0].mxu0
    %v507 = vadd.f32 0.0, %v506
    %v508 = vpop.f32.mrb[0].mxu0
    %509 = vmatprep.mubr.bf16.mxu0 0
    %510 = vmatmul.mubr.bf16.gmra.mrb[0].mxu0 %v449
    %v511 = vpop.f32.mrb[0].mxu0
    %v512 = vadd.f32 0.0, %v511
    %v513 = vpop.f32.mrb[0].mxu0
    %v514 = vpop.f32.mrb[0].mxu0
    %v515 = vadd.f32 0.0, %v514
    %v516 = vpop.f32.mrb[0].mxu0
    %517 = vmatprep.mubr.bf16.mxu0 0
    %518 = vmatmul.mubr.bf16.gmra.mrb[0].mxu0 %v452
    %v519 = vpop.f32.mrb[0].mxu0
    %v520 = vadd.f32 0.0, %v519
    %v521 = vpop.f32.mrb[0].mxu0
    %v522 = vpop.f32.mrb[0].mxu0
    %v523 = vadd.f32 0.0, %v522
    %v524 = vpop.f32.mrb[0].mxu0
    %525 = vmatprep.mubr.bf16.mxu0 0
    %526 = vmatmul.mubr.bf16.gmra.mrb[0].mxu0 %v455
    %v527 = vpop.f32.mrb[0].mxu0
    %v528 = vadd.f32 0.0, %v527
    %v529 = vpop.f32.mrb[0].mxu0
    %v530 = vpop.f32.mrb[0].mxu0
    %v531 = vadd.f32 0.0, %v530
    %v532 = vpop.f32.mrb[0].mxu0
    %533 = vmatprep.mubr.bf16.mxu0 0
    %534 = vmatmul.mubr.bf16.gmra.mrb[0].mxu0 %v458
    %v535 = vpop.f32.mrb[0].mxu0
    %v536 = vadd.f32 0.0, %v535
    %v537 = vpop.f32.mrb[0].mxu0
    %v538 = vpop.f32.mrb[0].mxu0
    %v539 = vadd.f32 0.0, %v538
    %v540 = vpop.f32.mrb[0].mxu0
    %541 = vmatprep.mubr.bf16.mxu0 0
    %542 = vmatmul.mubr.bf16.gmra.mrb[0].mxu0 %v461
    %v543 = vpop.f32.mrb[0].mxu0
    %v544 = vadd.f32 0.0, %v543
    %v545 = vpop.f32.mrb[0].mxu0
    %v546 = vpop.f32.mrb[0].mxu0
    %v547 = vadd.f32 0.0, %v546
    %v548 = vpop.f32.mrb[0].mxu0
    %549 = vmatprep.mubr.bf16.mxu0 0
    %550 = vmatmul.mubr.bf16.gmra.mrb[0].mxu0 %v464
    %v551 = vpop.f32.mrb[0].mxu0
    %v552 = vadd.f32 0.0, %v551
    %v553 = vpop.f32.mrb[0].mxu0
    %v554 = vpop.f32.mrb[0].mxu0
    %v555 = vadd.f32 0.0, %v554
    %v556 = vpop.f32.mrb[0].mxu0
    %557 = vmatprep.mubr.bf16.mxu0 0
    %558 = vmatmul.mubr.bf16.gmra.mrb[0].mxu0 %v467
    %v559 = vpop.f32.mrb[0].mxu0
    %v560 = vadd.f32 0.0, %v559
    %v561 = vpop.f32.mrb[0].mxu0
    %v562 = vpop.f32.mrb[0].mxu0
    %v563 = vadd.f32 0.0, %v562
    %v564 = vpop.f32.mrb[0].mxu0
    %565 = vdwg.mxu0
    %v566 = vpack.c.bf16 %v507, %v504
    %v567 = vpack.c.bf16 %v515, %v512
    %v568 = vpack.c.bf16 %v523, %v520
    %v569 = vpack.c.bf16 %v531, %v528
    %v570 = vpack.c.bf16 %v539, %v536
    %v571 = vpack.c.bf16 %v547, %v544
    %v572 = vpack.c.bf16 %v555, %v552
    %v573 = vpack.c.bf16 %v563, %v560
    %v590 = vunpack.c.l.b16 %v102
    %v591 = vunpack.c.l.b16 %v103
    %v592 = vunpack.c.l.b16 %v104
    %v593 = vunpack.c.l.b16 %v105
    %v594 = vunpack.c.l.b16 %v106
    %v595 = vunpack.c.l.b16 %v107
    %v596 = vunpack.c.l.b16 %v108
    %v597 = vunpack.c.l.b16 %v109
    %v598 = vunpack.c.l.b16 %v110
    %v599 = vunpack.c.l.b16 %v111
    %v600 = vunpack.c.l.b16 %v112
    %v601 = vunpack.c.l.b16 %v113
    %v602 = vunpack.c.l.b16 %v114
    %v603 = vunpack.c.l.b16 %v115
    %v604 = vunpack.c.l.b16 %v116
    %v605 = vunpack.c.l.b16 %v117
    %v606 = vpack.c.b16 %v591, %v590
    %v607 = vpack.c.b16 %v593, %v592
    %v608 = vpack.c.b16 %v595, %v594
    %v609 = vpack.c.b16 %v597, %v596
    %v610 = vpack.c.b16 %v599, %v598
    %v611 = vpack.c.b16 %v601, %v600
    %v612 = vpack.c.b16 %v603, %v602
    %v613 = vpack.c.b16 %v605, %v604
    %v622 = vmul.bf16 %v566, %v606
    %v623 = vmul.bf16 %v567, %v607
    %v624 = vmul.bf16 %v568, %v608
    %v625 = vmul.bf16 %v569, %v609
    %v626 = vmul.bf16 %v570, %v610
    %v627 = vmul.bf16 %v571, %v611
    %v628 = vmul.bf16 %v572, %v612
    %v629 = vmul.bf16 %v573, %v613
    %630 = vmatprep.subr.bf16.mxu0 0
    %631 = vmatpush1.bf16.xpose.msra.mxu0 %v401
    %632 = vmatprep.subr.bf16.mxu0 0
    %633 = vmatpush1.bf16.xpose.msra.mxu0 0
    %634 = vmatprep.subr.bf16.mxu0 0
    %635 = vmatpush1.bf16.xpose.msra.mxu0 0
    %636 = vmatprep.subr.bf16.mxu0 0
    %637 = vmatpush1.bf16.xpose.msra.mxu0 0
    %638 = vmatprep.subr.bf16.mxu0 0
    %639 = vmatpush1.bf16.xpose.msra.mxu0 0
    %640 = vmatprep.subr.bf16.mxu0 0
    %641 = vmatpush1.bf16.xpose.msra.mxu0 0
    %642 = vmatprep.subr.bf16.mxu0 0
    %643 = vmatpush1.bf16.xpose.msra.mxu0 0
    %644 = vmatprep.subr.bf16.mxu0 0
    %645 = vmatpush1.bf16.xpose.msra.mxu0 0
    %646 = vmatprep.subr.bf16.mxu0 0
    %647 = vmatpush1.bf16.xpose.msra.mxu0 0
    %648 = vmatprep.subr.bf16.mxu0 0
    %649 = vmatpush1.bf16.xpose.msra.mxu0 0
    %650 = vmatprep.subr.bf16.mxu0 0
    %651 = vmatpush1.bf16.xpose.msra.mxu0 0
    %652 = vmatprep.subr.bf16.mxu0 0
    %653 = vmatpush1.bf16.xpose.msra.mxu0 0
    %654 = vmatprep.subr.bf16.mxu0 0
    %655 = vmatpush1.bf16.xpose.msra.mxu0 0
    %656 = vmatprep.subr.bf16.mxu0 0
    %657 = vmatpush1.bf16.xpose.msra.mxu0 0
    %658 = vmatprep.subr.bf16.mxu0 0
    %659 = vmatpush1.bf16.xpose.msra.mxu0 0
    %660 = vmatprep.subr.bf16.mxu0 0
    %661 = vmatpush1.bf16.xpose.msra.mxu0 0
    %662 = vmatprep.mubr.bf16.mxu0 0
    %663 = vmatmul.mubr.bf16.gmra.mrb[0].mxu0 %v622
    %v664 = vpop.f32.mrb[0].mxu0
    %v665 = vadd.f32 %v120, %v664
    %v666 = vpop.f32.mrb[0].mxu0
    %v667 = vpop.f32.mrb[0].mxu0
    %v668 = vadd.f32 %v121, %v667
    %v669 = vpop.f32.mrb[0].mxu0
    %670 = vmatprep.mubr.bf16.mxu0 0
    %671 = vmatmul.mubr.bf16.gmra.mrb[0].mxu0 %v623
    %v672 = vpop.f32.mrb[0].mxu0
    %v673 = vadd.f32 %v122, %v672
    %v674 = vpop.f32.mrb[0].mxu0
    %v675 = vpop.f32.mrb[0].mxu0
    %v676 = vadd.f32 %v123, %v675
    %v677 = vpop.f32.mrb[0].mxu0
    %678 = vmatprep.mubr.bf16.mxu0 0
    %679 = vmatmul.mubr.bf16.gmra.mrb[0].mxu0 %v624
    %v680 = vpop.f32.mrb[0].mxu0
    %v681 = vadd.f32 %v124, %v680
    %v682 = vpop.f32.mrb[0].mxu0
    %v683 = vpop.f32.mrb[0].mxu0
    %v684 = vadd.f32 %v125, %v683
    %v685 = vpop.f32.mrb[0].mxu0
    %686 = vmatprep.mubr.bf16.mxu0 0
    %687 = vmatmul.mubr.bf16.gmra.mrb[0].mxu0 %v625
    %v688 = vpop.f32.mrb[0].mxu0
    %v689 = vadd.f32 %v126, %v688
    %v690 = vpop.f32.mrb[0].mxu0
    %v691 = vpop.f32.mrb[0].mxu0
    %v692 = vadd.f32 %v127, %v691
    %v693 = vpop.f32.mrb[0].mxu0
    %694 = vmatprep.mubr.bf16.mxu0 0
    %695 = vmatmul.mubr.bf16.gmra.mrb[0].mxu0 %v626
    %v696 = vpop.f32.mrb[0].mxu0
    %v697 = vadd.f32 %v128, %v696
    %v698 = vpop.f32.mrb[0].mxu0
    %v699 = vpop.f32.mrb[0].mxu0
    %v700 = vadd.f32 %v129, %v699
    %v701 = vpop.f32.mrb[0].mxu0
    %702 = vmatprep.mubr.bf16.mxu0 0
    %703 = vmatmul.mubr.bf16.gmra.mrb[0].mxu0 %v627
    %v704 = vpop.f32.mrb[0].mxu0
    %v705 = vadd.f32 %v130, %v704
    %v706 = vpop.f32.mrb[0].mxu0
    %v707 = vpop.f32.mrb[0].mxu0
    %v708 = vadd.f32 %v131, %v707
    %v709 = vpop.f32.mrb[0].mxu0
    %710 = vmatprep.mubr.bf16.mxu0 0
    %711 = vmatmul.mubr.bf16.gmra.mrb[0].mxu0 %v628
    %v712 = vpop.f32.mrb[0].mxu0
    %v713 = vadd.f32 %v132, %v712
    %v714 = vpop.f32.mrb[0].mxu0
    %v715 = vpop.f32.mrb[0].mxu0
    %v716 = vadd.f32 %v133, %v715
    %v717 = vpop.f32.mrb[0].mxu0
    %718 = vmatprep.mubr.bf16.mxu0 0
    %719 = vmatmul.mubr.bf16.gmra.mrb[0].mxu0 %v629
    %v720 = vpop.f32.mrb[0].mxu0
    %v721 = vadd.f32 %v134, %v720
    %v722 = vpop.f32.mrb[0].mxu0
    %v723 = vpop.f32.mrb[0].mxu0
    %v724 = vadd.f32 %v135, %v723
    %v725 = vpop.f32.mrb[0].mxu0
    %726 = vdwg.mxu0
    %v727 = vsel %vm444, %v665, -inf
    %728 = vmax.xlane.f32.xlu0 %v727
    %v729 = vpop.xlane.xlu0 %728
    %v730 = vsel %vm444, %v668, -inf
    %731 = vmax.xlane.f32.xlu0 %v730
    %v732 = vpop.xlane.xlu0 %731
    %v733 = vsel %vm444, %v673, -inf
    %734 = vmax.xlane.f32.xlu0 %v733
    %v735 = vpop.xlane.xlu0 %734
    %v736 = vsel %vm444, %v676, -inf
    %737 = vmax.xlane.f32.xlu0 %v736
    %v738 = vpop.xlane.xlu0 %737
    %v739 = vsel %vm444, %v681, -inf
    %740 = vmax.xlane.f32.xlu0 %v739
    %v741 = vpop.xlane.xlu0 %740
    %v742 = vsel %vm444, %v684, -inf
    %743 = vmax.xlane.f32.xlu0 %v742
    %v744 = vpop.xlane.xlu0 %743
    %v745 = vsel %vm444, %v689, -inf
    %746 = vmax.xlane.f32.xlu0 %v745
    %v747 = vpop.xlane.xlu0 %746
    %v748 = vsel %vm444, %v692, -inf
    %749 = vmax.xlane.f32.xlu0 %v748
    %v750 = vpop.xlane.xlu0 %749
    %v751 = vsel %vm444, %v697, -inf
    %752 = vmax.xlane.f32.xlu0 %v751
    %v753 = vpop.xlane.xlu0 %752
    %v754 = vsel %vm444, %v700, -inf
    %755 = vmax.xlane.f32.xlu0 %v754
    %v756 = vpop.xlane.xlu0 %755
    %v757 = vsel %vm444, %v705, -inf
    %758 = vmax.xlane.f32.xlu0 %v757
    %v759 = vpop.xlane.xlu0 %758
    %v760 = vsel %vm444, %v708, -inf
    %761 = vmax.xlane.f32.xlu0 %v760
    %v762 = vpop.xlane.xlu0 %761
    %v763 = vsel %vm444, %v713, -inf
    %764 = vmax.xlane.f32.xlu0 %v763
    %v765 = vpop.xlane.xlu0 %764
    %v766 = vsel %vm444, %v716, -inf
    %767 = vmax.xlane.f32.xlu0 %v766
    %v768 = vpop.xlane.xlu0 %767
    %v769 = vsel %vm444, %v721, -inf
    %770 = vmax.xlane.f32.xlu0 %v769
    %v771 = vpop.xlane.xlu0 %770
    %v772 = vsel %vm444, %v724, -inf
    %773 = vmax.xlane.f32.xlu0 %v772
    %v774 = vpop.xlane.xlu0 %773
    %v775 = vsub.f32 %v665, %v729
    %v776 = vsub.f32 %v668, %v732
    %v777 = vsub.f32 %v673, %v735
    %v778 = vsub.f32 %v676, %v738
    %v779 = vsub.f32 %v681, %v741
    %v780 = vsub.f32 %v684, %v744
    %v781 = vsub.f32 %v689, %v747
    %v782 = vsub.f32 %v692, %v750
    %v783 = vsub.f32 %v697, %v753
    %v784 = vsub.f32 %v700, %v756
    %v785 = vsub.f32 %v705, %v759
    %v786 = vsub.f32 %v708, %v762
    %v787 = vsub.f32 %v713, %v765
    %v788 = vsub.f32 %v716, %v768
    %v789 = vsub.f32 %v721, %v771
    %v790 = vsub.f32 %v724, %v774
    %v791 = vmul.f32 %v775, 1.442695
    %v792 = vpow.pop %v791
    %v793 = vmul.f32 %v776, 1.442695
    %v794 = vpow.pop %v793
    %v795 = vmul.f32 %v777, 1.442695
    %v796 = vpow.pop %v795
    %v797 = vmul.f32 %v778, 1.442695
    %v798 = vpow.pop %v797
    %v799 = vmul.f32 %v779, 1.442695
    %v800 = vpow.pop %v799
    %v801 = vmul.f32 %v780, 1.442695
    %v802 = vpow.pop %v801
    %v803 = vmul.f32 %v781, 1.442695
    %v804 = vpow.pop %v803
    %v805 = vmul.f32 %v782, 1.442695
    %v806 = vpow.pop %v805
    %v807 = vmul.f32 %v783, 1.442695
    %v808 = vpow.pop %v807
    %v809 = vmul.f32 %v784, 1.442695
    %v810 = vpow.pop %v809
    %v811 = vmul.f32 %v785, 1.442695
    %v812 = vpow.pop %v811
    %v813 = vmul.f32 %v786, 1.442695
    %v814 = vpow.pop %v813
    %v815 = vmul.f32 %v787, 1.442695
    %v816 = vpow.pop %v815
    %v817 = vmul.f32 %v788, 1.442695
    %v818 = vpow.pop %v817
    %v819 = vmul.f32 %v789, 1.442695
    %v820 = vpow.pop %v819
    %v821 = vmul.f32 %v790, 1.442695
    %v822 = vpow.pop %v821
    %v823 = vsel %vm444, %v792, 0.0
    %824 = vadd.xlane.f32.xlu0 %v823
    %v825 = vpop.xlane.xlu0 %824
    %v826 = vsel %vm444, %v794, 0.0
    %827 = vadd.xlane.f32.xlu0 %v826
    %v828 = vpop.xlane.xlu0 %827
    %v829 = vsel %vm444, %v796, 0.0
    %830 = vadd.xlane.f32.xlu0 %v829
    %v831 = vpop.xlane.xlu0 %830
    %v832 = vsel %vm444, %v798, 0.0
    %833 = vadd.xlane.f32.xlu0 %v832
    %v834 = vpop.xlane.xlu0 %833
    %v835 = vsel %vm444, %v800, 0.0
    %836 = vadd.xlane.f32.xlu0 %v835
    %v837 = vpop.xlane.xlu0 %836
    %v838 = vsel %vm444, %v802, 0.0
    %839 = vadd.xlane.f32.xlu0 %v838
    %v840 = vpop.xlane.xlu0 %839
    %v841 = vsel %vm444, %v804, 0.0
    %842 = vadd.xlane.f32.xlu0 %v841
    %v843 = vpop.xlane.xlu0 %842
    %v844 = vsel %vm444, %v806, 0.0
    %845 = vadd.xlane.f32.xlu0 %v844
    %v846 = vpop.xlane.xlu0 %845
    %v847 = vsel %vm444, %v808, 0.0
    %848 = vadd.xlane.f32.xlu0 %v847
    %v849 = vpop.xlane.xlu0 %848
    %v850 = vsel %vm444, %v810, 0.0
    %851 = vadd.xlane.f32.xlu0 %v850
    %v852 = vpop.xlane.xlu0 %851
    %v853 = vsel %vm444, %v812, 0.0
    %854 = vadd.xlane.f32.xlu0 %v853
    %v855 = vpop.xlane.xlu0 %854
    %v856 = vsel %vm444, %v814, 0.0
    %857 = vadd.xlane.f32.xlu0 %v856
    %v858 = vpop.xlane.xlu0 %857
    %v859 = vsel %vm444, %v816, 0.0
    %860 = vadd.xlane.f32.xlu0 %v859
    %v861 = vpop.xlane.xlu0 %860
    %v862 = vsel %vm444, %v818, 0.0
    %863 = vadd.xlane.f32.xlu0 %v862
    %v864 = vpop.xlane.xlu0 %863
    %v865 = vsel %vm444, %v820, 0.0
    %866 = vadd.xlane.f32.xlu0 %v865
    %v867 = vpop.xlane.xlu0 %866
    %v868 = vsel %vm444, %v822, 0.0
    %869 = vadd.xlane.f32.xlu0 %v868
    %v870 = vpop.xlane.xlu0 %869
    %v871 = vrcp.pop %v825
    %v872 = vrcp.pop %v828
    %v873 = vrcp.pop %v831
    %v874 = vrcp.pop %v834
    %v875 = vrcp.pop %v837
    %v876 = vrcp.pop %v840
    %v877 = vrcp.pop %v843
    %v878 = vrcp.pop %v846
    %v879 = vrcp.pop %v849
    %v880 = vrcp.pop %v852
    %v881 = vrcp.pop %v855
    %v882 = vrcp.pop %v858
    %v883 = vrcp.pop %v861
    %v884 = vrcp.pop %v864
    %v885 = vrcp.pop %v867
    %v886 = vrcp.pop %v870
    %v887 = vmul.f32 %v792, %v871
    %v888 = vmul.f32 %v794, %v872
    %v889 = vmul.f32 %v796, %v873
    %v890 = vmul.f32 %v798, %v874
    %v891 = vmul.f32 %v800, %v875
    %v892 = vmul.f32 %v802, %v876
    %v893 = vmul.f32 %v804, %v877
    %v894 = vmul.f32 %v806, %v878
    %v895 = vmul.f32 %v808, %v879
    %v896 = vmul.f32 %v810, %v880
    %v897 = vmul.f32 %v812, %v881
    %v898 = vmul.f32 %v814, %v882
    %v899 = vmul.f32 %v816, %v883
    %v900 = vmul.f32 %v818, %v884
    %v901 = vmul.f32 %v820, %v885
    %v902 = vmul.f32 %v822, %v886
    %v903 = vpack.c.bf16 %v888, %v887
    %v904 = vpack.c.bf16 %v890, %v889
    %v905 = vpack.c.bf16 %v892, %v891
    %v906 = vpack.c.bf16 %v894, %v893
    %v907 = vpack.c.bf16 %v896, %v895
    %v908 = vpack.c.bf16 %v898, %v897
    %v909 = vpack.c.bf16 %v900, %v899
    %v910 = vpack.c.bf16 %v902, %v901
    %v912 = vsel %vm444, %v903, 0
    %v915 = vsel %vm444, %v904, 0
    %v918 = vsel %vm444, %v905, 0
    %v921 = vsel %vm444, %v906, 0
    %v924 = vsel %vm444, %v907, 0
    %v927 = vsel %vm444, %v908, 0
    %v930 = vsel %vm444, %v909, 0
    %v933 = vsel %vm444, %v910, 0
    %935 = vmatprep.subr.bf16.mxu0 0
    %936 = vmatpush1.bf16.msra.mxu0 %v402
    %937 = vmatprep.subr.bf16.mxu0 0
    %938 = vmatpush1.bf16.msra.mxu0 0
    %939 = vmatprep.subr.bf16.mxu0 0
    %940 = vmatpush1.bf16.msra.mxu0 0
    %941 = vmatprep.subr.bf16.mxu0 0
    %942 = vmatpush1.bf16.msra.mxu0 0
    %943 = vmatprep.subr.bf16.mxu0 0
    %944 = vmatpush1.bf16.msra.mxu0 0
    %945 = vmatprep.subr.bf16.mxu0 0
    %946 = vmatpush1.bf16.msra.mxu0 0
    %947 = vmatprep.subr.bf16.mxu0 0
    %948 = vmatpush1.bf16.msra.mxu0 0
    %949 = vmatprep.subr.bf16.mxu0 0
    %950 = vmatpush1.bf16.msra.mxu0 0
    %951 = vmatprep.subr.bf16.mxu0 0
    %952 = vmatpush1.bf16.msra.mxu0 0
    %953 = vmatprep.subr.bf16.mxu0 0
    %954 = vmatpush1.bf16.msra.mxu0 0
    %955 = vmatprep.subr.bf16.mxu0 0
    %956 = vmatpush1.bf16.msra.mxu0 0
    %957 = vmatprep.subr.bf16.mxu0 0
    %958 = vmatpush1.bf16.msra.mxu0 0
    %959 = vmatprep.subr.bf16.mxu0 0
    %960 = vmatpush1.bf16.msra.mxu0 0
    %961 = vmatprep.subr.bf16.mxu0 0
    %962 = vmatpush1.bf16.msra.mxu0 0
    %963 = vmatprep.subr.bf16.mxu0 0
    %964 = vmatpush1.bf16.msra.mxu0 0
    %965 = vmatprep.subr.bf16.mxu0 0
    %966 = vmatpush1.bf16.msra.mxu0 0
    %967 = vmatprep.mubr.bf16.mxu0 0
    %968 = vmatmul.mubr.bf16.gmra.mrb[0].mxu0 %v912
    %v969 = vpop.f32.mrb[0].mxu0
    %v970 = vadd.f32 0.0, %v969
    %v971 = vpop.f32.mrb[0].mxu0
    %v972 = vpop.f32.mrb[0].mxu0
    %v973 = vadd.f32 0.0, %v972
    %v974 = vpop.f32.mrb[0].mxu0
    %975 = vmatprep.mubr.bf16.mxu0 0
    %976 = vmatmul.mubr.bf16.gmra.mrb[0].mxu0 %v915
    %v977 = vpop.f32.mrb[0].mxu0
    %v978 = vadd.f32 0.0, %v977
    %v979 = vpop.f32.mrb[0].mxu0
    %v980 = vpop.f32.mrb[0].mxu0
    %v981 = vadd.f32 0.0, %v980
    %v982 = vpop.f32.mrb[0].mxu0
    %983 = vmatprep.mubr.bf16.mxu0 0
    %984 = vmatmul.mubr.bf16.gmra.mrb[0].mxu0 %v918
    %v985 = vpop.f32.mrb[0].mxu0
    %v986 = vadd.f32 0.0, %v985
    %v987 = vpop.f32.mrb[0].mxu0
    %v988 = vpop.f32.mrb[0].mxu0
    %v989 = vadd.f32 0.0, %v988
    %v990 = vpop.f32.mrb[0].mxu0
    %991 = vmatprep.mubr.bf16.mxu0 0
    %992 = vmatmul.mubr.bf16.gmra.mrb[0].mxu0 %v921
    %v993 = vpop.f32.mrb[0].mxu0
    %v994 = vadd.f32 0.0, %v993
    %v995 = vpop.f32.mrb[0].mxu0
    %v996 = vpop.f32.mrb[0].mxu0
    %v997 = vadd.f32 0.0, %v996
    %v998 = vpop.f32.mrb[0].mxu0
    %999 = vmatprep.mubr.bf16.mxu0 0
    %1000 = vmatmul.mubr.bf16.gmra.mrb[0].mxu0 %v924
    %v1001 = vpop.f32.mrb[0].mxu0
    %v1002 = vadd.f32 0.0, %v1001
    %v1003 = vpop.f32.mrb[0].mxu0
    %v1004 = vpop.f32.mrb[0].mxu0
    %v1005 = vadd.f32 0.0, %v1004
    %v1006 = vpop.f32.mrb[0].mxu0
    %1007 = vmatprep.mubr.bf16.mxu0 0
    %1008 = vmatmul.mubr.bf16.gmra.mrb[0].mxu0 %v927
    %v1009 = vpop.f32.mrb[0].mxu0
    %v1010 = vadd.f32 0.0, %v1009
    %v1011 = vpop.f32.mrb[0].mxu0
    %v1012 = vpop.f32.mrb[0].mxu0
    %v1013 = vadd.f32 0.0, %v1012
    %v1014 = vpop.f32.mrb[0].mxu0
    %1015 = vmatprep.mubr.bf16.mxu0 0
    %1016 = vmatmul.mubr.bf16.gmra.mrb[0].mxu0 %v930
    %v1017 = vpop.f32.mrb[0].mxu0
    %v1018 = vadd.f32 0.0, %v1017
    %v1019 = vpop.f32.mrb[0].mxu0
    %v1020 = vpop.f32.mrb[0].mxu0
    %v1021 = vadd.f32 0.0, %v1020
    %v1022 = vpop.f32.mrb[0].mxu0
    %1023 = vmatprep.mubr.bf16.mxu0 0
    %1024 = vmatmul.mubr.bf16.gmra.mrb[0].mxu0 %v933
    %v1025 = vpop.f32.mrb[0].mxu0
    %v1026 = vadd.f32 0.0, %v1025
    %v1027 = vpop.f32.mrb[0].mxu0
    %v1028 = vpop.f32.mrb[0].mxu0
    %v1029 = vadd.f32 0.0, %v1028
    %v1030 = vpop.f32.mrb[0].mxu0
    %1031 = vdwg.mxu0
    %v1032 = vpack.c.bf16 %v973, %v970
    %v1033 = vpack.c.bf16 %v981, %v978
    %v1034 = vpack.c.bf16 %v989, %v986
    %v1035 = vpack.c.bf16 %v997, %v994
    %v1036 = vpack.c.bf16 %v1005, %v1002
    %v1037 = vpack.c.bf16 %v1013, %v1010
    %v1038 = vpack.c.bf16 %v1021, %v1018
    %v1039 = vpack.c.bf16 %v1029, %v1026
    %v1040 = vmul.bf16 %v1032, %v606
    %v1041 = vmul.bf16 %v1033, %v607
    %v1042 = vmul.bf16 %v1034, %v608
    %v1043 = vmul.bf16 %v1035, %v609
    %v1044 = vmul.bf16 %v1036, %v610
    %v1045 = vmul.bf16 %v1037, %v611
    %v1046 = vmul.bf16 %v1038, %v612
    %v1047 = vmul.bf16 %v1039, %v613
    %v1050 = vunpack.c.l.b16 %v118
    %v1051 = vunpack.c.l.b16 %v119
    %v1052 = vpack.c.b16 %v1051, %v1050
    %1054 = vmatprep.subr.bf16.mxu0 0
    %1055 = vmatpush1.bf16.msra.mxu0 %v1040
    %1056 = vmatprep.subr.bf16.mxu0 0
    %1057 = vmatpush1.bf16.msra.mxu0 %v1041
    %1058 = vmatprep.subr.bf16.mxu0 0
    %1059 = vmatpush1.bf16.msra.mxu0 %v1042
    %1060 = vmatprep.subr.bf16.mxu0 0
    %1061 = vmatpush1.bf16.msra.mxu0 %v1043
    %1062 = vmatprep.subr.bf16.mxu0 0
    %1063 = vmatpush1.bf16.msra.mxu0 %v1044
    %1064 = vmatprep.subr.bf16.mxu0 0
    %1065 = vmatpush1.bf16.msra.mxu0 %v1045
    %1066 = vmatprep.subr.bf16.mxu0 0
    %1067 = vmatpush1.bf16.msra.mxu0 %v1046
    %1068 = vmatprep.subr.bf16.mxu0 0
    %1069 = vmatpush1.bf16.msra.mxu0 %v1047
    %1070 = vmatprep.subr.bf16.mxu0 0
    %1071 = vmatpush1.bf16.msra.mxu0 0
    %1072 = vmatprep.subr.bf16.mxu0 0
    %1073 = vmatpush1.bf16.msra.mxu0 0
    %1074 = vmatprep.subr.bf16.mxu0 0
    %1075 = vmatpush1.bf16.msra.mxu0 0
    %1076 = vmatprep.subr.bf16.mxu0 0
    %1077 = vmatpush1.bf16.msra.mxu0 0
    %1078 = vmatprep.subr.bf16.mxu0 0
    %1079 = vmatpush1.bf16.msra.mxu0 0
    %1080 = vmatprep.subr.bf16.mxu0 0
    %1081 = vmatpush1.bf16.msra.mxu0 0
    %1082 = vmatprep.subr.bf16.mxu0 0
    %1083 = vmatpush1.bf16.msra.mxu0 0
    %1084 = vmatprep.subr.bf16.mxu0 0
    %1085 = vmatpush1.bf16.msra.mxu0 0
    %1086 = vmatprep.mubr.bf16.mxu0 0
    %1087 = vmatmul.mubr.bf16.gmra.mrb[0].mxu0 %v1052
    %v1088 = vpop.f32.mrb[0].mxu0
    %v1089 = vadd.f32 0.0, %v1088
    %v1090 = vpop.f32.mrb[0].mxu0
    %v1091 = vpop.f32.mrb[0].mxu0
    %v1092 = vadd.f32 0.0, %v1091
    %v1093 = vpop.f32.mrb[0].mxu0
    %1094 = vdwg.mxu0
    %v1095 = vpack.c.bf16 %v1092, %v1089
    %v1096 = vld [vmem:[%s2] sm:$0xf]
    %v1097 = vld [vmem:[%s2 + $0x4] sm:$0xf]
    %v1098 = vld [vmem:[%s2 + $0x8] sm:$0xf]
    %v1099 = vld [vmem:[%s2 + $0xc] sm:$0xf]
    %v1100 = vld [vmem:[%s2 + $0x10] sm:$0xf]
    %v1101 = vld [vmem:[%s2 + $0x14] sm:$0xf]
    %v1102 = vld [vmem:[%s2 + $0x18] sm:$0xf]
    %v1103 = vld [vmem:[%s2 + $0x1c] sm:$0xf]
    %v1104 = vld [vmem:[%s2 + $0x20] sm:$0xf]
    %v1105 = vld [vmem:[%s2 + $0x24] sm:$0xf]
    %v1106 = vld [vmem:[%s2 + $0x28] sm:$0xf]
    %v1107 = vld [vmem:[%s2 + $0x2c] sm:$0xf]
    %v1108 = vld [vmem:[%s2 + $0x30] sm:$0xf]
    %v1109 = vld [vmem:[%s2 + $0x34] sm:$0xf]
    %v1110 = vld [vmem:[%s2 + $0x38] sm:$0xf]
    %v1111 = vld [vmem:[%s2 + $0x3c] sm:$0xf]
    %v1112 = vlaneseq
    %v1113 = vshrl.u32 %v1112, 7
    %v1114 = vsub.s32 0, %v1113
    %v1115 = vrot.slane %v138, %v1114
    %v1132 = vunpack.c.l.b16 %v1096
    %v1133 = vunpack.c.l.b16 %v1097
    %v1134 = vunpack.c.l.b16 %v1098
    %v1135 = vunpack.c.l.b16 %v1099
    %v1136 = vunpack.c.l.b16 %v1100
    %v1137 = vunpack.c.l.b16 %v1101
    %v1138 = vunpack.c.l.b16 %v1102
    %v1139 = vunpack.c.l.b16 %v1103
    %v1140 = vunpack.c.l.b16 %v1104
    %v1141 = vunpack.c.l.b16 %v1105
    %v1142 = vunpack.c.l.b16 %v1106
    %v1143 = vunpack.c.l.b16 %v1107
    %v1144 = vunpack.c.l.b16 %v1108
    %v1145 = vunpack.c.l.b16 %v1109
    %v1146 = vunpack.c.l.b16 %v1110
    %v1147 = vunpack.c.l.b16 %v1111
    %v1148 = vpack.c.b16 %v1133, %v1132
    %v1149 = vpack.c.b16 %v1135, %v1134
    %v1150 = vpack.c.b16 %v1137, %v1136
    %v1151 = vpack.c.b16 %v1139, %v1138
    %v1152 = vpack.c.b16 %v1141, %v1140
    %v1153 = vpack.c.b16 %v1143, %v1142
    %v1154 = vpack.c.b16 %v1145, %v1144
    %v1155 = vpack.c.b16 %v1147, %v1146
    %1164 = vmatprep.subr.bf16.mxu0 0
    %1165 = vmatpush1.bf16.msra.mxu0 %v1148
    %1166 = vmatprep.subr.bf16.mxu0 0
    %1167 = vmatpush1.bf16.msra.mxu0 %v1149
    %1168 = vmatprep.subr.bf16.mxu0 0
    %1169 = vmatpush1.bf16.msra.mxu0 %v1150
    %1170 = vmatprep.subr.bf16.mxu0 0
    %1171 = vmatpush1.bf16.msra.mxu0 %v1151
    %1172 = vmatprep.subr.bf16.mxu0 0
    %1173 = vmatpush1.bf16.msra.mxu0 %v1152
    %1174 = vmatprep.subr.bf16.mxu0 0
    %1175 = vmatpush1.bf16.msra.mxu0 %v1153
    %1176 = vmatprep.subr.bf16.mxu0 0
    %1177 = vmatpush1.bf16.msra.mxu0 %v1154
    %1178 = vmatprep.subr.bf16.mxu0 0
    %1179 = vmatpush1.bf16.msra.mxu0 %v1155
    %1180 = vmatprep.subr.bf16.mxu0 0
    %1181 = vmatpush1.bf16.msra.mxu0 0
    %1182 = vmatprep.subr.bf16.mxu0 0
    %1183 = vmatpush1.bf16.msra.mxu0 0
    %1184 = vmatprep.subr.bf16.mxu0 0
    %1185 = vmatpush1.bf16.msra.mxu0 0
    %1186 = vmatprep.subr.bf16.mxu0 0
    %1187 = vmatpush1.bf16.msra.mxu0 0
    %1188 = vmatprep.subr.bf16.mxu0 0
    %1189 = vmatpush1.bf16.msra.mxu0 0
    %1190 = vmatprep.subr.bf16.mxu0 0
    %1191 = vmatpush1.bf16.msra.mxu0 0
    %1192 = vmatprep.subr.bf16.mxu0 0
    %1193 = vmatpush1.bf16.msra.mxu0 0
    %1194 = vmatprep.subr.bf16.mxu0 0
    %1195 = vmatpush1.bf16.msra.mxu0 0
    %1196 = vmatprep.mubr.bf16.mxu0 0
    %1197 = vmatmul.mubr.bf16.gmra.mrb[0].mxu0 %v1095
    %v1198 = vpop.f32.mrb[0].mxu0
    %v1199 = vadd.f32 %v1115, %v1198
    %v1200 = vpop.f32.mrb[0].mxu0
    %v1201 = vpop.f32.mrb[0].mxu0
    %v1202 = vadd.f32 %v1115, %v1201
    %v1203 = vpop.f32.mrb[0].mxu0
    %1204 = vdwg.mxu0
    %v1205 = vadd.f32 %v1199, %v136
    %v1206 = vadd.f32 %v1202, %v137
    %1207 = vadd.xlane.f32.xlu0 %v1205
    %v1208 = vpop.xlane.xlu0 %1207
    %1209 = vadd.xlane.f32.xlu0 %v1206
    %v1210 = vpop.xlane.xlu0 %1209
    %v1211 = vrcp.pop 128.0
    %v1212 = vmul.f32 %v1208, %v1211
    %v1213 = vmul.f32 %v1210, %v1211
    %v1214 = vsub.f32 %v1205, %v1212
    %v1215 = vsub.f32 %v1206, %v1213
    %v1216 = vmul.f32 %v1214, %v1214
    %v1217 = vmul.f32 %v1215, %v1215
    %1218 = vadd.xlane.f32.xlu0 %v1216
    %v1219 = vpop.xlane.xlu0 %1218
    %1220 = vadd.xlane.f32.xlu0 %v1217
    %v1221 = vpop.xlane.xlu0 %1220
    %v1222 = vmul.f32 %v1219, %v1211
    %v1223 = vmul.f32 %v1221, %v1211
    %v1224 = vadd.f32 %v1222, 1e-12
    %v1225 = vadd.f32 %v1223, 1e-12
    %v1226 = vrsqrt.pop %v1224
    %v1227 = vrsqrt.pop %v1225
    %v1228 = vmul.f32 %v1214, %v1226
    %v1229 = vmul.f32 %v1215, %v1227
    %v1230 = vlaneseq
    %v1231 = vshrl.u32 %v1230, 7
    %v1232 = vsub.s32 1, %v1231
    %v1233 = vrot.slane %v138, %v1232
    %v1234 = vmul.f32 %v1228, %v1233
    %v1235 = vmul.f32 %v1229, %v1233
    %v1236 = vlaneseq
    %v1237 = vshrl.u32 %v1236, 7
    %v1238 = vsub.s32 2, %v1237
    %v1239 = vrot.slane %v138, %v1238
    %v1240 = vadd.f32 %v1234, %v1239
    %v1241 = vadd.f32 %v1235, %v1239
    %v1242 = vpack.c.bf16 %v1241, %v1240
    %v1243 = vld [vmem:[#allocation4] sm:$0xff]
    %v1244 = vld [vmem:[#allocation4 + $0x8] sm:$0xff]
    %v1245 = vld [vmem:[#allocation4 + $0x10] sm:$0xff]
    %v1246 = vld [vmem:[#allocation4 + $0x18] sm:$0xff]
    %v1247 = vld [vmem:[#allocation4 + $0x20] sm:$0xff]
    %v1248 = vld [vmem:[#allocation4 + $0x28] sm:$0xff]
    %v1249 = vld [vmem:[#allocation4 + $0x30] sm:$0xff]
    %v1250 = vld [vmem:[#allocation4 + $0x38] sm:$0xff]
    %v1251 = vld [vmem:[#allocation4 + $0x40] sm:$0xff]
    %v1252 = vld [vmem:[#allocation4 + $0x48] sm:$0xff]
    %v1253 = vld [vmem:[#allocation4 + $0x50] sm:$0xff]
    %v1254 = vld [vmem:[#allocation4 + $0x58] sm:$0xff]
    %v1255 = vld [vmem:[#allocation4 + $0x60] sm:$0xff]
    %v1256 = vld [vmem:[#allocation4 + $0x68] sm:$0xff]
    %v1257 = vld [vmem:[#allocation4 + $0x70] sm:$0xff]
    %v1258 = vld [vmem:[#allocation4 + $0x78] sm:$0xff]
    %v1259 = vld [vmem:[#allocation4 + $0x80] sm:$0xff]
    %v1260 = vld [vmem:[#allocation4 + $0x88] sm:$0xff]
    %v1261 = vld [vmem:[#allocation4 + $0x90] sm:$0xff]
    %v1262 = vld [vmem:[#allocation4 + $0x98] sm:$0xff]
    %v1263 = vld [vmem:[#allocation4 + $0xa0] sm:$0xff]
    %v1264 = vld [vmem:[#allocation4 + $0xa8] sm:$0xff]
    %v1265 = vld [vmem:[#allocation4 + $0xb0] sm:$0xff]
    %v1266 = vld [vmem:[#allocation4 + $0xb8] sm:$0xff]
    %v1267 = vld [vmem:[#allocation4 + $0xc0] sm:$0xff]
    %v1268 = vld [vmem:[#allocation4 + $0xc8] sm:$0xff]
    %v1269 = vld [vmem:[#allocation4 + $0xd0] sm:$0xff]
    %v1270 = vld [vmem:[#allocation4 + $0xd8] sm:$0xff]
    %v1271 = vld [vmem:[#allocation4 + $0xe0] sm:$0xff]
    %v1272 = vld [vmem:[#allocation4 + $0xe8] sm:$0xff]
    %v1273 = vld [vmem:[#allocation4 + $0xf0] sm:$0xff]
    %v1274 = vld [vmem:[#allocation4 + $0xf8] sm:$0xff]
    %v1275 = vld [vmem:[%s7] sm:$0xf]
    %v1277 = vlaneseq
    %v1278 = vshrl.u32 %v1277, 7
    %v1279 = vsub.s32 0, %v1278
    %v1280 = vrot.slane %v1275, %v1279
    %v1281 = vlaneseq
    %v1282 = vshrl.u32 %v1281, 7
    %v1283 = vsub.s32 1, %v1282
    %v1284 = vrot.slane %v1275, %v1283
    %v1285 = vlaneseq
    %v1286 = vshrl.u32 %v1285, 7
    %v1287 = vsub.s32 2, %v1286
    %v1288 = vrot.slane %v1275, %v1287
    %v1289 = vlaneseq
    %v1290 = vshrl.u32 %v1289, 7
    %v1291 = vsub.s32 3, %v1290
    %v1292 = vrot.slane %v1275, %v1291
    %v1329 = vunpack.c.l.b16 %v1243
    %v1330 = vunpack.c.h.b16 %v1243
    %v1331 = vunpack.c.l.b16 %v1244
    %v1332 = vunpack.c.h.b16 %v1244
    %v1333 = vunpack.c.l.b16 %v1245
    %v1334 = vunpack.c.h.b16 %v1245
    %v1335 = vunpack.c.l.b16 %v1246
    %v1336 = vunpack.c.h.b16 %v1246
    %v1337 = vunpack.c.l.b16 %v1247
    %v1338 = vunpack.c.h.b16 %v1247
    %v1339 = vunpack.c.l.b16 %v1248
    %v1340 = vunpack.c.h.b16 %v1248
    %v1341 = vunpack.c.l.b16 %v1249
    %v1342 = vunpack.c.h.b16 %v1249
    %v1343 = vunpack.c.l.b16 %v1250
    %v1344 = vunpack.c.h.b16 %v1250
    %v1345 = vunpack.c.l.b16 %v1251
    %v1346 = vunpack.c.h.b16 %v1251
    %v1347 = vunpack.c.l.b16 %v1252
    %v1348 = vunpack.c.h.b16 %v1252
    %v1349 = vunpack.c.l.b16 %v1253
    %v1350 = vunpack.c.h.b16 %v1253
    %v1351 = vunpack.c.l.b16 %v1254
    %v1352 = vunpack.c.h.b16 %v1254
    %v1353 = vunpack.c.l.b16 %v1255
    %v1354 = vunpack.c.h.b16 %v1255
    %v1355 = vunpack.c.l.b16 %v1256
    %v1356 = vunpack.c.h.b16 %v1256
    %v1357 = vunpack.c.l.b16 %v1257
    %v1358 = vunpack.c.h.b16 %v1257
    %v1359 = vunpack.c.l.b16 %v1258
    %v1360 = vunpack.c.h.b16 %v1258
    %v1361 = vunpack.c.l.b16 %v1259
    %v1362 = vunpack.c.h.b16 %v1259
    %v1363 = vunpack.c.l.b16 %v1260
    %v1364 = vunpack.c.h.b16 %v1260
    %v1365 = vunpack.c.l.b16 %v1261
    %v1366 = vunpack.c.h.b16 %v1261
    %v1367 = vunpack.c.l.b16 %v1262
    %v1368 = vunpack.c.h.b16 %v1262
    %v1369 = vunpack.c.l.b16 %v1263
    %v1370 = vunpack.c.h.b16 %v1263
    %v1371 = vunpack.c.l.b16 %v1264
    %v1372 = vunpack.c.h.b16 %v1264
    %v1373 = vunpack.c.l.b16 %v1265
    %v1374 = vunpack.c.h.b16 %v1265
    %v1375 = vunpack.c.l.b16 %v1266
    %v1376 = vunpack.c.h.b16 %v1266
    %v1377 = vunpack.c.l.b16 %v1267
    %v1378 = vunpack.c.h.b16 %v1267
    %v1379 = vunpack.c.l.b16 %v1268
    %v1380 = vunpack.c.h.b16 %v1268
    %v1381 = vunpack.c.l.b16 %v1269
    %v1382 = vunpack.c.h.b16 %v1269
    %v1383 = vunpack.c.l.b16 %v1270
    %v1384 = vunpack.c.h.b16 %v1270
    %v1385 = vunpack.c.l.b16 %v1271
    %v1386 = vunpack.c.h.b16 %v1271
    %v1387 = vunpack.c.l.b16 %v1272
    %v1388 = vunpack.c.h.b16 %v1272
    %v1389 = vunpack.c.l.b16 %v1273
    %v1390 = vunpack.c.h.b16 %v1273
    %v1391 = vunpack.c.l.b16 %v1274
    %v1392 = vunpack.c.h.b16 %v1274
    %v1393 = vpack.c.b16 %v1333, %v1329
    %v1394 = vpack.c.b16 %v1334, %v1330
    %v1395 = vpack.c.b16 %v1335, %v1331
    %v1396 = vpack.c.b16 %v1336, %v1332
    %v1397 = vpack.c.b16 %v1341, %v1337
    %v1398 = vpack.c.b16 %v1342, %v1338
    %v1399 = vpack.c.b16 %v1343, %v1339
    %v1400 = vpack.c.b16 %v1344, %v1340
    %v1401 = vpack.c.b16 %v1349, %v1345
    %v1402 = vpack.c.b16 %v1350, %v1346
    %v1403 = vpack.c.b16 %v1351, %v1347
    %v1404 = vpack.c.b16 %v1352, %v1348
    %v1405 = vpack.c.b16 %v1357, %v1353
    %v1406 = vpack.c.b16 %v1358, %v1354
    %v1407 = vpack.c.b16 %v1359, %v1355
    %v1408 = vpack.c.b16 %v1360, %v1356
    %v1409 = vpack.c.b16 %v1365, %v1361
    %v1410 = vpack.c.b16 %v1366, %v1362
    %v1411 = vpack.c.b16 %v1367, %v1363
    %v1412 = vpack.c.b16 %v1368, %v1364
    %v1413 = vpack.c.b16 %v1373, %v1369
    %v1414 = vpack.c.b16 %v1374, %v1370
    %v1415 = vpack.c.b16 %v1375, %v1371
    %v1416 = vpack.c.b16 %v1376, %v1372
    %v1417 = vpack.c.b16 %v1381, %v1377
    %v1418 = vpack.c.b16 %v1382, %v1378
    %v1419 = vpack.c.b16 %v1383, %v1379
    %v1420 = vpack.c.b16 %v1384, %v1380
    %v1421 = vpack.c.b16 %v1389, %v1385
    %v1422 = vpack.c.b16 %v1390, %v1386
    %v1423 = vpack.c.b16 %v1391, %v1387
    %v1424 = vpack.c.b16 %v1392, %v1388
    %1457 = vmatprep.subr.bf16.mxu0 %v1394
    %1458 = vmatpush1.bf16.msra.mxu0 %v1393
    %1459 = vmatprep.subr.bf16.mxu0 %v1398
    %1460 = vmatpush1.bf16.msra.mxu0 %v1397
    %1461 = vmatprep.subr.bf16.mxu0 %v1402
    %1462 = vmatpush1.bf16.msra.mxu0 %v1401
    %1463 = vmatprep.subr.bf16.mxu0 %v1406
    %1464 = vmatpush1.bf16.msra.mxu0 %v1405
    %1465 = vmatprep.subr.bf16.mxu0 %v1410
    %1466 = vmatpush1.bf16.msra.mxu0 %v1409
    %1467 = vmatprep.subr.bf16.mxu0 %v1414
    %1468 = vmatpush1.bf16.msra.mxu0 %v1413
    %1469 = vmatprep.subr.bf16.mxu0 %v1418
    %1470 = vmatpush1.bf16.msra.mxu0 %v1417
    %1471 = vmatprep.subr.bf16.mxu0 %v1422
    %1472 = vmatpush1.bf16.msra.mxu0 %v1421
    %1473 = vmatprep.subr.bf16.mxu0 0
    %1474 = vmatpush1.bf16.msra.mxu0 0
    %1475 = vmatprep.subr.bf16.mxu0 0
    %1476 = vmatpush1.bf16.msra.mxu0 0
    %1477 = vmatprep.subr.bf16.mxu0 0
    %1478 = vmatpush1.bf16.msra.mxu0 0
    %1479 = vmatprep.subr.bf16.mxu0 0
    %1480 = vmatpush1.bf16.msra.mxu0 0
    %1481 = vmatprep.subr.bf16.mxu0 0
    %1482 = vmatpush1.bf16.msra.mxu0 0
    %1483 = vmatprep.subr.bf16.mxu0 0
    %1484 = vmatpush1.bf16.msra.mxu0 0
    %1485 = vmatprep.subr.bf16.mxu0 0
    %1486 = vmatpush1.bf16.msra.mxu0 0
    %1487 = vmatprep.subr.bf16.mxu0 0
    %1488 = vmatpush1.bf16.msra.mxu0 0
    %1489 = vmatprep.mubr.bf16.mxu0 0
    %1490 = vmatmul.mubr.bf16.gmra.mrb[0].mxu0 %v1242
    %v1491 = vpop.f32.mrb[0].mxu0
    %v1492 = vadd.f32 %v1280, %v1491
    %v1493 = vpop.f32.mrb[0].mxu0
    %v1494 = vadd.f32 %v1284, %v1493
    %v1495 = vpop.f32.mrb[0].mxu0
    %v1496 = vadd.f32 %v1280, %v1495
    %v1497 = vpop.f32.mrb[0].mxu0
    %v1498 = vadd.f32 %v1284, %v1497
    %1499 = vdwg.mxu0
    %1500 = vmatprep.subr.bf16.mxu0 %v1396
    %1501 = vmatpush1.bf16.msra.mxu0 %v1395
    %1502 = vmatprep.subr.bf16.mxu0 %v1400
    %1503 = vmatpush1.bf16.msra.mxu0 %v1399
    %1504 = vmatprep.subr.bf16.mxu0 %v1404
    %1505 = vmatpush1.bf16.msra.mxu0 %v1403
    %1506 = vmatprep.subr.bf16.mxu0 %v1408
    %1507 = vmatpush1.bf16.msra.mxu0 %v1407
    %1508 = vmatprep.subr.bf16.mxu0 %v1412
    %1509 = vmatpush1.bf16.msra.mxu0 %v1411
    %1510 = vmatprep.subr.bf16.mxu0 %v1416
    %1511 = vmatpush1.bf16.msra.mxu0 %v1415
    %1512 = vmatprep.subr.bf16.mxu0 %v1420
    %1513 = vmatpush1.bf16.msra.mxu0 %v1419
    %1514 = vmatprep.subr.bf16.mxu0 %v1424
    %1515 = vmatpush1.bf16.msra.mxu0 %v1423
    %1516 = vmatprep.subr.bf16.mxu0 0
    %1517 = vmatpush1.bf16.msra.mxu0 0
    %1518 = vmatprep.subr.bf16.mxu0 0
    %1519 = vmatpush1.bf16.msra.mxu0 0
    %1520 = vmatprep.subr.bf16.mxu0 0
    %1521 = vmatpush1.bf16.msra.mxu0 0
    %1522 = vmatprep.subr.bf16.mxu0 0
    %1523 = vmatpush1.bf16.msra.mxu0 0
    %1524 = vmatprep.subr.bf16.mxu0 0
    %1525 = vmatpush1.bf16.msra.mxu0 0
    %1526 = vmatprep.subr.bf16.mxu0 0
    %1527 = vmatpush1.bf16.msra.mxu0 0
    %1528 = vmatprep.subr.bf16.mxu0 0
    %1529 = vmatpush1.bf16.msra.mxu0 0
    %1530 = vmatprep.subr.bf16.mxu0 0
    %1531 = vmatpush1.bf16.msra.mxu0 0
    %1532 = vmatprep.mubr.bf16.mxu0 0
    %1533 = vmatmul.mubr.bf16.gmra.mrb[0].mxu0 %v1242
    %v1534 = vpop.f32.mrb[0].mxu0
    %v1535 = vadd.f32 %v1288, %v1534
    %v1536 = vpop.f32.mrb[0].mxu0
    %v1537 = vadd.f32 %v1292, %v1536
    %v1538 = vpop.f32.mrb[0].mxu0
    %v1539 = vadd.f32 %v1288, %v1538
    %v1540 = vpop.f32.mrb[0].mxu0
    %v1541 = vadd.f32 %v1292, %v1540
    %1542 = vdwg.mxu0
    %v1543 = vmul.f32 %v1492, 0.5
    %v1544 = vmul.f32 %v1494, 0.5
    %v1545 = vmul.f32 %v1535, 0.5
    %v1546 = vmul.f32 %v1537, 0.5
    %v1547 = vmul.f32 %v1496, 0.5
    %v1548 = vmul.f32 %v1498, 0.5
    %v1549 = vmul.f32 %v1539, 0.5
    %v1550 = vmul.f32 %v1541, 0.5
    %v1551 = vmul.f32 %v1492, 0.70710677
    %v1552 = vmul.f32 %v1494, 0.70710677
    %v1553 = vmul.f32 %v1535, 0.70710677
    %v1554 = vmul.f32 %v1537, 0.70710677
    %v1555 = vmul.f32 %v1496, 0.70710677
    %v1556 = vmul.f32 %v1498, 0.70710677
    %v1557 = vmul.f32 %v1539, 0.70710677
    %v1558 = vmul.f32 %v1541, 0.70710677
    %v1559 = vand.u32 2147483647, %v1551
    %v1560 = vand.u32 2147483647, %v1552
    %v1561 = vand.u32 2147483647, %v1553
    %v1562 = vand.u32 2147483647, %v1554
    %v1563 = vand.u32 2147483647, %v1555
    %v1564 = vand.u32 2147483647, %v1556
    %v1565 = vand.u32 2147483647, %v1557
    %v1566 = vand.u32 2147483647, %v1558
    %v1567 = vmul.f32 %v1559, 0.3275911
    %v1568 = vmul.f32 %v1560, 0.3275911
    %v1569 = vmul.f32 %v1561, 0.3275911
    %v1570 = vmul.f32 %v1562, 0.3275911
    %v1571 = vmul.f32 %v1563, 0.3275911
    %v1572 = vmul.f32 %v1564, 0.3275911
    %v1573 = vmul.f32 %v1565, 0.3275911
    %v1574 = vmul.f32 %v1566, 0.3275911
    %v1575 = vadd.f32 %v1567, 1.0
    %v1576 = vadd.f32 %v1568, 1.0
    %v1577 = vadd.f32 %v1569, 1.0
    %v1578 = vadd.f32 %v1570, 1.0
    %v1579 = vadd.f32 %v1571, 1.0
    %v1580 = vadd.f32 %v1572, 1.0
    %v1581 = vadd.f32 %v1573, 1.0
    %v1582 = vadd.f32 %v1574, 1.0
    %v1583 = vrcp.pop %v1575
    %v1584 = vmul.f32 1.0, %v1583
    %v1585 = vrcp.pop %v1576
    %v1586 = vmul.f32 1.0, %v1585
    %v1587 = vrcp.pop %v1577
    %v1588 = vmul.f32 1.0, %v1587
    %v1589 = vrcp.pop %v1578
    %v1590 = vmul.f32 1.0, %v1589
    %v1591 = vrcp.pop %v1579
    %v1592 = vmul.f32 1.0, %v1591
    %v1593 = vrcp.pop %v1580
    %v1594 = vmul.f32 1.0, %v1593
    %v1595 = vrcp.pop %v1581
    %v1596 = vmul.f32 1.0, %v1595
    %v1597 = vrcp.pop %v1582
    %v1598 = vmul.f32 1.0, %v1597
    %v1599 = vmul.f32 %v1584, 1.0614054
    %v1600 = vmul.f32 %v1586, 1.0614054
    %v1601 = vmul.f32 %v1588, 1.0614054
    %v1602 = vmul.f32 %v1590, 1.0614054
    %v1603 = vmul.f32 %v1592, 1.0614054
    %v1604 = vmul.f32 %v1594, 1.0614054
    %v1605 = vmul.f32 %v1596, 1.0614054
    %v1606 = vmul.f32 %v1598, 1.0614054
    %v1607 = vadd.f32 %v1599, -1.4531521
    %v1608 = vadd.f32 %v1600, -1.4531521
    %v1609 = vadd.f32 %v1601, -1.4531521
    %v1610 = vadd.f32 %v1602, -1.4531521
    %v1611 = vadd.f32 %v1603, -1.4531521
    %v1612 = vadd.f32 %v1604, -1.4531521
    %v1613 = vadd.f32 %v1605, -1.4531521
    %v1614 = vadd.f32 %v1606, -1.4531521
    %v1615 = vmul.f32 %v1607, %v1584
    %v1616 = vmul.f32 %v1608, %v1586
    %v1617 = vmul.f32 %v1609, %v1588
    %v1618 = vmul.f32 %v1610, %v1590
    %v1619 = vmul.f32 %v1611, %v1592
    %v1620 = vmul.f32 %v1612, %v1594
    %v1621 = vmul.f32 %v1613, %v1596
    %v1622 = vmul.f32 %v1614, %v1598
    %v1623 = vadd.f32 %v1615, 1.4214138
    %v1624 = vadd.f32 %v1616, 1.4214138
    %v1625 = vadd.f32 %v1617, 1.4214138
    %v1626 = vadd.f32 %v1618, 1.4214138
    %v1627 = vadd.f32 %v1619, 1.4214138
    %v1628 = vadd.f32 %v1620, 1.4214138
    %v1629 = vadd.f32 %v1621, 1.4214138
    %v1630 = vadd.f32 %v1622, 1.4214138
    %v1631 = vmul.f32 %v1623, %v1584
    %v1632 = vmul.f32 %v1624, %v1586
    %v1633 = vmul.f32 %v1625, %v1588
    %v1634 = vmul.f32 %v1626, %v1590
    %v1635 = vmul.f32 %v1627, %v1592
    %v1636 = vmul.f32 %v1628, %v1594
    %v1637 = vmul.f32 %v1629, %v1596
    %v1638 = vmul.f32 %v1630, %v1598
    %v1639 = vadd.f32 %v1631, -0.28449672
    %v1640 = vadd.f32 %v1632, -0.28449672
    %v1641 = vadd.f32 %v1633, -0.28449672
    %v1642 = vadd.f32 %v1634, -0.28449672
    %v1643 = vadd.f32 %v1635, -0.28449672
    %v1644 = vadd.f32 %v1636, -0.28449672
    %v1645 = vadd.f32 %v1637, -0.28449672
    %v1646 = vadd.f32 %v1638, -0.28449672
    %v1647 = vmul.f32 %v1639, %v1584
    %v1648 = vmul.f32 %v1640, %v1586
    %v1649 = vmul.f32 %v1641, %v1588
    %v1650 = vmul.f32 %v1642, %v1590
    %v1651 = vmul.f32 %v1643, %v1592
    %v1652 = vmul.f32 %v1644, %v1594
    %v1653 = vmul.f32 %v1645, %v1596
    %v1654 = vmul.f32 %v1646, %v1598
    %v1655 = vadd.f32 %v1647, 0.2548296
    %v1656 = vadd.f32 %v1648, 0.2548296
    %v1657 = vadd.f32 %v1649, 0.2548296
    %v1658 = vadd.f32 %v1650, 0.2548296
    %v1659 = vadd.f32 %v1651, 0.2548296
    %v1660 = vadd.f32 %v1652, 0.2548296
    %v1661 = vadd.f32 %v1653, 0.2548296
    %v1662 = vadd.f32 %v1654, 0.2548296
    %v1663 = vmul.f32 %v1655, %v1584
    %v1664 = vmul.f32 %v1656, %v1586
    %v1665 = vmul.f32 %v1657, %v1588
    %v1666 = vmul.f32 %v1658, %v1590
    %v1667 = vmul.f32 %v1659, %v1592
    %v1668 = vmul.f32 %v1660, %v1594
    %v1669 = vmul.f32 %v1661, %v1596
    %v1670 = vmul.f32 %v1662, %v1598
    %v1671 = vsub.f32 0.0, %v1559
    %v1672 = vsub.f32 0.0, %v1560
    %v1673 = vsub.f32 0.0, %v1561
    %v1674 = vsub.f32 0.0, %v1562
    %v1675 = vsub.f32 0.0, %v1563
    %v1676 = vsub.f32 0.0, %v1564
    %v1677 = vsub.f32 0.0, %v1565
    %v1678 = vsub.f32 0.0, %v1566
    %v1679 = vmul.f32 %v1671, %v1559
    %v1680 = vmul.f32 %v1672, %v1560
    %v1681 = vmul.f32 %v1673, %v1561
    %v1682 = vmul.f32 %v1674, %v1562
    %v1683 = vmul.f32 %v1675, %v1563
    %v1684 = vmul.f32 %v1676, %v1564
    %v1685 = vmul.f32 %v1677, %v1565
    %v1686 = vmul.f32 %v1678, %v1566
    %v1687 = vmul.f32 %v1679, 1.442695
    %v1688 = vpow.pop %v1687
    %v1689 = vmul.f32 %v1680, 1.442695
    %v1690 = vpow.pop %v1689
    %v1691 = vmul.f32 %v1681, 1.442695
    %v1692 = vpow.pop %v1691
    %v1693 = vmul.f32 %v1682, 1.442695
    %v1694 = vpow.pop %v1693
    %v1695 = vmul.f32 %v1683, 1.442695
    %v1696 = vpow.pop %v1695
    %v1697 = vmul.f32 %v1684, 1.442695
    %v1698 = vpow.pop %v1697
    %v1699 = vmul.f32 %v1685, 1.442695
    %v1700 = vpow.pop %v1699
    %v1701 = vmul.f32 %v1686, 1.442695
    %v1702 = vpow.pop %v1701
    %v1703 = vmul.f32 %v1663, %v1688
    %v1704 = vmul.f32 %v1664, %v1690
    %v1705 = vmul.f32 %v1665, %v1692
    %v1706 = vmul.f32 %v1666, %v1694
    %v1707 = vmul.f32 %v1667, %v1696
    %v1708 = vmul.f32 %v1668, %v1698
    %v1709 = vmul.f32 %v1669, %v1700
    %v1710 = vmul.f32 %v1670, %v1702
    %v1711 = vsub.f32 1.0, %v1703
    %v1712 = vsub.f32 1.0, %v1704
    %v1713 = vsub.f32 1.0, %v1705
    %v1714 = vsub.f32 1.0, %v1706
    %v1715 = vsub.f32 1.0, %v1707
    %v1716 = vsub.f32 1.0, %v1708
    %v1717 = vsub.f32 1.0, %v1709
    %v1718 = vsub.f32 1.0, %v1710
    %vm1719 = vcmp.ge.f32.partialorder %v1551, 0.0
    %vm1720 = vcmp.ge.f32.partialorder %v1552, 0.0
    %vm1721 = vcmp.ge.f32.partialorder %v1553, 0.0
    %vm1722 = vcmp.ge.f32.partialorder %v1554, 0.0
    %vm1723 = vcmp.ge.f32.partialorder %v1555, 0.0
    %vm1724 = vcmp.ge.f32.partialorder %v1556, 0.0
    %vm1725 = vcmp.ge.f32.partialorder %v1557, 0.0
    %vm1726 = vcmp.ge.f32.partialorder %v1558, 0.0
    %v1727 = vsub.f32 0.0, %v1711
    %v1728 = vsub.f32 0.0, %v1712
    %v1729 = vsub.f32 0.0, %v1713
    %v1730 = vsub.f32 0.0, %v1714
    %v1731 = vsub.f32 0.0, %v1715
    %v1732 = vsub.f32 0.0, %v1716
    %v1733 = vsub.f32 0.0, %v1717
    %v1734 = vsub.f32 0.0, %v1718
    %v1735 = vsel %vm1719, %v1711, %v1727
    %v1736 = vsel %vm1720, %v1712, %v1728
    %v1737 = vsel %vm1721, %v1713, %v1729
    %v1738 = vsel %vm1722, %v1714, %v1730
    %v1739 = vsel %vm1723, %v1715, %v1731
    %v1740 = vsel %vm1724, %v1716, %v1732
    %v1741 = vsel %vm1725, %v1717, %v1733
    %v1742 = vsel %vm1726, %v1718, %v1734
    %v1743 = vadd.f32 %v1735, 1.0
    %v1744 = vadd.f32 %v1736, 1.0
    %v1745 = vadd.f32 %v1737, 1.0
    %v1746 = vadd.f32 %v1738, 1.0
    %v1747 = vadd.f32 %v1739, 1.0
    %v1748 = vadd.f32 %v1740, 1.0
    %v1749 = vadd.f32 %v1741, 1.0
    %v1750 = vadd.f32 %v1742, 1.0
    %v1751 = vmul.f32 %v1543, %v1743
    %v1752 = vmul.f32 %v1544, %v1744
    %v1753 = vmul.f32 %v1545, %v1745
    %v1754 = vmul.f32 %v1546, %v1746
    %v1755 = vmul.f32 %v1547, %v1747
    %v1756 = vmul.f32 %v1548, %v1748
    %v1757 = vmul.f32 %v1549, %v1749
    %v1758 = vmul.f32 %v1550, %v1750
    %v1759 = vpack.c.bf16 %v1755, %v1751
    %v1760 = vpack.c.bf16 %v1756, %v1752
    %v1761 = vpack.c.bf16 %v1757, %v1753
    %v1762 = vpack.c.bf16 %v1758, %v1754
    %v1763 = vld [vmem:[#allocation6] sm:$0xf]
    %v1764 = vld [vmem:[#allocation6 + $0x4] sm:$0xf]
    %v1765 = vld [vmem:[#allocation6 + $0x8] sm:$0xf]
    %v1766 = vld [vmem:[#allocation6 + $0xc] sm:$0xf]
    %v1767 = vld [vmem:[#allocation6 + $0x10] sm:$0xf]
    %v1768 = vld [vmem:[#allocation6 + $0x14] sm:$0xf]
    %v1769 = vld [vmem:[#allocation6 + $0x18] sm:$0xf]
    %v1770 = vld [vmem:[#allocation6 + $0x1c] sm:$0xf]
    %v1771 = vld [vmem:[#allocation6 + $0x20] sm:$0xf]
    %v1772 = vld [vmem:[#allocation6 + $0x24] sm:$0xf]
    %v1773 = vld [vmem:[#allocation6 + $0x28] sm:$0xf]
    %v1774 = vld [vmem:[#allocation6 + $0x2c] sm:$0xf]
    %v1775 = vld [vmem:[#allocation6 + $0x30] sm:$0xf]
    %v1776 = vld [vmem:[#allocation6 + $0x34] sm:$0xf]
    %v1777 = vld [vmem:[#allocation6 + $0x38] sm:$0xf]
    %v1778 = vld [vmem:[#allocation6 + $0x3c] sm:$0xf]
    %v1779 = vld [vmem:[#allocation6 + $0x40] sm:$0xf]
    %v1780 = vld [vmem:[#allocation6 + $0x44] sm:$0xf]
    %v1781 = vld [vmem:[#allocation6 + $0x48] sm:$0xf]
    %v1782 = vld [vmem:[#allocation6 + $0x4c] sm:$0xf]
    %v1783 = vld [vmem:[#allocation6 + $0x50] sm:$0xf]
    %v1784 = vld [vmem:[#allocation6 + $0x54] sm:$0xf]
    %v1785 = vld [vmem:[#allocation6 + $0x58] sm:$0xf]
    %v1786 = vld [vmem:[#allocation6 + $0x5c] sm:$0xf]
    %v1787 = vld [vmem:[#allocation6 + $0x60] sm:$0xf]
    %v1788 = vld [vmem:[#allocation6 + $0x64] sm:$0xf]
    %v1789 = vld [vmem:[#allocation6 + $0x68] sm:$0xf]
    %v1790 = vld [vmem:[#allocation6 + $0x6c] sm:$0xf]
    %v1791 = vld [vmem:[#allocation6 + $0x70] sm:$0xf]
    %v1792 = vld [vmem:[#allocation6 + $0x74] sm:$0xf]
    %v1793 = vld [vmem:[#allocation6 + $0x78] sm:$0xf]
    %v1794 = vld [vmem:[#allocation6 + $0x7c] sm:$0xf]
    %v1795 = vld [vmem:[#allocation6 + $0x80] sm:$0xf]
    %v1796 = vld [vmem:[#allocation6 + $0x84] sm:$0xf]
    %v1797 = vld [vmem:[#allocation6 + $0x88] sm:$0xf]
    %v1798 = vld [vmem:[#allocation6 + $0x8c] sm:$0xf]
    %v1799 = vld [vmem:[#allocation6 + $0x90] sm:$0xf]
    %v1800 = vld [vmem:[#allocation6 + $0x94] sm:$0xf]
    %v1801 = vld [vmem:[#allocation6 + $0x98] sm:$0xf]
    %v1802 = vld [vmem:[#allocation6 + $0x9c] sm:$0xf]
    %v1803 = vld [vmem:[#allocation6 + $0xa0] sm:$0xf]
    %v1804 = vld [vmem:[#allocation6 + $0xa4] sm:$0xf]
    %v1805 = vld [vmem:[#allocation6 + $0xa8] sm:$0xf]
    %v1806 = vld [vmem:[#allocation6 + $0xac] sm:$0xf]
    %v1807 = vld [vmem:[#allocation6 + $0xb0] sm:$0xf]
    %v1808 = vld [vmem:[#allocation6 + $0xb4] sm:$0xf]
    %v1809 = vld [vmem:[#allocation6 + $0xb8] sm:$0xf]
    %v1810 = vld [vmem:[#allocation6 + $0xbc] sm:$0xf]
    %v1811 = vld [vmem:[#allocation6 + $0xc0] sm:$0xf]
    %v1812 = vld [vmem:[#allocation6 + $0xc4] sm:$0xf]
    %v1813 = vld [vmem:[#allocation6 + $0xc8] sm:$0xf]
    %v1814 = vld [vmem:[#allocation6 + $0xcc] sm:$0xf]
    %v1815 = vld [vmem:[#allocation6 + $0xd0] sm:$0xf]
    %v1816 = vld [vmem:[#allocation6 + $0xd4] sm:$0xf]
    %v1817 = vld [vmem:[#allocation6 + $0xd8] sm:$0xf]
    %v1818 = vld [vmem:[#allocation6 + $0xdc] sm:$0xf]
    %v1819 = vld [vmem:[#allocation6 + $0xe0] sm:$0xf]
    %v1820 = vld [vmem:[#allocation6 + $0xe4] sm:$0xf]
    %v1821 = vld [vmem:[#allocation6 + $0xe8] sm:$0xf]
    %v1822 = vld [vmem:[#allocation6 + $0xec] sm:$0xf]
    %v1823 = vld [vmem:[#allocation6 + $0xf0] sm:$0xf]
    %v1824 = vld [vmem:[#allocation6 + $0xf4] sm:$0xf]
    %v1825 = vld [vmem:[#allocation6 + $0xf8] sm:$0xf]
    %v1826 = vld [vmem:[#allocation6 + $0xfc] sm:$0xf]
    %v1827 = vlaneseq
    %v1828 = vshrl.u32 %v1827, 7
    %v1829 = vsub.s32 3, %v1828
    %v1830 = vrot.slane %v138, %v1829
    %v1895 = vunpack.c.l.b16 %v1763
    %v1896 = vunpack.c.l.b16 %v1764
    %v1897 = vunpack.c.l.b16 %v1765
    %v1898 = vunpack.c.l.b16 %v1766
    %v1899 = vunpack.c.l.b16 %v1767
    %v1900 = vunpack.c.l.b16 %v1768
    %v1901 = vunpack.c.l.b16 %v1769
    %v1902 = vunpack.c.l.b16 %v1770
    %v1903 = vunpack.c.l.b16 %v1771
    %v1904 = vunpack.c.l.b16 %v1772
    %v1905 = vunpack.c.l.b16 %v1773
    %v1906 = vunpack.c.l.b16 %v1774
    %v1907 = vunpack.c.l.b16 %v1775
    %v1908 = vunpack.c.l.b16 %v1776
    %v1909 = vunpack.c.l.b16 %v1777
    %v1910 = vunpack.c.l.b16 %v1778
    %v1911 = vunpack.c.l.b16 %v1779
    %v1912 = vunpack.c.l.b16 %v1780
    %v1913 = vunpack.c.l.b16 %v1781
    %v1914 = vunpack.c.l.b16 %v1782
    %v1915 = vunpack.c.l.b16 %v1783
    %v1916 = vunpack.c.l.b16 %v1784
    %v1917 = vunpack.c.l.b16 %v1785
    %v1918 = vunpack.c.l.b16 %v1786
    %v1919 = vunpack.c.l.b16 %v1787
    %v1920 = vunpack.c.l.b16 %v1788
    %v1921 = vunpack.c.l.b16 %v1789
    %v1922 = vunpack.c.l.b16 %v1790
    %v1923 = vunpack.c.l.b16 %v1791
    %v1924 = vunpack.c.l.b16 %v1792
    %v1925 = vunpack.c.l.b16 %v1793
    %v1926 = vunpack.c.l.b16 %v1794
    %v1927 = vunpack.c.l.b16 %v1795
    %v1928 = vunpack.c.l.b16 %v1796
    %v1929 = vunpack.c.l.b16 %v1797
    %v1930 = vunpack.c.l.b16 %v1798
    %v1931 = vunpack.c.l.b16 %v1799
    %v1932 = vunpack.c.l.b16 %v1800
    %v1933 = vunpack.c.l.b16 %v1801
    %v1934 = vunpack.c.l.b16 %v1802
    %v1935 = vunpack.c.l.b16 %v1803
    %v1936 = vunpack.c.l.b16 %v1804
    %v1937 = vunpack.c.l.b16 %v1805
    %v1938 = vunpack.c.l.b16 %v1806
    %v1939 = vunpack.c.l.b16 %v1807
    %v1940 = vunpack.c.l.b16 %v1808
    %v1941 = vunpack.c.l.b16 %v1809
    %v1942 = vunpack.c.l.b16 %v1810
    %v1943 = vunpack.c.l.b16 %v1811
    %v1944 = vunpack.c.l.b16 %v1812
    %v1945 = vunpack.c.l.b16 %v1813
    %v1946 = vunpack.c.l.b16 %v1814
    %v1947 = vunpack.c.l.b16 %v1815
    %v1948 = vunpack.c.l.b16 %v1816
    %v1949 = vunpack.c.l.b16 %v1817
    %v1950 = vunpack.c.l.b16 %v1818
    %v1951 = vunpack.c.l.b16 %v1819
    %v1952 = vunpack.c.l.b16 %v1820
    %v1953 = vunpack.c.l.b16 %v1821
    %v1954 = vunpack.c.l.b16 %v1822
    %v1955 = vunpack.c.l.b16 %v1823
    %v1956 = vunpack.c.l.b16 %v1824
    %v1957 = vunpack.c.l.b16 %v1825
    %v1958 = vunpack.c.l.b16 %v1826
    %v1959 = vpack.c.b16 %v1896, %v1895
    %v1960 = vpack.c.b16 %v1898, %v1897
    %v1961 = vpack.c.b16 %v1900, %v1899
    %v1962 = vpack.c.b16 %v1902, %v1901
    %v1963 = vpack.c.b16 %v1904, %v1903
    %v1964 = vpack.c.b16 %v1906, %v1905
    %v1965 = vpack.c.b16 %v1908, %v1907
    %v1966 = vpack.c.b16 %v1910, %v1909
    %v1967 = vpack.c.b16 %v1912, %v1911
    %v1968 = vpack.c.b16 %v1914, %v1913
    %v1969 = vpack.c.b16 %v1916, %v1915
    %v1970 = vpack.c.b16 %v1918, %v1917
    %v1971 = vpack.c.b16 %v1920, %v1919
    %v1972 = vpack.c.b16 %v1922, %v1921
    %v1973 = vpack.c.b16 %v1924, %v1923
    %v1974 = vpack.c.b16 %v1926, %v1925
    %v1975 = vpack.c.b16 %v1928, %v1927
    %v1976 = vpack.c.b16 %v1930, %v1929
    %v1977 = vpack.c.b16 %v1932, %v1931
    %v1978 = vpack.c.b16 %v1934, %v1933
    %v1979 = vpack.c.b16 %v1936, %v1935
    %v1980 = vpack.c.b16 %v1938, %v1937
    %v1981 = vpack.c.b16 %v1940, %v1939
    %v1982 = vpack.c.b16 %v1942, %v1941
    %v1983 = vpack.c.b16 %v1944, %v1943
    %v1984 = vpack.c.b16 %v1946, %v1945
    %v1985 = vpack.c.b16 %v1948, %v1947
    %v1986 = vpack.c.b16 %v1950, %v1949
    %v1987 = vpack.c.b16 %v1952, %v1951
    %v1988 = vpack.c.b16 %v1954, %v1953
    %v1989 = vpack.c.b16 %v1956, %v1955
    %v1990 = vpack.c.b16 %v1958, %v1957
    %2023 = vmatprep.subr.bf16.mxu0 0
    %2024 = vmatpush1.bf16.msra.mxu0 %v1959
    %2025 = vmatprep.subr.bf16.mxu0 0
    %2026 = vmatpush1.bf16.msra.mxu0 %v1960
    %2027 = vmatprep.subr.bf16.mxu0 0
    %2028 = vmatpush1.bf16.msra.mxu0 %v1961
    %2029 = vmatprep.subr.bf16.mxu0 0
    %2030 = vmatpush1.bf16.msra.mxu0 %v1962
    %2031 = vmatprep.subr.bf16.mxu0 0
    %2032 = vmatpush1.bf16.msra.mxu0 %v1963
    %2033 = vmatprep.subr.bf16.mxu0 0
    %2034 = vmatpush1.bf16.msra.mxu0 %v1964
    %2035 = vmatprep.subr.bf16.mxu0 0
    %2036 = vmatpush1.bf16.msra.mxu0 %v1965
    %2037 = vmatprep.subr.bf16.mxu0 0
    %2038 = vmatpush1.bf16.msra.mxu0 %v1966
    %2039 = vmatprep.subr.bf16.mxu0 0
    %2040 = vmatpush1.bf16.msra.mxu0 %v1967
    %2041 = vmatprep.subr.bf16.mxu0 0
    %2042 = vmatpush1.bf16.msra.mxu0 %v1968
    %2043 = vmatprep.subr.bf16.mxu0 0
    %2044 = vmatpush1.bf16.msra.mxu0 %v1969
    %2045 = vmatprep.subr.bf16.mxu0 0
    %2046 = vmatpush1.bf16.msra.mxu0 %v1970
    %2047 = vmatprep.subr.bf16.mxu0 0
    %2048 = vmatpush1.bf16.msra.mxu0 %v1971
    %2049 = vmatprep.subr.bf16.mxu0 0
    %2050 = vmatpush1.bf16.msra.mxu0 %v1972
    %2051 = vmatprep.subr.bf16.mxu0 0
    %2052 = vmatpush1.bf16.msra.mxu0 %v1973
    %2053 = vmatprep.subr.bf16.mxu0 0
    %2054 = vmatpush1.bf16.msra.mxu0 %v1974
    %2055 = vmatprep.mubr.bf16.mxu0 %v1760
    %2056 = vmatmul.mubr.bf16.gmra.mrb[0].mxu0 %v1759
    %v2057 = vpop.f32.mrb[0].mxu0
    %v2058 = vadd.f32 %v1830, %v2057
    %v2059 = vpop.f32.mrb[0].mxu0
    %v2060 = vpop.f32.mrb[0].mxu0
    %v2061 = vadd.f32 %v1830, %v2060
    %v2062 = vpop.f32.mrb[0].mxu0
    %2063 = vdwg.mxu0
    %2064 = vmatprep.subr.bf16.mxu0 0
    %2065 = vmatpush1.bf16.msra.mxu0 %v1975
    %2066 = vmatprep.subr.bf16.mxu0 0
    %2067 = vmatpush1.bf16.msra.mxu0 %v1976
    %2068 = vmatprep.subr.bf16.mxu0 0
    %2069 = vmatpush1.bf16.msra.mxu0 %v1977
    %2070 = vmatprep.subr.bf16.mxu0 0
    %2071 = vmatpush1.bf16.msra.mxu0 %v1978
    %2072 = vmatprep.subr.bf16.mxu0 0
    %2073 = vmatpush1.bf16.msra.mxu0 %v1979
    %2074 = vmatprep.subr.bf16.mxu0 0
    %2075 = vmatpush1.bf16.msra.mxu0 %v1980
    %2076 = vmatprep.subr.bf16.mxu0 0
    %2077 = vmatpush1.bf16.msra.mxu0 %v1981
    %2078 = vmatprep.subr.bf16.mxu0 0
    %2079 = vmatpush1.bf16.msra.mxu0 %v1982
    %2080 = vmatprep.subr.bf16.mxu0 0
    %2081 = vmatpush1.bf16.msra.mxu0 %v1983
    %2082 = vmatprep.subr.bf16.mxu0 0
    %2083 = vmatpush1.bf16.msra.mxu0 %v1984
    %2084 = vmatprep.subr.bf16.mxu0 0
    %2085 = vmatpush1.bf16.msra.mxu0 %v1985
    %2086 = vmatprep.subr.bf16.mxu0 0
    %2087 = vmatpush1.bf16.msra.mxu0 %v1986
    %2088 = vmatprep.subr.bf16.mxu0 0
    %2089 = vmatpush1.bf16.msra.mxu0 %v1987
    %2090 = vmatprep.subr.bf16.mxu0 0
    %2091 = vmatpush1.bf16.msra.mxu0 %v1988
    %2092 = vmatprep.subr.bf16.mxu0 0
    %2093 = vmatpush1.bf16.msra.mxu0 %v1989
    %2094 = vmatprep.subr.bf16.mxu0 0
    %2095 = vmatpush1.bf16.msra.mxu0 %v1990
    %2096 = vmatprep.mubr.bf16.mxu0 %v1762
    %2097 = vmatmul.mubr.bf16.gmra.mrb[0].mxu0 %v1761
    %v2098 = vpop.f32.mrb[0].mxu0
    %v2099 = vadd.f32 %v2058, %v2098
    %v2100 = vpop.f32.mrb[0].mxu0
    %v2101 = vpop.f32.mrb[0].mxu0
    %v2102 = vadd.f32 %v2061, %v2101
    %v2103 = vpop.f32.mrb[0].mxu0
    %2104 = vdwg.mxu0
    %v2105 = vadd.f32 %v2099, %v1240
    %v2106 = vadd.f32 %v2102, %v1241
    %2107 = vadd.xlane.f32.xlu0 %v2105
    %v2108 = vpop.xlane.xlu0 %2107
    %2109 = vadd.xlane.f32.xlu0 %v2106
    %v2110 = vpop.xlane.xlu0 %2109
    %v2111 = vmul.f32 %v2108, %v1211
    %v2112 = vmul.f32 %v2110, %v1211
    %v2113 = vsub.f32 %v2105, %v2111
    %v2114 = vsub.f32 %v2106, %v2112
    %v2115 = vmul.f32 %v2113, %v2113
    %v2116 = vmul.f32 %v2114, %v2114
    %2117 = vadd.xlane.f32.xlu0 %v2115
    %v2118 = vpop.xlane.xlu0 %2117
    %2119 = vadd.xlane.f32.xlu0 %v2116
    %v2120 = vpop.xlane.xlu0 %2119
    %v2121 = vmul.f32 %v2118, %v1211
    %v2122 = vmul.f32 %v2120, %v1211
    %v2123 = vadd.f32 %v2121, 1e-12
    %v2124 = vadd.f32 %v2122, 1e-12
    %v2125 = vrsqrt.pop %v2123
    %v2126 = vrsqrt.pop %v2124
    %v2127 = vmul.f32 %v2113, %v2125
    %v2128 = vmul.f32 %v2114, %v2126
    %v2129 = vlaneseq
    %v2130 = vshrl.u32 %v2129, 7
    %v2131 = vsub.s32 4, %v2130
    %v2132 = vrot.slane %v138, %v2131
    %v2133 = vmul.f32 %v2127, %v2132
    %v2134 = vmul.f32 %v2128, %v2132
    %v2135 = vlaneseq
    %v2136 = vshrl.u32 %v2135, 7
    %v2137 = vsub.s32 5, %v2136
    %v2138 = vrot.slane %v138, %v2137
    %v2139 = vadd.f32 %v2133, %v2138
    %v2140 = vadd.f32 %v2134, %v2138
    %s2141 = scalar_lea.vmem %s6, 8
    %v2142 = vld [vmem:[%s2141] sm:$0x3f]
    %v2143 = vpack.c.bf16 %v2140, %v2139
    %s2144 = scalar_lea.vmem [#allocation2], 192
    %v2145 = vld [vmem:[%s2144] sm:$0xff]
    %v2146 = vld [vmem:[%s2144 + $0x8] sm:$0xf]
    %v2147 = vld [vmem:[%s2144 + $0xc] sm:$0xff]
    %v2148 = vld [vmem:[%s2144 + $0x14] sm:$0xf]
    %v2149 = vld [vmem:[%s2144 + $0x18] sm:$0xff]
    %v2150 = vld [vmem:[%s2144 + $0x20] sm:$0xf]
    %v2151 = vld [vmem:[%s2144 + $0x24] sm:$0xff]
    %v2152 = vld [vmem:[%s2144 + $0x2c] sm:$0xf]
    %v2153 = vld [vmem:[%s2144 + $0x30] sm:$0xff]
    %v2154 = vld [vmem:[%s2144 + $0x38] sm:$0xf]
    %v2155 = vld [vmem:[%s2144 + $0x3c] sm:$0xff]
    %v2156 = vld [vmem:[%s2144 + $0x44] sm:$0xf]
    %v2157 = vld [vmem:[%s2144 + $0x48] sm:$0xff]
    %v2158 = vld [vmem:[%s2144 + $0x50] sm:$0xf]
    %v2159 = vld [vmem:[%s2144 + $0x54] sm:$0xff]
    %v2160 = vld [vmem:[%s2144 + $0x5c] sm:$0xf]
    %v2161 = vld [vmem:[%s2144 + $0x60] sm:$0xff]
    %v2162 = vld [vmem:[%s2144 + $0x68] sm:$0xf]
    %v2163 = vld [vmem:[%s2144 + $0x6c] sm:$0xff]
    %v2164 = vld [vmem:[%s2144 + $0x74] sm:$0xf]
    %v2165 = vld [vmem:[%s2144 + $0x78] sm:$0xff]
    %v2166 = vld [vmem:[%s2144 + $0x80] sm:$0xf]
    %v2167 = vld [vmem:[%s2144 + $0x84] sm:$0xff]
    %v2168 = vld [vmem:[%s2144 + $0x8c] sm:$0xf]
    %v2169 = vld [vmem:[%s2144 + $0x90] sm:$0xff]
    %v2170 = vld [vmem:[%s2144 + $0x98] sm:$0xf]
    %v2171 = vld [vmem:[%s2144 + $0x9c] sm:$0xff]
    %v2172 = vld [vmem:[%s2144 + $0xa4] sm:$0xf]
    %v2173 = vld [vmem:[%s2144 + $0xa8] sm:$0xff]
    %v2174 = vld [vmem:[%s2144 + $0xb0] sm:$0xf]
    %v2175 = vld [vmem:[%s2144 + $0xb4] sm:$0xff]
    %v2176 = vld [vmem:[%s2144 + $0xbc] sm:$0xf]
    %s2177 = scalar_lea.vmem %s5, 3
    %v2178 = vld [vmem:[%s2177] sm:$0x7]
    %v2180 = vlaneseq
    %v2181 = vshrl.u32 %v2180, 7
    %v2182 = vsub.s32 0, %v2181
    %v2183 = vrot.slane %v2178, %v2182
    %v2184 = vlaneseq
    %v2185 = vshrl.u32 %v2184, 7
    %v2186 = vsub.s32 1, %v2185
    %v2187 = vrot.slane %v2178, %v2186
    %v2188 = vlaneseq
    %v2189 = vshrl.u32 %v2188, 7
    %v2190 = vsub.s32 2, %v2189
    %v2191 = vrot.slane %v2178, %v2190
    %v2227 = vunpack.c.l.b16 %v2145
    %v2228 = vunpack.c.h.b16 %v2145
    %v2229 = vunpack.c.l.b16 %v2146
    %v2230 = vunpack.c.l.b16 %v2147
    %v2231 = vunpack.c.h.b16 %v2147
    %v2232 = vunpack.c.l.b16 %v2148
    %v2233 = vunpack.c.l.b16 %v2149
    %v2234 = vunpack.c.h.b16 %v2149
    %v2235 = vunpack.c.l.b16 %v2150
    %v2236 = vunpack.c.l.b16 %v2151
    %v2237 = vunpack.c.h.b16 %v2151
    %v2238 = vunpack.c.l.b16 %v2152
    %v2239 = vunpack.c.l.b16 %v2153
    %v2240 = vunpack.c.h.b16 %v2153
    %v2241 = vunpack.c.l.b16 %v2154
    %v2242 = vunpack.c.l.b16 %v2155
    %v2243 = vunpack.c.h.b16 %v2155
    %v2244 = vunpack.c.l.b16 %v2156
    %v2245 = vunpack.c.l.b16 %v2157
    %v2246 = vunpack.c.h.b16 %v2157
    %v2247 = vunpack.c.l.b16 %v2158
    %v2248 = vunpack.c.l.b16 %v2159
    %v2249 = vunpack.c.h.b16 %v2159
    %v2250 = vunpack.c.l.b16 %v2160
    %v2251 = vunpack.c.l.b16 %v2161
    %v2252 = vunpack.c.h.b16 %v2161
    %v2253 = vunpack.c.l.b16 %v2162
    %v2254 = vunpack.c.l.b16 %v2163
    %v2255 = vunpack.c.h.b16 %v2163
    %v2256 = vunpack.c.l.b16 %v2164
    %v2257 = vunpack.c.l.b16 %v2165
    %v2258 = vunpack.c.h.b16 %v2165
    %v2259 = vunpack.c.l.b16 %v2166
    %v2260 = vunpack.c.l.b16 %v2167
    %v2261 = vunpack.c.h.b16 %v2167
    %v2262 = vunpack.c.l.b16 %v2168
    %v2263 = vunpack.c.l.b16 %v2169
    %v2264 = vunpack.c.h.b16 %v2169
    %v2265 = vunpack.c.l.b16 %v2170
    %v2266 = vunpack.c.l.b16 %v2171
    %v2267 = vunpack.c.h.b16 %v2171
    %v2268 = vunpack.c.l.b16 %v2172
    %v2269 = vunpack.c.l.b16 %v2173
    %v2270 = vunpack.c.h.b16 %v2173
    %v2271 = vunpack.c.l.b16 %v2174
    %v2272 = vunpack.c.l.b16 %v2175
    %v2273 = vunpack.c.h.b16 %v2175
    %v2274 = vunpack.c.l.b16 %v2176
    %v2275 = vpack.c.b16 %v2230, %v2227
    %v2276 = vpack.c.b16 %v2231, %v2228
    %v2277 = vpack.c.b16 %v2232, %v2229
    %v2278 = vpack.c.b16 %v2236, %v2233
    %v2279 = vpack.c.b16 %v2237, %v2234
    %v2280 = vpack.c.b16 %v2238, %v2235
    %v2281 = vpack.c.b16 %v2242, %v2239
    %v2282 = vpack.c.b16 %v2243, %v2240
    %v2283 = vpack.c.b16 %v2244, %v2241
    %v2284 = vpack.c.b16 %v2248, %v2245
    %v2285 = vpack.c.b16 %v2249, %v2246
    %v2286 = vpack.c.b16 %v2250, %v2247
    %v2287 = vpack.c.b16 %v2254, %v2251
    %v2288 = vpack.c.b16 %v2255, %v2252
    %v2289 = vpack.c.b16 %v2256, %v2253
    %v2290 = vpack.c.b16 %v2260, %v2257
    %v2291 = vpack.c.b16 %v2261, %v2258
    %v2292 = vpack.c.b16 %v2262, %v2259
    %v2293 = vpack.c.b16 %v2266, %v2263
    %v2294 = vpack.c.b16 %v2267, %v2264
    %v2295 = vpack.c.b16 %v2268, %v2265
    %v2296 = vpack.c.b16 %v2272, %v2269
    %v2297 = vpack.c.b16 %v2273, %v2270
    %v2298 = vpack.c.b16 %v2274, %v2271
    %2323 = vmatprep.subr.bf16.mxu0 %v2276
    %2324 = vmatpush1.bf16.msra.mxu0 %v2275
    %2325 = vmatprep.subr.bf16.mxu0 %v2279
    %2326 = vmatpush1.bf16.msra.mxu0 %v2278
    %2327 = vmatprep.subr.bf16.mxu0 %v2282
    %2328 = vmatpush1.bf16.msra.mxu0 %v2281
    %2329 = vmatprep.subr.bf16.mxu0 %v2285
    %2330 = vmatpush1.bf16.msra.mxu0 %v2284
    %2331 = vmatprep.subr.bf16.mxu0 %v2288
    %2332 = vmatpush1.bf16.msra.mxu0 %v2287
    %2333 = vmatprep.subr.bf16.mxu0 %v2291
    %2334 = vmatpush1.bf16.msra.mxu0 %v2290
    %2335 = vmatprep.subr.bf16.mxu0 %v2294
    %2336 = vmatpush1.bf16.msra.mxu0 %v2293
    %2337 = vmatprep.subr.bf16.mxu0 %v2297
    %2338 = vmatpush1.bf16.msra.mxu0 %v2296
    %2339 = vmatprep.subr.bf16.mxu0 0
    %2340 = vmatpush1.bf16.msra.mxu0 0
    %2341 = vmatprep.subr.bf16.mxu0 0
    %2342 = vmatpush1.bf16.msra.mxu0 0
    %2343 = vmatprep.subr.bf16.mxu0 0
    %2344 = vmatpush1.bf16.msra.mxu0 0
    %2345 = vmatprep.subr.bf16.mxu0 0
    %2346 = vmatpush1.bf16.msra.mxu0 0
    %2347 = vmatprep.subr.bf16.mxu0 0
    %2348 = vmatpush1.bf16.msra.mxu0 0
    %2349 = vmatprep.subr.bf16.mxu0 0
    %2350 = vmatpush1.bf16.msra.mxu0 0
    %2351 = vmatprep.subr.bf16.mxu0 0
    %2352 = vmatpush1.bf16.msra.mxu0 0
    %2353 = vmatprep.subr.bf16.mxu0 0
    %2354 = vmatpush1.bf16.msra.mxu0 0
    %2355 = vmatprep.mubr.bf16.mxu0 0
    %2356 = vmatmul.mubr.bf16.gmra.mrb[0].mxu0 %v2143
    %v2357 = vpop.f32.mrb[0].mxu0
    %v2358 = vadd.f32 %v2183, %v2357
    %v2359 = vpop.f32.mrb[0].mxu0
    %v2360 = vadd.f32 %v2187, %v2359
    %v2361 = vpop.f32.mrb[0].mxu0
    %v2362 = vadd.f32 %v2183, %v2361
    %v2363 = vpop.f32.mrb[0].mxu0
    %v2364 = vadd.f32 %v2187, %v2363
    %2365 = vdwg.mxu0
    %2366 = vmatprep.subr.bf16.mxu0 0
    %2367 = vmatpush1.bf16.msra.mxu0 %v2277
    %2368 = vmatprep.subr.bf16.mxu0 0
    %2369 = vmatpush1.bf16.msra.mxu0 %v2280
    %2370 = vmatprep.subr.bf16.mxu0 0
    %2371 = vmatpush1.bf16.msra.mxu0 %v2283
    %2372 = vmatprep.subr.bf16.mxu0 0
    %2373 = vmatpush1.bf16.msra.mxu0 %v2286
    %2374 = vmatprep.subr.bf16.mxu0 0
    %2375 = vmatpush1.bf16.msra.mxu0 %v2289
    %2376 = vmatprep.subr.bf16.mxu0 0
    %2377 = vmatpush1.bf16.msra.mxu0 %v2292
    %2378 = vmatprep.subr.bf16.mxu0 0
    %2379 = vmatpush1.bf16.msra.mxu0 %v2295
    %2380 = vmatprep.subr.bf16.mxu0 0
    %2381 = vmatpush1.bf16.msra.mxu0 %v2298
    %2382 = vmatprep.subr.bf16.mxu0 0
    %2383 = vmatpush1.bf16.msra.mxu0 0
    %2384 = vmatprep.subr.bf16.mxu0 0
    %2385 = vmatpush1.bf16.msra.mxu0 0
    %2386 = vmatprep.subr.bf16.mxu0 0
    %2387 = vmatpush1.bf16.msra.mxu0 0
    %2388 = vmatprep.subr.bf16.mxu0 0
    %2389 = vmatpush1.bf16.msra.mxu0 0
    %2390 = vmatprep.subr.bf16.mxu0 0
    %2391 = vmatpush1.bf16.msra.mxu0 0
    %2392 = vmatprep.subr.bf16.mxu0 0
    %2393 = vmatpush1.bf16.msra.mxu0 0
    %2394 = vmatprep.subr.bf16.mxu0 0
    %2395 = vmatpush1.bf16.msra.mxu0 0
    %2396 = vmatprep.subr.bf16.mxu0 0
    %2397 = vmatpush1.bf16.msra.mxu0 0
    %2398 = vmatprep.mubr.bf16.mxu0 0
    %2399 = vmatmul.mubr.bf16.gmra.mrb[0].mxu0 %v2143
    %v2400 = vpop.f32.mrb[0].mxu0
    %v2401 = vadd.f32 %v2191, %v2400
    %v2402 = vpop.f32.mrb[0].mxu0
    %v2403 = vpop.f32.mrb[0].mxu0
    %v2404 = vadd.f32 %v2191, %v2403
    %v2405 = vpop.f32.mrb[0].mxu0
    %2406 = vdwg.mxu0
    %v2407 = vpack.c.bf16 %v2364, %v2360
    %v2408 = vpack.c.bf16 %v2404, %v2401
    %v2409 = vpack.c.bf16 %v2362, %v2358
    %2410 = vmatprep.subr.bf16.mxu0 0
    %2411 = vmatpush1.bf16.msra.mxu0 %v2409
    %2412 = vmatprep.subr.bf16.mxu0 0
    %2413 = vmatpush1.bf16.msra.mxu0 0
    %2414 = vmatprep.subr.bf16.mxu0 0
    %2415 = vmatpush1.bf16.msra.mxu0 0
    %2416 = vmatprep.subr.bf16.mxu0 0
    %2417 = vmatpush1.bf16.msra.mxu0 0
    %2418 = vmatprep.subr.bf16.mxu0 0
    %2419 = vmatpush1.bf16.msra.mxu0 0
    %2420 = vmatprep.subr.bf16.mxu0 0
    %2421 = vmatpush1.bf16.msra.mxu0 0
    %2422 = vmatprep.subr.bf16.mxu0 0
    %2423 = vmatpush1.bf16.msra.mxu0 0
    %2424 = vmatprep.subr.bf16.mxu0 0
    %2425 = vmatpush1.bf16.msra.mxu0 0
    %2426 = vmatprep.subr.bf16.mxu0 0
    %2427 = vmatpush1.bf16.msra.mxu0 0
    %2428 = vmatprep.subr.bf16.mxu0 0
    %2429 = vmatpush1.bf16.msra.mxu0 0
    %2430 = vmatprep.subr.bf16.mxu0 0
    %2431 = vmatpush1.bf16.msra.mxu0 0
    %2432 = vmatprep.subr.bf16.mxu0 0
    %2433 = vmatpush1.bf16.msra.mxu0 0
    %2434 = vmatprep.subr.bf16.mxu0 0
    %2435 = vmatpush1.bf16.msra.mxu0 0
    %2436 = vmatprep.subr.bf16.mxu0 0
    %2437 = vmatpush1.bf16.msra.mxu0 0
    %2438 = vmatprep.subr.bf16.mxu0 0
    %2439 = vmatpush1.bf16.msra.mxu0 0
    %2440 = vmatprep.subr.bf16.mxu0 0
    %2441 = vmatpush1.bf16.msra.mxu0 0
    %2442 = vmatprep.mubr.bf16.mxu0 0
    %2443 = vmatmul.mubr.bf16.gmra.mrb[0].mxu0 %v446
    %v2444 = vpop.f32.mrb[0].mxu0
    %v2445 = vadd.f32 0.0, %v2444
    %v2446 = vpop.f32.mrb[0].mxu0
    %v2447 = vpop.f32.mrb[0].mxu0
    %v2448 = vadd.f32 0.0, %v2447
    %v2449 = vpop.f32.mrb[0].mxu0
    %2450 = vmatprep.mubr.bf16.mxu0 0
    %2451 = vmatmul.mubr.bf16.gmra.mrb[0].mxu0 %v449
    %v2452 = vpop.f32.mrb[0].mxu0
    %v2453 = vadd.f32 0.0, %v2452
    %v2454 = vpop.f32.mrb[0].mxu0
    %v2455 = vpop.f32.mrb[0].mxu0
    %v2456 = vadd.f32 0.0, %v2455
    %v2457 = vpop.f32.mrb[0].mxu0
    %2458 = vmatprep.mubr.bf16.mxu0 0
    %2459 = vmatmul.mubr.bf16.gmra.mrb[0].mxu0 %v452
    %v2460 = vpop.f32.mrb[0].mxu0
    %v2461 = vadd.f32 0.0, %v2460
    %v2462 = vpop.f32.mrb[0].mxu0
    %v2463 = vpop.f32.mrb[0].mxu0
    %v2464 = vadd.f32 0.0, %v2463
    %v2465 = vpop.f32.mrb[0].mxu0
    %2466 = vmatprep.mubr.bf16.mxu0 0
    %2467 = vmatmul.mubr.bf16.gmra.mrb[0].mxu0 %v455
    %v2468 = vpop.f32.mrb[0].mxu0
    %v2469 = vadd.f32 0.0, %v2468
    %v2470 = vpop.f32.mrb[0].mxu0
    %v2471 = vpop.f32.mrb[0].mxu0
    %v2472 = vadd.f32 0.0, %v2471
    %v2473 = vpop.f32.mrb[0].mxu0
    %2474 = vmatprep.mubr.bf16.mxu0 0
    %2475 = vmatmul.mubr.bf16.gmra.mrb[0].mxu0 %v458
    %v2476 = vpop.f32.mrb[0].mxu0
    %v2477 = vadd.f32 0.0, %v2476
    %v2478 = vpop.f32.mrb[0].mxu0
    %v2479 = vpop.f32.mrb[0].mxu0
    %v2480 = vadd.f32 0.0, %v2479
    %v2481 = vpop.f32.mrb[0].mxu0
    %2482 = vmatprep.mubr.bf16.mxu0 0
    %2483 = vmatmul.mubr.bf16.gmra.mrb[0].mxu0 %v461
    %v2484 = vpop.f32.mrb[0].mxu0
    %v2485 = vadd.f32 0.0, %v2484
    %v2486 = vpop.f32.mrb[0].mxu0
    %v2487 = vpop.f32.mrb[0].mxu0
    %v2488 = vadd.f32 0.0, %v2487
    %v2489 = vpop.f32.mrb[0].mxu0
    %2490 = vmatprep.mubr.bf16.mxu0 0
    %2491 = vmatmul.mubr.bf16.gmra.mrb[0].mxu0 %v464
    %v2492 = vpop.f32.mrb[0].mxu0
    %v2493 = vadd.f32 0.0, %v2492
    %v2494 = vpop.f32.mrb[0].mxu0
    %v2495 = vpop.f32.mrb[0].mxu0
    %v2496 = vadd.f32 0.0, %v2495
    %v2497 = vpop.f32.mrb[0].mxu0
    %2498 = vmatprep.mubr.bf16.mxu0 0
    %2499 = vmatmul.mubr.bf16.gmra.mrb[0].mxu0 %v467
    %v2500 = vpop.f32.mrb[0].mxu0
    %v2501 = vadd.f32 0.0, %v2500
    %v2502 = vpop.f32.mrb[0].mxu0
    %v2503 = vpop.f32.mrb[0].mxu0
    %v2504 = vadd.f32 0.0, %v2503
    %v2505 = vpop.f32.mrb[0].mxu0
    %2506 = vdwg.mxu0
    %v2507 = vpack.c.bf16 %v2448, %v2445
    %v2508 = vpack.c.bf16 %v2456, %v2453
    %v2509 = vpack.c.bf16 %v2464, %v2461
    %v2510 = vpack.c.bf16 %v2472, %v2469
    %v2511 = vpack.c.bf16 %v2480, %v2477
    %v2512 = vpack.c.bf16 %v2488, %v2485
    %v2513 = vpack.c.bf16 %v2496, %v2493
    %v2514 = vpack.c.bf16 %v2504, %v2501
    %v2515 = vmul.bf16 %v2507, %v606
    %v2516 = vmul.bf16 %v2508, %v607
    %v2517 = vmul.bf16 %v2509, %v608
    %v2518 = vmul.bf16 %v2510, %v609
    %v2519 = vmul.bf16 %v2511, %v610
    %v2520 = vmul.bf16 %v2512, %v611
    %v2521 = vmul.bf16 %v2513, %v612
    %v2522 = vmul.bf16 %v2514, %v613
    %2523 = vmatprep.subr.bf16.mxu0 0
    %2524 = vmatpush1.bf16.xpose.msra.mxu0 %v2407
    %2525 = vmatprep.subr.bf16.mxu0 0
    %2526 = vmatpush1.bf16.xpose.msra.mxu0 0
    %2527 = vmatprep.subr.bf16.mxu0 0
    %2528 = vmatpush1.bf16.xpose.msra.mxu0 0
    %2529 = vmatprep.subr.bf16.mxu0 0
    %2530 = vmatpush1.bf16.xpose.msra.mxu0 0
    %2531 = vmatprep.subr.bf16.mxu0 0
    %2532 = vmatpush1.bf16.xpose.msra.mxu0 0
    %2533 = vmatprep.subr.bf16.mxu0 0
    %2534 = vmatpush1.bf16.xpose.msra.mxu0 0
    %2535 = vmatprep.subr.bf16.mxu0 0
    %2536 = vmatpush1.bf16.xpose.msra.mxu0 0
    %2537 = vmatprep.subr.bf16.mxu0 0
    %2538 = vmatpush1.bf16.xpose.msra.mxu0 0
    %2539 = vmatprep.subr.bf16.mxu0 0
    %2540 = vmatpush1.bf16.xpose.msra.mxu0 0
    %2541 = vmatprep.subr.bf16.mxu0 0
    %2542 = vmatpush1.bf16.xpose.msra.mxu0 0
    %2543 = vmatprep.subr.bf16.mxu0 0
    %2544 = vmatpush1.bf16.xpose.msra.mxu0 0
    %2545 = vmatprep.subr.bf16.mxu0 0
    %2546 = vmatpush1.bf16.xpose.msra.mxu0 0
    %2547 = vmatprep.subr.bf16.mxu0 0
    %2548 = vmatpush1.bf16.xpose.msra.mxu0 0
    %2549 = vmatprep.subr.bf16.mxu0 0
    %2550 = vmatpush1.bf16.xpose.msra.mxu0 0
    %2551 = vmatprep.subr.bf16.mxu0 0
    %2552 = vmatpush1.bf16.xpose.msra.mxu0 0
    %2553 = vmatprep.subr.bf16.mxu0 0
    %2554 = vmatpush1.bf16.xpose.msra.mxu0 0
    %2555 = vmatprep.mubr.bf16.mxu0 0
    %2556 = vmatmul.mubr.bf16.gmra.mrb[0].mxu0 %v2515
    %v2557 = vpop.f32.mrb[0].mxu0
    %v2558 = vadd.f32 %v120, %v2557
    %v2559 = vpop.f32.mrb[0].mxu0
    %v2560 = vpop.f32.mrb[0].mxu0
    %v2561 = vadd.f32 %v121, %v2560
    %v2562 = vpop.f32.mrb[0].mxu0
    %2563 = vmatprep.mubr.bf16.mxu0 0
    %2564 = vmatmul.mubr.bf16.gmra.mrb[0].mxu0 %v2516
    %v2565 = vpop.f32.mrb[0].mxu0
    %v2566 = vadd.f32 %v122, %v2565
    %v2567 = vpop.f32.mrb[0].mxu0
    %v2568 = vpop.f32.mrb[0].mxu0
    %v2569 = vadd.f32 %v123, %v2568
    %v2570 = vpop.f32.mrb[0].mxu0
    %2571 = vmatprep.mubr.bf16.mxu0 0
    %2572 = vmatmul.mubr.bf16.gmra.mrb[0].mxu0 %v2517
    %v2573 = vpop.f32.mrb[0].mxu0
    %v2574 = vadd.f32 %v124, %v2573
    %v2575 = vpop.f32.mrb[0].mxu0
    %v2576 = vpop.f32.mrb[0].mxu0
    %v2577 = vadd.f32 %v125, %v2576
    %v2578 = vpop.f32.mrb[0].mxu0
    %2579 = vmatprep.mubr.bf16.mxu0 0
    %2580 = vmatmul.mubr.bf16.gmra.mrb[0].mxu0 %v2518
    %v2581 = vpop.f32.mrb[0].mxu0
    %v2582 = vadd.f32 %v126, %v2581
    %v2583 = vpop.f32.mrb[0].mxu0
    %v2584 = vpop.f32.mrb[0].mxu0
    %v2585 = vadd.f32 %v127, %v2584
    %v2586 = vpop.f32.mrb[0].mxu0
    %2587 = vmatprep.mubr.bf16.mxu0 0
    %2588 = vmatmul.mubr.bf16.gmra.mrb[0].mxu0 %v2519
    %v2589 = vpop.f32.mrb[0].mxu0
    %v2590 = vadd.f32 %v128, %v2589
    %v2591 = vpop.f32.mrb[0].mxu0
    %v2592 = vpop.f32.mrb[0].mxu0
    %v2593 = vadd.f32 %v129, %v2592
    %v2594 = vpop.f32.mrb[0].mxu0
    %2595 = vmatprep.mubr.bf16.mxu0 0
    %2596 = vmatmul.mubr.bf16.gmra.mrb[0].mxu0 %v2520
    %v2597 = vpop.f32.mrb[0].mxu0
    %v2598 = vadd.f32 %v130, %v2597
    %v2599 = vpop.f32.mrb[0].mxu0
    %v2600 = vpop.f32.mrb[0].mxu0
    %v2601 = vadd.f32 %v131, %v2600
    %v2602 = vpop.f32.mrb[0].mxu0
    %2603 = vmatprep.mubr.bf16.mxu0 0
    %2604 = vmatmul.mubr.bf16.gmra.mrb[0].mxu0 %v2521
    %v2605 = vpop.f32.mrb[0].mxu0
    %v2606 = vadd.f32 %v132, %v2605
    %v2607 = vpop.f32.mrb[0].mxu0
    %v2608 = vpop.f32.mrb[0].mxu0
    %v2609 = vadd.f32 %v133, %v2608
    %v2610 = vpop.f32.mrb[0].mxu0
    %2611 = vmatprep.mubr.bf16.mxu0 0
    %2612 = vmatmul.mubr.bf16.gmra.mrb[0].mxu0 %v2522
    %v2613 = vpop.f32.mrb[0].mxu0
    %v2614 = vadd.f32 %v134, %v2613
    %v2615 = vpop.f32.mrb[0].mxu0
    %v2616 = vpop.f32.mrb[0].mxu0
    %v2617 = vadd.f32 %v135, %v2616
    %v2618 = vpop.f32.mrb[0].mxu0
    %2619 = vdwg.mxu0
    %v2620 = vsel %vm444, %v2558, -inf
    %2621 = vmax.xlane.f32.xlu0 %v2620
    %v2622 = vpop.xlane.xlu0 %2621
    %v2623 = vsel %vm444, %v2561, -inf
    %2624 = vmax.xlane.f32.xlu0 %v2623
    %v2625 = vpop.xlane.xlu0 %2624
    %v2626 = vsel %vm444, %v2566, -inf
    %2627 = vmax.xlane.f32.xlu0 %v2626
    %v2628 = vpop.xlane.xlu0 %2627
    %v2629 = vsel %vm444, %v2569, -inf
    %2630 = vmax.xlane.f32.xlu0 %v2629
    %v2631 = vpop.xlane.xlu0 %2630
    %v2632 = vsel %vm444, %v2574, -inf
    %2633 = vmax.xlane.f32.xlu0 %v2632
    %v2634 = vpop.xlane.xlu0 %2633
    %v2635 = vsel %vm444, %v2577, -inf
    %2636 = vmax.xlane.f32.xlu0 %v2635
    %v2637 = vpop.xlane.xlu0 %2636
    %v2638 = vsel %vm444, %v2582, -inf
    %2639 = vmax.xlane.f32.xlu0 %v2638
    %v2640 = vpop.xlane.xlu0 %2639
    %v2641 = vsel %vm444, %v2585, -inf
    %2642 = vmax.xlane.f32.xlu0 %v2641
    %v2643 = vpop.xlane.xlu0 %2642
    %v2644 = vsel %vm444, %v2590, -inf
    %2645 = vmax.xlane.f32.xlu0 %v2644
    %v2646 = vpop.xlane.xlu0 %2645
    %v2647 = vsel %vm444, %v2593, -inf
    %2648 = vmax.xlane.f32.xlu0 %v2647
    %v2649 = vpop.xlane.xlu0 %2648
    %v2650 = vsel %vm444, %v2598, -inf
    %2651 = vmax.xlane.f32.xlu0 %v2650
    %v2652 = vpop.xlane.xlu0 %2651
    %v2653 = vsel %vm444, %v2601, -inf
    %2654 = vmax.xlane.f32.xlu0 %v2653
    %v2655 = vpop.xlane.xlu0 %2654
    %v2656 = vsel %vm444, %v2606, -inf
    %2657 = vmax.xlane.f32.xlu0 %v2656
    %v2658 = vpop.xlane.xlu0 %2657
    %v2659 = vsel %vm444, %v2609, -inf
    %2660 = vmax.xlane.f32.xlu0 %v2659
    %v2661 = vpop.xlane.xlu0 %2660
    %v2662 = vsel %vm444, %v2614, -inf
    %2663 = vmax.xlane.f32.xlu0 %v2662
    %v2664 = vpop.xlane.xlu0 %2663
    %v2665 = vsel %vm444, %v2617, -inf
    %2666 = vmax.xlane.f32.xlu0 %v2665
    %v2667 = vpop.xlane.xlu0 %2666
    %v2668 = vsub.f32 %v2558, %v2622
    %v2669 = vsub.f32 %v2561, %v2625
    %v2670 = vsub.f32 %v2566, %v2628
    %v2671 = vsub.f32 %v2569, %v2631
    %v2672 = vsub.f32 %v2574, %v2634
    %v2673 = vsub.f32 %v2577, %v2637
    %v2674 = vsub.f32 %v2582, %v2640
    %v2675 = vsub.f32 %v2585, %v2643
    %v2676 = vsub.f32 %v2590, %v2646
    %v2677 = vsub.f32 %v2593, %v2649
    %v2678 = vsub.f32 %v2598, %v2652
    %v2679 = vsub.f32 %v2601, %v2655
    %v2680 = vsub.f32 %v2606, %v2658
    %v2681 = vsub.f32 %v2609, %v2661
    %v2682 = vsub.f32 %v2614, %v2664
    %v2683 = vsub.f32 %v2617, %v2667
    %v2684 = vmul.f32 %v2668, 1.442695
    %v2685 = vpow.pop %v2684
    %v2686 = vmul.f32 %v2669, 1.442695
    %v2687 = vpow.pop %v2686
    %v2688 = vmul.f32 %v2670, 1.442695
    %v2689 = vpow.pop %v2688
    %v2690 = vmul.f32 %v2671, 1.442695
    %v2691 = vpow.pop %v2690
    %v2692 = vmul.f32 %v2672, 1.442695
    %v2693 = vpow.pop %v2692
    %v2694 = vmul.f32 %v2673, 1.442695
    %v2695 = vpow.pop %v2694
    %v2696 = vmul.f32 %v2674, 1.442695
    %v2697 = vpow.pop %v2696
    %v2698 = vmul.f32 %v2675, 1.442695
    %v2699 = vpow.pop %v2698
    %v2700 = vmul.f32 %v2676, 1.442695
    %v2701 = vpow.pop %v2700
    %v2702 = vmul.f32 %v2677, 1.442695
    %v2703 = vpow.pop %v2702
    %v2704 = vmul.f32 %v2678, 1.442695
    %v2705 = vpow.pop %v2704
    %v2706 = vmul.f32 %v2679, 1.442695
    %v2707 = vpow.pop %v2706
    %v2708 = vmul.f32 %v2680, 1.442695
    %v2709 = vpow.pop %v2708
    %v2710 = vmul.f32 %v2681, 1.442695
    %v2711 = vpow.pop %v2710
    %v2712 = vmul.f32 %v2682, 1.442695
    %v2713 = vpow.pop %v2712
    %v2714 = vmul.f32 %v2683, 1.442695
    %v2715 = vpow.pop %v2714
    %v2716 = vsel %vm444, %v2685, 0.0
    %2717 = vadd.xlane.f32.xlu0 %v2716
    %v2718 = vpop.xlane.xlu0 %2717
    %v2719 = vsel %vm444, %v2687, 0.0
    %2720 = vadd.xlane.f32.xlu0 %v2719
    %v2721 = vpop.xlane.xlu0 %2720
    %v2722 = vsel %vm444, %v2689, 0.0
    %2723 = vadd.xlane.f32.xlu0 %v2722
    %v2724 = vpop.xlane.xlu0 %2723
    %v2725 = vsel %vm444, %v2691, 0.0
    %2726 = vadd.xlane.f32.xlu0 %v2725
    %v2727 = vpop.xlane.xlu0 %2726
    %v2728 = vsel %vm444, %v2693, 0.0
    %2729 = vadd.xlane.f32.xlu0 %v2728
    %v2730 = vpop.xlane.xlu0 %2729
    %v2731 = vsel %vm444, %v2695, 0.0
    %2732 = vadd.xlane.f32.xlu0 %v2731
    %v2733 = vpop.xlane.xlu0 %2732
    %v2734 = vsel %vm444, %v2697, 0.0
    %2735 = vadd.xlane.f32.xlu0 %v2734
    %v2736 = vpop.xlane.xlu0 %2735
    %v2737 = vsel %vm444, %v2699, 0.0
    %2738 = vadd.xlane.f32.xlu0 %v2737
    %v2739 = vpop.xlane.xlu0 %2738
    %v2740 = vsel %vm444, %v2701, 0.0
    %2741 = vadd.xlane.f32.xlu0 %v2740
    %v2742 = vpop.xlane.xlu0 %2741
    %v2743 = vsel %vm444, %v2703, 0.0
    %2744 = vadd.xlane.f32.xlu0 %v2743
    %v2745 = vpop.xlane.xlu0 %2744
    %v2746 = vsel %vm444, %v2705, 0.0
    %2747 = vadd.xlane.f32.xlu0 %v2746
    %v2748 = vpop.xlane.xlu0 %2747
    %v2749 = vsel %vm444, %v2707, 0.0
    %2750 = vadd.xlane.f32.xlu0 %v2749
    %v2751 = vpop.xlane.xlu0 %2750
    %v2752 = vsel %vm444, %v2709, 0.0
    %2753 = vadd.xlane.f32.xlu0 %v2752
    %v2754 = vpop.xlane.xlu0 %2753
    %v2755 = vsel %vm444, %v2711, 0.0
    %2756 = vadd.xlane.f32.xlu0 %v2755
    %v2757 = vpop.xlane.xlu0 %2756
    %v2758 = vsel %vm444, %v2713, 0.0
    %2759 = vadd.xlane.f32.xlu0 %v2758
    %v2760 = vpop.xlane.xlu0 %2759
    %v2761 = vsel %vm444, %v2715, 0.0
    %2762 = vadd.xlane.f32.xlu0 %v2761
    %v2763 = vpop.xlane.xlu0 %2762
    %v2764 = vrcp.pop %v2718
    %v2765 = vrcp.pop %v2721
    %v2766 = vrcp.pop %v2724
    %v2767 = vrcp.pop %v2727
    %v2768 = vrcp.pop %v2730
    %v2769 = vrcp.pop %v2733
    %v2770 = vrcp.pop %v2736
    %v2771 = vrcp.pop %v2739
    %v2772 = vrcp.pop %v2742
    %v2773 = vrcp.pop %v2745
    %v2774 = vrcp.pop %v2748
    %v2775 = vrcp.pop %v2751
    %v2776 = vrcp.pop %v2754
    %v2777 = vrcp.pop %v2757
    %v2778 = vrcp.pop %v2760
    %v2779 = vrcp.pop %v2763
    %v2780 = vmul.f32 %v2685, %v2764
    %v2781 = vmul.f32 %v2687, %v2765
    %v2782 = vmul.f32 %v2689, %v2766
    %v2783 = vmul.f32 %v2691, %v2767
    %v2784 = vmul.f32 %v2693, %v2768
    %v2785 = vmul.f32 %v2695, %v2769
    %v2786 = vmul.f32 %v2697, %v2770
    %v2787 = vmul.f32 %v2699, %v2771
    %v2788 = vmul.f32 %v2701, %v2772
    %v2789 = vmul.f32 %v2703, %v2773
    %v2790 = vmul.f32 %v2705, %v2774
    %v2791 = vmul.f32 %v2707, %v2775
    %v2792 = vmul.f32 %v2709, %v2776
    %v2793 = vmul.f32 %v2711, %v2777
    %v2794 = vmul.f32 %v2713, %v2778
    %v2795 = vmul.f32 %v2715, %v2779
    %v2796 = vpack.c.bf16 %v2781, %v2780
    %v2797 = vpack.c.bf16 %v2783, %v2782
    %v2798 = vpack.c.bf16 %v2785, %v2784
    %v2799 = vpack.c.bf16 %v2787, %v2786
    %v2800 = vpack.c.bf16 %v2789, %v2788
    %v2801 = vpack.c.bf16 %v2791, %v2790
    %v2802 = vpack.c.bf16 %v2793, %v2792
    %v2803 = vpack.c.bf16 %v2795, %v2794
    %v2805 = vsel %vm444, %v2796, 0
    %v2808 = vsel %vm444, %v2797, 0
    %v2811 = vsel %vm444, %v2798, 0
    %v2814 = vsel %vm444, %v2799, 0
    %v2817 = vsel %vm444, %v2800, 0
    %v2820 = vsel %vm444, %v2801, 0
    %v2823 = vsel %vm444, %v2802, 0
    %v2826 = vsel %vm444, %v2803, 0
    %2828 = vmatprep.subr.bf16.mxu0 0
    %2829 = vmatpush1.bf16.msra.mxu0 %v2408
    %2830 = vmatprep.subr.bf16.mxu0 0
    %2831 = vmatpush1.bf16.msra.mxu0 0
    %2832 = vmatprep.subr.bf16.mxu0 0
    %2833 = vmatpush1.bf16.msra.mxu0 0
    %2834 = vmatprep.subr.bf16.mxu0 0
    %2835 = vmatpush1.bf16.msra.mxu0 0
    %2836 = vmatprep.subr.bf16.mxu0 0
    %2837 = vmatpush1.bf16.msra.mxu0 0
    %2838 = vmatprep.subr.bf16.mxu0 0
    %2839 = vmatpush1.bf16.msra.mxu0 0
    %2840 = vmatprep.subr.bf16.mxu0 0
    %2841 = vmatpush1.bf16.msra.mxu0 0
    %2842 = vmatprep.subr.bf16.mxu0 0
    %2843 = vmatpush1.bf16.msra.mxu0 0
    %2844 = vmatprep.subr.bf16.mxu0 0
    %2845 = vmatpush1.bf16.msra.mxu0 0
    %2846 = vmatprep.subr.bf16.mxu0 0
    %2847 = vmatpush1.bf16.msra.mxu0 0
    %2848 = vmatprep.subr.bf16.mxu0 0
    %2849 = vmatpush1.bf16.msra.mxu0 0
    %2850 = vmatprep.subr.bf16.mxu0 0
    %2851 = vmatpush1.bf16.msra.mxu0 0
    %2852 = vmatprep.subr.bf16.mxu0 0
    %2853 = vmatpush1.bf16.msra.mxu0 0
    %2854 = vmatprep.subr.bf16.mxu0 0
    %2855 = vmatpush1.bf16.msra.mxu0 0
    %2856 = vmatprep.subr.bf16.mxu0 0
    %2857 = vmatpush1.bf16.msra.mxu0 0
    %2858 = vmatprep.subr.bf16.mxu0 0
    %2859 = vmatpush1.bf16.msra.mxu0 0
    %2860 = vmatprep.mubr.bf16.mxu0 0
    %2861 = vmatmul.mubr.bf16.gmra.mrb[0].mxu0 %v2805
    %v2862 = vpop.f32.mrb[0].mxu0
    %v2863 = vadd.f32 0.0, %v2862
    %v2864 = vpop.f32.mrb[0].mxu0
    %v2865 = vpop.f32.mrb[0].mxu0
    %v2866 = vadd.f32 0.0, %v2865
    %v2867 = vpop.f32.mrb[0].mxu0
    %2868 = vmatprep.mubr.bf16.mxu0 0
    %2869 = vmatmul.mubr.bf16.gmra.mrb[0].mxu0 %v2808
    %v2870 = vpop.f32.mrb[0].mxu0
    %v2871 = vadd.f32 0.0, %v2870
    %v2872 = vpop.f32.mrb[0].mxu0
    %v2873 = vpop.f32.mrb[0].mxu0
    %v2874 = vadd.f32 0.0, %v2873
    %v2875 = vpop.f32.mrb[0].mxu0
    %2876 = vmatprep.mubr.bf16.mxu0 0
    %2877 = vmatmul.mubr.bf16.gmra.mrb[0].mxu0 %v2811
    %v2878 = vpop.f32.mrb[0].mxu0
    %v2879 = vadd.f32 0.0, %v2878
    %v2880 = vpop.f32.mrb[0].mxu0
    %v2881 = vpop.f32.mrb[0].mxu0
    %v2882 = vadd.f32 0.0, %v2881
    %v2883 = vpop.f32.mrb[0].mxu0
    %2884 = vmatprep.mubr.bf16.mxu0 0
    %2885 = vmatmul.mubr.bf16.gmra.mrb[0].mxu0 %v2814
    %v2886 = vpop.f32.mrb[0].mxu0
    %v2887 = vadd.f32 0.0, %v2886
    %v2888 = vpop.f32.mrb[0].mxu0
    %v2889 = vpop.f32.mrb[0].mxu0
    %v2890 = vadd.f32 0.0, %v2889
    %v2891 = vpop.f32.mrb[0].mxu0
    %2892 = vmatprep.mubr.bf16.mxu0 0
    %2893 = vmatmul.mubr.bf16.gmra.mrb[0].mxu0 %v2817
    %v2894 = vpop.f32.mrb[0].mxu0
    %v2895 = vadd.f32 0.0, %v2894
    %v2896 = vpop.f32.mrb[0].mxu0
    %v2897 = vpop.f32.mrb[0].mxu0
    %v2898 = vadd.f32 0.0, %v2897
    %v2899 = vpop.f32.mrb[0].mxu0
    %2900 = vmatprep.mubr.bf16.mxu0 0
    %2901 = vmatmul.mubr.bf16.gmra.mrb[0].mxu0 %v2820
    %v2902 = vpop.f32.mrb[0].mxu0
    %v2903 = vadd.f32 0.0, %v2902
    %v2904 = vpop.f32.mrb[0].mxu0
    %v2905 = vpop.f32.mrb[0].mxu0
    %v2906 = vadd.f32 0.0, %v2905
    %v2907 = vpop.f32.mrb[0].mxu0
    %2908 = vmatprep.mubr.bf16.mxu0 0
    %2909 = vmatmul.mubr.bf16.gmra.mrb[0].mxu0 %v2823
    %v2910 = vpop.f32.mrb[0].mxu0
    %v2911 = vadd.f32 0.0, %v2910
    %v2912 = vpop.f32.mrb[0].mxu0
    %v2913 = vpop.f32.mrb[0].mxu0
    %v2914 = vadd.f32 0.0, %v2913
    %v2915 = vpop.f32.mrb[0].mxu0
    %2916 = vmatprep.mubr.bf16.mxu0 0
    %2917 = vmatmul.mubr.bf16.gmra.mrb[0].mxu0 %v2826
    %v2918 = vpop.f32.mrb[0].mxu0
    %v2919 = vadd.f32 0.0, %v2918
    %v2920 = vpop.f32.mrb[0].mxu0
    %v2921 = vpop.f32.mrb[0].mxu0
    %v2922 = vadd.f32 0.0, %v2921
    %v2923 = vpop.f32.mrb[0].mxu0
    %2924 = vdwg.mxu0
    %v2925 = vpack.c.bf16 %v2866, %v2863
    %v2926 = vpack.c.bf16 %v2874, %v2871
    %v2927 = vpack.c.bf16 %v2882, %v2879
    %v2928 = vpack.c.bf16 %v2890, %v2887
    %v2929 = vpack.c.bf16 %v2898, %v2895
    %v2930 = vpack.c.bf16 %v2906, %v2903
    %v2931 = vpack.c.bf16 %v2914, %v2911
    %v2932 = vpack.c.bf16 %v2922, %v2919
    %v2933 = vmul.bf16 %v2925, %v606
    %v2934 = vmul.bf16 %v2926, %v607
    %v2935 = vmul.bf16 %v2927, %v608
    %v2936 = vmul.bf16 %v2928, %v609
    %v2937 = vmul.bf16 %v2929, %v610
    %v2938 = vmul.bf16 %v2930, %v611
    %v2939 = vmul.bf16 %v2931, %v612
    %v2940 = vmul.bf16 %v2932, %v613
    %2941 = vmatprep.subr.bf16.mxu0 0
    %2942 = vmatpush1.bf16.msra.mxu0 %v2933
    %2943 = vmatprep.subr.bf16.mxu0 0
    %2944 = vmatpush1.bf16.msra.mxu0 %v2934
    %2945 = vmatprep.subr.bf16.mxu0 0
    %2946 = vmatpush1.bf16.msra.mxu0 %v2935
    %2947 = vmatprep.subr.bf16.mxu0 0
    %2948 = vmatpush1.bf16.msra.mxu0 %v2936
    %2949 = vmatprep.subr.bf16.mxu0 0
    %2950 = vmatpush1.bf16.msra.mxu0 %v2937
    %2951 = vmatprep.subr.bf16.mxu0 0
    %2952 = vmatpush1.bf16.msra.mxu0 %v2938
    %2953 = vmatprep.subr.bf16.mxu0 0
    %2954 = vmatpush1.bf16.msra.mxu0 %v2939
    %2955 = vmatprep.subr.bf16.mxu0 0
    %2956 = vmatpush1.bf16.msra.mxu0 %v2940
    %2957 = vmatprep.subr.bf16.mxu0 0
    %2958 = vmatpush1.bf16.msra.mxu0 0
    %2959 = vmatprep.subr.bf16.mxu0 0
    %2960 = vmatpush1.bf16.msra.mxu0 0
    %2961 = vmatprep.subr.bf16.mxu0 0
    %2962 = vmatpush1.bf16.msra.mxu0 0
    %2963 = vmatprep.subr.bf16.mxu0 0
    %2964 = vmatpush1.bf16.msra.mxu0 0
    %2965 = vmatprep.subr.bf16.mxu0 0
    %2966 = vmatpush1.bf16.msra.mxu0 0
    %2967 = vmatprep.subr.bf16.mxu0 0
    %2968 = vmatpush1.bf16.msra.mxu0 0
    %2969 = vmatprep.subr.bf16.mxu0 0
    %2970 = vmatpush1.bf16.msra.mxu0 0
    %2971 = vmatprep.subr.bf16.mxu0 0
    %2972 = vmatpush1.bf16.msra.mxu0 0
    %2973 = vmatprep.mubr.bf16.mxu0 0
    %2974 = vmatmul.mubr.bf16.gmra.mrb[0].mxu0 %v1052
    %v2975 = vpop.f32.mrb[0].mxu0
    %v2976 = vadd.f32 0.0, %v2975
    %v2977 = vpop.f32.mrb[0].mxu0
    %v2978 = vpop.f32.mrb[0].mxu0
    %v2979 = vadd.f32 0.0, %v2978
    %v2980 = vpop.f32.mrb[0].mxu0
    %2981 = vdwg.mxu0
    %v2982 = vpack.c.bf16 %v2979, %v2976
    %s2983 = scalar_lea.vmem %s2, 64
    %v2984 = vld [vmem:[%s2983] sm:$0xf]
    %v2985 = vld [vmem:[%s2983 + $0x4] sm:$0xf]
    %v2986 = vld [vmem:[%s2983 + $0x8] sm:$0xf]
    %v2987 = vld [vmem:[%s2983 + $0xc] sm:$0xf]
    %v2988 = vld [vmem:[%s2983 + $0x10] sm:$0xf]
    %v2989 = vld [vmem:[%s2983 + $0x14] sm:$0xf]
    %v2990 = vld [vmem:[%s2983 + $0x18] sm:$0xf]
    %v2991 = vld [vmem:[%s2983 + $0x1c] sm:$0xf]
    %v2992 = vld [vmem:[%s2983 + $0x20] sm:$0xf]
    %v2993 = vld [vmem:[%s2983 + $0x24] sm:$0xf]
    %v2994 = vld [vmem:[%s2983 + $0x28] sm:$0xf]
    %v2995 = vld [vmem:[%s2983 + $0x2c] sm:$0xf]
    %v2996 = vld [vmem:[%s2983 + $0x30] sm:$0xf]
    %v2997 = vld [vmem:[%s2983 + $0x34] sm:$0xf]
    %v2998 = vld [vmem:[%s2983 + $0x38] sm:$0xf]
    %v2999 = vld [vmem:[%s2983 + $0x3c] sm:$0xf]
    %v3000 = vlaneseq
    %v3001 = vshrl.u32 %v3000, 7
    %v3002 = vsub.s32 0, %v3001
    %v3003 = vrot.slane %v2142, %v3002
    %v3020 = vunpack.c.l.b16 %v2984
    %v3021 = vunpack.c.l.b16 %v2985
    %v3022 = vunpack.c.l.b16 %v2986
    %v3023 = vunpack.c.l.b16 %v2987
    %v3024 = vunpack.c.l.b16 %v2988
    %v3025 = vunpack.c.l.b16 %v2989
    %v3026 = vunpack.c.l.b16 %v2990
    %v3027 = vunpack.c.l.b16 %v2991
    %v3028 = vunpack.c.l.b16 %v2992
    %v3029 = vunpack.c.l.b16 %v2993
    %v3030 = vunpack.c.l.b16 %v2994
    %v3031 = vunpack.c.l.b16 %v2995
    %v3032 = vunpack.c.l.b16 %v2996
    %v3033 = vunpack.c.l.b16 %v2997
    %v3034 = vunpack.c.l.b16 %v2998
    %v3035 = vunpack.c.l.b16 %v2999
    %v3036 = vpack.c.b16 %v3021, %v3020
    %v3037 = vpack.c.b16 %v3023, %v3022
    %v3038 = vpack.c.b16 %v3025, %v3024
    %v3039 = vpack.c.b16 %v3027, %v3026
    %v3040 = vpack.c.b16 %v3029, %v3028
    %v3041 = vpack.c.b16 %v3031, %v3030
    %v3042 = vpack.c.b16 %v3033, %v3032
    %v3043 = vpack.c.b16 %v3035, %v3034
    %3052 = vmatprep.subr.bf16.mxu0 0
    %3053 = vmatpush1.bf16.msra.mxu0 %v3036
    %3054 = vmatprep.subr.bf16.mxu0 0
    %3055 = vmatpush1.bf16.msra.mxu0 %v3037
    %3056 = vmatprep.subr.bf16.mxu0 0
    %3057 = vmatpush1.bf16.msra.mxu0 %v3038
    %3058 = vmatprep.subr.bf16.mxu0 0
    %3059 = vmatpush1.bf16.msra.mxu0 %v3039
    %3060 = vmatprep.subr.bf16.mxu0 0
    %3061 = vmatpush1.bf16.msra.mxu0 %v3040
    %3062 = vmatprep.subr.bf16.mxu0 0
    %3063 = vmatpush1.bf16.msra.mxu0 %v3041
    %3064 = vmatprep.subr.bf16.mxu0 0
    %3065 = vmatpush1.bf16.msra.mxu0 %v3042
    %3066 = vmatprep.subr.bf16.mxu0 0
    %3067 = vmatpush1.bf16.msra.mxu0 %v3043
    %3068 = vmatprep.subr.bf16.mxu0 0
    %3069 = vmatpush1.bf16.msra.mxu0 0
    %3070 = vmatprep.subr.bf16.mxu0 0
    %3071 = vmatpush1.bf16.msra.mxu0 0
    %3072 = vmatprep.subr.bf16.mxu0 0
    %3073 = vmatpush1.bf16.msra.mxu0 0
    %3074 = vmatprep.subr.bf16.mxu0 0
    %3075 = vmatpush1.bf16.msra.mxu0 0
    %3076 = vmatprep.subr.bf16.mxu0 0
    %3077 = vmatpush1.bf16.msra.mxu0 0
    %3078 = vmatprep.subr.bf16.mxu0 0
    %3079 = vmatpush1.bf16.msra.mxu0 0
    %3080 = vmatprep.subr.bf16.mxu0 0
    %3081 = vmatpush1.bf16.msra.mxu0 0
    %3082 = vmatprep.subr.bf16.mxu0 0
    %3083 = vmatpush1.bf16.msra.mxu0 0
    %3084 = vmatprep.mubr.bf16.mxu0 0
    %3085 = vmatmul.mubr.bf16.gmra.mrb[0].mxu0 %v2982
    %v3086 = vpop.f32.mrb[0].mxu0
    %v3087 = vadd.f32 %v3003, %v3086
    %v3088 = vpop.f32.mrb[0].mxu0
    %v3089 = vpop.f32.mrb[0].mxu0
    %v3090 = vadd.f32 %v3003, %v3089
    %v3091 = vpop.f32.mrb[0].mxu0
    %3092 = vdwg.mxu0
    %v3093 = vadd.f32 %v3087, %v2139
    %v3094 = vadd.f32 %v3090, %v2140
    %3095 = vadd.xlane.f32.xlu0 %v3093
    %v3096 = vpop.xlane.xlu0 %3095
    %3097 = vadd.xlane.f32.xlu0 %v3094
    %v3098 = vpop.xlane.xlu0 %3097
    %v3099 = vmul.f32 %v3096, %v1211
    %v3100 = vmul.f32 %v3098, %v1211
    %v3101 = vsub.f32 %v3093, %v3099
    %v3102 = vsub.f32 %v3094, %v3100
    %v3103 = vmul.f32 %v3101, %v3101
    %v3104 = vmul.f32 %v3102, %v3102
    %3105 = vadd.xlane.f32.xlu0 %v3103
    %v3106 = vpop.xlane.xlu0 %3105
    %3107 = vadd.xlane.f32.xlu0 %v3104
    %v3108 = vpop.xlane.xlu0 %3107
    %v3109 = vmul.f32 %v3106, %v1211
    %v3110 = vmul.f32 %v3108, %v1211
    %v3111 = vadd.f32 %v3109, 1e-12
    %v3112 = vadd.f32 %v3110, 1e-12
    %v3113 = vrsqrt.pop %v3111
    %v3114 = vrsqrt.pop %v3112
    %v3115 = vmul.f32 %v3101, %v3113
    %v3116 = vmul.f32 %v3102, %v3114
    %v3117 = vlaneseq
    %v3118 = vshrl.u32 %v3117, 7
    %v3119 = vsub.s32 1, %v3118
    %v3120 = vrot.slane %v2142, %v3119
    %v3121 = vmul.f32 %v3115, %v3120
    %v3122 = vmul.f32 %v3116, %v3120
    %v3123 = vlaneseq
    %v3124 = vshrl.u32 %v3123, 7
    %v3125 = vsub.s32 2, %v3124
    %v3126 = vrot.slane %v2142, %v3125
    %v3127 = vadd.f32 %v3121, %v3126
    %v3128 = vadd.f32 %v3122, %v3126
    %v3129 = vpack.c.bf16 %v3128, %v3127
    %s3130 = scalar_lea.vmem [#allocation4], 256
    %v3131 = vld [vmem:[%s3130] sm:$0xff]
    %v3132 = vld [vmem:[%s3130 + $0x8] sm:$0xff]
    %v3133 = vld [vmem:[%s3130 + $0x10] sm:$0xff]
    %v3134 = vld [vmem:[%s3130 + $0x18] sm:$0xff]
    %v3135 = vld [vmem:[%s3130 + $0x20] sm:$0xff]
    %v3136 = vld [vmem:[%s3130 + $0x28] sm:$0xff]
    %v3137 = vld [vmem:[%s3130 + $0x30] sm:$0xff]
    %v3138 = vld [vmem:[%s3130 + $0x38] sm:$0xff]
    %v3139 = vld [vmem:[%s3130 + $0x40] sm:$0xff]
    %v3140 = vld [vmem:[%s3130 + $0x48] sm:$0xff]
    %v3141 = vld [vmem:[%s3130 + $0x50] sm:$0xff]
    %v3142 = vld [vmem:[%s3130 + $0x58] sm:$0xff]
    %v3143 = vld [vmem:[%s3130 + $0x60] sm:$0xff]
    %v3144 = vld [vmem:[%s3130 + $0x68] sm:$0xff]
    %v3145 = vld [vmem:[%s3130 + $0x70] sm:$0xff]
    %v3146 = vld [vmem:[%s3130 + $0x78] sm:$0xff]
    %v3147 = vld [vmem:[%s3130 + $0x80] sm:$0xff]
    %v3148 = vld [vmem:[%s3130 + $0x88] sm:$0xff]
    %v3149 = vld [vmem:[%s3130 + $0x90] sm:$0xff]
    %v3150 = vld [vmem:[%s3130 + $0x98] sm:$0xff]
    %v3151 = vld [vmem:[%s3130 + $0xa0] sm:$0xff]
    %v3152 = vld [vmem:[%s3130 + $0xa8] sm:$0xff]
    %v3153 = vld [vmem:[%s3130 + $0xb0] sm:$0xff]
    %v3154 = vld [vmem:[%s3130 + $0xb8] sm:$0xff]
    %v3155 = vld [vmem:[%s3130 + $0xc0] sm:$0xff]
    %v3156 = vld [vmem:[%s3130 + $0xc8] sm:$0xff]
    %v3157 = vld [vmem:[%s3130 + $0xd0] sm:$0xff]
    %v3158 = vld [vmem:[%s3130 + $0xd8] sm:$0xff]
    %v3159 = vld [vmem:[%s3130 + $0xe0] sm:$0xff]
    %v3160 = vld [vmem:[%s3130 + $0xe8] sm:$0xff]
    %v3161 = vld [vmem:[%s3130 + $0xf0] sm:$0xff]
    %v3162 = vld [vmem:[%s3130 + $0xf8] sm:$0xff]
    %s3163 = scalar_lea.vmem %s7, 4
    %v3164 = vld [vmem:[%s3163] sm:$0xf]
    %v3166 = vlaneseq
    %v3167 = vshrl.u32 %v3166, 7
    %v3168 = vsub.s32 0, %v3167
    %v3169 = vrot.slane %v3164, %v3168
    %v3170 = vlaneseq
    %v3171 = vshrl.u32 %v3170, 7
    %v3172 = vsub.s32 1, %v3171
    %v3173 = vrot.slane %v3164, %v3172
    %v3174 = vlaneseq
    %v3175 = vshrl.u32 %v3174, 7
    %v3176 = vsub.s32 2, %v3175
    %v3177 = vrot.slane %v3164, %v3176
    %v3178 = vlaneseq
    %v3179 = vshrl.u32 %v3178, 7
    %v3180 = vsub.s32 3, %v3179
    %v3181 = vrot.slane %v3164, %v3180
    %v3218 = vunpack.c.l.b16 %v3131
    %v3219 = vunpack.c.h.b16 %v3131
    %v3220 = vunpack.c.l.b16 %v3132
    %v3221 = vunpack.c.h.b16 %v3132
    %v3222 = vunpack.c.l.b16 %v3133
    %v3223 = vunpack.c.h.b16 %v3133
    %v3224 = vunpack.c.l.b16 %v3134
    %v3225 = vunpack.c.h.b16 %v3134
    %v3226 = vunpack.c.l.b16 %v3135
    %v3227 = vunpack.c.h.b16 %v3135
    %v3228 = vunpack.c.l.b16 %v3136
    %v3229 = vunpack.c.h.b16 %v3136
    %v3230 = vunpack.c.l.b16 %v3137
    %v3231 = vunpack.c.h.b16 %v3137
    %v3232 = vunpack.c.l.b16 %v3138
    %v3233 = vunpack.c.h.b16 %v3138
    %v3234 = vunpack.c.l.b16 %v3139
    %v3235 = vunpack.c.h.b16 %v3139
    %v3236 = vunpack.c.l.b16 %v3140
    %v3237 = vunpack.c.h.b16 %v3140
    %v3238 = vunpack.c.l.b16 %v3141
    %v3239 = vunpack.c.h.b16 %v3141
    %v3240 = vunpack.c.l.b16 %v3142
    %v3241 = vunpack.c.h.b16 %v3142
    %v3242 = vunpack.c.l.b16 %v3143
    %v3243 = vunpack.c.h.b16 %v3143
    %v3244 = vunpack.c.l.b16 %v3144
    %v3245 = vunpack.c.h.b16 %v3144
    %v3246 = vunpack.c.l.b16 %v3145
    %v3247 = vunpack.c.h.b16 %v3145
    %v3248 = vunpack.c.l.b16 %v3146
    %v3249 = vunpack.c.h.b16 %v3146
    %v3250 = vunpack.c.l.b16 %v3147
    %v3251 = vunpack.c.h.b16 %v3147
    %v3252 = vunpack.c.l.b16 %v3148
    %v3253 = vunpack.c.h.b16 %v3148
    %v3254 = vunpack.c.l.b16 %v3149
    %v3255 = vunpack.c.h.b16 %v3149
    %v3256 = vunpack.c.l.b16 %v3150
    %v3257 = vunpack.c.h.b16 %v3150
    %v3258 = vunpack.c.l.b16 %v3151
    %v3259 = vunpack.c.h.b16 %v3151
    %v3260 = vunpack.c.l.b16 %v3152
    %v3261 = vunpack.c.h.b16 %v3152
    %v3262 = vunpack.c.l.b16 %v3153
    %v3263 = vunpack.c.h.b16 %v3153
    %v3264 = vunpack.c.l.b16 %v3154
    %v3265 = vunpack.c.h.b16 %v3154
    %v3266 = vunpack.c.l.b16 %v3155
    %v3267 = vunpack.c.h.b16 %v3155
    %v3268 = vunpack.c.l.b16 %v3156
    %v3269 = vunpack.c.h.b16 %v3156
    %v3270 = vunpack.c.l.b16 %v3157
    %v3271 = vunpack.c.h.b16 %v3157
    %v3272 = vunpack.c.l.b16 %v3158
    %v3273 = vunpack.c.h.b16 %v3158
    %v3274 = vunpack.c.l.b16 %v3159
    %v3275 = vunpack.c.h.b16 %v3159
    %v3276 = vunpack.c.l.b16 %v3160
    %v3277 = vunpack.c.h.b16 %v3160
    %v3278 = vunpack.c.l.b16 %v3161
    %v3279 = vunpack.c.h.b16 %v3161
    %v3280 = vunpack.c.l.b16 %v3162
    %v3281 = vunpack.c.h.b16 %v3162
    %v3282 = vpack.c.b16 %v3222, %v3218
    %v3283 = vpack.c.b16 %v3223, %v3219
    %v3284 = vpack.c.b16 %v3224, %v3220
    %v3285 = vpack.c.b16 %v3225, %v3221
    %v3286 = vpack.c.b16 %v3230, %v3226
    %v3287 = vpack.c.b16 %v3231, %v3227
    %v3288 = vpack.c.b16 %v3232, %v3228
    %v3289 = vpack.c.b16 %v3233, %v3229
    %v3290 = vpack.c.b16 %v3238, %v3234
    %v3291 = vpack.c.b16 %v3239, %v3235
    %v3292 = vpack.c.b16 %v3240, %v3236
    %v3293 = vpack.c.b16 %v3241, %v3237
    %v3294 = vpack.c.b16 %v3246, %v3242
    %v3295 = vpack.c.b16 %v3247, %v3243
    %v3296 = vpack.c.b16 %v3248, %v3244
    %v3297 = vpack.c.b16 %v3249, %v3245
    %v3298 = vpack.c.b16 %v3254, %v3250
    %v3299 = vpack.c.b16 %v3255, %v3251
    %v3300 = vpack.c.b16 %v3256, %v3252
    %v3301 = vpack.c.b16 %v3257, %v3253
    %v3302 = vpack.c.b16 %v3262, %v3258
    %v3303 = vpack.c.b16 %v3263, %v3259
    %v3304 = vpack.c.b16 %v3264, %v3260
    %v3305 = vpack.c.b16 %v3265, %v3261
    %v3306 = vpack.c.b16 %v3270, %v3266
    %v3307 = vpack.c.b16 %v3271, %v3267
    %v3308 = vpack.c.b16 %v3272, %v3268
    %v3309 = vpack.c.b16 %v3273, %v3269
    %v3310 = vpack.c.b16 %v3278, %v3274
    %v3311 = vpack.c.b16 %v3279, %v3275
    %v3312 = vpack.c.b16 %v3280, %v3276
    %v3313 = vpack.c.b16 %v3281, %v3277
    %3346 = vmatprep.subr.bf16.mxu0 %v3283
    %3347 = vmatpush1.bf16.msra.mxu0 %v3282
    %3348 = vmatprep.subr.bf16.mxu0 %v3287
    %3349 = vmatpush1.bf16.msra.mxu0 %v3286
    %3350 = vmatprep.subr.bf16.mxu0 %v3291
    %3351 = vmatpush1.bf16.msra.mxu0 %v3290
    %3352 = vmatprep.subr.bf16.mxu0 %v3295
    %3353 = vmatpush1.bf16.msra.mxu0 %v3294
    %3354 = vmatprep.subr.bf16.mxu0 %v3299
    %3355 = vmatpush1.bf16.msra.mxu0 %v3298
    %3356 = vmatprep.subr.bf16.mxu0 %v3303
    %3357 = vmatpush1.bf16.msra.mxu0 %v3302
    %3358 = vmatprep.subr.bf16.mxu0 %v3307
    %3359 = vmatpush1.bf16.msra.mxu0 %v3306
    %3360 = vmatprep.subr.bf16.mxu0 %v3311
    %3361 = vmatpush1.bf16.msra.mxu0 %v3310
    %3362 = vmatprep.subr.bf16.mxu0 0
    %3363 = vmatpush1.bf16.msra.mxu0 0
    %3364 = vmatprep.subr.bf16.mxu0 0
    %3365 = vmatpush1.bf16.msra.mxu0 0
    %3366 = vmatprep.subr.bf16.mxu0 0
    %3367 = vmatpush1.bf16.msra.mxu0 0
    %3368 = vmatprep.subr.bf16.mxu0 0
    %3369 = vmatpush1.bf16.msra.mxu0 0
    %3370 = vmatprep.subr.bf16.mxu0 0
    %3371 = vmatpush1.bf16.msra.mxu0 0
    %3372 = vmatprep.subr.bf16.mxu0 0
    %3373 = vmatpush1.bf16.msra.mxu0 0
    %3374 = vmatprep.subr.bf16.mxu0 0
    %3375 = vmatpush1.bf16.msra.mxu0 0
    %3376 = vmatprep.subr.bf16.mxu0 0
    %3377 = vmatpush1.bf16.msra.mxu0 0
    %3378 = vmatprep.mubr.bf16.mxu0 0
    %3379 = vmatmul.mubr.bf16.gmra.mrb[0].mxu0 %v3129
    %v3380 = vpop.f32.mrb[0].mxu0
    %v3381 = vadd.f32 %v3169, %v3380
    %v3382 = vpop.f32.mrb[0].mxu0
    %v3383 = vadd.f32 %v3173, %v3382
    %v3384 = vpop.f32.mrb[0].mxu0
    %v3385 = vadd.f32 %v3169, %v3384
    %v3386 = vpop.f32.mrb[0].mxu0
    %v3387 = vadd.f32 %v3173, %v3386
    %3388 = vdwg.mxu0
    %3389 = vmatprep.subr.bf16.mxu0 %v3285
    %3390 = vmatpush1.bf16.msra.mxu0 %v3284
    %3391 = vmatprep.subr.bf16.mxu0 %v3289
    %3392 = vmatpush1.bf16.msra.mxu0 %v3288
    %3393 = vmatprep.subr.bf16.mxu0 %v3293
    %3394 = vmatpush1.bf16.msra.mxu0 %v3292
    %3395 = vmatprep.subr.bf16.mxu0 %v3297
    %3396 = vmatpush1.bf16.msra.mxu0 %v3296
    %3397 = vmatprep.subr.bf16.mxu0 %v3301
    %3398 = vmatpush1.bf16.msra.mxu0 %v3300
    %3399 = vmatprep.subr.bf16.mxu0 %v3305
    %3400 = vmatpush1.bf16.msra.mxu0 %v3304
    %3401 = vmatprep.subr.bf16.mxu0 %v3309
    %3402 = vmatpush1.bf16.msra.mxu0 %v3308
    %3403 = vmatprep.subr.bf16.mxu0 %v3313
    %3404 = vmatpush1.bf16.msra.mxu0 %v3312
    %3405 = vmatprep.subr.bf16.mxu0 0
    %3406 = vmatpush1.bf16.msra.mxu0 0
    %3407 = vmatprep.subr.bf16.mxu0 0
    %3408 = vmatpush1.bf16.msra.mxu0 0
    %3409 = vmatprep.subr.bf16.mxu0 0
    %3410 = vmatpush1.bf16.msra.mxu0 0
    %3411 = vmatprep.subr.bf16.mxu0 0
    %3412 = vmatpush1.bf16.msra.mxu0 0
    %3413 = vmatprep.subr.bf16.mxu0 0
    %3414 = vmatpush1.bf16.msra.mxu0 0
    %3415 = vmatprep.subr.bf16.mxu0 0
    %3416 = vmatpush1.bf16.msra.mxu0 0
    %3417 = vmatprep.subr.bf16.mxu0 0
    %3418 = vmatpush1.bf16.msra.mxu0 0
    %3419 = vmatprep.subr.bf16.mxu0 0
    %3420 = vmatpush1.bf16.msra.mxu0 0
    %3421 = vmatprep.mubr.bf16.mxu0 0
    %3422 = vmatmul.mubr.bf16.gmra.mrb[0].mxu0 %v3129
    %v3423 = vpop.f32.mrb[0].mxu0
    %v3424 = vadd.f32 %v3177, %v3423
    %v3425 = vpop.f32.mrb[0].mxu0
    %v3426 = vadd.f32 %v3181, %v3425
    %v3427 = vpop.f32.mrb[0].mxu0
    %v3428 = vadd.f32 %v3177, %v3427
    %v3429 = vpop.f32.mrb[0].mxu0
    %v3430 = vadd.f32 %v3181, %v3429
    %3431 = vdwg.mxu0
    %v3432 = vmul.f32 %v3381, 0.5
    %v3433 = vmul.f32 %v3383, 0.5
    %v3434 = vmul.f32 %v3424, 0.5
    %v3435 = vmul.f32 %v3426, 0.5
    %v3436 = vmul.f32 %v3385, 0.5
    %v3437 = vmul.f32 %v3387, 0.5
    %v3438 = vmul.f32 %v3428, 0.5
    %v3439 = vmul.f32 %v3430, 0.5
    %v3440 = vmul.f32 %v3381, 0.70710677
    %v3441 = vmul.f32 %v3383, 0.70710677
    %v3442 = vmul.f32 %v3424, 0.70710677
    %v3443 = vmul.f32 %v3426, 0.70710677
    %v3444 = vmul.f32 %v3385, 0.70710677
    %v3445 = vmul.f32 %v3387, 0.70710677
    %v3446 = vmul.f32 %v3428, 0.70710677
    %v3447 = vmul.f32 %v3430, 0.70710677
    %v3448 = vand.u32 2147483647, %v3440
    %v3449 = vand.u32 2147483647, %v3441
    %v3450 = vand.u32 2147483647, %v3442
    %v3451 = vand.u32 2147483647, %v3443
    %v3452 = vand.u32 2147483647, %v3444
    %v3453 = vand.u32 2147483647, %v3445
    %v3454 = vand.u32 2147483647, %v3446
    %v3455 = vand.u32 2147483647, %v3447
    %v3456 = vmul.f32 %v3448, 0.3275911
    %v3457 = vmul.f32 %v3449, 0.3275911
    %v3458 = vmul.f32 %v3450, 0.3275911
    %v3459 = vmul.f32 %v3451, 0.3275911
    %v3460 = vmul.f32 %v3452, 0.3275911
    %v3461 = vmul.f32 %v3453, 0.3275911
    %v3462 = vmul.f32 %v3454, 0.3275911
    %v3463 = vmul.f32 %v3455, 0.3275911
    %v3464 = vadd.f32 %v3456, 1.0
    %v3465 = vadd.f32 %v3457, 1.0
    %v3466 = vadd.f32 %v3458, 1.0
    %v3467 = vadd.f32 %v3459, 1.0
    %v3468 = vadd.f32 %v3460, 1.0
    %v3469 = vadd.f32 %v3461, 1.0
    %v3470 = vadd.f32 %v3462, 1.0
    %v3471 = vadd.f32 %v3463, 1.0
    %v3472 = vrcp.pop %v3464
    %v3473 = vmul.f32 1.0, %v3472
    %v3474 = vrcp.pop %v3465
    %v3475 = vmul.f32 1.0, %v3474
    %v3476 = vrcp.pop %v3466
    %v3477 = vmul.f32 1.0, %v3476
    %v3478 = vrcp.pop %v3467
    %v3479 = vmul.f32 1.0, %v3478
    %v3480 = vrcp.pop %v3468
    %v3481 = vmul.f32 1.0, %v3480
    %v3482 = vrcp.pop %v3469
    %v3483 = vmul.f32 1.0, %v3482
    %v3484 = vrcp.pop %v3470
    %v3485 = vmul.f32 1.0, %v3484
    %v3486 = vrcp.pop %v3471
    %v3487 = vmul.f32 1.0, %v3486
    %v3488 = vmul.f32 %v3473, 1.0614054
    %v3489 = vmul.f32 %v3475, 1.0614054
    %v3490 = vmul.f32 %v3477, 1.0614054
    %v3491 = vmul.f32 %v3479, 1.0614054
    %v3492 = vmul.f32 %v3481, 1.0614054
    %v3493 = vmul.f32 %v3483, 1.0614054
    %v3494 = vmul.f32 %v3485, 1.0614054
    %v3495 = vmul.f32 %v3487, 1.0614054
    %v3496 = vadd.f32 %v3488, -1.4531521
    %v3497 = vadd.f32 %v3489, -1.4531521
    %v3498 = vadd.f32 %v3490, -1.4531521
    %v3499 = vadd.f32 %v3491, -1.4531521
    %v3500 = vadd.f32 %v3492, -1.4531521
    %v3501 = vadd.f32 %v3493, -1.4531521
    %v3502 = vadd.f32 %v3494, -1.4531521
    %v3503 = vadd.f32 %v3495, -1.4531521
    %v3504 = vmul.f32 %v3496, %v3473
    %v3505 = vmul.f32 %v3497, %v3475
    %v3506 = vmul.f32 %v3498, %v3477
    %v3507 = vmul.f32 %v3499, %v3479
    %v3508 = vmul.f32 %v3500, %v3481
    %v3509 = vmul.f32 %v3501, %v3483
    %v3510 = vmul.f32 %v3502, %v3485
    %v3511 = vmul.f32 %v3503, %v3487
    %v3512 = vadd.f32 %v3504, 1.4214138
    %v3513 = vadd.f32 %v3505, 1.4214138
    %v3514 = vadd.f32 %v3506, 1.4214138
    %v3515 = vadd.f32 %v3507, 1.4214138
    %v3516 = vadd.f32 %v3508, 1.4214138
    %v3517 = vadd.f32 %v3509, 1.4214138
    %v3518 = vadd.f32 %v3510, 1.4214138
    %v3519 = vadd.f32 %v3511, 1.4214138
    %v3520 = vmul.f32 %v3512, %v3473
    %v3521 = vmul.f32 %v3513, %v3475
    %v3522 = vmul.f32 %v3514, %v3477
    %v3523 = vmul.f32 %v3515, %v3479
    %v3524 = vmul.f32 %v3516, %v3481
    %v3525 = vmul.f32 %v3517, %v3483
    %v3526 = vmul.f32 %v3518, %v3485
    %v3527 = vmul.f32 %v3519, %v3487
    %v3528 = vadd.f32 %v3520, -0.28449672
    %v3529 = vadd.f32 %v3521, -0.28449672
    %v3530 = vadd.f32 %v3522, -0.28449672
    %v3531 = vadd.f32 %v3523, -0.28449672
    %v3532 = vadd.f32 %v3524, -0.28449672
    %v3533 = vadd.f32 %v3525, -0.28449672
    %v3534 = vadd.f32 %v3526, -0.28449672
    %v3535 = vadd.f32 %v3527, -0.28449672
    %v3536 = vmul.f32 %v3528, %v3473
    %v3537 = vmul.f32 %v3529, %v3475
    %v3538 = vmul.f32 %v3530, %v3477
    %v3539 = vmul.f32 %v3531, %v3479
    %v3540 = vmul.f32 %v3532, %v3481
    %v3541 = vmul.f32 %v3533, %v3483
    %v3542 = vmul.f32 %v3534, %v3485
    %v3543 = vmul.f32 %v3535, %v3487
    %v3544 = vadd.f32 %v3536, 0.2548296
    %v3545 = vadd.f32 %v3537, 0.2548296
    %v3546 = vadd.f32 %v3538, 0.2548296
    %v3547 = vadd.f32 %v3539, 0.2548296
    %v3548 = vadd.f32 %v3540, 0.2548296
    %v3549 = vadd.f32 %v3541, 0.2548296
    %v3550 = vadd.f32 %v3542, 0.2548296
    %v3551 = vadd.f32 %v3543, 0.2548296
    %v3552 = vmul.f32 %v3544, %v3473
    %v3553 = vmul.f32 %v3545, %v3475
    %v3554 = vmul.f32 %v3546, %v3477
    %v3555 = vmul.f32 %v3547, %v3479
    %v3556 = vmul.f32 %v3548, %v3481
    %v3557 = vmul.f32 %v3549, %v3483
    %v3558 = vmul.f32 %v3550, %v3485
    %v3559 = vmul.f32 %v3551, %v3487
    %v3560 = vsub.f32 0.0, %v3448
    %v3561 = vsub.f32 0.0, %v3449
    %v3562 = vsub.f32 0.0, %v3450
    %v3563 = vsub.f32 0.0, %v3451
    %v3564 = vsub.f32 0.0, %v3452
    %v3565 = vsub.f32 0.0, %v3453
    %v3566 = vsub.f32 0.0, %v3454
    %v3567 = vsub.f32 0.0, %v3455
    %v3568 = vmul.f32 %v3560, %v3448
    %v3569 = vmul.f32 %v3561, %v3449
    %v3570 = vmul.f32 %v3562, %v3450
    %v3571 = vmul.f32 %v3563, %v3451
    %v3572 = vmul.f32 %v3564, %v3452
    %v3573 = vmul.f32 %v3565, %v3453
    %v3574 = vmul.f32 %v3566, %v3454
    %v3575 = vmul.f32 %v3567, %v3455
    %v3576 = vmul.f32 %v3568, 1.442695
    %v3577 = vpow.pop %v3576
    %v3578 = vmul.f32 %v3569, 1.442695
    %v3579 = vpow.pop %v3578
    %v3580 = vmul.f32 %v3570, 1.442695
    %v3581 = vpow.pop %v3580
    %v3582 = vmul.f32 %v3571, 1.442695
    %v3583 = vpow.pop %v3582
    %v3584 = vmul.f32 %v3572, 1.442695
    %v3585 = vpow.pop %v3584
    %v3586 = vmul.f32 %v3573, 1.442695
    %v3587 = vpow.pop %v3586
    %v3588 = vmul.f32 %v3574, 1.442695
    %v3589 = vpow.pop %v3588
    %v3590 = vmul.f32 %v3575, 1.442695
    %v3591 = vpow.pop %v3590
    %v3592 = vmul.f32 %v3552, %v3577
    %v3593 = vmul.f32 %v3553, %v3579
    %v3594 = vmul.f32 %v3554, %v3581
    %v3595 = vmul.f32 %v3555, %v3583
    %v3596 = vmul.f32 %v3556, %v3585
    %v3597 = vmul.f32 %v3557, %v3587
    %v3598 = vmul.f32 %v3558, %v3589
    %v3599 = vmul.f32 %v3559, %v3591
    %v3600 = vsub.f32 1.0, %v3592
    %v3601 = vsub.f32 1.0, %v3593
    %v3602 = vsub.f32 1.0, %v3594
    %v3603 = vsub.f32 1.0, %v3595
    %v3604 = vsub.f32 1.0, %v3596
    %v3605 = vsub.f32 1.0, %v3597
    %v3606 = vsub.f32 1.0, %v3598
    %v3607 = vsub.f32 1.0, %v3599
    %vm3608 = vcmp.ge.f32.partialorder %v3440, 0.0
    %vm3609 = vcmp.ge.f32.partialorder %v3441, 0.0
    %vm3610 = vcmp.ge.f32.partialorder %v3442, 0.0
    %vm3611 = vcmp.ge.f32.partialorder %v3443, 0.0
    %vm3612 = vcmp.ge.f32.partialorder %v3444, 0.0
    %vm3613 = vcmp.ge.f32.partialorder %v3445, 0.0
    %vm3614 = vcmp.ge.f32.partialorder %v3446, 0.0
    %vm3615 = vcmp.ge.f32.partialorder %v3447, 0.0
    %v3616 = vsub.f32 0.0, %v3600
    %v3617 = vsub.f32 0.0, %v3601
    %v3618 = vsub.f32 0.0, %v3602
    %v3619 = vsub.f32 0.0, %v3603
    %v3620 = vsub.f32 0.0, %v3604
    %v3621 = vsub.f32 0.0, %v3605
    %v3622 = vsub.f32 0.0, %v3606
    %v3623 = vsub.f32 0.0, %v3607
    %v3624 = vsel %vm3608, %v3600, %v3616
    %v3625 = vsel %vm3609, %v3601, %v3617
    %v3626 = vsel %vm3610, %v3602, %v3618
    %v3627 = vsel %vm3611, %v3603, %v3619
    %v3628 = vsel %vm3612, %v3604, %v3620
    %v3629 = vsel %vm3613, %v3605, %v3621
    %v3630 = vsel %vm3614, %v3606, %v3622
    %v3631 = vsel %vm3615, %v3607, %v3623
    %v3632 = vadd.f32 %v3624, 1.0
    %v3633 = vadd.f32 %v3625, 1.0
    %v3634 = vadd.f32 %v3626, 1.0
    %v3635 = vadd.f32 %v3627, 1.0
    %v3636 = vadd.f32 %v3628, 1.0
    %v3637 = vadd.f32 %v3629, 1.0
    %v3638 = vadd.f32 %v3630, 1.0
    %v3639 = vadd.f32 %v3631, 1.0
    %v3640 = vmul.f32 %v3432, %v3632
    %v3641 = vmul.f32 %v3433, %v3633
    %v3642 = vmul.f32 %v3434, %v3634
    %v3643 = vmul.f32 %v3435, %v3635
    %v3644 = vmul.f32 %v3436, %v3636
    %v3645 = vmul.f32 %v3437, %v3637
    %v3646 = vmul.f32 %v3438, %v3638
    %v3647 = vmul.f32 %v3439, %v3639
    %v3648 = vpack.c.bf16 %v3644, %v3640
    %v3649 = vpack.c.bf16 %v3645, %v3641
    %v3650 = vpack.c.bf16 %v3646, %v3642
    %v3651 = vpack.c.bf16 %v3647, %v3643
    %s3652 = scalar_lea.vmem [#allocation6], 256
    %v3653 = vld [vmem:[%s3652] sm:$0xf]
    %v3654 = vld [vmem:[%s3652 + $0x4] sm:$0xf]
    %v3655 = vld [vmem:[%s3652 + $0x8] sm:$0xf]
    %v3656 = vld [vmem:[%s3652 + $0xc] sm:$0xf]
    %v3657 = vld [vmem:[%s3652 + $0x10] sm:$0xf]
    %v3658 = vld [vmem:[%s3652 + $0x14] sm:$0xf]
    %v3659 = vld [vmem:[%s3652 + $0x18] sm:$0xf]
    %v3660 = vld [vmem:[%s3652 + $0x1c] sm:$0xf]
    %v3661 = vld [vmem:[%s3652 + $0x20] sm:$0xf]
    %v3662 = vld [vmem:[%s3652 + $0x24] sm:$0xf]
    %v3663 = vld [vmem:[%s3652 + $0x28] sm:$0xf]
    %v3664 = vld [vmem:[%s3652 + $0x2c] sm:$0xf]
    %v3665 = vld [vmem:[%s3652 + $0x30] sm:$0xf]
    %v3666 = vld [vmem:[%s3652 + $0x34] sm:$0xf]
    %v3667 = vld [vmem:[%s3652 + $0x38] sm:$0xf]
    %v3668 = vld [vmem:[%s3652 + $0x3c] sm:$0xf]
    %v3669 = vld [vmem:[%s3652 + $0x40] sm:$0xf]
    %v3670 = vld [vmem:[%s3652 + $0x44] sm:$0xf]
    %v3671 = vld [vmem:[%s3652 + $0x48] sm:$0xf]
    %v3672 = vld [vmem:[%s3652 + $0x4c] sm:$0xf]
    %v3673 = vld [vmem:[%s3652 + $0x50] sm:$0xf]
    %v3674 = vld [vmem:[%s3652 + $0x54] sm:$0xf]
    %v3675 = vld [vmem:[%s3652 + $0x58] sm:$0xf]
    %v3676 = vld [vmem:[%s3652 + $0x5c] sm:$0xf]
    %v3677 = vld [vmem:[%s3652 + $0x60] sm:$0xf]
    %v3678 = vld [vmem:[%s3652 + $0x64] sm:$0xf]
    %v3679 = vld [vmem:[%s3652 + $0x68] sm:$0xf]
    %v3680 = vld [vmem:[%s3652 + $0x6c] sm:$0xf]
    %v3681 = vld [vmem:[%s3652 + $0x70] sm:$0xf]
    %v3682 = vld [vmem:[%s3652 + $0x74] sm:$0xf]
    %v3683 = vld [vmem:[%s3652 + $0x78] sm:$0xf]
    %v3684 = vld [vmem:[%s3652 + $0x7c] sm:$0xf]
    %v3685 = vld [vmem:[%s3652 + $0x80] sm:$0xf]
    %v3686 = vld [vmem:[%s3652 + $0x84] sm:$0xf]
    %v3687 = vld [vmem:[%s3652 + $0x88] sm:$0xf]
    %v3688 = vld [vmem:[%s3652 + $0x8c] sm:$0xf]
    %v3689 = vld [vmem:[%s3652 + $0x90] sm:$0xf]
    %v3690 = vld [vmem:[%s3652 + $0x94] sm:$0xf]
    %v3691 = vld [vmem:[%s3652 + $0x98] sm:$0xf]
    %v3692 = vld [vmem:[%s3652 + $0x9c] sm:$0xf]
    %v3693 = vld [vmem:[%s3652 + $0xa0] sm:$0xf]
    %v3694 = vld [vmem:[%s3652 + $0xa4] sm:$0xf]
    %v3695 = vld [vmem:[%s3652 + $0xa8] sm:$0xf]
    %v3696 = vld [vmem:[%s3652 + $0xac] sm:$0xf]
    %v3697 = vld [vmem:[%s3652 + $0xb0] sm:$0xf]
    %v3698 = vld [vmem:[%s3652 + $0xb4] sm:$0xf]
    %v3699 = vld [vmem:[%s3652 + $0xb8] sm:$0xf]
    %v3700 = vld [vmem:[%s3652 + $0xbc] sm:$0xf]
    %v3701 = vld [vmem:[%s3652 + $0xc0] sm:$0xf]
    %v3702 = vld [vmem:[%s3652 + $0xc4] sm:$0xf]
    %v3703 = vld [vmem:[%s3652 + $0xc8] sm:$0xf]
    %v3704 = vld [vmem:[%s3652 + $0xcc] sm:$0xf]
    %v3705 = vld [vmem:[%s3652 + $0xd0] sm:$0xf]
    %v3706 = vld [vmem:[%s3652 + $0xd4] sm:$0xf]
    %v3707 = vld [vmem:[%s3652 + $0xd8] sm:$0xf]
    %v3708 = vld [vmem:[%s3652 + $0xdc] sm:$0xf]
    %v3709 = vld [vmem:[%s3652 + $0xe0] sm:$0xf]
    %v3710 = vld [vmem:[%s3652 + $0xe4] sm:$0xf]
    %v3711 = vld [vmem:[%s3652 + $0xe8] sm:$0xf]
    %v3712 = vld [vmem:[%s3652 + $0xec] sm:$0xf]
    %v3713 = vld [vmem:[%s3652 + $0xf0] sm:$0xf]
    %v3714 = vld [vmem:[%s3652 + $0xf4] sm:$0xf]
    %v3715 = vld [vmem:[%s3652 + $0xf8] sm:$0xf]
    %v3716 = vld [vmem:[%s3652 + $0xfc] sm:$0xf]
    %v3717 = vlaneseq
    %v3718 = vshrl.u32 %v3717, 7
    %v3719 = vsub.s32 3, %v3718
    %v3720 = vrot.slane %v2142, %v3719
    %v3785 = vunpack.c.l.b16 %v3653
    %v3786 = vunpack.c.l.b16 %v3654
    %v3787 = vunpack.c.l.b16 %v3655
    %v3788 = vunpack.c.l.b16 %v3656
    %v3789 = vunpack.c.l.b16 %v3657
    %v3790 = vunpack.c.l.b16 %v3658
    %v3791 = vunpack.c.l.b16 %v3659
    %v3792 = vunpack.c.l.b16 %v3660
    %v3793 = vunpack.c.l.b16 %v3661
    %v3794 = vunpack.c.l.b16 %v3662
    %v3795 = vunpack.c.l.b16 %v3663
    %v3796 = vunpack.c.l.b16 %v3664
    %v3797 = vunpack.c.l.b16 %v3665
    %v3798 = vunpack.c.l.b16 %v3666
    %v3799 = vunpack.c.l.b16 %v3667
    %v3800 = vunpack.c.l.b16 %v3668
    %v3801 = vunpack.c.l.b16 %v3669
    %v3802 = vunpack.c.l.b16 %v3670
    %v3803 = vunpack.c.l.b16 %v3671
    %v3804 = vunpack.c.l.b16 %v3672
    %v3805 = vunpack.c.l.b16 %v3673
    %v3806 = vunpack.c.l.b16 %v3674
    %v3807 = vunpack.c.l.b16 %v3675
    %v3808 = vunpack.c.l.b16 %v3676
    %v3809 = vunpack.c.l.b16 %v3677
    %v3810 = vunpack.c.l.b16 %v3678
    %v3811 = vunpack.c.l.b16 %v3679
    %v3812 = vunpack.c.l.b16 %v3680
    %v3813 = vunpack.c.l.b16 %v3681
    %v3814 = vunpack.c.l.b16 %v3682
    %v3815 = vunpack.c.l.b16 %v3683
    %v3816 = vunpack.c.l.b16 %v3684
    %v3817 = vunpack.c.l.b16 %v3685
    %v3818 = vunpack.c.l.b16 %v3686
    %v3819 = vunpack.c.l.b16 %v3687
    %v3820 = vunpack.c.l.b16 %v3688
    %v3821 = vunpack.c.l.b16 %v3689
    %v3822 = vunpack.c.l.b16 %v3690
    %v3823 = vunpack.c.l.b16 %v3691
    %v3824 = vunpack.c.l.b16 %v3692
    %v3825 = vunpack.c.l.b16 %v3693
    %v3826 = vunpack.c.l.b16 %v3694
    %v3827 = vunpack.c.l.b16 %v3695
    %v3828 = vunpack.c.l.b16 %v3696
    %v3829 = vunpack.c.l.b16 %v3697
    %v3830 = vunpack.c.l.b16 %v3698
    %v3831 = vunpack.c.l.b16 %v3699
    %v3832 = vunpack.c.l.b16 %v3700
    %v3833 = vunpack.c.l.b16 %v3701
    %v3834 = vunpack.c.l.b16 %v3702
    %v3835 = vunpack.c.l.b16 %v3703
    %v3836 = vunpack.c.l.b16 %v3704
    %v3837 = vunpack.c.l.b16 %v3705
    %v3838 = vunpack.c.l.b16 %v3706
    %v3839 = vunpack.c.l.b16 %v3707
    %v3840 = vunpack.c.l.b16 %v3708
    %v3841 = vunpack.c.l.b16 %v3709
    %v3842 = vunpack.c.l.b16 %v3710
    %v3843 = vunpack.c.l.b16 %v3711
    %v3844 = vunpack.c.l.b16 %v3712
    %v3845 = vunpack.c.l.b16 %v3713
    %v3846 = vunpack.c.l.b16 %v3714
    %v3847 = vunpack.c.l.b16 %v3715
    %v3848 = vunpack.c.l.b16 %v3716
    %v3849 = vpack.c.b16 %v3786, %v3785
    %v3850 = vpack.c.b16 %v3788, %v3787
    %v3851 = vpack.c.b16 %v3790, %v3789
    %v3852 = vpack.c.b16 %v3792, %v3791
    %v3853 = vpack.c.b16 %v3794, %v3793
    %v3854 = vpack.c.b16 %v3796, %v3795
    %v3855 = vpack.c.b16 %v3798, %v3797
    %v3856 = vpack.c.b16 %v3800, %v3799
    %v3857 = vpack.c.b16 %v3802, %v3801
    %v3858 = vpack.c.b16 %v3804, %v3803
    %v3859 = vpack.c.b16 %v3806, %v3805
    %v3860 = vpack.c.b16 %v3808, %v3807
    %v3861 = vpack.c.b16 %v3810, %v3809
    %v3862 = vpack.c.b16 %v3812, %v3811
    %v3863 = vpack.c.b16 %v3814, %v3813
    %v3864 = vpack.c.b16 %v3816, %v3815
    %v3865 = vpack.c.b16 %v3818, %v3817
    %v3866 = vpack.c.b16 %v3820, %v3819
    %v3867 = vpack.c.b16 %v3822, %v3821
    %v3868 = vpack.c.b16 %v3824, %v3823
    %v3869 = vpack.c.b16 %v3826, %v3825
    %v3870 = vpack.c.b16 %v3828, %v3827
    %v3871 = vpack.c.b16 %v3830, %v3829
    %v3872 = vpack.c.b16 %v3832, %v3831
    %v3873 = vpack.c.b16 %v3834, %v3833
    %v3874 = vpack.c.b16 %v3836, %v3835
    %v3875 = vpack.c.b16 %v3838, %v3837
    %v3876 = vpack.c.b16 %v3840, %v3839
    %v3877 = vpack.c.b16 %v3842, %v3841
    %v3878 = vpack.c.b16 %v3844, %v3843
    %v3879 = vpack.c.b16 %v3846, %v3845
    %v3880 = vpack.c.b16 %v3848, %v3847
    %3913 = vmatprep.subr.bf16.mxu0 0
    %3914 = vmatpush1.bf16.msra.mxu0 %v3849
    %3915 = vmatprep.subr.bf16.mxu0 0
    %3916 = vmatpush1.bf16.msra.mxu0 %v3850
    %3917 = vmatprep.subr.bf16.mxu0 0
    %3918 = vmatpush1.bf16.msra.mxu0 %v3851
    %3919 = vmatprep.subr.bf16.mxu0 0
    %3920 = vmatpush1.bf16.msra.mxu0 %v3852
    %3921 = vmatprep.subr.bf16.mxu0 0
    %3922 = vmatpush1.bf16.msra.mxu0 %v3853
    %3923 = vmatprep.subr.bf16.mxu0 0
    %3924 = vmatpush1.bf16.msra.mxu0 %v3854
    %3925 = vmatprep.subr.bf16.mxu0 0
    %3926 = vmatpush1.bf16.msra.mxu0 %v3855
    %3927 = vmatprep.subr.bf16.mxu0 0
    %3928 = vmatpush1.bf16.msra.mxu0 %v3856
    %3929 = vmatprep.subr.bf16.mxu0 0
    %3930 = vmatpush1.bf16.msra.mxu0 %v3857
    %3931 = vmatprep.subr.bf16.mxu0 0
    %3932 = vmatpush1.bf16.msra.mxu0 %v3858
    %3933 = vmatprep.subr.bf16.mxu0 0
    %3934 = vmatpush1.bf16.msra.mxu0 %v3859
    %3935 = vmatprep.subr.bf16.mxu0 0
    %3936 = vmatpush1.bf16.msra.mxu0 %v3860
    %3937 = vmatprep.subr.bf16.mxu0 0
    %3938 = vmatpush1.bf16.msra.mxu0 %v3861
    %3939 = vmatprep.subr.bf16.mxu0 0
    %3940 = vmatpush1.bf16.msra.mxu0 %v3862
    %3941 = vmatprep.subr.bf16.mxu0 0
    %3942 = vmatpush1.bf16.msra.mxu0 %v3863
    %3943 = vmatprep.subr.bf16.mxu0 0
    %3944 = vmatpush1.bf16.msra.mxu0 %v3864
    %3945 = vmatprep.mubr.bf16.mxu0 %v3649
    %3946 = vmatmul.mubr.bf16.gmra.mrb[0].mxu0 %v3648
    %v3947 = vpop.f32.mrb[0].mxu0
    %v3948 = vadd.f32 %v3720, %v3947
    %v3949 = vpop.f32.mrb[0].mxu0
    %v3950 = vpop.f32.mrb[0].mxu0
    %v3951 = vadd.f32 %v3720, %v3950
    %v3952 = vpop.f32.mrb[0].mxu0
    %3953 = vdwg.mxu0
    %3954 = vmatprep.subr.bf16.mxu0 0
    %3955 = vmatpush1.bf16.msra.mxu0 %v3865
    %3956 = vmatprep.subr.bf16.mxu0 0
    %3957 = vmatpush1.bf16.msra.mxu0 %v3866
    %3958 = vmatprep.subr.bf16.mxu0 0
    %3959 = vmatpush1.bf16.msra.mxu0 %v3867
    %3960 = vmatprep.subr.bf16.mxu0 0
    %3961 = vmatpush1.bf16.msra.mxu0 %v3868
    %3962 = vmatprep.subr.bf16.mxu0 0
    %3963 = vmatpush1.bf16.msra.mxu0 %v3869
    %3964 = vmatprep.subr.bf16.mxu0 0
    %3965 = vmatpush1.bf16.msra.mxu0 %v3870
    %3966 = vmatprep.subr.bf16.mxu0 0
    %3967 = vmatpush1.bf16.msra.mxu0 %v3871
    %3968 = vmatprep.subr.bf16.mxu0 0
    %3969 = vmatpush1.bf16.msra.mxu0 %v3872
    %3970 = vmatprep.subr.bf16.mxu0 0
    %3971 = vmatpush1.bf16.msra.mxu0 %v3873
    %3972 = vmatprep.subr.bf16.mxu0 0
    %3973 = vmatpush1.bf16.msra.mxu0 %v3874
    %3974 = vmatprep.subr.bf16.mxu0 0
    %3975 = vmatpush1.bf16.msra.mxu0 %v3875
    %3976 = vmatprep.subr.bf16.mxu0 0
    %3977 = vmatpush1.bf16.msra.mxu0 %v3876
    %3978 = vmatprep.subr.bf16.mxu0 0
    %3979 = vmatpush1.bf16.msra.mxu0 %v3877
    %3980 = vmatprep.subr.bf16.mxu0 0
    %3981 = vmatpush1.bf16.msra.mxu0 %v3878
    %3982 = vmatprep.subr.bf16.mxu0 0
    %3983 = vmatpush1.bf16.msra.mxu0 %v3879
    %3984 = vmatprep.subr.bf16.mxu0 0
    %3985 = vmatpush1.bf16.msra.mxu0 %v3880
    %3986 = vmatprep.mubr.bf16.mxu0 %v3651
    %3987 = vmatmul.mubr.bf16.gmra.mrb[0].mxu0 %v3650
    %v3988 = vpop.f32.mrb[0].mxu0
    %v3989 = vadd.f32 %v3948, %v3988
    %v3990 = vpop.f32.mrb[0].mxu0
    %v3991 = vpop.f32.mrb[0].mxu0
    %v3992 = vadd.f32 %v3951, %v3991
    %v3993 = vpop.f32.mrb[0].mxu0
    %3994 = vdwg.mxu0
    %v3995 = vadd.f32 %v3989, %v3127
    %v3996 = vadd.f32 %v3992, %v3128
    %3997 = vadd.xlane.f32.xlu0 %v3995
    %v3998 = vpop.xlane.xlu0 %3997
    %3999 = vadd.xlane.f32.xlu0 %v3996
    %v4000 = vpop.xlane.xlu0 %3999
    %v4001 = vmul.f32 %v3998, %v1211
    %v4002 = vmul.f32 %v4000, %v1211
    %v4003 = vsub.f32 %v3995, %v4001
    %v4004 = vsub.f32 %v3996, %v4002
    %v4005 = vmul.f32 %v4003, %v4003
    %v4006 = vmul.f32 %v4004, %v4004
    %4007 = vadd.xlane.f32.xlu0 %v4005
    %v4008 = vpop.xlane.xlu0 %4007
    %4009 = vadd.xlane.f32.xlu0 %v4006
    %v4010 = vpop.xlane.xlu0 %4009
    %v4011 = vmul.f32 %v4008, %v1211
    %v4012 = vmul.f32 %v4010, %v1211
    %v4013 = vadd.f32 %v4011, 1e-12
    %v4014 = vadd.f32 %v4012, 1e-12
    %v4015 = vrsqrt.pop %v4013
    %v4016 = vrsqrt.pop %v4014
    %v4017 = vmul.f32 %v4003, %v4015
    %v4018 = vmul.f32 %v4004, %v4016
    %v4019 = vlaneseq
    %v4020 = vshrl.u32 %v4019, 7
    %v4021 = vsub.s32 4, %v4020
    %v4022 = vrot.slane %v2142, %v4021
    %v4023 = vmul.f32 %v4017, %v4022
    %v4024 = vmul.f32 %v4018, %v4022
    %v4025 = vlaneseq
    %v4026 = vshrl.u32 %v4025, 7
    %v4027 = vsub.s32 5, %v4026
    %v4028 = vrot.slane %v2142, %v4027
    %v4029 = vadd.f32 %v4023, %v4028
    %v4030 = vadd.f32 %v4024, %v4028
    %s4031 = scalar_lea.vmem %s6, 16
    %v4032 = vld [vmem:[%s4031] sm:$0x3f]
    %v4033 = vpack.c.bf16 %v4030, %v4029
    %s4034 = scalar_lea.vmem [#allocation2], 384
    %v4035 = vld [vmem:[%s4034] sm:$0xff]
    %v4036 = vld [vmem:[%s4034 + $0x8] sm:$0xf]
    %v4037 = vld [vmem:[%s4034 + $0xc] sm:$0xff]
    %v4038 = vld [vmem:[%s4034 + $0x14] sm:$0xf]
    %v4039 = vld [vmem:[%s4034 + $0x18] sm:$0xff]
    %v4040 = vld [vmem:[%s4034 + $0x20] sm:$0xf]
    %v4041 = vld [vmem:[%s4034 + $0x24] sm:$0xff]
    %v4042 = vld [vmem:[%s4034 + $0x2c] sm:$0xf]
    %v4043 = vld [vmem:[%s4034 + $0x30] sm:$0xff]
    %v4044 = vld [vmem:[%s4034 + $0x38] sm:$0xf]
    %v4045 = vld [vmem:[%s4034 + $0x3c] sm:$0xff]
    %v4046 = vld [vmem:[%s4034 + $0x44] sm:$0xf]
    %v4047 = vld [vmem:[%s4034 + $0x48] sm:$0xff]
    %v4048 = vld [vmem:[%s4034 + $0x50] sm:$0xf]
    %v4049 = vld [vmem:[%s4034 + $0x54] sm:$0xff]
    %v4050 = vld [vmem:[%s4034 + $0x5c] sm:$0xf]
    %v4051 = vld [vmem:[%s4034 + $0x60] sm:$0xff]
    %v4052 = vld [vmem:[%s4034 + $0x68] sm:$0xf]
    %v4053 = vld [vmem:[%s4034 + $0x6c] sm:$0xff]
    %v4054 = vld [vmem:[%s4034 + $0x74] sm:$0xf]
    %v4055 = vld [vmem:[%s4034 + $0x78] sm:$0xff]
    %v4056 = vld [vmem:[%s4034 + $0x80] sm:$0xf]
    %v4057 = vld [vmem:[%s4034 + $0x84] sm:$0xff]
    %v4058 = vld [vmem:[%s4034 + $0x8c] sm:$0xf]
    %v4059 = vld [vmem:[%s4034 + $0x90] sm:$0xff]
    %v4060 = vld [vmem:[%s4034 + $0x98] sm:$0xf]
    %v4061 = vld [vmem:[%s4034 + $0x9c] sm:$0xff]
    %v4062 = vld [vmem:[%s4034 + $0xa4] sm:$0xf]
    %v4063 = vld [vmem:[%s4034 + $0xa8] sm:$0xff]
    %v4064 = vld [vmem:[%s4034 + $0xb0] sm:$0xf]
    %v4065 = vld [vmem:[%s4034 + $0xb4] sm:$0xff]
    %v4066 = vld [vmem:[%s4034 + $0xbc] sm:$0xf]
    %s4067 = scalar_lea.vmem %s5, 6
    %v4068 = vld [vmem:[%s4067] sm:$0x7]
    %v4070 = vlaneseq
    %v4071 = vshrl.u32 %v4070, 7
    %v4072 = vsub.s32 0, %v4071
    %v4073 = vrot.slane %v4068, %v4072
    %v4074 = vlaneseq
    %v4075 = vshrl.u32 %v4074, 7
    %v4076 = vsub.s32 1, %v4075
    %v4077 = vrot.slane %v4068, %v4076
    %v4078 = vlaneseq
    %v4079 = vshrl.u32 %v4078, 7
    %v4080 = vsub.s32 2, %v4079
    %v4081 = vrot.slane %v4068, %v4080
    %v4117 = vunpack.c.l.b16 %v4035
    %v4118 = vunpack.c.h.b16 %v4035
    %v4119 = vunpack.c.l.b16 %v4036
    %v4120 = vunpack.c.l.b16 %v4037
    %v4121 = vunpack.c.h.b16 %v4037
    %v4122 = vunpack.c.l.b16 %v4038
    %v4123 = vunpack.c.l.b16 %v4039
    %v4124 = vunpack.c.h.b16 %v4039
    %v4125 = vunpack.c.l.b16 %v4040
    %v4126 = vunpack.c.l.b16 %v4041
    %v4127 = vunpack.c.h.b16 %v4041
    %v4128 = vunpack.c.l.b16 %v4042
    %v4129 = vunpack.c.l.b16 %v4043
    %v4130 = vunpack.c.h.b16 %v4043
    %v4131 = vunpack.c.l.b16 %v4044
    %v4132 = vunpack.c.l.b16 %v4045
    %v4133 = vunpack.c.h.b16 %v4045
    %v4134 = vunpack.c.l.b16 %v4046
    %v4135 = vunpack.c.l.b16 %v4047
    %v4136 = vunpack.c.h.b16 %v4047
    %v4137 = vunpack.c.l.b16 %v4048
    %v4138 = vunpack.c.l.b16 %v4049
    %v4139 = vunpack.c.h.b16 %v4049
    %v4140 = vunpack.c.l.b16 %v4050
    %v4141 = vunpack.c.l.b16 %v4051
    %v4142 = vunpack.c.h.b16 %v4051
    %v4143 = vunpack.c.l.b16 %v4052
    %v4144 = vunpack.c.l.b16 %v4053
    %v4145 = vunpack.c.h.b16 %v4053
    %v4146 = vunpack.c.l.b16 %v4054
    %v4147 = vunpack.c.l.b16 %v4055
    %v4148 = vunpack.c.h.b16 %v4055
    %v4149 = vunpack.c.l.b16 %v4056
    %v4150 = vunpack.c.l.b16 %v4057
    %v4151 = vunpack.c.h.b16 %v4057
    %v4152 = vunpack.c.l.b16 %v4058
    %v4153 = vunpack.c.l.b16 %v4059
    %v4154 = vunpack.c.h.b16 %v4059
    %v4155 = vunpack.c.l.b16 %v4060
    %v4156 = vunpack.c.l.b16 %v4061
    %v4157 = vunpack.c.h.b16 %v4061
    %v4158 = vunpack.c.l.b16 %v4062
    %v4159 = vunpack.c.l.b16 %v4063
    %v4160 = vunpack.c.h.b16 %v4063
    %v4161 = vunpack.c.l.b16 %v4064
    %v4162 = vunpack.c.l.b16 %v4065
    %v4163 = vunpack.c.h.b16 %v4065
    %v4164 = vunpack.c.l.b16 %v4066
    %v4165 = vpack.c.b16 %v4120, %v4117
    %v4166 = vpack.c.b16 %v4121, %v4118
    %v4167 = vpack.c.b16 %v4122, %v4119
    %v4168 = vpack.c.b16 %v4126, %v4123
    %v4169 = vpack.c.b16 %v4127, %v4124
    %v4170 = vpack.c.b16 %v4128, %v4125
    %v4171 = vpack.c.b16 %v4132, %v4129
    %v4172 = vpack.c.b16 %v4133, %v4130
    %v4173 = vpack.c.b16 %v4134, %v4131
    %v4174 = vpack.c.b16 %v4138, %v4135
    %v4175 = vpack.c.b16 %v4139, %v4136
    %v4176 = vpack.c.b16 %v4140, %v4137
    %v4177 = vpack.c.b16 %v4144, %v4141
    %v4178 = vpack.c.b16 %v4145, %v4142
    %v4179 = vpack.c.b16 %v4146, %v4143
    %v4180 = vpack.c.b16 %v4150, %v4147
    %v4181 = vpack.c.b16 %v4151, %v4148
    %v4182 = vpack.c.b16 %v4152, %v4149
    %v4183 = vpack.c.b16 %v4156, %v4153
    %v4184 = vpack.c.b16 %v4157, %v4154
    %v4185 = vpack.c.b16 %v4158, %v4155
    %v4186 = vpack.c.b16 %v4162, %v4159
    %v4187 = vpack.c.b16 %v4163, %v4160
    %v4188 = vpack.c.b16 %v4164, %v4161
    %4213 = vmatprep.subr.bf16.mxu0 %v4166
    %4214 = vmatpush1.bf16.msra.mxu0 %v4165
    %4215 = vmatprep.subr.bf16.mxu0 %v4169
    %4216 = vmatpush1.bf16.msra.mxu0 %v4168
    %4217 = vmatprep.subr.bf16.mxu0 %v4172
    %4218 = vmatpush1.bf16.msra.mxu0 %v4171
    %4219 = vmatprep.subr.bf16.mxu0 %v4175
    %4220 = vmatpush1.bf16.msra.mxu0 %v4174
    %4221 = vmatprep.subr.bf16.mxu0 %v4178
    %4222 = vmatpush1.bf16.msra.mxu0 %v4177
    %4223 = vmatprep.subr.bf16.mxu0 %v4181
    %4224 = vmatpush1.bf16.msra.mxu0 %v4180
    %4225 = vmatprep.subr.bf16.mxu0 %v4184
    %4226 = vmatpush1.bf16.msra.mxu0 %v4183
    %4227 = vmatprep.subr.bf16.mxu0 %v4187
    %4228 = vmatpush1.bf16.msra.mxu0 %v4186
    %4229 = vmatprep.subr.bf16.mxu0 0
    %4230 = vmatpush1.bf16.msra.mxu0 0
    %4231 = vmatprep.subr.bf16.mxu0 0
    %4232 = vmatpush1.bf16.msra.mxu0 0
    %4233 = vmatprep.subr.bf16.mxu0 0
    %4234 = vmatpush1.bf16.msra.mxu0 0
    %4235 = vmatprep.subr.bf16.mxu0 0
    %4236 = vmatpush1.bf16.msra.mxu0 0
    %4237 = vmatprep.subr.bf16.mxu0 0
    %4238 = vmatpush1.bf16.msra.mxu0 0
    %4239 = vmatprep.subr.bf16.mxu0 0
    %4240 = vmatpush1.bf16.msra.mxu0 0
    %4241 = vmatprep.subr.bf16.mxu0 0
    %4242 = vmatpush1.bf16.msra.mxu0 0
    %4243 = vmatprep.subr.bf16.mxu0 0
    %4244 = vmatpush1.bf16.msra.mxu0 0
    %4245 = vmatprep.mubr.bf16.mxu0 0
    %4246 = vmatmul.mubr.bf16.gmra.mrb[0].mxu0 %v4033
    %v4247 = vpop.f32.mrb[0].mxu0
    %v4248 = vadd.f32 %v4073, %v4247
    %v4249 = vpop.f32.mrb[0].mxu0
    %v4250 = vadd.f32 %v4077, %v4249
    %v4251 = vpop.f32.mrb[0].mxu0
    %v4252 = vadd.f32 %v4073, %v4251
    %v4253 = vpop.f32.mrb[0].mxu0
    %v4254 = vadd.f32 %v4077, %v4253
    %4255 = vdwg.mxu0
    %4256 = vmatprep.subr.bf16.mxu0 0
    %4257 = vmatpush1.bf16.msra.mxu0 %v4167
    %4258 = vmatprep.subr.bf16.mxu0 0
    %4259 = vmatpush1.bf16.msra.mxu0 %v4170
    %4260 = vmatprep.subr.bf16.mxu0 0
    %4261 = vmatpush1.bf16.msra.mxu0 %v4173
    %4262 = vmatprep.subr.bf16.mxu0 0
    %4263 = vmatpush1.bf16.msra.mxu0 %v4176
    %4264 = vmatprep.subr.bf16.mxu0 0
    %4265 = vmatpush1.bf16.msra.mxu0 %v4179
    %4266 = vmatprep.subr.bf16.mxu0 0
    %4267 = vmatpush1.bf16.msra.mxu0 %v4182
    %4268 = vmatprep.subr.bf16.mxu0 0
    %4269 = vmatpush1.bf16.msra.mxu0 %v4185
    %4270 = vmatprep.subr.bf16.mxu0 0
    %4271 = vmatpush1.bf16.msra.mxu0 %v4188
    %4272 = vmatprep.subr.bf16.mxu0 0
    %4273 = vmatpush1.bf16.msra.mxu0 0
    %4274 = vmatprep.subr.bf16.mxu0 0
    %4275 = vmatpush1.bf16.msra.mxu0 0
    %4276 = vmatprep.subr.bf16.mxu0 0
    %4277 = vmatpush1.bf16.msra.mxu0 0
    %4278 = vmatprep.subr.bf16.mxu0 0
    %4279 = vmatpush1.bf16.msra.mxu0 0
    %4280 = vmatprep.subr.bf16.mxu0 0
    %4281 = vmatpush1.bf16.msra.mxu0 0
    %4282 = vmatprep.subr.bf16.mxu0 0
    %4283 = vmatpush1.bf16.msra.mxu0 0
    %4284 = vmatprep.subr.bf16.mxu0 0
    %4285 = vmatpush1.bf16.msra.mxu0 0
    %4286 = vmatprep.subr.bf16.mxu0 0
    %4287 = vmatpush1.bf16.msra.mxu0 0
    %4288 = vmatprep.mubr.bf16.mxu0 0
    %4289 = vmatmul.mubr.bf16.gmra.mrb[0].mxu0 %v4033
    %v4290 = vpop.f32.mrb[0].mxu0
    %v4291 = vadd.f32 %v4081, %v4290
    %v4292 = vpop.f32.mrb[0].mxu0
    %v4293 = vpop.f32.mrb[0].mxu0
    %v4294 = vadd.f32 %v4081, %v4293
    %v4295 = vpop.f32.mrb[0].mxu0
    %4296 = vdwg.mxu0
    %v4297 = vpack.c.bf16 %v4254, %v4250
    %v4298 = vpack.c.bf16 %v4294, %v4291
    %v4299 = vpack.c.bf16 %v4252, %v4248
    %4300 = vmatprep.subr.bf16.mxu0 0
    %4301 = vmatpush1.bf16.msra.mxu0 %v4299
    %4302 = vmatprep.subr.bf16.mxu0 0
    %4303 = vmatpush1.bf16.msra.mxu0 0
    %4304 = vmatprep.subr.bf16.mxu0 0
    %4305 = vmatpush1.bf16.msra.mxu0 0
    %4306 = vmatprep.subr.bf16.mxu0 0
    %4307 = vmatpush1.bf16.msra.mxu0 0
    %4308 = vmatprep.subr.bf16.mxu0 0
    %4309 = vmatpush1.bf16.msra.mxu0 0
    %4310 = vmatprep.subr.bf16.mxu0 0
    %4311 = vmatpush1.bf16.msra.mxu0 0
    %4312 = vmatprep.subr.bf16.mxu0 0
    %4313 = vmatpush1.bf16.msra.mxu0 0
    %4314 = vmatprep.subr.bf16.mxu0 0
    %4315 = vmatpush1.bf16.msra.mxu0 0
    %4316 = vmatprep.subr.bf16.mxu0 0
    %4317 = vmatpush1.bf16.msra.mxu0 0
    %4318 = vmatprep.subr.bf16.mxu0 0
    %4319 = vmatpush1.bf16.msra.mxu0 0
    %4320 = vmatprep.subr.bf16.mxu0 0
    %4321 = vmatpush1.bf16.msra.mxu0 0
    %4322 = vmatprep.subr.bf16.mxu0 0
    %4323 = vmatpush1.bf16.msra.mxu0 0
    %4324 = vmatprep.subr.bf16.mxu0 0
    %4325 = vmatpush1.bf16.msra.mxu0 0
    %4326 = vmatprep.subr.bf16.mxu0 0
    %4327 = vmatpush1.bf16.msra.mxu0 0
    %4328 = vmatprep.subr.bf16.mxu0 0
    %4329 = vmatpush1.bf16.msra.mxu0 0
    %4330 = vmatprep.subr.bf16.mxu0 0
    %4331 = vmatpush1.bf16.msra.mxu0 0
    %4332 = vmatprep.mubr.bf16.mxu0 0
    %4333 = vmatmul.mubr.bf16.gmra.mrb[0].mxu0 %v446
    %v4334 = vpop.f32.mrb[0].mxu0
    %v4335 = vadd.f32 0.0, %v4334
    %v4336 = vpop.f32.mrb[0].mxu0
    %v4337 = vpop.f32.mrb[0].mxu0
    %v4338 = vadd.f32 0.0, %v4337
    %v4339 = vpop.f32.mrb[0].mxu0
    %4340 = vmatprep.mubr.bf16.mxu0 0
    %4341 = vmatmul.mubr.bf16.gmra.mrb[0].mxu0 %v449
    %v4342 = vpop.f32.mrb[0].mxu0
    %v4343 = vadd.f32 0.0, %v4342
    %v4344 = vpop.f32.mrb[0].mxu0
    %v4345 = vpop.f32.mrb[0].mxu0
    %v4346 = vadd.f32 0.0, %v4345
    %v4347 = vpop.f32.mrb[0].mxu0
    %4348 = vmatprep.mubr.bf16.mxu0 0
    %4349 = vmatmul.mubr.bf16.gmra.mrb[0].mxu0 %v452
    %v4350 = vpop.f32.mrb[0].mxu0
    %v4351 = vadd.f32 0.0, %v4350
    %v4352 = vpop.f32.mrb[0].mxu0
    %v4353 = vpop.f32.mrb[0].mxu0
    %v4354 = vadd.f32 0.0, %v4353
    %v4355 = vpop.f32.mrb[0].mxu0
    %4356 = vmatprep.mubr.bf16.mxu0 0
    %4357 = vmatmul.mubr.bf16.gmra.mrb[0].mxu0 %v455
    %v4358 = vpop.f32.mrb[0].mxu0
    %v4359 = vadd.f32 0.0, %v4358
    %v4360 = vpop.f32.mrb[0].mxu0
    %v4361 = vpop.f32.mrb[0].mxu0
    %v4362 = vadd.f32 0.0, %v4361
    %v4363 = vpop.f32.mrb[0].mxu0
    %4364 = vmatprep.mubr.bf16.mxu0 0
    %4365 = vmatmul.mubr.bf16.gmra.mrb[0].mxu0 %v458
    %v4366 = vpop.f32.mrb[0].mxu0
    %v4367 = vadd.f32 0.0, %v4366
    %v4368 = vpop.f32.mrb[0].mxu0
    %v4369 = vpop.f32.mrb[0].mxu0
    %v4370 = vadd.f32 0.0, %v4369
    %v4371 = vpop.f32.mrb[0].mxu0
    %4372 = vmatprep.mubr.bf16.mxu0 0
    %4373 = vmatmul.mubr.bf16.gmra.mrb[0].mxu0 %v461
    %v4374 = vpop.f32.mrb[0].mxu0
    %v4375 = vadd.f32 0.0, %v4374
    %v4376 = vpop.f32.mrb[0].mxu0
    %v4377 = vpop.f32.mrb[0].mxu0
    %v4378 = vadd.f32 0.0, %v4377
    %v4379 = vpop.f32.mrb[0].mxu0
    %4380 = vmatprep.mubr.bf16.mxu0 0
    %4381 = vmatmul.mubr.bf16.gmra.mrb[0].mxu0 %v464
    %v4382 = vpop.f32.mrb[0].mxu0
    %v4383 = vadd.f32 0.0, %v4382
    %v4384 = vpop.f32.mrb[0].mxu0
    %v4385 = vpop.f32.mrb[0].mxu0
    %v4386 = vadd.f32 0.0, %v4385
    %v4387 = vpop.f32.mrb[0].mxu0
    %4388 = vmatprep.mubr.bf16.mxu0 0
    %4389 = vmatmul.mubr.bf16.gmra.mrb[0].mxu0 %v467
    %v4390 = vpop.f32.mrb[0].mxu0
    %v4391 = vadd.f32 0.0, %v4390
    %v4392 = vpop.f32.mrb[0].mxu0
    %v4393 = vpop.f32.mrb[0].mxu0
    %v4394 = vadd.f32 0.0, %v4393
    %v4395 = vpop.f32.mrb[0].mxu0
    %4396 = vdwg.mxu0
    %v4397 = vpack.c.bf16 %v4338, %v4335
    %v4398 = vpack.c.bf16 %v4346, %v4343
    %v4399 = vpack.c.bf16 %v4354, %v4351
    %v4400 = vpack.c.bf16 %v4362, %v4359
    %v4401 = vpack.c.bf16 %v4370, %v4367
    %v4402 = vpack.c.bf16 %v4378, %v4375
    %v4403 = vpack.c.bf16 %v4386, %v4383
    %v4404 = vpack.c.bf16 %v4394, %v4391
    %v4405 = vmul.bf16 %v4397, %v606
    %v4406 = vmul.bf16 %v4398, %v607
    %v4407 = vmul.bf16 %v4399, %v608
    %v4408 = vmul.bf16 %v4400, %v609
    %v4409 = vmul.bf16 %v4401, %v610
    %v4410 = vmul.bf16 %v4402, %v611
    %v4411 = vmul.bf16 %v4403, %v612
    %v4412 = vmul.bf16 %v4404, %v613
    %4413 = vmatprep.subr.bf16.mxu0 0
    %4414 = vmatpush1.bf16.xpose.msra.mxu0 %v4297
    %4415 = vmatprep.subr.bf16.mxu0 0
    %4416 = vmatpush1.bf16.xpose.msra.mxu0 0
    %4417 = vmatprep.subr.bf16.mxu0 0
    %4418 = vmatpush1.bf16.xpose.msra.mxu0 0
    %4419 = vmatprep.subr.bf16.mxu0 0
    %4420 = vmatpush1.bf16.xpose.msra.mxu0 0
    %4421 = vmatprep.subr.bf16.mxu0 0
    %4422 = vmatpush1.bf16.xpose.msra.mxu0 0
    %4423 = vmatprep.subr.bf16.mxu0 0
    %4424 = vmatpush1.bf16.xpose.msra.mxu0 0
    %4425 = vmatprep.subr.bf16.mxu0 0
    %4426 = vmatpush1.bf16.xpose.msra.mxu0 0
    %4427 = vmatprep.subr.bf16.mxu0 0
    %4428 = vmatpush1.bf16.xpose.msra.mxu0 0
    %4429 = vmatprep.subr.bf16.mxu0 0
    %4430 = vmatpush1.bf16.xpose.msra.mxu0 0
    %4431 = vmatprep.subr.bf16.mxu0 0
    %4432 = vmatpush1.bf16.xpose.msra.mxu0 0
    %4433 = vmatprep.subr.bf16.mxu0 0
    %4434 = vmatpush1.bf16.xpose.msra.mxu0 0
    %4435 = vmatprep.subr.bf16.mxu0 0
    %4436 = vmatpush1.bf16.xpose.msra.mxu0 0
    %4437 = vmatprep.subr.bf16.mxu0 0
    %4438 = vmatpush1.bf16.xpose.msra.mxu0 0
    %4439 = vmatprep.subr.bf16.mxu0 0
    %4440 = vmatpush1.bf16.xpose.msra.mxu0 0
    %4441 = vmatprep.subr.bf16.mxu0 0
    %4442 = vmatpush1.bf16.xpose.msra.mxu0 0
    %4443 = vmatprep.subr.bf16.mxu0 0
    %4444 = vmatpush1.bf16.xpose.msra.mxu0 0
    %4445 = vmatprep.mubr.bf16.mxu0 0
    %4446 = vmatmul.mubr.bf16.gmra.mrb[0].mxu0 %v4405
    %v4447 = vpop.f32.mrb[0].mxu0
    %v4448 = vadd.f32 %v120, %v4447
    %v4449 = vpop.f32.mrb[0].mxu0
    %v4450 = vpop.f32.mrb[0].mxu0
    %v4451 = vadd.f32 %v121, %v4450
    %v4452 = vpop.f32.mrb[0].mxu0
    %4453 = vmatprep.mubr.bf16.mxu0 0
    %4454 = vmatmul.mubr.bf16.gmra.mrb[0].mxu0 %v4406
    %v4455 = vpop.f32.mrb[0].mxu0
    %v4456 = vadd.f32 %v122, %v4455
    %v4457 = vpop.f32.mrb[0].mxu0
    %v4458 = vpop.f32.mrb[0].mxu0
    %v4459 = vadd.f32 %v123, %v4458
    %v4460 = vpop.f32.mrb[0].mxu0
    %4461 = vmatprep.mubr.bf16.mxu0 0
    %4462 = vmatmul.mubr.bf16.gmra.mrb[0].mxu0 %v4407
    %v4463 = vpop.f32.mrb[0].mxu0
    %v4464 = vadd.f32 %v124, %v4463
    %v4465 = vpop.f32.mrb[0].mxu0
    %v4466 = vpop.f32.mrb[0].mxu0
    %v4467 = vadd.f32 %v125, %v4466
    %v4468 = vpop.f32.mrb[0].mxu0
    %4469 = vmatprep.mubr.bf16.mxu0 0
    %4470 = vmatmul.mubr.bf16.gmra.mrb[0].mxu0 %v4408
    %v4471 = vpop.f32.mrb[0].mxu0
    %v4472 = vadd.f32 %v126, %v4471
    %v4473 = vpop.f32.mrb[0].mxu0
    %v4474 = vpop.f32.mrb[0].mxu0
    %v4475 = vadd.f32 %v127, %v4474
    %v4476 = vpop.f32.mrb[0].mxu0
    %4477 = vmatprep.mubr.bf16.mxu0 0
    %4478 = vmatmul.mubr.bf16.gmra.mrb[0].mxu0 %v4409
    %v4479 = vpop.f32.mrb[0].mxu0
    %v4480 = vadd.f32 %v128, %v4479
    %v4481 = vpop.f32.mrb[0].mxu0
    %v4482 = vpop.f32.mrb[0].mxu0
    %v4483 = vadd.f32 %v129, %v4482
    %v4484 = vpop.f32.mrb[0].mxu0
    %4485 = vmatprep.mubr.bf16.mxu0 0
    %4486 = vmatmul.mubr.bf16.gmra.mrb[0].mxu0 %v4410
    %v4487 = vpop.f32.mrb[0].mxu0
    %v4488 = vadd.f32 %v130, %v4487
    %v4489 = vpop.f32.mrb[0].mxu0
    %v4490 = vpop.f32.mrb[0].mxu0
    %v4491 = vadd.f32 %v131, %v4490
    %v4492 = vpop.f32.mrb[0].mxu0
    %4493 = vmatprep.mubr.bf16.mxu0 0
    %4494 = vmatmul.mubr.bf16.gmra.mrb[0].mxu0 %v4411
    %v4495 = vpop.f32.mrb[0].mxu0
    %v4496 = vadd.f32 %v132, %v4495
    %v4497 = vpop.f32.mrb[0].mxu0
    %v4498 = vpop.f32.mrb[0].mxu0
    %v4499 = vadd.f32 %v133, %v4498
    %v4500 = vpop.f32.mrb[0].mxu0
    %4501 = vmatprep.mubr.bf16.mxu0 0
    %4502 = vmatmul.mubr.bf16.gmra.mrb[0].mxu0 %v4412
    %v4503 = vpop.f32.mrb[0].mxu0
    %v4504 = vadd.f32 %v134, %v4503
    %v4505 = vpop.f32.mrb[0].mxu0
    %v4506 = vpop.f32.mrb[0].mxu0
    %v4507 = vadd.f32 %v135, %v4506
    %v4508 = vpop.f32.mrb[0].mxu0
    %4509 = vdwg.mxu0
    %v4510 = vsel %vm444, %v4448, -inf
    %4511 = vmax.xlane.f32.xlu0 %v4510
    %v4512 = vpop.xlane.xlu0 %4511
    %v4513 = vsel %vm444, %v4451, -inf
    %4514 = vmax.xlane.f32.xlu0 %v4513
    %v4515 = vpop.xlane.xlu0 %4514
    %v4516 = vsel %vm444, %v4456, -inf
    %4517 = vmax.xlane.f32.xlu0 %v4516
    %v4518 = vpop.xlane.xlu0 %4517
    %v4519 = vsel %vm444, %v4459, -inf
    %4520 = vmax.xlane.f32.xlu0 %v4519
    %v4521 = vpop.xlane.xlu0 %4520
    %v4522 = vsel %vm444, %v4464, -inf
    %4523 = vmax.xlane.f32.xlu0 %v4522
    %v4524 = vpop.xlane.xlu0 %4523
    %v4525 = vsel %vm444, %v4467, -inf
    %4526 = vmax.xlane.f32.xlu0 %v4525
    %v4527 = vpop.xlane.xlu0 %4526
    %v4528 = vsel %vm444, %v4472, -inf
    %4529 = vmax.xlane.f32.xlu0 %v4528
    %v4530 = vpop.xlane.xlu0 %4529
    %v4531 = vsel %vm444, %v4475, -inf
    %4532 = vmax.xlane.f32.xlu0 %v4531
    %v4533 = vpop.xlane.xlu0 %4532
    %v4534 = vsel %vm444, %v4480, -inf
    %4535 = vmax.xlane.f32.xlu0 %v4534
    %v4536 = vpop.xlane.xlu0 %4535
    %v4537 = vsel %vm444, %v4483, -inf
    %4538 = vmax.xlane.f32.xlu0 %v4537
    %v4539 = vpop.xlane.xlu0 %4538
    %v4540 = vsel %vm444, %v4488, -inf
    %4541 = vmax.xlane.f32.xlu0 %v4540
    %v4542 = vpop.xlane.xlu0 %4541
    %v4543 = vsel %vm444, %v4491, -inf
    %4544 = vmax.xlane.f32.xlu0 %v4543
    %v4545 = vpop.xlane.xlu0 %4544
    %v4546 = vsel %vm444, %v4496, -inf
    %4547 = vmax.xlane.f32.xlu0 %v4546
    %v4548 = vpop.xlane.xlu0 %4547
    %v4549 = vsel %vm444, %v4499, -inf
    %4550 = vmax.xlane.f32.xlu0 %v4549
    %v4551 = vpop.xlane.xlu0 %4550
    %v4552 = vsel %vm444, %v4504, -inf
    %4553 = vmax.xlane.f32.xlu0 %v4552
    %v4554 = vpop.xlane.xlu0 %4553
    %v4555 = vsel %vm444, %v4507, -inf
    %4556 = vmax.xlane.f32.xlu0 %v4555
    %v4557 = vpop.xlane.xlu0 %4556
    %v4558 = vsub.f32 %v4448, %v4512
    %v4559 = vsub.f32 %v4451, %v4515
    %v4560 = vsub.f32 %v4456, %v4518
    %v4561 = vsub.f32 %v4459, %v4521
    %v4562 = vsub.f32 %v4464, %v4524
    %v4563 = vsub.f32 %v4467, %v4527
    %v4564 = vsub.f32 %v4472, %v4530
    %v4565 = vsub.f32 %v4475, %v4533
    %v4566 = vsub.f32 %v4480, %v4536
    %v4567 = vsub.f32 %v4483, %v4539
    %v4568 = vsub.f32 %v4488, %v4542
    %v4569 = vsub.f32 %v4491, %v4545
    %v4570 = vsub.f32 %v4496, %v4548
    %v4571 = vsub.f32 %v4499, %v4551
    %v4572 = vsub.f32 %v4504, %v4554
    %v4573 = vsub.f32 %v4507, %v4557
    %v4574 = vmul.f32 %v4558, 1.442695
    %v4575 = vpow.pop %v4574
    %v4576 = vmul.f32 %v4559, 1.442695
    %v4577 = vpow.pop %v4576
    %v4578 = vmul.f32 %v4560, 1.442695
    %v4579 = vpow.pop %v4578
    %v4580 = vmul.f32 %v4561, 1.442695
    %v4581 = vpow.pop %v4580
    %v4582 = vmul.f32 %v4562, 1.442695
    %v4583 = vpow.pop %v4582
    %v4584 = vmul.f32 %v4563, 1.442695
    %v4585 = vpow.pop %v4584
    %v4586 = vmul.f32 %v4564, 1.442695
    %v4587 = vpow.pop %v4586
    %v4588 = vmul.f32 %v4565, 1.442695
    %v4589 = vpow.pop %v4588
    %v4590 = vmul.f32 %v4566, 1.442695
    %v4591 = vpow.pop %v4590
    %v4592 = vmul.f32 %v4567, 1.442695
    %v4593 = vpow.pop %v4592
    %v4594 = vmul.f32 %v4568, 1.442695
    %v4595 = vpow.pop %v4594
    %v4596 = vmul.f32 %v4569, 1.442695
    %v4597 = vpow.pop %v4596
    %v4598 = vmul.f32 %v4570, 1.442695
    %v4599 = vpow.pop %v4598
    %v4600 = vmul.f32 %v4571, 1.442695
    %v4601 = vpow.pop %v4600
    %v4602 = vmul.f32 %v4572, 1.442695
    %v4603 = vpow.pop %v4602
    %v4604 = vmul.f32 %v4573, 1.442695
    %v4605 = vpow.pop %v4604
    %v4606 = vsel %vm444, %v4575, 0.0
    %4607 = vadd.xlane.f32.xlu0 %v4606
    %v4608 = vpop.xlane.xlu0 %4607
    %v4609 = vsel %vm444, %v4577, 0.0
    %4610 = vadd.xlane.f32.xlu0 %v4609
    %v4611 = vpop.xlane.xlu0 %4610
    %v4612 = vsel %vm444, %v4579, 0.0
    %4613 = vadd.xlane.f32.xlu0 %v4612
    %v4614 = vpop.xlane.xlu0 %4613
    %v4615 = vsel %vm444, %v4581, 0.0
    %4616 = vadd.xlane.f32.xlu0 %v4615
    %v4617 = vpop.xlane.xlu0 %4616
    %v4618 = vsel %vm444, %v4583, 0.0
    %4619 = vadd.xlane.f32.xlu0 %v4618
    %v4620 = vpop.xlane.xlu0 %4619
    %v4621 = vsel %vm444, %v4585, 0.0
    %4622 = vadd.xlane.f32.xlu0 %v4621
    %v4623 = vpop.xlane.xlu0 %4622
    %v4624 = vsel %vm444, %v4587, 0.0
    %4625 = vadd.xlane.f32.xlu0 %v4624
    %v4626 = vpop.xlane.xlu0 %4625
    %v4627 = vsel %vm444, %v4589, 0.0
    %4628 = vadd.xlane.f32.xlu0 %v4627
    %v4629 = vpop.xlane.xlu0 %4628
    %v4630 = vsel %vm444, %v4591, 0.0
    %4631 = vadd.xlane.f32.xlu0 %v4630
    %v4632 = vpop.xlane.xlu0 %4631
    %v4633 = vsel %vm444, %v4593, 0.0
    %4634 = vadd.xlane.f32.xlu0 %v4633
    %v4635 = vpop.xlane.xlu0 %4634
    %v4636 = vsel %vm444, %v4595, 0.0
    %4637 = vadd.xlane.f32.xlu0 %v4636
    %v4638 = vpop.xlane.xlu0 %4637
    %v4639 = vsel %vm444, %v4597, 0.0
    %4640 = vadd.xlane.f32.xlu0 %v4639
    %v4641 = vpop.xlane.xlu0 %4640
    %v4642 = vsel %vm444, %v4599, 0.0
    %4643 = vadd.xlane.f32.xlu0 %v4642
    %v4644 = vpop.xlane.xlu0 %4643
    %v4645 = vsel %vm444, %v4601, 0.0
    %4646 = vadd.xlane.f32.xlu0 %v4645
    %v4647 = vpop.xlane.xlu0 %4646
    %v4648 = vsel %vm444, %v4603, 0.0
    %4649 = vadd.xlane.f32.xlu0 %v4648
    %v4650 = vpop.xlane.xlu0 %4649
    %v4651 = vsel %vm444, %v4605, 0.0
    %4652 = vadd.xlane.f32.xlu0 %v4651
    %v4653 = vpop.xlane.xlu0 %4652
    %v4654 = vrcp.pop %v4608
    %v4655 = vrcp.pop %v4611
    %v4656 = vrcp.pop %v4614
    %v4657 = vrcp.pop %v4617
    %v4658 = vrcp.pop %v4620
    %v4659 = vrcp.pop %v4623
    %v4660 = vrcp.pop %v4626
    %v4661 = vrcp.pop %v4629
    %v4662 = vrcp.pop %v4632
    %v4663 = vrcp.pop %v4635
    %v4664 = vrcp.pop %v4638
    %v4665 = vrcp.pop %v4641
    %v4666 = vrcp.pop %v4644
    %v4667 = vrcp.pop %v4647
    %v4668 = vrcp.pop %v4650
    %v4669 = vrcp.pop %v4653
    %v4670 = vmul.f32 %v4575, %v4654
    %v4671 = vmul.f32 %v4577, %v4655
    %v4672 = vmul.f32 %v4579, %v4656
    %v4673 = vmul.f32 %v4581, %v4657
    %v4674 = vmul.f32 %v4583, %v4658
    %v4675 = vmul.f32 %v4585, %v4659
    %v4676 = vmul.f32 %v4587, %v4660
    %v4677 = vmul.f32 %v4589, %v4661
    %v4678 = vmul.f32 %v4591, %v4662
    %v4679 = vmul.f32 %v4593, %v4663
    %v4680 = vmul.f32 %v4595, %v4664
    %v4681 = vmul.f32 %v4597, %v4665
    %v4682 = vmul.f32 %v4599, %v4666
    %v4683 = vmul.f32 %v4601, %v4667
    %v4684 = vmul.f32 %v4603, %v4668
    %v4685 = vmul.f32 %v4605, %v4669
    %v4686 = vpack.c.bf16 %v4671, %v4670
    %v4687 = vpack.c.bf16 %v4673, %v4672
    %v4688 = vpack.c.bf16 %v4675, %v4674
    %v4689 = vpack.c.bf16 %v4677, %v4676
    %v4690 = vpack.c.bf16 %v4679, %v4678
    %v4691 = vpack.c.bf16 %v4681, %v4680
    %v4692 = vpack.c.bf16 %v4683, %v4682
    %v4693 = vpack.c.bf16 %v4685, %v4684
    %v4695 = vsel %vm444, %v4686, 0
    %v4698 = vsel %vm444, %v4687, 0
    %v4701 = vsel %vm444, %v4688, 0
    %v4704 = vsel %vm444, %v4689, 0
    %v4707 = vsel %vm444, %v4690, 0
    %v4710 = vsel %vm444, %v4691, 0
    %v4713 = vsel %vm444, %v4692, 0
    %v4716 = vsel %vm444, %v4693, 0
    %4718 = vmatprep.subr.bf16.mxu0 0
    %4719 = vmatpush1.bf16.msra.mxu0 %v4298
    %4720 = vmatprep.subr.bf16.mxu0 0
    %4721 = vmatpush1.bf16.msra.mxu0 0
    %4722 = vmatprep.subr.bf16.mxu0 0
    %4723 = vmatpush1.bf16.msra.mxu0 0
    %4724 = vmatprep.subr.bf16.mxu0 0
    %4725 = vmatpush1.bf16.msra.mxu0 0
    %4726 = vmatprep.subr.bf16.mxu0 0
    %4727 = vmatpush1.bf16.msra.mxu0 0
    %4728 = vmatprep.subr.bf16.mxu0 0
    %4729 = vmatpush1.bf16.msra.mxu0 0
    %4730 = vmatprep.subr.bf16.mxu0 0
    %4731 = vmatpush1.bf16.msra.mxu0 0
    %4732 = vmatprep.subr.bf16.mxu0 0
    %4733 = vmatpush1.bf16.msra.mxu0 0
    %4734 = vmatprep.subr.bf16.mxu0 0
    %4735 = vmatpush1.bf16.msra.mxu0 0
    %4736 = vmatprep.subr.bf16.mxu0 0
    %4737 = vmatpush1.bf16.msra.mxu0 0
    %4738 = vmatprep.subr.bf16.mxu0 0
    %4739 = vmatpush1.bf16.msra.mxu0 0
    %4740 = vmatprep.subr.bf16.mxu0 0
    %4741 = vmatpush1.bf16.msra.mxu0 0
    %4742 = vmatprep.subr.bf16.mxu0 0
    %4743 = vmatpush1.bf16.msra.mxu0 0
    %4744 = vmatprep.subr.bf16.mxu0 0
    %4745 = vmatpush1.bf16.msra.mxu0 0
    %4746 = vmatprep.subr.bf16.mxu0 0
    %4747 = vmatpush1.bf16.msra.mxu0 0
    %4748 = vmatprep.subr.bf16.mxu0 0
    %4749 = vmatpush1.bf16.msra.mxu0 0
    %4750 = vmatprep.mubr.bf16.mxu0 0
    %4751 = vmatmul.mubr.bf16.gmra.mrb[0].mxu0 %v4695
    %v4752 = vpop.f32.mrb[0].mxu0
    %v4753 = vadd.f32 0.0, %v4752
    %v4754 = vpop.f32.mrb[0].mxu0
    %v4755 = vpop.f32.mrb[0].mxu0
    %v4756 = vadd.f32 0.0, %v4755
    %v4757 = vpop.f32.mrb[0].mxu0
    %4758 = vmatprep.mubr.bf16.mxu0 0
    %4759 = vmatmul.mubr.bf16.gmra.mrb[0].mxu0 %v4698
    %v4760 = vpop.f32.mrb[0].mxu0
    %v4761 = vadd.f32 0.0, %v4760
    %v4762 = vpop.f32.mrb[0].mxu0
    %v4763 = vpop.f32.mrb[0].mxu0
    %v4764 = vadd.f32 0.0, %v4763
    %v4765 = vpop.f32.mrb[0].mxu0
    %4766 = vmatprep.mubr.bf16.mxu0 0
    %4767 = vmatmul.mubr.bf16.gmra.mrb[0].mxu0 %v4701
    %v4768 = vpop.f32.mrb[0].mxu0
    %v4769 = vadd.f32 0.0, %v4768
    %v4770 = vpop.f32.mrb[0].mxu0
    %v4771 = vpop.f32.mrb[0].mxu0
    %v4772 = vadd.f32 0.0, %v4771
    %v4773 = vpop.f32.mrb[0].mxu0
    %4774 = vmatprep.mubr.bf16.mxu0 0
    %4775 = vmatmul.mubr.bf16.gmra.mrb[0].mxu0 %v4704
    %v4776 = vpop.f32.mrb[0].mxu0
    %v4777 = vadd.f32 0.0, %v4776
    %v4778 = vpop.f32.mrb[0].mxu0
    %v4779 = vpop.f32.mrb[0].mxu0
    %v4780 = vadd.f32 0.0, %v4779
    %v4781 = vpop.f32.mrb[0].mxu0
    %4782 = vmatprep.mubr.bf16.mxu0 0
    %4783 = vmatmul.mubr.bf16.gmra.mrb[0].mxu0 %v4707
    %v4784 = vpop.f32.mrb[0].mxu0
    %v4785 = vadd.f32 0.0, %v4784
    %v4786 = vpop.f32.mrb[0].mxu0
    %v4787 = vpop.f32.mrb[0].mxu0
    %v4788 = vadd.f32 0.0, %v4787
    %v4789 = vpop.f32.mrb[0].mxu0
    %4790 = vmatprep.mubr.bf16.mxu0 0
    %4791 = vmatmul.mubr.bf16.gmra.mrb[0].mxu0 %v4710
    %v4792 = vpop.f32.mrb[0].mxu0
    %v4793 = vadd.f32 0.0, %v4792
    %v4794 = vpop.f32.mrb[0].mxu0
    %v4795 = vpop.f32.mrb[0].mxu0
    %v4796 = vadd.f32 0.0, %v4795
    %v4797 = vpop.f32.mrb[0].mxu0
    %4798 = vmatprep.mubr.bf16.mxu0 0
    %4799 = vmatmul.mubr.bf16.gmra.mrb[0].mxu0 %v4713
    %v4800 = vpop.f32.mrb[0].mxu0
    %v4801 = vadd.f32 0.0, %v4800
    %v4802 = vpop.f32.mrb[0].mxu0
    %v4803 = vpop.f32.mrb[0].mxu0
    %v4804 = vadd.f32 0.0, %v4803
    %v4805 = vpop.f32.mrb[0].mxu0
    %4806 = vmatprep.mubr.bf16.mxu0 0
    %4807 = vmatmul.mubr.bf16.gmra.mrb[0].mxu0 %v4716
    %v4808 = vpop.f32.mrb[0].mxu0
    %v4809 = vadd.f32 0.0, %v4808
    %v4810 = vpop.f32.mrb[0].mxu0
    %v4811 = vpop.f32.mrb[0].mxu0
    %v4812 = vadd.f32 0.0, %v4811
    %v4813 = vpop.f32.mrb[0].mxu0
    %4814 = vdwg.mxu0
    %v4815 = vpack.c.bf16 %v4756, %v4753
    %v4816 = vpack.c.bf16 %v4764, %v4761
    %v4817 = vpack.c.bf16 %v4772, %v4769
    %v4818 = vpack.c.bf16 %v4780, %v4777
    %v4819 = vpack.c.bf16 %v4788, %v4785
    %v4820 = vpack.c.bf16 %v4796, %v4793
    %v4821 = vpack.c.bf16 %v4804, %v4801
    %v4822 = vpack.c.bf16 %v4812, %v4809
    %v4823 = vmul.bf16 %v4815, %v606
    %v4824 = vmul.bf16 %v4816, %v607
    %v4825 = vmul.bf16 %v4817, %v608
    %v4826 = vmul.bf16 %v4818, %v609
    %v4827 = vmul.bf16 %v4819, %v610
    %v4828 = vmul.bf16 %v4820, %v611
    %v4829 = vmul.bf16 %v4821, %v612
    %v4830 = vmul.bf16 %v4822, %v613
    %4831 = vmatprep.subr.bf16.mxu0 0
    %4832 = vmatpush1.bf16.msra.mxu0 %v4823
    %4833 = vmatprep.subr.bf16.mxu0 0
    %4834 = vmatpush1.bf16.msra.mxu0 %v4824
    %4835 = vmatprep.subr.bf16.mxu0 0
    %4836 = vmatpush1.bf16.msra.mxu0 %v4825
    %4837 = vmatprep.subr.bf16.mxu0 0
    %4838 = vmatpush1.bf16.msra.mxu0 %v4826
    %4839 = vmatprep.subr.bf16.mxu0 0
    %4840 = vmatpush1.bf16.msra.mxu0 %v4827
    %4841 = vmatprep.subr.bf16.mxu0 0
    %4842 = vmatpush1.bf16.msra.mxu0 %v4828
    %4843 = vmatprep.subr.bf16.mxu0 0
    %4844 = vmatpush1.bf16.msra.mxu0 %v4829
    %4845 = vmatprep.subr.bf16.mxu0 0
    %4846 = vmatpush1.bf16.msra.mxu0 %v4830
    %4847 = vmatprep.subr.bf16.mxu0 0
    %4848 = vmatpush1.bf16.msra.mxu0 0
    %4849 = vmatprep.subr.bf16.mxu0 0
    %4850 = vmatpush1.bf16.msra.mxu0 0
    %4851 = vmatprep.subr.bf16.mxu0 0
    %4852 = vmatpush1.bf16.msra.mxu0 0
    %4853 = vmatprep.subr.bf16.mxu0 0
    %4854 = vmatpush1.bf16.msra.mxu0 0
    %4855 = vmatprep.subr.bf16.mxu0 0
    %4856 = vmatpush1.bf16.msra.mxu0 0
    %4857 = vmatprep.subr.bf16.mxu0 0
    %4858 = vmatpush1.bf16.msra.mxu0 0
    %4859 = vmatprep.subr.bf16.mxu0 0
    %4860 = vmatpush1.bf16.msra.mxu0 0
    %4861 = vmatprep.subr.bf16.mxu0 0
    %4862 = vmatpush1.bf16.msra.mxu0 0
    %4863 = vmatprep.mubr.bf16.mxu0 0
    %4864 = vmatmul.mubr.bf16.gmra.mrb[0].mxu0 %v1052
    %v4865 = vpop.f32.mrb[0].mxu0
    %v4866 = vadd.f32 0.0, %v4865
    %v4867 = vpop.f32.mrb[0].mxu0
    %v4868 = vpop.f32.mrb[0].mxu0
    %v4869 = vadd.f32 0.0, %v4868
    %v4870 = vpop.f32.mrb[0].mxu0
    %4871 = vdwg.mxu0
    %v4872 = vpack.c.bf16 %v4869, %v4866
    %s4873 = scalar_lea.vmem %s2, 128
    %v4874 = vld [vmem:[%s4873] sm:$0xf]
    %v4875 = vld [vmem:[%s4873 + $0x4] sm:$0xf]
    %v4876 = vld [vmem:[%s4873 + $0x8] sm:$0xf]
    %v4877 = vld [vmem:[%s4873 + $0xc] sm:$0xf]
    %v4878 = vld [vmem:[%s4873 + $0x10] sm:$0xf]
    %v4879 = vld [vmem:[%s4873 + $0x14] sm:$0xf]
    %v4880 = vld [vmem:[%s4873 + $0x18] sm:$0xf]
    %v4881 = vld [vmem:[%s4873 + $0x1c] sm:$0xf]
    %v4882 = vld [vmem:[%s4873 + $0x20] sm:$0xf]
    %v4883 = vld [vmem:[%s4873 + $0x24] sm:$0xf]
    %v4884 = vld [vmem:[%s4873 + $0x28] sm:$0xf]
    %v4885 = vld [vmem:[%s4873 + $0x2c] sm:$0xf]
    %v4886 = vld [vmem:[%s4873 + $0x30] sm:$0xf]
    %v4887 = vld [vmem:[%s4873 + $0x34] sm:$0xf]
    %v4888 = vld [vmem:[%s4873 + $0x38] sm:$0xf]
    %v4889 = vld [vmem:[%s4873 + $0x3c] sm:$0xf]
    %v4890 = vlaneseq
    %v4891 = vshrl.u32 %v4890, 7
    %v4892 = vsub.s32 0, %v4891
    %v4893 = vrot.slane %v4032, %v4892
    %v4910 = vunpack.c.l.b16 %v4874
    %v4911 = vunpack.c.l.b16 %v4875
    %v4912 = vunpack.c.l.b16 %v4876
    %v4913 = vunpack.c.l.b16 %v4877
    %v4914 = vunpack.c.l.b16 %v4878
    %v4915 = vunpack.c.l.b16 %v4879
    %v4916 = vunpack.c.l.b16 %v4880
    %v4917 = vunpack.c.l.b16 %v4881
    %v4918 = vunpack.c.l.b16 %v4882
    %v4919 = vunpack.c.l.b16 %v4883
    %v4920 = vunpack.c.l.b16 %v4884
    %v4921 = vunpack.c.l.b16 %v4885
    %v4922 = vunpack.c.l.b16 %v4886
    %v4923 = vunpack.c.l.b16 %v4887
    %v4924 = vunpack.c.l.b16 %v4888
    %v4925 = vunpack.c.l.b16 %v4889
    %v4926 = vpack.c.b16 %v4911, %v4910
    %v4927 = vpack.c.b16 %v4913, %v4912
    %v4928 = vpack.c.b16 %v4915, %v4914
    %v4929 = vpack.c.b16 %v4917, %v4916
    %v4930 = vpack.c.b16 %v4919, %v4918
    %v4931 = vpack.c.b16 %v4921, %v4920
    %v4932 = vpack.c.b16 %v4923, %v4922
    %v4933 = vpack.c.b16 %v4925, %v4924
    %4942 = vmatprep.subr.bf16.mxu0 0
    %4943 = vmatpush1.bf16.msra.mxu0 %v4926
    %4944 = vmatprep.subr.bf16.mxu0 0
    %4945 = vmatpush1.bf16.msra.mxu0 %v4927
    %4946 = vmatprep.subr.bf16.mxu0 0
    %4947 = vmatpush1.bf16.msra.mxu0 %v4928
    %4948 = vmatprep.subr.bf16.mxu0 0
    %4949 = vmatpush1.bf16.msra.mxu0 %v4929
    %4950 = vmatprep.subr.bf16.mxu0 0
    %4951 = vmatpush1.bf16.msra.mxu0 %v4930
    %4952 = vmatprep.subr.bf16.mxu0 0
    %4953 = vmatpush1.bf16.msra.mxu0 %v4931
    %4954 = vmatprep.subr.bf16.mxu0 0
    %4955 = vmatpush1.bf16.msra.mxu0 %v4932
    %4956 = vmatprep.subr.bf16.mxu0 0
    %4957 = vmatpush1.bf16.msra.mxu0 %v4933
    %4958 = vmatprep.subr.bf16.mxu0 0
    %4959 = vmatpush1.bf16.msra.mxu0 0
    %4960 = vmatprep.subr.bf16.mxu0 0
    %4961 = vmatpush1.bf16.msra.mxu0 0
    %4962 = vmatprep.subr.bf16.mxu0 0
    %4963 = vmatpush1.bf16.msra.mxu0 0
    %4964 = vmatprep.subr.bf16.mxu0 0
    %4965 = vmatpush1.bf16.msra.mxu0 0
    %4966 = vmatprep.subr.bf16.mxu0 0
    %4967 = vmatpush1.bf16.msra.mxu0 0
    %4968 = vmatprep.subr.bf16.mxu0 0
    %4969 = vmatpush1.bf16.msra.mxu0 0
    %4970 = vmatprep.subr.bf16.mxu0 0
    %4971 = vmatpush1.bf16.msra.mxu0 0
    %4972 = vmatprep.subr.bf16.mxu0 0
    %4973 = vmatpush1.bf16.msra.mxu0 0
    %4974 = vmatprep.mubr.bf16.mxu0 0
    %4975 = vmatmul.mubr.bf16.gmra.mrb[0].mxu0 %v4872
    %v4976 = vpop.f32.mrb[0].mxu0
    %v4977 = vadd.f32 %v4893, %v4976
    %v4978 = vpop.f32.mrb[0].mxu0
    %v4979 = vpop.f32.mrb[0].mxu0
    %v4980 = vadd.f32 %v4893, %v4979
    %v4981 = vpop.f32.mrb[0].mxu0
    %4982 = vdwg.mxu0
    %v4983 = vadd.f32 %v4977, %v4029
    %v4984 = vadd.f32 %v4980, %v4030
    %4985 = vadd.xlane.f32.xlu0 %v4983
    %v4986 = vpop.xlane.xlu0 %4985
    %4987 = vadd.xlane.f32.xlu0 %v4984
    %v4988 = vpop.xlane.xlu0 %4987
    %v4989 = vmul.f32 %v4986, %v1211
    %v4990 = vmul.f32 %v4988, %v1211
    %v4991 = vsub.f32 %v4983, %v4989
    %v4992 = vsub.f32 %v4984, %v4990
    %v4993 = vmul.f32 %v4991, %v4991
    %v4994 = vmul.f32 %v4992, %v4992
    %4995 = vadd.xlane.f32.xlu0 %v4993
    %v4996 = vpop.xlane.xlu0 %4995
    %4997 = vadd.xlane.f32.xlu0 %v4994
    %v4998 = vpop.xlane.xlu0 %4997
    %v4999 = vmul.f32 %v4996, %v1211
    %v5000 = vmul.f32 %v4998, %v1211
    %v5001 = vadd.f32 %v4999, 1e-12
    %v5002 = vadd.f32 %v5000, 1e-12
    %v5003 = vrsqrt.pop %v5001
    %v5004 = vrsqrt.pop %v5002
    %v5005 = vmul.f32 %v4991, %v5003
    %v5006 = vmul.f32 %v4992, %v5004
    %v5007 = vlaneseq
    %v5008 = vshrl.u32 %v5007, 7
    %v5009 = vsub.s32 1, %v5008
    %v5010 = vrot.slane %v4032, %v5009
    %v5011 = vmul.f32 %v5005, %v5010
    %v5012 = vmul.f32 %v5006, %v5010
    %v5013 = vlaneseq
    %v5014 = vshrl.u32 %v5013, 7
    %v5015 = vsub.s32 2, %v5014
    %v5016 = vrot.slane %v4032, %v5015
    %v5017 = vadd.f32 %v5011, %v5016
    %v5018 = vadd.f32 %v5012, %v5016
    %v5019 = vpack.c.bf16 %v5018, %v5017
    %s5020 = scalar_lea.vmem [#allocation4], 512
    %v5021 = vld [vmem:[%s5020] sm:$0xff]
    %v5022 = vld [vmem:[%s5020 + $0x8] sm:$0xff]
    %v5023 = vld [vmem:[%s5020 + $0x10] sm:$0xff]
    %v5024 = vld [vmem:[%s5020 + $0x18] sm:$0xff]
    %v5025 = vld [vmem:[%s5020 + $0x20] sm:$0xff]
    %v5026 = vld [vmem:[%s5020 + $0x28] sm:$0xff]
    %v5027 = vld [vmem:[%s5020 + $0x30] sm:$0xff]
    %v5028 = vld [vmem:[%s5020 + $0x38] sm:$0xff]
    %v5029 = vld [vmem:[%s5020 + $0x40] sm:$0xff]
    %v5030 = vld [vmem:[%s5020 + $0x48] sm:$0xff]
    %v5031 = vld [vmem:[%s5020 + $0x50] sm:$0xff]
    %v5032 = vld [vmem:[%s5020 + $0x58] sm:$0xff]
    %v5033 = vld [vmem:[%s5020 + $0x60] sm:$0xff]
    %v5034 = vld [vmem:[%s5020 + $0x68] sm:$0xff]
    %v5035 = vld [vmem:[%s5020 + $0x70] sm:$0xff]
    %v5036 = vld [vmem:[%s5020 + $0x78] sm:$0xff]
    %v5037 = vld [vmem:[%s5020 + $0x80] sm:$0xff]
    %v5038 = vld [vmem:[%s5020 + $0x88] sm:$0xff]
    %v5039 = vld [vmem:[%s5020 + $0x90] sm:$0xff]
    %v5040 = vld [vmem:[%s5020 + $0x98] sm:$0xff]
    %v5041 = vld [vmem:[%s5020 + $0xa0] sm:$0xff]
    %v5042 = vld [vmem:[%s5020 + $0xa8] sm:$0xff]
    %v5043 = vld [vmem:[%s5020 + $0xb0] sm:$0xff]
    %v5044 = vld [vmem:[%s5020 + $0xb8] sm:$0xff]
    %v5045 = vld [vmem:[%s5020 + $0xc0] sm:$0xff]
    %v5046 = vld [vmem:[%s5020 + $0xc8] sm:$0xff]
    %v5047 = vld [vmem:[%s5020 + $0xd0] sm:$0xff]
    %v5048 = vld [vmem:[%s5020 + $0xd8] sm:$0xff]
    %v5049 = vld [vmem:[%s5020 + $0xe0] sm:$0xff]
    %v5050 = vld [vmem:[%s5020 + $0xe8] sm:$0xff]
    %v5051 = vld [vmem:[%s5020 + $0xf0] sm:$0xff]
    %v5052 = vld [vmem:[%s5020 + $0xf8] sm:$0xff]
    %s5053 = scalar_lea.vmem %s7, 8
    %v5054 = vld [vmem:[%s5053] sm:$0xf]
    %v5056 = vlaneseq
    %v5057 = vshrl.u32 %v5056, 7
    %v5058 = vsub.s32 0, %v5057
    %v5059 = vrot.slane %v5054, %v5058
    %v5060 = vlaneseq
    %v5061 = vshrl.u32 %v5060, 7
    %v5062 = vsub.s32 1, %v5061
    %v5063 = vrot.slane %v5054, %v5062
    %v5064 = vlaneseq
    %v5065 = vshrl.u32 %v5064, 7
    %v5066 = vsub.s32 2, %v5065
    %v5067 = vrot.slane %v5054, %v5066
    %v5068 = vlaneseq
    %v5069 = vshrl.u32 %v5068, 7
    %v5070 = vsub.s32 3, %v5069
    %v5071 = vrot.slane %v5054, %v5070
    %v5108 = vunpack.c.l.b16 %v5021
    %v5109 = vunpack.c.h.b16 %v5021
    %v5110 = vunpack.c.l.b16 %v5022
    %v5111 = vunpack.c.h.b16 %v5022
    %v5112 = vunpack.c.l.b16 %v5023
    %v5113 = vunpack.c.h.b16 %v5023
    %v5114 = vunpack.c.l.b16 %v5024
    %v5115 = vunpack.c.h.b16 %v5024
    %v5116 = vunpack.c.l.b16 %v5025
    %v5117 = vunpack.c.h.b16 %v5025
    %v5118 = vunpack.c.l.b16 %v5026
    %v5119 = vunpack.c.h.b16 %v5026
    %v5120 = vunpack.c.l.b16 %v5027
    %v5121 = vunpack.c.h.b16 %v5027
    %v5122 = vunpack.c.l.b16 %v5028
    %v5123 = vunpack.c.h.b16 %v5028
    %v5124 = vunpack.c.l.b16 %v5029
    %v5125 = vunpack.c.h.b16 %v5029
    %v5126 = vunpack.c.l.b16 %v5030
    %v5127 = vunpack.c.h.b16 %v5030
    %v5128 = vunpack.c.l.b16 %v5031
    %v5129 = vunpack.c.h.b16 %v5031
    %v5130 = vunpack.c.l.b16 %v5032
    %v5131 = vunpack.c.h.b16 %v5032
    %v5132 = vunpack.c.l.b16 %v5033
    %v5133 = vunpack.c.h.b16 %v5033
    %v5134 = vunpack.c.l.b16 %v5034
    %v5135 = vunpack.c.h.b16 %v5034
    %v5136 = vunpack.c.l.b16 %v5035
    %v5137 = vunpack.c.h.b16 %v5035
    %v5138 = vunpack.c.l.b16 %v5036
    %v5139 = vunpack.c.h.b16 %v5036
    %v5140 = vunpack.c.l.b16 %v5037
    %v5141 = vunpack.c.h.b16 %v5037
    %v5142 = vunpack.c.l.b16 %v5038
    %v5143 = vunpack.c.h.b16 %v5038
    %v5144 = vunpack.c.l.b16 %v5039
    %v5145 = vunpack.c.h.b16 %v5039
    %v5146 = vunpack.c.l.b16 %v5040
    %v5147 = vunpack.c.h.b16 %v5040
    %v5148 = vunpack.c.l.b16 %v5041
    %v5149 = vunpack.c.h.b16 %v5041
    %v5150 = vunpack.c.l.b16 %v5042
    %v5151 = vunpack.c.h.b16 %v5042
    %v5152 = vunpack.c.l.b16 %v5043
    %v5153 = vunpack.c.h.b16 %v5043
    %v5154 = vunpack.c.l.b16 %v5044
    %v5155 = vunpack.c.h.b16 %v5044
    %v5156 = vunpack.c.l.b16 %v5045
    %v5157 = vunpack.c.h.b16 %v5045
    %v5158 = vunpack.c.l.b16 %v5046
    %v5159 = vunpack.c.h.b16 %v5046
    %v5160 = vunpack.c.l.b16 %v5047
    %v5161 = vunpack.c.h.b16 %v5047
    %v5162 = vunpack.c.l.b16 %v5048
    %v5163 = vunpack.c.h.b16 %v5048
    %v5164 = vunpack.c.l.b16 %v5049
    %v5165 = vunpack.c.h.b16 %v5049
    %v5166 = vunpack.c.l.b16 %v5050
    %v5167 = vunpack.c.h.b16 %v5050
    %v5168 = vunpack.c.l.b16 %v5051
    %v5169 = vunpack.c.h.b16 %v5051
    %v5170 = vunpack.c.l.b16 %v5052
    %v5171 = vunpack.c.h.b16 %v5052
    %v5172 = vpack.c.b16 %v5112, %v5108
    %v5173 = vpack.c.b16 %v5113, %v5109
    %v5174 = vpack.c.b16 %v5114, %v5110
    %v5175 = vpack.c.b16 %v5115, %v5111
    %v5176 = vpack.c.b16 %v5120, %v5116
    %v5177 = vpack.c.b16 %v5121, %v5117
    %v5178 = vpack.c.b16 %v5122, %v5118
    %v5179 = vpack.c.b16 %v5123, %v5119
    %v5180 = vpack.c.b16 %v5128, %v5124
    %v5181 = vpack.c.b16 %v5129, %v5125
    %v5182 = vpack.c.b16 %v5130, %v5126
    %v5183 = vpack.c.b16 %v5131, %v5127
    %v5184 = vpack.c.b16 %v5136, %v5132
    %v5185 = vpack.c.b16 %v5137, %v5133
    %v5186 = vpack.c.b16 %v5138, %v5134
    %v5187 = vpack.c.b16 %v5139, %v5135
    %v5188 = vpack.c.b16 %v5144, %v5140
    %v5189 = vpack.c.b16 %v5145, %v5141
    %v5190 = vpack.c.b16 %v5146, %v5142
    %v5191 = vpack.c.b16 %v5147, %v5143
    %v5192 = vpack.c.b16 %v5152, %v5148
    %v5193 = vpack.c.b16 %v5153, %v5149
    %v5194 = vpack.c.b16 %v5154, %v5150
    %v5195 = vpack.c.b16 %v5155, %v5151
    %v5196 = vpack.c.b16 %v5160, %v5156
    %v5197 = vpack.c.b16 %v5161, %v5157
    %v5198 = vpack.c.b16 %v5162, %v5158
    %v5199 = vpack.c.b16 %v5163, %v5159
    %v5200 = vpack.c.b16 %v5168, %v5164
    %v5201 = vpack.c.b16 %v5169, %v5165
    %v5202 = vpack.c.b16 %v5170, %v5166
    %v5203 = vpack.c.b16 %v5171, %v5167
    %5236 = vmatprep.subr.bf16.mxu0 %v5173
    %5237 = vmatpush1.bf16.msra.mxu0 %v5172
    %5238 = vmatprep.subr.bf16.mxu0 %v5177
    %5239 = vmatpush1.bf16.msra.mxu0 %v5176
    %5240 = vmatprep.subr.bf16.mxu0 %v5181
    %5241 = vmatpush1.bf16.msra.mxu0 %v5180
    %5242 = vmatprep.subr.bf16.mxu0 %v5185
    %5243 = vmatpush1.bf16.msra.mxu0 %v5184
    %5244 = vmatprep.subr.bf16.mxu0 %v5189
    %5245 = vmatpush1.bf16.msra.mxu0 %v5188
    %5246 = vmatprep.subr.bf16.mxu0 %v5193
    %5247 = vmatpush1.bf16.msra.mxu0 %v5192
    %5248 = vmatprep.subr.bf16.mxu0 %v5197
    %5249 = vmatpush1.bf16.msra.mxu0 %v5196
    %5250 = vmatprep.subr.bf16.mxu0 %v5201
    %5251 = vmatpush1.bf16.msra.mxu0 %v5200
    %5252 = vmatprep.subr.bf16.mxu0 0
    %5253 = vmatpush1.bf16.msra.mxu0 0
    %5254 = vmatprep.subr.bf16.mxu0 0
    %5255 = vmatpush1.bf16.msra.mxu0 0
    %5256 = vmatprep.subr.bf16.mxu0 0
    %5257 = vmatpush1.bf16.msra.mxu0 0
    %5258 = vmatprep.subr.bf16.mxu0 0
    %5259 = vmatpush1.bf16.msra.mxu0 0
    %5260 = vmatprep.subr.bf16.mxu0 0
    %5261 = vmatpush1.bf16.msra.mxu0 0
    %5262 = vmatprep.subr.bf16.mxu0 0
    %5263 = vmatpush1.bf16.msra.mxu0 0
    %5264 = vmatprep.subr.bf16.mxu0 0
    %5265 = vmatpush1.bf16.msra.mxu0 0
    %5266 = vmatprep.subr.bf16.mxu0 0
    %5267 = vmatpush1.bf16.msra.mxu0 0
    %5268 = vmatprep.mubr.bf16.mxu0 0
    %5269 = vmatmul.mubr.bf16.gmra.mrb[0].mxu0 %v5019
    %v5270 = vpop.f32.mrb[0].mxu0
    %v5271 = vadd.f32 %v5059, %v5270
    %v5272 = vpop.f32.mrb[0].mxu0
    %v5273 = vadd.f32 %v5063, %v5272
    %v5274 = vpop.f32.mrb[0].mxu0
    %v5275 = vadd.f32 %v5059, %v5274
    %v5276 = vpop.f32.mrb[0].mxu0
    %v5277 = vadd.f32 %v5063, %v5276
    %5278 = vdwg.mxu0
    %5279 = vmatprep.subr.bf16.mxu0 %v5175
    %5280 = vmatpush1.bf16.msra.mxu0 %v5174
    %5281 = vmatprep.subr.bf16.mxu0 %v5179
    %5282 = vmatpush1.bf16.msra.mxu0 %v5178
    %5283 = vmatprep.subr.bf16.mxu0 %v5183
    %5284 = vmatpush1.bf16.msra.mxu0 %v5182
    %5285 = vmatprep.subr.bf16.mxu0 %v5187
    %5286 = vmatpush1.bf16.msra.mxu0 %v5186
    %5287 = vmatprep.subr.bf16.mxu0 %v5191
    %5288 = vmatpush1.bf16.msra.mxu0 %v5190
    %5289 = vmatprep.subr.bf16.mxu0 %v5195
    %5290 = vmatpush1.bf16.msra.mxu0 %v5194
    %5291 = vmatprep.subr.bf16.mxu0 %v5199
    %5292 = vmatpush1.bf16.msra.mxu0 %v5198
    %5293 = vmatprep.subr.bf16.mxu0 %v5203
    %5294 = vmatpush1.bf16.msra.mxu0 %v5202
    %5295 = vmatprep.subr.bf16.mxu0 0
    %5296 = vmatpush1.bf16.msra.mxu0 0
    %5297 = vmatprep.subr.bf16.mxu0 0
    %5298 = vmatpush1.bf16.msra.mxu0 0
    %5299 = vmatprep.subr.bf16.mxu0 0
    %5300 = vmatpush1.bf16.msra.mxu0 0
    %5301 = vmatprep.subr.bf16.mxu0 0
    %5302 = vmatpush1.bf16.msra.mxu0 0
    %5303 = vmatprep.subr.bf16.mxu0 0
    %5304 = vmatpush1.bf16.msra.mxu0 0
    %5305 = vmatprep.subr.bf16.mxu0 0
    %5306 = vmatpush1.bf16.msra.mxu0 0
    %5307 = vmatprep.subr.bf16.mxu0 0
    %5308 = vmatpush1.bf16.msra.mxu0 0
    %5309 = vmatprep.subr.bf16.mxu0 0
    %5310 = vmatpush1.bf16.msra.mxu0 0
    %5311 = vmatprep.mubr.bf16.mxu0 0
    %5312 = vmatmul.mubr.bf16.gmra.mrb[0].mxu0 %v5019
    %v5313 = vpop.f32.mrb[0].mxu0
    %v5314 = vadd.f32 %v5067, %v5313
    %v5315 = vpop.f32.mrb[0].mxu0
    %v5316 = vadd.f32 %v5071, %v5315
    %v5317 = vpop.f32.mrb[0].mxu0
    %v5318 = vadd.f32 %v5067, %v5317
    %v5319 = vpop.f32.mrb[0].mxu0
    %v5320 = vadd.f32 %v5071, %v5319
    %5321 = vdwg.mxu0
    %v5322 = vmul.f32 %v5271, 0.5
    %v5323 = vmul.f32 %v5273, 0.5
    %v5324 = vmul.f32 %v5314, 0.5
    %v5325 = vmul.f32 %v5316, 0.5
    %v5326 = vmul.f32 %v5275, 0.5
    %v5327 = vmul.f32 %v5277, 0.5
    %v5328 = vmul.f32 %v5318, 0.5
    %v5329 = vmul.f32 %v5320, 0.5
    %v5330 = vmul.f32 %v5271, 0.70710677
    %v5331 = vmul.f32 %v5273, 0.70710677
    %v5332 = vmul.f32 %v5314, 0.70710677
    %v5333 = vmul.f32 %v5316, 0.70710677
    %v5334 = vmul.f32 %v5275, 0.70710677
    %v5335 = vmul.f32 %v5277, 0.70710677
    %v5336 = vmul.f32 %v5318, 0.70710677
    %v5337 = vmul.f32 %v5320, 0.70710677
    %v5338 = vand.u32 2147483647, %v5330
    %v5339 = vand.u32 2147483647, %v5331
    %v5340 = vand.u32 2147483647, %v5332
    %v5341 = vand.u32 2147483647, %v5333
    %v5342 = vand.u32 2147483647, %v5334
    %v5343 = vand.u32 2147483647, %v5335
    %v5344 = vand.u32 2147483647, %v5336
    %v5345 = vand.u32 2147483647, %v5337
    %v5346 = vmul.f32 %v5338, 0.3275911
    %v5347 = vmul.f32 %v5339, 0.3275911
    %v5348 = vmul.f32 %v5340, 0.3275911
    %v5349 = vmul.f32 %v5341, 0.3275911
    %v5350 = vmul.f32 %v5342, 0.3275911
    %v5351 = vmul.f32 %v5343, 0.3275911
    %v5352 = vmul.f32 %v5344, 0.3275911
    %v5353 = vmul.f32 %v5345, 0.3275911
    %v5354 = vadd.f32 %v5346, 1.0
    %v5355 = vadd.f32 %v5347, 1.0
    %v5356 = vadd.f32 %v5348, 1.0
    %v5357 = vadd.f32 %v5349, 1.0
    %v5358 = vadd.f32 %v5350, 1.0
    %v5359 = vadd.f32 %v5351, 1.0
    %v5360 = vadd.f32 %v5352, 1.0
    %v5361 = vadd.f32 %v5353, 1.0
    %v5362 = vrcp.pop %v5354
    %v5363 = vmul.f32 1.0, %v5362
    %v5364 = vrcp.pop %v5355
    %v5365 = vmul.f32 1.0, %v5364
    %v5366 = vrcp.pop %v5356
    %v5367 = vmul.f32 1.0, %v5366
    %v5368 = vrcp.pop %v5357
    %v5369 = vmul.f32 1.0, %v5368
    %v5370 = vrcp.pop %v5358
    %v5371 = vmul.f32 1.0, %v5370
    %v5372 = vrcp.pop %v5359
    %v5373 = vmul.f32 1.0, %v5372
    %v5374 = vrcp.pop %v5360
    %v5375 = vmul.f32 1.0, %v5374
    %v5376 = vrcp.pop %v5361
    %v5377 = vmul.f32 1.0, %v5376
    %v5378 = vmul.f32 %v5363, 1.0614054
    %v5379 = vmul.f32 %v5365, 1.0614054
    %v5380 = vmul.f32 %v5367, 1.0614054
    %v5381 = vmul.f32 %v5369, 1.0614054
    %v5382 = vmul.f32 %v5371, 1.0614054
    %v5383 = vmul.f32 %v5373, 1.0614054
    %v5384 = vmul.f32 %v5375, 1.0614054
    %v5385 = vmul.f32 %v5377, 1.0614054
    %v5386 = vadd.f32 %v5378, -1.4531521
    %v5387 = vadd.f32 %v5379, -1.4531521
    %v5388 = vadd.f32 %v5380, -1.4531521
    %v5389 = vadd.f32 %v5381, -1.4531521
    %v5390 = vadd.f32 %v5382, -1.4531521
    %v5391 = vadd.f32 %v5383, -1.4531521
    %v5392 = vadd.f32 %v5384, -1.4531521
    %v5393 = vadd.f32 %v5385, -1.4531521
    %v5394 = vmul.f32 %v5386, %v5363
    %v5395 = vmul.f32 %v5387, %v5365
    %v5396 = vmul.f32 %v5388, %v5367
    %v5397 = vmul.f32 %v5389, %v5369
    %v5398 = vmul.f32 %v5390, %v5371
    %v5399 = vmul.f32 %v5391, %v5373
    %v5400 = vmul.f32 %v5392, %v5375
    %v5401 = vmul.f32 %v5393, %v5377
    %v5402 = vadd.f32 %v5394, 1.4214138
    %v5403 = vadd.f32 %v5395, 1.4214138
    %v5404 = vadd.f32 %v5396, 1.4214138
    %v5405 = vadd.f32 %v5397, 1.4214138
    %v5406 = vadd.f32 %v5398, 1.4214138
    %v5407 = vadd.f32 %v5399, 1.4214138
    %v5408 = vadd.f32 %v5400, 1.4214138
    %v5409 = vadd.f32 %v5401, 1.4214138
    %v5410 = vmul.f32 %v5402, %v5363
    %v5411 = vmul.f32 %v5403, %v5365
    %v5412 = vmul.f32 %v5404, %v5367
    %v5413 = vmul.f32 %v5405, %v5369
    %v5414 = vmul.f32 %v5406, %v5371
    %v5415 = vmul.f32 %v5407, %v5373
    %v5416 = vmul.f32 %v5408, %v5375
    %v5417 = vmul.f32 %v5409, %v5377
    %v5418 = vadd.f32 %v5410, -0.28449672
    %v5419 = vadd.f32 %v5411, -0.28449672
    %v5420 = vadd.f32 %v5412, -0.28449672
    %v5421 = vadd.f32 %v5413, -0.28449672
    %v5422 = vadd.f32 %v5414, -0.28449672
    %v5423 = vadd.f32 %v5415, -0.28449672
    %v5424 = vadd.f32 %v5416, -0.28449672
    %v5425 = vadd.f32 %v5417, -0.28449672
    %v5426 = vmul.f32 %v5418, %v5363
    %v5427 = vmul.f32 %v5419, %v5365
    %v5428 = vmul.f32 %v5420, %v5367
    %v5429 = vmul.f32 %v5421, %v5369
    %v5430 = vmul.f32 %v5422, %v5371
    %v5431 = vmul.f32 %v5423, %v5373
    %v5432 = vmul.f32 %v5424, %v5375
    %v5433 = vmul.f32 %v5425, %v5377
    %v5434 = vadd.f32 %v5426, 0.2548296
    %v5435 = vadd.f32 %v5427, 0.2548296
    %v5436 = vadd.f32 %v5428, 0.2548296
    %v5437 = vadd.f32 %v5429, 0.2548296
    %v5438 = vadd.f32 %v5430, 0.2548296
    %v5439 = vadd.f32 %v5431, 0.2548296
    %v5440 = vadd.f32 %v5432, 0.2548296
    %v5441 = vadd.f32 %v5433, 0.2548296
    %v5442 = vmul.f32 %v5434, %v5363
    %v5443 = vmul.f32 %v5435, %v5365
    %v5444 = vmul.f32 %v5436, %v5367
    %v5445 = vmul.f32 %v5437, %v5369
    %v5446 = vmul.f32 %v5438, %v5371
    %v5447 = vmul.f32 %v5439, %v5373
    %v5448 = vmul.f32 %v5440, %v5375
    %v5449 = vmul.f32 %v5441, %v5377
    %v5450 = vsub.f32 0.0, %v5338
    %v5451 = vsub.f32 0.0, %v5339
    %v5452 = vsub.f32 0.0, %v5340
    %v5453 = vsub.f32 0.0, %v5341
    %v5454 = vsub.f32 0.0, %v5342
    %v5455 = vsub.f32 0.0, %v5343
    %v5456 = vsub.f32 0.0, %v5344
    %v5457 = vsub.f32 0.0, %v5345
    %v5458 = vmul.f32 %v5450, %v5338
    %v5459 = vmul.f32 %v5451, %v5339
    %v5460 = vmul.f32 %v5452, %v5340
    %v5461 = vmul.f32 %v5453, %v5341
    %v5462 = vmul.f32 %v5454, %v5342
    %v5463 = vmul.f32 %v5455, %v5343
    %v5464 = vmul.f32 %v5456, %v5344
    %v5465 = vmul.f32 %v5457, %v5345
    %v5466 = vmul.f32 %v5458, 1.442695
    %v5467 = vpow.pop %v5466
    %v5468 = vmul.f32 %v5459, 1.442695
    %v5469 = vpow.pop %v5468
    %v5470 = vmul.f32 %v5460, 1.442695
    %v5471 = vpow.pop %v5470
    %v5472 = vmul.f32 %v5461, 1.442695
    %v5473 = vpow.pop %v5472
    %v5474 = vmul.f32 %v5462, 1.442695
    %v5475 = vpow.pop %v5474
    %v5476 = vmul.f32 %v5463, 1.442695
    %v5477 = vpow.pop %v5476
    %v5478 = vmul.f32 %v5464, 1.442695
    %v5479 = vpow.pop %v5478
    %v5480 = vmul.f32 %v5465, 1.442695
    %v5481 = vpow.pop %v5480
    %v5482 = vmul.f32 %v5442, %v5467
    %v5483 = vmul.f32 %v5443, %v5469
    %v5484 = vmul.f32 %v5444, %v5471
    %v5485 = vmul.f32 %v5445, %v5473
    %v5486 = vmul.f32 %v5446, %v5475
    %v5487 = vmul.f32 %v5447, %v5477
    %v5488 = vmul.f32 %v5448, %v5479
    %v5489 = vmul.f32 %v5449, %v5481
    %v5490 = vsub.f32 1.0, %v5482
    %v5491 = vsub.f32 1.0, %v5483
    %v5492 = vsub.f32 1.0, %v5484
    %v5493 = vsub.f32 1.0, %v5485
    %v5494 = vsub.f32 1.0, %v5486
    %v5495 = vsub.f32 1.0, %v5487
    %v5496 = vsub.f32 1.0, %v5488
    %v5497 = vsub.f32 1.0, %v5489
    %vm5498 = vcmp.ge.f32.partialorder %v5330, 0.0
    %vm5499 = vcmp.ge.f32.partialorder %v5331, 0.0
    %vm5500 = vcmp.ge.f32.partialorder %v5332, 0.0
    %vm5501 = vcmp.ge.f32.partialorder %v5333, 0.0
    %vm5502 = vcmp.ge.f32.partialorder %v5334, 0.0
    %vm5503 = vcmp.ge.f32.partialorder %v5335, 0.0
    %vm5504 = vcmp.ge.f32.partialorder %v5336, 0.0
    %vm5505 = vcmp.ge.f32.partialorder %v5337, 0.0
    %v5506 = vsub.f32 0.0, %v5490
    %v5507 = vsub.f32 0.0, %v5491
    %v5508 = vsub.f32 0.0, %v5492
    %v5509 = vsub.f32 0.0, %v5493
    %v5510 = vsub.f32 0.0, %v5494
    %v5511 = vsub.f32 0.0, %v5495
    %v5512 = vsub.f32 0.0, %v5496
    %v5513 = vsub.f32 0.0, %v5497
    %v5514 = vsel %vm5498, %v5490, %v5506
    %v5515 = vsel %vm5499, %v5491, %v5507
    %v5516 = vsel %vm5500, %v5492, %v5508
    %v5517 = vsel %vm5501, %v5493, %v5509
    %v5518 = vsel %vm5502, %v5494, %v5510
    %v5519 = vsel %vm5503, %v5495, %v5511
    %v5520 = vsel %vm5504, %v5496, %v5512
    %v5521 = vsel %vm5505, %v5497, %v5513
    %v5522 = vadd.f32 %v5514, 1.0
    %v5523 = vadd.f32 %v5515, 1.0
    %v5524 = vadd.f32 %v5516, 1.0
    %v5525 = vadd.f32 %v5517, 1.0
    %v5526 = vadd.f32 %v5518, 1.0
    %v5527 = vadd.f32 %v5519, 1.0
    %v5528 = vadd.f32 %v5520, 1.0
    %v5529 = vadd.f32 %v5521, 1.0
    %v5530 = vmul.f32 %v5322, %v5522
    %v5531 = vmul.f32 %v5323, %v5523
    %v5532 = vmul.f32 %v5324, %v5524
    %v5533 = vmul.f32 %v5325, %v5525
    %v5534 = vmul.f32 %v5326, %v5526
    %v5535 = vmul.f32 %v5327, %v5527
    %v5536 = vmul.f32 %v5328, %v5528
    %v5537 = vmul.f32 %v5329, %v5529
    %v5538 = vpack.c.bf16 %v5534, %v5530
    %v5539 = vpack.c.bf16 %v5535, %v5531
    %v5540 = vpack.c.bf16 %v5536, %v5532
    %v5541 = vpack.c.bf16 %v5537, %v5533
    %s5542 = scalar_lea.vmem [#allocation6], 512
    %v5543 = vld [vmem:[%s5542] sm:$0xf]
    %v5544 = vld [vmem:[%s5542 + $0x4] sm:$0xf]
    %v5545 = vld [vmem:[%s5542 + $0x8] sm:$0xf]
    %v5546 = vld [vmem:[%s5542 + $0xc] sm:$0xf]
    %v5547 = vld [vmem:[%s5542 + $0x10] sm:$0xf]
    %v5548 = vld [vmem:[%s5542 + $0x14] sm:$0xf]
    %v5549 = vld [vmem:[%s5542 + $0x18] sm:$0xf]
    %v5550 = vld [vmem:[%s5542 + $0x1c] sm:$0xf]
    %v5551 = vld [vmem:[%s5542 + $0x20] sm:$0xf]
    %v5552 = vld [vmem:[%s5542 + $0x24] sm:$0xf]
    %v5553 = vld [vmem:[%s5542 + $0x28] sm:$0xf]
    %v5554 = vld [vmem:[%s5542 + $0x2c] sm:$0xf]
    %v5555 = vld [vmem:[%s5542 + $0x30] sm:$0xf]
    %v5556 = vld [vmem:[%s5542 + $0x34] sm:$0xf]
    %v5557 = vld [vmem:[%s5542 + $0x38] sm:$0xf]
    %v5558 = vld [vmem:[%s5542 + $0x3c] sm:$0xf]
    %v5559 = vld [vmem:[%s5542 + $0x40] sm:$0xf]
    %v5560 = vld [vmem:[%s5542 + $0x44] sm:$0xf]
    %v5561 = vld [vmem:[%s5542 + $0x48] sm:$0xf]
    %v5562 = vld [vmem:[%s5542 + $0x4c] sm:$0xf]
    %v5563 = vld [vmem:[%s5542 + $0x50] sm:$0xf]
    %v5564 = vld [vmem:[%s5542 + $0x54] sm:$0xf]
    %v5565 = vld [vmem:[%s5542 + $0x58] sm:$0xf]
    %v5566 = vld [vmem:[%s5542 + $0x5c] sm:$0xf]
    %v5567 = vld [vmem:[%s5542 + $0x60] sm:$0xf]
    %v5568 = vld [vmem:[%s5542 + $0x64] sm:$0xf]
    %v5569 = vld [vmem:[%s5542 + $0x68] sm:$0xf]
    %v5570 = vld [vmem:[%s5542 + $0x6c] sm:$0xf]
    %v5571 = vld [vmem:[%s5542 + $0x70] sm:$0xf]
    %v5572 = vld [vmem:[%s5542 + $0x74] sm:$0xf]
    %v5573 = vld [vmem:[%s5542 + $0x78] sm:$0xf]
    %v5574 = vld [vmem:[%s5542 + $0x7c] sm:$0xf]
    %v5575 = vld [vmem:[%s5542 + $0x80] sm:$0xf]
    %v5576 = vld [vmem:[%s5542 + $0x84] sm:$0xf]
    %v5577 = vld [vmem:[%s5542 + $0x88] sm:$0xf]
    %v5578 = vld [vmem:[%s5542 + $0x8c] sm:$0xf]
    %v5579 = vld [vmem:[%s5542 + $0x90] sm:$0xf]
    %v5580 = vld [vmem:[%s5542 + $0x94] sm:$0xf]
    %v5581 = vld [vmem:[%s5542 + $0x98] sm:$0xf]
    %v5582 = vld [vmem:[%s5542 + $0x9c] sm:$0xf]
    %v5583 = vld [vmem:[%s5542 + $0xa0] sm:$0xf]
    %v5584 = vld [vmem:[%s5542 + $0xa4] sm:$0xf]
    %v5585 = vld [vmem:[%s5542 + $0xa8] sm:$0xf]
    %v5586 = vld [vmem:[%s5542 + $0xac] sm:$0xf]
    %v5587 = vld [vmem:[%s5542 + $0xb0] sm:$0xf]
    %v5588 = vld [vmem:[%s5542 + $0xb4] sm:$0xf]
    %v5589 = vld [vmem:[%s5542 + $0xb8] sm:$0xf]
    %v5590 = vld [vmem:[%s5542 + $0xbc] sm:$0xf]
    %v5591 = vld [vmem:[%s5542 + $0xc0] sm:$0xf]
    %v5592 = vld [vmem:[%s5542 + $0xc4] sm:$0xf]
    %v5593 = vld [vmem:[%s5542 + $0xc8] sm:$0xf]
    %v5594 = vld [vmem:[%s5542 + $0xcc] sm:$0xf]
    %v5595 = vld [vmem:[%s5542 + $0xd0] sm:$0xf]
    %v5596 = vld [vmem:[%s5542 + $0xd4] sm:$0xf]
    %v5597 = vld [vmem:[%s5542 + $0xd8] sm:$0xf]
    %v5598 = vld [vmem:[%s5542 + $0xdc] sm:$0xf]
    %v5599 = vld [vmem:[%s5542 + $0xe0] sm:$0xf]
    %v5600 = vld [vmem:[%s5542 + $0xe4] sm:$0xf]
    %v5601 = vld [vmem:[%s5542 + $0xe8] sm:$0xf]
    %v5602 = vld [vmem:[%s5542 + $0xec] sm:$0xf]
    %v5603 = vld [vmem:[%s5542 + $0xf0] sm:$0xf]
    %v5604 = vld [vmem:[%s5542 + $0xf4] sm:$0xf]
    %v5605 = vld [vmem:[%s5542 + $0xf8] sm:$0xf]
    %v5606 = vld [vmem:[%s5542 + $0xfc] sm:$0xf]
    %v5607 = vlaneseq
    %v5608 = vshrl.u32 %v5607, 7
    %v5609 = vsub.s32 3, %v5608
    %v5610 = vrot.slane %v4032, %v5609
    %v5675 = vunpack.c.l.b16 %v5543
    %v5676 = vunpack.c.l.b16 %v5544
    %v5677 = vunpack.c.l.b16 %v5545
    %v5678 = vunpack.c.l.b16 %v5546
    %v5679 = vunpack.c.l.b16 %v5547
    %v5680 = vunpack.c.l.b16 %v5548
    %v5681 = vunpack.c.l.b16 %v5549
    %v5682 = vunpack.c.l.b16 %v5550
    %v5683 = vunpack.c.l.b16 %v5551
    %v5684 = vunpack.c.l.b16 %v5552
    %v5685 = vunpack.c.l.b16 %v5553
    %v5686 = vunpack.c.l.b16 %v5554
    %v5687 = vunpack.c.l.b16 %v5555
    %v5688 = vunpack.c.l.b16 %v5556
    %v5689 = vunpack.c.l.b16 %v5557
    %v5690 = vunpack.c.l.b16 %v5558
    %v5691 = vunpack.c.l.b16 %v5559
    %v5692 = vunpack.c.l.b16 %v5560
    %v5693 = vunpack.c.l.b16 %v5561
    %v5694 = vunpack.c.l.b16 %v5562
    %v5695 = vunpack.c.l.b16 %v5563
    %v5696 = vunpack.c.l.b16 %v5564
    %v5697 = vunpack.c.l.b16 %v5565
    %v5698 = vunpack.c.l.b16 %v5566
    %v5699 = vunpack.c.l.b16 %v5567
    %v5700 = vunpack.c.l.b16 %v5568
    %v5701 = vunpack.c.l.b16 %v5569
    %v5702 = vunpack.c.l.b16 %v5570
    %v5703 = vunpack.c.l.b16 %v5571
    %v5704 = vunpack.c.l.b16 %v5572
    %v5705 = vunpack.c.l.b16 %v5573
    %v5706 = vunpack.c.l.b16 %v5574
    %v5707 = vunpack.c.l.b16 %v5575
    %v5708 = vunpack.c.l.b16 %v5576
    %v5709 = vunpack.c.l.b16 %v5577
    %v5710 = vunpack.c.l.b16 %v5578
    %v5711 = vunpack.c.l.b16 %v5579
    %v5712 = vunpack.c.l.b16 %v5580
    %v5713 = vunpack.c.l.b16 %v5581
    %v5714 = vunpack.c.l.b16 %v5582
    %v5715 = vunpack.c.l.b16 %v5583
    %v5716 = vunpack.c.l.b16 %v5584
    %v5717 = vunpack.c.l.b16 %v5585
    %v5718 = vunpack.c.l.b16 %v5586
    %v5719 = vunpack.c.l.b16 %v5587
    %v5720 = vunpack.c.l.b16 %v5588
    %v5721 = vunpack.c.l.b16 %v5589
    %v5722 = vunpack.c.l.b16 %v5590
    %v5723 = vunpack.c.l.b16 %v5591
    %v5724 = vunpack.c.l.b16 %v5592
    %v5725 = vunpack.c.l.b16 %v5593
    %v5726 = vunpack.c.l.b16 %v5594
    %v5727 = vunpack.c.l.b16 %v5595
    %v5728 = vunpack.c.l.b16 %v5596
    %v5729 = vunpack.c.l.b16 %v5597
    %v5730 = vunpack.c.l.b16 %v5598
    %v5731 = vunpack.c.l.b16 %v5599
    %v5732 = vunpack.c.l.b16 %v5600
    %v5733 = vunpack.c.l.b16 %v5601
    %v5734 = vunpack.c.l.b16 %v5602
    %v5735 = vunpack.c.l.b16 %v5603
    %v5736 = vunpack.c.l.b16 %v5604
    %v5737 = vunpack.c.l.b16 %v5605
    %v5738 = vunpack.c.l.b16 %v5606
    %v5739 = vpack.c.b16 %v5676, %v5675
    %v5740 = vpack.c.b16 %v5678, %v5677
    %v5741 = vpack.c.b16 %v5680, %v5679
    %v5742 = vpack.c.b16 %v5682, %v5681
    %v5743 = vpack.c.b16 %v5684, %v5683
    %v5744 = vpack.c.b16 %v5686, %v5685
    %v5745 = vpack.c.b16 %v5688, %v5687
    %v5746 = vpack.c.b16 %v5690, %v5689
    %v5747 = vpack.c.b16 %v5692, %v5691
    %v5748 = vpack.c.b16 %v5694, %v5693
    %v5749 = vpack.c.b16 %v5696, %v5695
    %v5750 = vpack.c.b16 %v5698, %v5697
    %v5751 = vpack.c.b16 %v5700, %v5699
    %v5752 = vpack.c.b16 %v5702, %v5701
    %v5753 = vpack.c.b16 %v5704, %v5703
    %v5754 = vpack.c.b16 %v5706, %v5705
    %v5755 = vpack.c.b16 %v5708, %v5707
    %v5756 = vpack.c.b16 %v5710, %v5709
    %v5757 = vpack.c.b16 %v5712, %v5711
    %v5758 = vpack.c.b16 %v5714, %v5713
    %v5759 = vpack.c.b16 %v5716, %v5715
    %v5760 = vpack.c.b16 %v5718, %v5717
    %v5761 = vpack.c.b16 %v5720, %v5719
    %v5762 = vpack.c.b16 %v5722, %v5721
    %v5763 = vpack.c.b16 %v5724, %v5723
    %v5764 = vpack.c.b16 %v5726, %v5725
    %v5765 = vpack.c.b16 %v5728, %v5727
    %v5766 = vpack.c.b16 %v5730, %v5729
    %v5767 = vpack.c.b16 %v5732, %v5731
    %v5768 = vpack.c.b16 %v5734, %v5733
    %v5769 = vpack.c.b16 %v5736, %v5735
    %v5770 = vpack.c.b16 %v5738, %v5737
    %5803 = vmatprep.subr.bf16.mxu0 0
    %5804 = vmatpush1.bf16.msra.mxu0 %v5739
    %5805 = vmatprep.subr.bf16.mxu0 0
    %5806 = vmatpush1.bf16.msra.mxu0 %v5740
    %5807 = vmatprep.subr.bf16.mxu0 0
    %5808 = vmatpush1.bf16.msra.mxu0 %v5741
    %5809 = vmatprep.subr.bf16.mxu0 0
    %5810 = vmatpush1.bf16.msra.mxu0 %v5742
    %5811 = vmatprep.subr.bf16.mxu0 0
    %5812 = vmatpush1.bf16.msra.mxu0 %v5743
    %5813 = vmatprep.subr.bf16.mxu0 0
    %5814 = vmatpush1.bf16.msra.mxu0 %v5744
    %5815 = vmatprep.subr.bf16.mxu0 0
    %5816 = vmatpush1.bf16.msra.mxu0 %v5745
    %5817 = vmatprep.subr.bf16.mxu0 0
    %5818 = vmatpush1.bf16.msra.mxu0 %v5746
    %5819 = vmatprep.subr.bf16.mxu0 0
    %5820 = vmatpush1.bf16.msra.mxu0 %v5747
    %5821 = vmatprep.subr.bf16.mxu0 0
    %5822 = vmatpush1.bf16.msra.mxu0 %v5748
    %5823 = vmatprep.subr.bf16.mxu0 0
    %5824 = vmatpush1.bf16.msra.mxu0 %v5749
    %5825 = vmatprep.subr.bf16.mxu0 0
    %5826 = vmatpush1.bf16.msra.mxu0 %v5750
    %5827 = vmatprep.subr.bf16.mxu0 0
    %5828 = vmatpush1.bf16.msra.mxu0 %v5751
    %5829 = vmatprep.subr.bf16.mxu0 0
    %5830 = vmatpush1.bf16.msra.mxu0 %v5752
    %5831 = vmatprep.subr.bf16.mxu0 0
    %5832 = vmatpush1.bf16.msra.mxu0 %v5753
    %5833 = vmatprep.subr.bf16.mxu0 0
    %5834 = vmatpush1.bf16.msra.mxu0 %v5754
    %5835 = vmatprep.mubr.bf16.mxu0 %v5539
    %5836 = vmatmul.mubr.bf16.gmra.mrb[0].mxu0 %v5538
    %v5837 = vpop.f32.mrb[0].mxu0
    %v5838 = vadd.f32 %v5610, %v5837
    %v5839 = vpop.f32.mrb[0].mxu0
    %v5840 = vpop.f32.mrb[0].mxu0
    %v5841 = vadd.f32 %v5610, %v5840
    %v5842 = vpop.f32.mrb[0].mxu0
    %5843 = vdwg.mxu0
    %5844 = vmatprep.subr.bf16.mxu0 0
    %5845 = vmatpush1.bf16.msra.mxu0 %v5755
    %5846 = vmatprep.subr.bf16.mxu0 0
    %5847 = vmatpush1.bf16.msra.mxu0 %v5756
    %5848 = vmatprep.subr.bf16.mxu0 0
    %5849 = vmatpush1.bf16.msra.mxu0 %v5757
    %5850 = vmatprep.subr.bf16.mxu0 0
    %5851 = vmatpush1.bf16.msra.mxu0 %v5758
    %5852 = vmatprep.subr.bf16.mxu0 0
    %5853 = vmatpush1.bf16.msra.mxu0 %v5759
    %5854 = vmatprep.subr.bf16.mxu0 0
    %5855 = vmatpush1.bf16.msra.mxu0 %v5760
    %5856 = vmatprep.subr.bf16.mxu0 0
    %5857 = vmatpush1.bf16.msra.mxu0 %v5761
    %5858 = vmatprep.subr.bf16.mxu0 0
    %5859 = vmatpush1.bf16.msra.mxu0 %v5762
    %5860 = vmatprep.subr.bf16.mxu0 0
    %5861 = vmatpush1.bf16.msra.mxu0 %v5763
    %5862 = vmatprep.subr.bf16.mxu0 0
    %5863 = vmatpush1.bf16.msra.mxu0 %v5764
    %5864 = vmatprep.subr.bf16.mxu0 0
    %5865 = vmatpush1.bf16.msra.mxu0 %v5765
    %5866 = vmatprep.subr.bf16.mxu0 0
    %5867 = vmatpush1.bf16.msra.mxu0 %v5766
    %5868 = vmatprep.subr.bf16.mxu0 0
    %5869 = vmatpush1.bf16.msra.mxu0 %v5767
    %5870 = vmatprep.subr.bf16.mxu0 0
    %5871 = vmatpush1.bf16.msra.mxu0 %v5768
    %5872 = vmatprep.subr.bf16.mxu0 0
    %5873 = vmatpush1.bf16.msra.mxu0 %v5769
    %5874 = vmatprep.subr.bf16.mxu0 0
    %5875 = vmatpush1.bf16.msra.mxu0 %v5770
    %5876 = vmatprep.mubr.bf16.mxu0 %v5541
    %5877 = vmatmul.mubr.bf16.gmra.mrb[0].mxu0 %v5540
    %v5878 = vpop.f32.mrb[0].mxu0
    %v5879 = vadd.f32 %v5838, %v5878
    %v5880 = vpop.f32.mrb[0].mxu0
    %v5881 = vpop.f32.mrb[0].mxu0
    %v5882 = vadd.f32 %v5841, %v5881
    %v5883 = vpop.f32.mrb[0].mxu0
    %5884 = vdwg.mxu0
    %v5885 = vadd.f32 %v5879, %v5017
    %v5886 = vadd.f32 %v5882, %v5018
    %5887 = vadd.xlane.f32.xlu0 %v5885
    %v5888 = vpop.xlane.xlu0 %5887
    %5889 = vadd.xlane.f32.xlu0 %v5886
    %v5890 = vpop.xlane.xlu0 %5889
    %v5891 = vmul.f32 %v5888, %v1211
    %v5892 = vmul.f32 %v5890, %v1211
    %v5893 = vsub.f32 %v5885, %v5891
    %v5894 = vsub.f32 %v5886, %v5892
    %v5895 = vmul.f32 %v5893, %v5893
    %v5896 = vmul.f32 %v5894, %v5894
    %5897 = vadd.xlane.f32.xlu0 %v5895
    %v5898 = vpop.xlane.xlu0 %5897
    %5899 = vadd.xlane.f32.xlu0 %v5896
    %v5900 = vpop.xlane.xlu0 %5899
    %v5901 = vmul.f32 %v5898, %v1211
    %v5902 = vmul.f32 %v5900, %v1211
    %v5903 = vadd.f32 %v5901, 1e-12
    %v5904 = vadd.f32 %v5902, 1e-12
    %v5905 = vrsqrt.pop %v5903
    %v5906 = vrsqrt.pop %v5904
    %v5907 = vmul.f32 %v5893, %v5905
    %v5908 = vmul.f32 %v5894, %v5906
    %v5909 = vlaneseq
    %v5910 = vshrl.u32 %v5909, 7
    %v5911 = vsub.s32 4, %v5910
    %v5912 = vrot.slane %v4032, %v5911
    %v5913 = vmul.f32 %v5907, %v5912
    %v5914 = vmul.f32 %v5908, %v5912
    %v5915 = vlaneseq
    %v5916 = vshrl.u32 %v5915, 7
    %v5917 = vsub.s32 5, %v5916
    %v5918 = vrot.slane %v4032, %v5917
    %v5919 = vadd.f32 %v5913, %v5918
    %v5920 = vadd.f32 %v5914, %v5918
    %s5921 = scalar_lea.vmem %s6, 24
    %v5922 = vld [vmem:[%s5921] sm:$0x3f]
    %v5923 = vpack.c.bf16 %v5920, %v5919
    %s5924 = scalar_lea.vmem [#allocation2], 576
    %v5925 = vld [vmem:[%s5924] sm:$0xff]
    %v5926 = vld [vmem:[%s5924 + $0x8] sm:$0xf]
    %v5927 = vld [vmem:[%s5924 + $0xc] sm:$0xff]
    %v5928 = vld [vmem:[%s5924 + $0x14] sm:$0xf]
    %v5929 = vld [vmem:[%s5924 + $0x18] sm:$0xff]
    %v5930 = vld [vmem:[%s5924 + $0x20] sm:$0xf]
    %v5931 = vld [vmem:[%s5924 + $0x24] sm:$0xff]
    %v5932 = vld [vmem:[%s5924 + $0x2c] sm:$0xf]
    %v5933 = vld [vmem:[%s5924 + $0x30] sm:$0xff]
    %v5934 = vld [vmem:[%s5924 + $0x38] sm:$0xf]
    %v5935 = vld [vmem:[%s5924 + $0x3c] sm:$0xff]
    %v5936 = vld [vmem:[%s5924 + $0x44] sm:$0xf]
    %v5937 = vld [vmem:[%s5924 + $0x48] sm:$0xff]
    %v5938 = vld [vmem:[%s5924 + $0x50] sm:$0xf]
    %v5939 = vld [vmem:[%s5924 + $0x54] sm:$0xff]
    %v5940 = vld [vmem:[%s5924 + $0x5c] sm:$0xf]
    %v5941 = vld [vmem:[%s5924 + $0x60] sm:$0xff]
    %v5942 = vld [vmem:[%s5924 + $0x68] sm:$0xf]
    %v5943 = vld [vmem:[%s5924 + $0x6c] sm:$0xff]
    %v5944 = vld [vmem:[%s5924 + $0x74] sm:$0xf]
    %v5945 = vld [vmem:[%s5924 + $0x78] sm:$0xff]
    %v5946 = vld [vmem:[%s5924 + $0x80] sm:$0xf]
    %v5947 = vld [vmem:[%s5924 + $0x84] sm:$0xff]
    %v5948 = vld [vmem:[%s5924 + $0x8c] sm:$0xf]
    %v5949 = vld [vmem:[%s5924 + $0x90] sm:$0xff]
    %v5950 = vld [vmem:[%s5924 + $0x98] sm:$0xf]
    %v5951 = vld [vmem:[%s5924 + $0x9c] sm:$0xff]
    %v5952 = vld [vmem:[%s5924 + $0xa4] sm:$0xf]
    %v5953 = vld [vmem:[%s5924 + $0xa8] sm:$0xff]
    %v5954 = vld [vmem:[%s5924 + $0xb0] sm:$0xf]
    %v5955 = vld [vmem:[%s5924 + $0xb4] sm:$0xff]
    %v5956 = vld [vmem:[%s5924 + $0xbc] sm:$0xf]
    %s5957 = scalar_lea.vmem %s5, 9
    %v5958 = vld [vmem:[%s5957] sm:$0x7]
    %v5960 = vlaneseq
    %v5961 = vshrl.u32 %v5960, 7
    %v5962 = vsub.s32 0, %v5961
    %v5963 = vrot.slane %v5958, %v5962
    %v5964 = vlaneseq
    %v5965 = vshrl.u32 %v5964, 7
    %v5966 = vsub.s32 1, %v5965
    %v5967 = vrot.slane %v5958, %v5966
    %v5968 = vlaneseq
    %v5969 = vshrl.u32 %v5968, 7
    %v5970 = vsub.s32 2, %v5969
    %v5971 = vrot.slane %v5958, %v5970
    %v6007 = vunpack.c.l.b16 %v5925
    %v6008 = vunpack.c.h.b16 %v5925
    %v6009 = vunpack.c.l.b16 %v5926
    %v6010 = vunpack.c.l.b16 %v5927
    %v6011 = vunpack.c.h.b16 %v5927
    %v6012 = vunpack.c.l.b16 %v5928
    %v6013 = vunpack.c.l.b16 %v5929
    %v6014 = vunpack.c.h.b16 %v5929
    %v6015 = vunpack.c.l.b16 %v5930
    %v6016 = vunpack.c.l.b16 %v5931
    %v6017 = vunpack.c.h.b16 %v5931
    %v6018 = vunpack.c.l.b16 %v5932
    %v6019 = vunpack.c.l.b16 %v5933
    %v6020 = vunpack.c.h.b16 %v5933
    %v6021 = vunpack.c.l.b16 %v5934
    %v6022 = vunpack.c.l.b16 %v5935
    %v6023 = vunpack.c.h.b16 %v5935
    %v6024 = vunpack.c.l.b16 %v5936
    %v6025 = vunpack.c.l.b16 %v5937
    %v6026 = vunpack.c.h.b16 %v5937
    %v6027 = vunpack.c.l.b16 %v5938
    %v6028 = vunpack.c.l.b16 %v5939
    %v6029 = vunpack.c.h.b16 %v5939
    %v6030 = vunpack.c.l.b16 %v5940
    %v6031 = vunpack.c.l.b16 %v5941
    %v6032 = vunpack.c.h.b16 %v5941
    %v6033 = vunpack.c.l.b16 %v5942
    %v6034 = vunpack.c.l.b16 %v5943
    %v6035 = vunpack.c.h.b16 %v5943
    %v6036 = vunpack.c.l.b16 %v5944
    %v6037 = vunpack.c.l.b16 %v5945
    %v6038 = vunpack.c.h.b16 %v5945
    %v6039 = vunpack.c.l.b16 %v5946
    %v6040 = vunpack.c.l.b16 %v5947
    %v6041 = vunpack.c.h.b16 %v5947
    %v6042 = vunpack.c.l.b16 %v5948
    %v6043 = vunpack.c.l.b16 %v5949
    %v6044 = vunpack.c.h.b16 %v5949
    %v6045 = vunpack.c.l.b16 %v5950
    %v6046 = vunpack.c.l.b16 %v5951
    %v6047 = vunpack.c.h.b16 %v5951
    %v6048 = vunpack.c.l.b16 %v5952
    %v6049 = vunpack.c.l.b16 %v5953
    %v6050 = vunpack.c.h.b16 %v5953
    %v6051 = vunpack.c.l.b16 %v5954
    %v6052 = vunpack.c.l.b16 %v5955
    %v6053 = vunpack.c.h.b16 %v5955
    %v6054 = vunpack.c.l.b16 %v5956
    %v6055 = vpack.c.b16 %v6010, %v6007
    %v6056 = vpack.c.b16 %v6011, %v6008
    %v6057 = vpack.c.b16 %v6012, %v6009
    %v6058 = vpack.c.b16 %v6016, %v6013
    %v6059 = vpack.c.b16 %v6017, %v6014
    %v6060 = vpack.c.b16 %v6018, %v6015
    %v6061 = vpack.c.b16 %v6022, %v6019
    %v6062 = vpack.c.b16 %v6023, %v6020
    %v6063 = vpack.c.b16 %v6024, %v6021
    %v6064 = vpack.c.b16 %v6028, %v6025
    %v6065 = vpack.c.b16 %v6029, %v6026
    %v6066 = vpack.c.b16 %v6030, %v6027
    %v6067 = vpack.c.b16 %v6034, %v6031
    %v6068 = vpack.c.b16 %v6035, %v6032
    %v6069 = vpack.c.b16 %v6036, %v6033
    %v6070 = vpack.c.b16 %v6040, %v6037
    %v6071 = vpack.c.b16 %v6041, %v6038
    %v6072 = vpack.c.b16 %v6042, %v6039
    %v6073 = vpack.c.b16 %v6046, %v6043
    %v6074 = vpack.c.b16 %v6047, %v6044
    %v6075 = vpack.c.b16 %v6048, %v6045
    %v6076 = vpack.c.b16 %v6052, %v6049
    %v6077 = vpack.c.b16 %v6053, %v6050
    %v6078 = vpack.c.b16 %v6054, %v6051
    %6103 = vmatprep.subr.bf16.mxu0 %v6056
    %6104 = vmatpush1.bf16.msra.mxu0 %v6055
    %6105 = vmatprep.subr.bf16.mxu0 %v6059
    %6106 = vmatpush1.bf16.msra.mxu0 %v6058
    %6107 = vmatprep.subr.bf16.mxu0 %v6062
    %6108 = vmatpush1.bf16.msra.mxu0 %v6061
    %6109 = vmatprep.subr.bf16.mxu0 %v6065
    %6110 = vmatpush1.bf16.msra.mxu0 %v6064
    %6111 = vmatprep.subr.bf16.mxu0 %v6068
    %6112 = vmatpush1.bf16.msra.mxu0 %v6067
    %6113 = vmatprep.subr.bf16.mxu0 %v6071
    %6114 = vmatpush1.bf16.msra.mxu0 %v6070
    %6115 = vmatprep.subr.bf16.mxu0 %v6074
    %6116 = vmatpush1.bf16.msra.mxu0 %v6073
    %6117 = vmatprep.subr.bf16.mxu0 %v6077
    %6118 = vmatpush1.bf16.msra.mxu0 %v6076
    %6119 = vmatprep.subr.bf16.mxu0 0
    %6120 = vmatpush1.bf16.msra.mxu0 0
    %6121 = vmatprep.subr.bf16.mxu0 0
    %6122 = vmatpush1.bf16.msra.mxu0 0
    %6123 = vmatprep.subr.bf16.mxu0 0
    %6124 = vmatpush1.bf16.msra.mxu0 0
    %6125 = vmatprep.subr.bf16.mxu0 0
    %6126 = vmatpush1.bf16.msra.mxu0 0
    %6127 = vmatprep.subr.bf16.mxu0 0
    %6128 = vmatpush1.bf16.msra.mxu0 0
    %6129 = vmatprep.subr.bf16.mxu0 0
    %6130 = vmatpush1.bf16.msra.mxu0 0
    %6131 = vmatprep.subr.bf16.mxu0 0
    %6132 = vmatpush1.bf16.msra.mxu0 0
    %6133 = vmatprep.subr.bf16.mxu0 0
    %6134 = vmatpush1.bf16.msra.mxu0 0
    %6135 = vmatprep.mubr.bf16.mxu0 0
    %6136 = vmatmul.mubr.bf16.gmra.mrb[0].mxu0 %v5923
    %v6137 = vpop.f32.mrb[0].mxu0
    %v6138 = vadd.f32 %v5963, %v6137
    %v6139 = vpop.f32.mrb[0].mxu0
    %v6140 = vadd.f32 %v5967, %v6139
    %v6141 = vpop.f32.mrb[0].mxu0
    %v6142 = vadd.f32 %v5963, %v6141
    %v6143 = vpop.f32.mrb[0].mxu0
    %v6144 = vadd.f32 %v5967, %v6143
    %6145 = vdwg.mxu0
    %6146 = vmatprep.subr.bf16.mxu0 0
    %6147 = vmatpush1.bf16.msra.mxu0 %v6057
    %6148 = vmatprep.subr.bf16.mxu0 0
    %6149 = vmatpush1.bf16.msra.mxu0 %v6060
    %6150 = vmatprep.subr.bf16.mxu0 0
    %6151 = vmatpush1.bf16.msra.mxu0 %v6063
    %6152 = vmatprep.subr.bf16.mxu0 0
    %6153 = vmatpush1.bf16.msra.mxu0 %v6066
    %6154 = vmatprep.subr.bf16.mxu0 0
    %6155 = vmatpush1.bf16.msra.mxu0 %v6069
    %6156 = vmatprep.subr.bf16.mxu0 0
    %6157 = vmatpush1.bf16.msra.mxu0 %v6072
    %6158 = vmatprep.subr.bf16.mxu0 0
    %6159 = vmatpush1.bf16.msra.mxu0 %v6075
    %6160 = vmatprep.subr.bf16.mxu0 0
    %6161 = vmatpush1.bf16.msra.mxu0 %v6078
    %6162 = vmatprep.subr.bf16.mxu0 0
    %6163 = vmatpush1.bf16.msra.mxu0 0
    %6164 = vmatprep.subr.bf16.mxu0 0
    %6165 = vmatpush1.bf16.msra.mxu0 0
    %6166 = vmatprep.subr.bf16.mxu0 0
    %6167 = vmatpush1.bf16.msra.mxu0 0
    %6168 = vmatprep.subr.bf16.mxu0 0
    %6169 = vmatpush1.bf16.msra.mxu0 0
    %6170 = vmatprep.subr.bf16.mxu0 0
    %6171 = vmatpush1.bf16.msra.mxu0 0
    %6172 = vmatprep.subr.bf16.mxu0 0
    %6173 = vmatpush1.bf16.msra.mxu0 0
    %6174 = vmatprep.subr.bf16.mxu0 0
    %6175 = vmatpush1.bf16.msra.mxu0 0
    %6176 = vmatprep.subr.bf16.mxu0 0
    %6177 = vmatpush1.bf16.msra.mxu0 0
    %6178 = vmatprep.mubr.bf16.mxu0 0
    %6179 = vmatmul.mubr.bf16.gmra.mrb[0].mxu0 %v5923
    %v6180 = vpop.f32.mrb[0].mxu0
    %v6181 = vadd.f32 %v5971, %v6180
    %v6182 = vpop.f32.mrb[0].mxu0
    %v6183 = vpop.f32.mrb[0].mxu0
    %v6184 = vadd.f32 %v5971, %v6183
    %v6185 = vpop.f32.mrb[0].mxu0
    %6186 = vdwg.mxu0
    %v6187 = vpack.c.bf16 %v6144, %v6140
    %v6188 = vpack.c.bf16 %v6184, %v6181
    %v6189 = vpack.c.bf16 %v6142, %v6138
    %6190 = vmatprep.subr.bf16.mxu0 0
    %6191 = vmatpush1.bf16.msra.mxu0 %v6189
    %6192 = vmatprep.subr.bf16.mxu0 0
    %6193 = vmatpush1.bf16.msra.mxu0 0
    %6194 = vmatprep.subr.bf16.mxu0 0
    %6195 = vmatpush1.bf16.msra.mxu0 0
    %6196 = vmatprep.subr.bf16.mxu0 0
    %6197 = vmatpush1.bf16.msra.mxu0 0
    %6198 = vmatprep.subr.bf16.mxu0 0
    %6199 = vmatpush1.bf16.msra.mxu0 0
    %6200 = vmatprep.subr.bf16.mxu0 0
    %6201 = vmatpush1.bf16.msra.mxu0 0
    %6202 = vmatprep.subr.bf16.mxu0 0
    %6203 = vmatpush1.bf16.msra.mxu0 0
    %6204 = vmatprep.subr.bf16.mxu0 0
    %6205 = vmatpush1.bf16.msra.mxu0 0
    %6206 = vmatprep.subr.bf16.mxu0 0
    %6207 = vmatpush1.bf16.msra.mxu0 0
    %6208 = vmatprep.subr.bf16.mxu0 0
    %6209 = vmatpush1.bf16.msra.mxu0 0
    %6210 = vmatprep.subr.bf16.mxu0 0
    %6211 = vmatpush1.bf16.msra.mxu0 0
    %6212 = vmatprep.subr.bf16.mxu0 0
    %6213 = vmatpush1.bf16.msra.mxu0 0
    %6214 = vmatprep.subr.bf16.mxu0 0
    %6215 = vmatpush1.bf16.msra.mxu0 0
    %6216 = vmatprep.subr.bf16.mxu0 0
    %6217 = vmatpush1.bf16.msra.mxu0 0
    %6218 = vmatprep.subr.bf16.mxu0 0
    %6219 = vmatpush1.bf16.msra.mxu0 0
    %6220 = vmatprep.subr.bf16.mxu0 0
    %6221 = vmatpush1.bf16.msra.mxu0 0
    %6222 = vmatprep.mubr.bf16.mxu0 0
    %6223 = vmatmul.mubr.bf16.gmra.mrb[0].mxu0 %v446
    %v6224 = vpop.f32.mrb[0].mxu0
    %v6225 = vadd.f32 0.0, %v6224
    %v6226 = vpop.f32.mrb[0].mxu0
    %v6227 = vpop.f32.mrb[0].mxu0
    %v6228 = vadd.f32 0.0, %v6227
    %v6229 = vpop.f32.mrb[0].mxu0
    %6230 = vmatprep.mubr.bf16.mxu0 0
    %6231 = vmatmul.mubr.bf16.gmra.mrb[0].mxu0 %v449
    %v6232 = vpop.f32.mrb[0].mxu0
    %v6233 = vadd.f32 0.0, %v6232
    %v6234 = vpop.f32.mrb[0].mxu0
    %v6235 = vpop.f32.mrb[0].mxu0
    %v6236 = vadd.f32 0.0, %v6235
    %v6237 = vpop.f32.mrb[0].mxu0
    %6238 = vmatprep.mubr.bf16.mxu0 0
    %6239 = vmatmul.mubr.bf16.gmra.mrb[0].mxu0 %v452
    %v6240 = vpop.f32.mrb[0].mxu0
    %v6241 = vadd.f32 0.0, %v6240
    %v6242 = vpop.f32.mrb[0].mxu0
    %v6243 = vpop.f32.mrb[0].mxu0
    %v6244 = vadd.f32 0.0, %v6243
    %v6245 = vpop.f32.mrb[0].mxu0
    %6246 = vmatprep.mubr.bf16.mxu0 0
    %6247 = vmatmul.mubr.bf16.gmra.mrb[0].mxu0 %v455
    %v6248 = vpop.f32.mrb[0].mxu0
    %v6249 = vadd.f32 0.0, %v6248
    %v6250 = vpop.f32.mrb[0].mxu0
    %v6251 = vpop.f32.mrb[0].mxu0
    %v6252 = vadd.f32 0.0, %v6251
    %v6253 = vpop.f32.mrb[0].mxu0
    %6254 = vmatprep.mubr.bf16.mxu0 0
    %6255 = vmatmul.mubr.bf16.gmra.mrb[0].mxu0 %v458
    %v6256 = vpop.f32.mrb[0].mxu0
    %v6257 = vadd.f32 0.0, %v6256
    %v6258 = vpop.f32.mrb[0].mxu0
    %v6259 = vpop.f32.mrb[0].mxu0
    %v6260 = vadd.f32 0.0, %v6259
    %v6261 = vpop.f32.mrb[0].mxu0
    %6262 = vmatprep.mubr.bf16.mxu0 0
    %6263 = vmatmul.mubr.bf16.gmra.mrb[0].mxu0 %v461
    %v6264 = vpop.f32.mrb[0].mxu0
    %v6265 = vadd.f32 0.0, %v6264
    %v6266 = vpop.f32.mrb[0].mxu0
    %v6267 = vpop.f32.mrb[0].mxu0
    %v6268 = vadd.f32 0.0, %v6267
    %v6269 = vpop.f32.mrb[0].mxu0
    %6270 = vmatprep.mubr.bf16.mxu0 0
    %6271 = vmatmul.mubr.bf16.gmra.mrb[0].mxu0 %v464
    %v6272 = vpop.f32.mrb[0].mxu0
    %v6273 = vadd.f32 0.0, %v6272
    %v6274 = vpop.f32.mrb[0].mxu0
    %v6275 = vpop.f32.mrb[0].mxu0
    %v6276 = vadd.f32 0.0, %v6275
    %v6277 = vpop.f32.mrb[0].mxu0
    %6278 = vmatprep.mubr.bf16.mxu0 0
    %6279 = vmatmul.mubr.bf16.gmra.mrb[0].mxu0 %v467
    %v6280 = vpop.f32.mrb[0].mxu0
    %v6281 = vadd.f32 0.0, %v6280
    %v6282 = vpop.f32.mrb[0].mxu0
    %v6283 = vpop.f32.mrb[0].mxu0
    %v6284 = vadd.f32 0.0, %v6283
    %v6285 = vpop.f32.mrb[0].mxu0
    %6286 = vdwg.mxu0
    %v6287 = vpack.c.bf16 %v6228, %v6225
    %v6288 = vpack.c.bf16 %v6236, %v6233
    %v6289 = vpack.c.bf16 %v6244, %v6241
    %v6290 = vpack.c.bf16 %v6252, %v6249
    %v6291 = vpack.c.bf16 %v6260, %v6257
    %v6292 = vpack.c.bf16 %v6268, %v6265
    %v6293 = vpack.c.bf16 %v6276, %v6273
    %v6294 = vpack.c.bf16 %v6284, %v6281
    %v6295 = vmul.bf16 %v6287, %v606
    %v6296 = vmul.bf16 %v6288, %v607
    %v6297 = vmul.bf16 %v6289, %v608
    %v6298 = vmul.bf16 %v6290, %v609
    %v6299 = vmul.bf16 %v6291, %v610
    %v6300 = vmul.bf16 %v6292, %v611
    %v6301 = vmul.bf16 %v6293, %v612
    %v6302 = vmul.bf16 %v6294, %v613
    %6303 = vmatprep.subr.bf16.mxu0 0
    %6304 = vmatpush1.bf16.xpose.msra.mxu0 %v6187
    %6305 = vmatprep.subr.bf16.mxu0 0
    %6306 = vmatpush1.bf16.xpose.msra.mxu0 0
    %6307 = vmatprep.subr.bf16.mxu0 0
    %6308 = vmatpush1.bf16.xpose.msra.mxu0 0
    %6309 = vmatprep.subr.bf16.mxu0 0
    %6310 = vmatpush1.bf16.xpose.msra.mxu0 0
    %6311 = vmatprep.subr.bf16.mxu0 0
    %6312 = vmatpush1.bf16.xpose.msra.mxu0 0
    %6313 = vmatprep.subr.bf16.mxu0 0
    %6314 = vmatpush1.bf16.xpose.msra.mxu0 0
    %6315 = vmatprep.subr.bf16.mxu0 0
    %6316 = vmatpush1.bf16.xpose.msra.mxu0 0
    %6317 = vmatprep.subr.bf16.mxu0 0
    %6318 = vmatpush1.bf16.xpose.msra.mxu0 0
    %6319 = vmatprep.subr.bf16.mxu0 0
    %6320 = vmatpush1.bf16.xpose.msra.mxu0 0
    %6321 = vmatprep.subr.bf16.mxu0 0
    %6322 = vmatpush1.bf16.xpose.msra.mxu0 0
    %6323 = vmatprep.subr.bf16.mxu0 0
    %6324 = vmatpush1.bf16.xpose.msra.mxu0 0
    %6325 = vmatprep.subr.bf16.mxu0 0
    %6326 = vmatpush1.bf16.xpose.msra.mxu0 0
    %6327 = vmatprep.subr.bf16.mxu0 0
    %6328 = vmatpush1.bf16.xpose.msra.mxu0 0
    %6329 = vmatprep.subr.bf16.mxu0 0
    %6330 = vmatpush1.bf16.xpose.msra.mxu0 0
    %6331 = vmatprep.subr.bf16.mxu0 0
    %6332 = vmatpush1.bf16.xpose.msra.mxu0 0
    %6333 = vmatprep.subr.bf16.mxu0 0
    %6334 = vmatpush1.bf16.xpose.msra.mxu0 0
    %6335 = vmatprep.mubr.bf16.mxu0 0
    %6336 = vmatmul.mubr.bf16.gmra.mrb[0].mxu0 %v6295
    %v6337 = vpop.f32.mrb[0].mxu0
    %v6338 = vadd.f32 %v120, %v6337
    %v6339 = vpop.f32.mrb[0].mxu0
    %v6340 = vpop.f32.mrb[0].mxu0
    %v6341 = vadd.f32 %v121, %v6340
    %v6342 = vpop.f32.mrb[0].mxu0
    %6343 = vmatprep.mubr.bf16.mxu0 0
    %6344 = vmatmul.mubr.bf16.gmra.mrb[0].mxu0 %v6296
    %v6345 = vpop.f32.mrb[0].mxu0
    %v6346 = vadd.f32 %v122, %v6345
    %v6347 = vpop.f32.mrb[0].mxu0
    %v6348 = vpop.f32.mrb[0].mxu0
    %v6349 = vadd.f32 %v123, %v6348
    %v6350 = vpop.f32.mrb[0].mxu0
    %6351 = vmatprep.mubr.bf16.mxu0 0
    %6352 = vmatmul.mubr.bf16.gmra.mrb[0].mxu0 %v6297
    %v6353 = vpop.f32.mrb[0].mxu0
    %v6354 = vadd.f32 %v124, %v6353
    %v6355 = vpop.f32.mrb[0].mxu0
    %v6356 = vpop.f32.mrb[0].mxu0
    %v6357 = vadd.f32 %v125, %v6356
    %v6358 = vpop.f32.mrb[0].mxu0
    %6359 = vmatprep.mubr.bf16.mxu0 0
    %6360 = vmatmul.mubr.bf16.gmra.mrb[0].mxu0 %v6298
    %v6361 = vpop.f32.mrb[0].mxu0
    %v6362 = vadd.f32 %v126, %v6361
    %v6363 = vpop.f32.mrb[0].mxu0
    %v6364 = vpop.f32.mrb[0].mxu0
    %v6365 = vadd.f32 %v127, %v6364
    %v6366 = vpop.f32.mrb[0].mxu0
    %6367 = vmatprep.mubr.bf16.mxu0 0
    %6368 = vmatmul.mubr.bf16.gmra.mrb[0].mxu0 %v6299
    %v6369 = vpop.f32.mrb[0].mxu0
    %v6370 = vadd.f32 %v128, %v6369
    %v6371 = vpop.f32.mrb[0].mxu0
    %v6372 = vpop.f32.mrb[0].mxu0
    %v6373 = vadd.f32 %v129, %v6372
    %v6374 = vpop.f32.mrb[0].mxu0
    %6375 = vmatprep.mubr.bf16.mxu0 0
    %6376 = vmatmul.mubr.bf16.gmra.mrb[0].mxu0 %v6300
    %v6377 = vpop.f32.mrb[0].mxu0
    %v6378 = vadd.f32 %v130, %v6377
    %v6379 = vpop.f32.mrb[0].mxu0
    %v6380 = vpop.f32.mrb[0].mxu0
    %v6381 = vadd.f32 %v131, %v6380
    %v6382 = vpop.f32.mrb[0].mxu0
    %6383 = vmatprep.mubr.bf16.mxu0 0
    %6384 = vmatmul.mubr.bf16.gmra.mrb[0].mxu0 %v6301
    %v6385 = vpop.f32.mrb[0].mxu0
    %v6386 = vadd.f32 %v132, %v6385
    %v6387 = vpop.f32.mrb[0].mxu0
    %v6388 = vpop.f32.mrb[0].mxu0
    %v6389 = vadd.f32 %v133, %v6388
    %v6390 = vpop.f32.mrb[0].mxu0
    %6391 = vmatprep.mubr.bf16.mxu0 0
    %6392 = vmatmul.mubr.bf16.gmra.mrb[0].mxu0 %v6302
    %v6393 = vpop.f32.mrb[0].mxu0
    %v6394 = vadd.f32 %v134, %v6393
    %v6395 = vpop.f32.mrb[0].mxu0
    %v6396 = vpop.f32.mrb[0].mxu0
    %v6397 = vadd.f32 %v135, %v6396
    %v6398 = vpop.f32.mrb[0].mxu0
    %6399 = vdwg.mxu0
    %v6400 = vsel %vm444, %v6338, -inf
    %6401 = vmax.xlane.f32.xlu0 %v6400
    %v6402 = vpop.xlane.xlu0 %6401
    %v6403 = vsel %vm444, %v6341, -inf
    %6404 = vmax.xlane.f32.xlu0 %v6403
    %v6405 = vpop.xlane.xlu0 %6404
    %v6406 = vsel %vm444, %v6346, -inf
    %6407 = vmax.xlane.f32.xlu0 %v6406
    %v6408 = vpop.xlane.xlu0 %6407
    %v6409 = vsel %vm444, %v6349, -inf
    %6410 = vmax.xlane.f32.xlu0 %v6409
    %v6411 = vpop.xlane.xlu0 %6410
    %v6412 = vsel %vm444, %v6354, -inf
    %6413 = vmax.xlane.f32.xlu0 %v6412
    %v6414 = vpop.xlane.xlu0 %6413
    %v6415 = vsel %vm444, %v6357, -inf
    %6416 = vmax.xlane.f32.xlu0 %v6415
    %v6417 = vpop.xlane.xlu0 %6416
    %v6418 = vsel %vm444, %v6362, -inf
    %6419 = vmax.xlane.f32.xlu0 %v6418
    %v6420 = vpop.xlane.xlu0 %6419
    %v6421 = vsel %vm444, %v6365, -inf
    %6422 = vmax.xlane.f32.xlu0 %v6421
    %v6423 = vpop.xlane.xlu0 %6422
    %v6424 = vsel %vm444, %v6370, -inf
    %6425 = vmax.xlane.f32.xlu0 %v6424
    %v6426 = vpop.xlane.xlu0 %6425
    %v6427 = vsel %vm444, %v6373, -inf
    %6428 = vmax.xlane.f32.xlu0 %v6427
    %v6429 = vpop.xlane.xlu0 %6428
    %v6430 = vsel %vm444, %v6378, -inf
    %6431 = vmax.xlane.f32.xlu0 %v6430
    %v6432 = vpop.xlane.xlu0 %6431
    %v6433 = vsel %vm444, %v6381, -inf
    %6434 = vmax.xlane.f32.xlu0 %v6433
    %v6435 = vpop.xlane.xlu0 %6434
    %v6436 = vsel %vm444, %v6386, -inf
    %6437 = vmax.xlane.f32.xlu0 %v6436
    %v6438 = vpop.xlane.xlu0 %6437
    %v6439 = vsel %vm444, %v6389, -inf
    %6440 = vmax.xlane.f32.xlu0 %v6439
    %v6441 = vpop.xlane.xlu0 %6440
    %v6442 = vsel %vm444, %v6394, -inf
    %6443 = vmax.xlane.f32.xlu0 %v6442
    %v6444 = vpop.xlane.xlu0 %6443
    %v6445 = vsel %vm444, %v6397, -inf
    %6446 = vmax.xlane.f32.xlu0 %v6445
    %v6447 = vpop.xlane.xlu0 %6446
    %v6448 = vsub.f32 %v6338, %v6402
    %v6449 = vsub.f32 %v6341, %v6405
    %v6450 = vsub.f32 %v6346, %v6408
    %v6451 = vsub.f32 %v6349, %v6411
    %v6452 = vsub.f32 %v6354, %v6414
    %v6453 = vsub.f32 %v6357, %v6417
    %v6454 = vsub.f32 %v6362, %v6420
    %v6455 = vsub.f32 %v6365, %v6423
    %v6456 = vsub.f32 %v6370, %v6426
    %v6457 = vsub.f32 %v6373, %v6429
    %v6458 = vsub.f32 %v6378, %v6432
    %v6459 = vsub.f32 %v6381, %v6435
    %v6460 = vsub.f32 %v6386, %v6438
    %v6461 = vsub.f32 %v6389, %v6441
    %v6462 = vsub.f32 %v6394, %v6444
    %v6463 = vsub.f32 %v6397, %v6447
    %v6464 = vmul.f32 %v6448, 1.442695
    %v6465 = vpow.pop %v6464
    %v6466 = vmul.f32 %v6449, 1.442695
    %v6467 = vpow.pop %v6466
    %v6468 = vmul.f32 %v6450, 1.442695
    %v6469 = vpow.pop %v6468
    %v6470 = vmul.f32 %v6451, 1.442695
    %v6471 = vpow.pop %v6470
    %v6472 = vmul.f32 %v6452, 1.442695
    %v6473 = vpow.pop %v6472
    %v6474 = vmul.f32 %v6453, 1.442695
    %v6475 = vpow.pop %v6474
    %v6476 = vmul.f32 %v6454, 1.442695
    %v6477 = vpow.pop %v6476
    %v6478 = vmul.f32 %v6455, 1.442695
    %v6479 = vpow.pop %v6478
    %v6480 = vmul.f32 %v6456, 1.442695
    %v6481 = vpow.pop %v6480
    %v6482 = vmul.f32 %v6457, 1.442695
    %v6483 = vpow.pop %v6482
    %v6484 = vmul.f32 %v6458, 1.442695
    %v6485 = vpow.pop %v6484
    %v6486 = vmul.f32 %v6459, 1.442695
    %v6487 = vpow.pop %v6486
    %v6488 = vmul.f32 %v6460, 1.442695
    %v6489 = vpow.pop %v6488
    %v6490 = vmul.f32 %v6461, 1.442695
    %v6491 = vpow.pop %v6490
    %v6492 = vmul.f32 %v6462, 1.442695
    %v6493 = vpow.pop %v6492
    %v6494 = vmul.f32 %v6463, 1.442695
    %v6495 = vpow.pop %v6494
    %v6496 = vsel %vm444, %v6465, 0.0
    %6497 = vadd.xlane.f32.xlu0 %v6496
    %v6498 = vpop.xlane.xlu0 %6497
    %v6499 = vsel %vm444, %v6467, 0.0
    %6500 = vadd.xlane.f32.xlu0 %v6499
    %v6501 = vpop.xlane.xlu0 %6500
    %v6502 = vsel %vm444, %v6469, 0.0
    %6503 = vadd.xlane.f32.xlu0 %v6502
    %v6504 = vpop.xlane.xlu0 %6503
    %v6505 = vsel %vm444, %v6471, 0.0
    %6506 = vadd.xlane.f32.xlu0 %v6505
    %v6507 = vpop.xlane.xlu0 %6506
    %v6508 = vsel %vm444, %v6473, 0.0
    %6509 = vadd.xlane.f32.xlu0 %v6508
    %v6510 = vpop.xlane.xlu0 %6509
    %v6511 = vsel %vm444, %v6475, 0.0
    %6512 = vadd.xlane.f32.xlu0 %v6511
    %v6513 = vpop.xlane.xlu0 %6512
    %v6514 = vsel %vm444, %v6477, 0.0
    %6515 = vadd.xlane.f32.xlu0 %v6514
    %v6516 = vpop.xlane.xlu0 %6515
    %v6517 = vsel %vm444, %v6479, 0.0
    %6518 = vadd.xlane.f32.xlu0 %v6517
    %v6519 = vpop.xlane.xlu0 %6518
    %v6520 = vsel %vm444, %v6481, 0.0
    %6521 = vadd.xlane.f32.xlu0 %v6520
    %v6522 = vpop.xlane.xlu0 %6521
    %v6523 = vsel %vm444, %v6483, 0.0
    %6524 = vadd.xlane.f32.xlu0 %v6523
    %v6525 = vpop.xlane.xlu0 %6524
    %v6526 = vsel %vm444, %v6485, 0.0
    %6527 = vadd.xlane.f32.xlu0 %v6526
    %v6528 = vpop.xlane.xlu0 %6527
    %v6529 = vsel %vm444, %v6487, 0.0
    %6530 = vadd.xlane.f32.xlu0 %v6529
    %v6531 = vpop.xlane.xlu0 %6530
    %v6532 = vsel %vm444, %v6489, 0.0
    %6533 = vadd.xlane.f32.xlu0 %v6532
    %v6534 = vpop.xlane.xlu0 %6533
    %v6535 = vsel %vm444, %v6491, 0.0
    %6536 = vadd.xlane.f32.xlu0 %v6535
    %v6537 = vpop.xlane.xlu0 %6536
    %v6538 = vsel %vm444, %v6493, 0.0
    %6539 = vadd.xlane.f32.xlu0 %v6538
    %v6540 = vpop.xlane.xlu0 %6539
    %v6541 = vsel %vm444, %v6495, 0.0
    %6542 = vadd.xlane.f32.xlu0 %v6541
    %v6543 = vpop.xlane.xlu0 %6542
    %v6544 = vrcp.pop %v6498
    %v6545 = vrcp.pop %v6501
    %v6546 = vrcp.pop %v6504
    %v6547 = vrcp.pop %v6507
    %v6548 = vrcp.pop %v6510
    %v6549 = vrcp.pop %v6513
    %v6550 = vrcp.pop %v6516
    %v6551 = vrcp.pop %v6519
    %v6552 = vrcp.pop %v6522
    %v6553 = vrcp.pop %v6525
    %v6554 = vrcp.pop %v6528
    %v6555 = vrcp.pop %v6531
    %v6556 = vrcp.pop %v6534
    %v6557 = vrcp.pop %v6537
    %v6558 = vrcp.pop %v6540
    %v6559 = vrcp.pop %v6543
    %v6560 = vmul.f32 %v6465, %v6544
    %v6561 = vmul.f32 %v6467, %v6545
    %v6562 = vmul.f32 %v6469, %v6546
    %v6563 = vmul.f32 %v6471, %v6547
    %v6564 = vmul.f32 %v6473, %v6548
    %v6565 = vmul.f32 %v6475, %v6549
    %v6566 = vmul.f32 %v6477, %v6550
    %v6567 = vmul.f32 %v6479, %v6551
    %v6568 = vmul.f32 %v6481, %v6552
    %v6569 = vmul.f32 %v6483, %v6553
    %v6570 = vmul.f32 %v6485, %v6554
    %v6571 = vmul.f32 %v6487, %v6555
    %v6572 = vmul.f32 %v6489, %v6556
    %v6573 = vmul.f32 %v6491, %v6557
    %v6574 = vmul.f32 %v6493, %v6558
    %v6575 = vmul.f32 %v6495, %v6559
    %v6576 = vpack.c.bf16 %v6561, %v6560
    %v6577 = vpack.c.bf16 %v6563, %v6562
    %v6578 = vpack.c.bf16 %v6565, %v6564
    %v6579 = vpack.c.bf16 %v6567, %v6566
    %v6580 = vpack.c.bf16 %v6569, %v6568
    %v6581 = vpack.c.bf16 %v6571, %v6570
    %v6582 = vpack.c.bf16 %v6573, %v6572
    %v6583 = vpack.c.bf16 %v6575, %v6574
    %v6585 = vsel %vm444, %v6576, 0
    %v6588 = vsel %vm444, %v6577, 0
    %v6591 = vsel %vm444, %v6578, 0
    %v6594 = vsel %vm444, %v6579, 0
    %v6597 = vsel %vm444, %v6580, 0
    %v6600 = vsel %vm444, %v6581, 0
    %v6603 = vsel %vm444, %v6582, 0
    %v6606 = vsel %vm444, %v6583, 0
    %6608 = vmatprep.subr.bf16.mxu0 0
    %6609 = vmatpush1.bf16.msra.mxu0 %v6188
    %6610 = vmatprep.subr.bf16.mxu0 0
    %6611 = vmatpush1.bf16.msra.mxu0 0
    %6612 = vmatprep.subr.bf16.mxu0 0
    %6613 = vmatpush1.bf16.msra.mxu0 0
    %6614 = vmatprep.subr.bf16.mxu0 0
    %6615 = vmatpush1.bf16.msra.mxu0 0
    %6616 = vmatprep.subr.bf16.mxu0 0
    %6617 = vmatpush1.bf16.msra.mxu0 0
    %6618 = vmatprep.subr.bf16.mxu0 0
    %6619 = vmatpush1.bf16.msra.mxu0 0
    %6620 = vmatprep.subr.bf16.mxu0 0
    %6621 = vmatpush1.bf16.msra.mxu0 0
    %6622 = vmatprep.subr.bf16.mxu0 0
    %6623 = vmatpush1.bf16.msra.mxu0 0
    %6624 = vmatprep.subr.bf16.mxu0 0
    %6625 = vmatpush1.bf16.msra.mxu0 0
    %6626 = vmatprep.subr.bf16.mxu0 0
    %6627 = vmatpush1.bf16.msra.mxu0 0
    %6628 = vmatprep.subr.bf16.mxu0 0
    %6629 = vmatpush1.bf16.msra.mxu0 0
    %6630 = vmatprep.subr.bf16.mxu0 0
    %6631 = vmatpush1.bf16.msra.mxu0 0
    %6632 = vmatprep.subr.bf16.mxu0 0
    %6633 = vmatpush1.bf16.msra.mxu0 0
    %6634 = vmatprep.subr.bf16.mxu0 0
    %6635 = vmatpush1.bf16.msra.mxu0 0
    %6636 = vmatprep.subr.bf16.mxu0 0
    %6637 = vmatpush1.bf16.msra.mxu0 0
    %6638 = vmatprep.subr.bf16.mxu0 0
    %6639 = vmatpush1.bf16.msra.mxu0 0
    %6640 = vmatprep.mubr.bf16.mxu0 0
    %6641 = vmatmul.mubr.bf16.gmra.mrb[0].mxu0 %v6585
    %v6642 = vpop.f32.mrb[0].mxu0
    %v6643 = vadd.f32 0.0, %v6642
    %v6644 = vpop.f32.mrb[0].mxu0
    %v6645 = vpop.f32.mrb[0].mxu0
    %v6646 = vadd.f32 0.0, %v6645
    %v6647 = vpop.f32.mrb[0].mxu0
    %6648 = vmatprep.mubr.bf16.mxu0 0
    %6649 = vmatmul.mubr.bf16.gmra.mrb[0].mxu0 %v6588
    %v6650 = vpop.f32.mrb[0].mxu0
    %v6651 = vadd.f32 0.0, %v6650
    %v6652 = vpop.f32.mrb[0].mxu0
    %v6653 = vpop.f32.mrb[0].mxu0
    %v6654 = vadd.f32 0.0, %v6653
    %v6655 = vpop.f32.mrb[0].mxu0
    %6656 = vmatprep.mubr.bf16.mxu0 0
    %6657 = vmatmul.mubr.bf16.gmra.mrb[0].mxu0 %v6591
    %v6658 = vpop.f32.mrb[0].mxu0
    %v6659 = vadd.f32 0.0, %v6658
    %v6660 = vpop.f32.mrb[0].mxu0
    %v6661 = vpop.f32.mrb[0].mxu0
    %v6662 = vadd.f32 0.0, %v6661
    %v6663 = vpop.f32.mrb[0].mxu0
    %6664 = vmatprep.mubr.bf16.mxu0 0
    %6665 = vmatmul.mubr.bf16.gmra.mrb[0].mxu0 %v6594
    %v6666 = vpop.f32.mrb[0].mxu0
    %v6667 = vadd.f32 0.0, %v6666
    %v6668 = vpop.f32.mrb[0].mxu0
    %v6669 = vpop.f32.mrb[0].mxu0
    %v6670 = vadd.f32 0.0, %v6669
    %v6671 = vpop.f32.mrb[0].mxu0
    %6672 = vmatprep.mubr.bf16.mxu0 0
    %6673 = vmatmul.mubr.bf16.gmra.mrb[0].mxu0 %v6597
    %v6674 = vpop.f32.mrb[0].mxu0
    %v6675 = vadd.f32 0.0, %v6674
    %v6676 = vpop.f32.mrb[0].mxu0
    %v6677 = vpop.f32.mrb[0].mxu0
    %v6678 = vadd.f32 0.0, %v6677
    %v6679 = vpop.f32.mrb[0].mxu0
    %6680 = vmatprep.mubr.bf16.mxu0 0
    %6681 = vmatmul.mubr.bf16.gmra.mrb[0].mxu0 %v6600
    %v6682 = vpop.f32.mrb[0].mxu0
    %v6683 = vadd.f32 0.0, %v6682
    %v6684 = vpop.f32.mrb[0].mxu0
    %v6685 = vpop.f32.mrb[0].mxu0
    %v6686 = vadd.f32 0.0, %v6685
    %v6687 = vpop.f32.mrb[0].mxu0
    %6688 = vmatprep.mubr.bf16.mxu0 0
    %6689 = vmatmul.mubr.bf16.gmra.mrb[0].mxu0 %v6603
    %v6690 = vpop.f32.mrb[0].mxu0
    %v6691 = vadd.f32 0.0, %v6690
    %v6692 = vpop.f32.mrb[0].mxu0
    %v6693 = vpop.f32.mrb[0].mxu0
    %v6694 = vadd.f32 0.0, %v6693
    %v6695 = vpop.f32.mrb[0].mxu0
    %6696 = vmatprep.mubr.bf16.mxu0 0
    %6697 = vmatmul.mubr.bf16.gmra.mrb[0].mxu0 %v6606
    %v6698 = vpop.f32.mrb[0].mxu0
    %v6699 = vadd.f32 0.0, %v6698
    %v6700 = vpop.f32.mrb[0].mxu0
    %v6701 = vpop.f32.mrb[0].mxu0
    %v6702 = vadd.f32 0.0, %v6701
    %v6703 = vpop.f32.mrb[0].mxu0
    %6704 = vdwg.mxu0
    %v6705 = vpack.c.bf16 %v6646, %v6643
    %v6706 = vpack.c.bf16 %v6654, %v6651
    %v6707 = vpack.c.bf16 %v6662, %v6659
    %v6708 = vpack.c.bf16 %v6670, %v6667
    %v6709 = vpack.c.bf16 %v6678, %v6675
    %v6710 = vpack.c.bf16 %v6686, %v6683
    %v6711 = vpack.c.bf16 %v6694, %v6691
    %v6712 = vpack.c.bf16 %v6702, %v6699
    %v6713 = vmul.bf16 %v6705, %v606
    %v6714 = vmul.bf16 %v6706, %v607
    %v6715 = vmul.bf16 %v6707, %v608
    %v6716 = vmul.bf16 %v6708, %v609
    %v6717 = vmul.bf16 %v6709, %v610
    %v6718 = vmul.bf16 %v6710, %v611
    %v6719 = vmul.bf16 %v6711, %v612
    %v6720 = vmul.bf16 %v6712, %v613
    %6721 = vmatprep.subr.bf16.mxu0 0
    %6722 = vmatpush1.bf16.msra.mxu0 %v6713
    %6723 = vmatprep.subr.bf16.mxu0 0
    %6724 = vmatpush1.bf16.msra.mxu0 %v6714
    %6725 = vmatprep.subr.bf16.mxu0 0
    %6726 = vmatpush1.bf16.msra.mxu0 %v6715
    %6727 = vmatprep.subr.bf16.mxu0 0
    %6728 = vmatpush1.bf16.msra.mxu0 %v6716
    %6729 = vmatprep.subr.bf16.mxu0 0
    %6730 = vmatpush1.bf16.msra.mxu0 %v6717
    %6731 = vmatprep.subr.bf16.mxu0 0
    %6732 = vmatpush1.bf16.msra.mxu0 %v6718
    %6733 = vmatprep.subr.bf16.mxu0 0
    %6734 = vmatpush1.bf16.msra.mxu0 %v6719
    %6735 = vmatprep.subr.bf16.mxu0 0
    %6736 = vmatpush1.bf16.msra.mxu0 %v6720
    %6737 = vmatprep.subr.bf16.mxu0 0
    %6738 = vmatpush1.bf16.msra.mxu0 0
    %6739 = vmatprep.subr.bf16.mxu0 0
    %6740 = vmatpush1.bf16.msra.mxu0 0
    %6741 = vmatprep.subr.bf16.mxu0 0
    %6742 = vmatpush1.bf16.msra.mxu0 0
    %6743 = vmatprep.subr.bf16.mxu0 0
    %6744 = vmatpush1.bf16.msra.mxu0 0
    %6745 = vmatprep.subr.bf16.mxu0 0
    %6746 = vmatpush1.bf16.msra.mxu0 0
    %6747 = vmatprep.subr.bf16.mxu0 0
    %6748 = vmatpush1.bf16.msra.mxu0 0
    %6749 = vmatprep.subr.bf16.mxu0 0
    %6750 = vmatpush1.bf16.msra.mxu0 0
    %6751 = vmatprep.subr.bf16.mxu0 0
    %6752 = vmatpush1.bf16.msra.mxu0 0
    %6753 = vmatprep.mubr.bf16.mxu0 0
    %6754 = vmatmul.mubr.bf16.gmra.mrb[0].mxu0 %v1052
    %v6755 = vpop.f32.mrb[0].mxu0
    %v6756 = vadd.f32 0.0, %v6755
    %v6757 = vpop.f32.mrb[0].mxu0
    %v6758 = vpop.f32.mrb[0].mxu0
    %v6759 = vadd.f32 0.0, %v6758
    %v6760 = vpop.f32.mrb[0].mxu0
    %6761 = vdwg.mxu0
    %v6762 = vpack.c.bf16 %v6759, %v6756
    %s6763 = scalar_lea.vmem %s2, 192
    %v6764 = vld [vmem:[%s6763] sm:$0xf]
    %v6765 = vld [vmem:[%s6763 + $0x4] sm:$0xf]
    %v6766 = vld [vmem:[%s6763 + $0x8] sm:$0xf]
    %v6767 = vld [vmem:[%s6763 + $0xc] sm:$0xf]
    %v6768 = vld [vmem:[%s6763 + $0x10] sm:$0xf]
    %v6769 = vld [vmem:[%s6763 + $0x14] sm:$0xf]
    %v6770 = vld [vmem:[%s6763 + $0x18] sm:$0xf]
    %v6771 = vld [vmem:[%s6763 + $0x1c] sm:$0xf]
    %v6772 = vld [vmem:[%s6763 + $0x20] sm:$0xf]
    %v6773 = vld [vmem:[%s6763 + $0x24] sm:$0xf]
    %v6774 = vld [vmem:[%s6763 + $0x28] sm:$0xf]
    %v6775 = vld [vmem:[%s6763 + $0x2c] sm:$0xf]
    %v6776 = vld [vmem:[%s6763 + $0x30] sm:$0xf]
    %v6777 = vld [vmem:[%s6763 + $0x34] sm:$0xf]
    %v6778 = vld [vmem:[%s6763 + $0x38] sm:$0xf]
    %v6779 = vld [vmem:[%s6763 + $0x3c] sm:$0xf]
    %v6780 = vlaneseq
    %v6781 = vshrl.u32 %v6780, 7
    %v6782 = vsub.s32 0, %v6781
    %v6783 = vrot.slane %v5922, %v6782
    %v6800 = vunpack.c.l.b16 %v6764
    %v6801 = vunpack.c.l.b16 %v6765
    %v6802 = vunpack.c.l.b16 %v6766
    %v6803 = vunpack.c.l.b16 %v6767
    %v6804 = vunpack.c.l.b16 %v6768
    %v6805 = vunpack.c.l.b16 %v6769
    %v6806 = vunpack.c.l.b16 %v6770
    %v6807 = vunpack.c.l.b16 %v6771
    %v6808 = vunpack.c.l.b16 %v6772
    %v6809 = vunpack.c.l.b16 %v6773
    %v6810 = vunpack.c.l.b16 %v6774
    %v6811 = vunpack.c.l.b16 %v6775
    %v6812 = vunpack.c.l.b16 %v6776
    %v6813 = vunpack.c.l.b16 %v6777
    %v6814 = vunpack.c.l.b16 %v6778
    %v6815 = vunpack.c.l.b16 %v6779
    %v6816 = vpack.c.b16 %v6801, %v6800
    %v6817 = vpack.c.b16 %v6803, %v6802
    %v6818 = vpack.c.b16 %v6805, %v6804
    %v6819 = vpack.c.b16 %v6807, %v6806
    %v6820 = vpack.c.b16 %v6809, %v6808
    %v6821 = vpack.c.b16 %v6811, %v6810
    %v6822 = vpack.c.b16 %v6813, %v6812
    %v6823 = vpack.c.b16 %v6815, %v6814
    %6832 = vmatprep.subr.bf16.mxu0 0
    %6833 = vmatpush1.bf16.msra.mxu0 %v6816
    %6834 = vmatprep.subr.bf16.mxu0 0
    %6835 = vmatpush1.bf16.msra.mxu0 %v6817
    %6836 = vmatprep.subr.bf16.mxu0 0
    %6837 = vmatpush1.bf16.msra.mxu0 %v6818
    %6838 = vmatprep.subr.bf16.mxu0 0
    %6839 = vmatpush1.bf16.msra.mxu0 %v6819
    %6840 = vmatprep.subr.bf16.mxu0 0
    %6841 = vmatpush1.bf16.msra.mxu0 %v6820
    %6842 = vmatprep.subr.bf16.mxu0 0
    %6843 = vmatpush1.bf16.msra.mxu0 %v6821
    %6844 = vmatprep.subr.bf16.mxu0 0
    %6845 = vmatpush1.bf16.msra.mxu0 %v6822
    %6846 = vmatprep.subr.bf16.mxu0 0
    %6847 = vmatpush1.bf16.msra.mxu0 %v6823
    %6848 = vmatprep.subr.bf16.mxu0 0
    %6849 = vmatpush1.bf16.msra.mxu0 0
    %6850 = vmatprep.subr.bf16.mxu0 0
    %6851 = vmatpush1.bf16.msra.mxu0 0
    %6852 = vmatprep.subr.bf16.mxu0 0
    %6853 = vmatpush1.bf16.msra.mxu0 0
    %6854 = vmatprep.subr.bf16.mxu0 0
    %6855 = vmatpush1.bf16.msra.mxu0 0
    %6856 = vmatprep.subr.bf16.mxu0 0
    %6857 = vmatpush1.bf16.msra.mxu0 0
    %6858 = vmatprep.subr.bf16.mxu0 0
    %6859 = vmatpush1.bf16.msra.mxu0 0
    %6860 = vmatprep.subr.bf16.mxu0 0
    %6861 = vmatpush1.bf16.msra.mxu0 0
    %6862 = vmatprep.subr.bf16.mxu0 0
    %6863 = vmatpush1.bf16.msra.mxu0 0
    %6864 = vmatprep.mubr.bf16.mxu0 0
    %6865 = vmatmul.mubr.bf16.gmra.mrb[0].mxu0 %v6762
    %v6866 = vpop.f32.mrb[0].mxu0
    %v6867 = vadd.f32 %v6783, %v6866
    %v6868 = vpop.f32.mrb[0].mxu0
    %v6869 = vpop.f32.mrb[0].mxu0
    %v6870 = vadd.f32 %v6783, %v6869
    %v6871 = vpop.f32.mrb[0].mxu0
    %6872 = vdwg.mxu0
    %v6873 = vadd.f32 %v6867, %v5919
    %v6874 = vadd.f32 %v6870, %v5920
    %6875 = vadd.xlane.f32.xlu0 %v6873
    %v6876 = vpop.xlane.xlu0 %6875
    %6877 = vadd.xlane.f32.xlu0 %v6874
    %v6878 = vpop.xlane.xlu0 %6877
    %v6879 = vmul.f32 %v6876, %v1211
    %v6880 = vmul.f32 %v6878, %v1211
    %v6881 = vsub.f32 %v6873, %v6879
    %v6882 = vsub.f32 %v6874, %v6880
    %v6883 = vmul.f32 %v6881, %v6881
    %v6884 = vmul.f32 %v6882, %v6882
    %6885 = vadd.xlane.f32.xlu0 %v6883
    %v6886 = vpop.xlane.xlu0 %6885
    %6887 = vadd.xlane.f32.xlu0 %v6884
    %v6888 = vpop.xlane.xlu0 %6887
    %v6889 = vmul.f32 %v6886, %v1211
    %v6890 = vmul.f32 %v6888, %v1211
    %v6891 = vadd.f32 %v6889, 1e-12
    %v6892 = vadd.f32 %v6890, 1e-12
    %v6893 = vrsqrt.pop %v6891
    %v6894 = vrsqrt.pop %v6892
    %v6895 = vmul.f32 %v6881, %v6893
    %v6896 = vmul.f32 %v6882, %v6894
    %v6897 = vlaneseq
    %v6898 = vshrl.u32 %v6897, 7
    %v6899 = vsub.s32 1, %v6898
    %v6900 = vrot.slane %v5922, %v6899
    %v6901 = vmul.f32 %v6895, %v6900
    %v6902 = vmul.f32 %v6896, %v6900
    %v6903 = vlaneseq
    %v6904 = vshrl.u32 %v6903, 7
    %v6905 = vsub.s32 2, %v6904
    %v6906 = vrot.slane %v5922, %v6905
    %v6907 = vadd.f32 %v6901, %v6906
    %v6908 = vadd.f32 %v6902, %v6906
    %v6909 = vpack.c.bf16 %v6908, %v6907
    %s6910 = scalar_lea.vmem [#allocation4], 768
    %v6911 = vld [vmem:[%s6910] sm:$0xff]
    %v6912 = vld [vmem:[%s6910 + $0x8] sm:$0xff]
    %v6913 = vld [vmem:[%s6910 + $0x10] sm:$0xff]
    %v6914 = vld [vmem:[%s6910 + $0x18] sm:$0xff]
    %v6915 = vld [vmem:[%s6910 + $0x20] sm:$0xff]
    %v6916 = vld [vmem:[%s6910 + $0x28] sm:$0xff]
    %v6917 = vld [vmem:[%s6910 + $0x30] sm:$0xff]
    %v6918 = vld [vmem:[%s6910 + $0x38] sm:$0xff]
    %v6919 = vld [vmem:[%s6910 + $0x40] sm:$0xff]
    %v6920 = vld [vmem:[%s6910 + $0x48] sm:$0xff]
    %v6921 = vld [vmem:[%s6910 + $0x50] sm:$0xff]
    %v6922 = vld [vmem:[%s6910 + $0x58] sm:$0xff]
    %v6923 = vld [vmem:[%s6910 + $0x60] sm:$0xff]
    %v6924 = vld [vmem:[%s6910 + $0x68] sm:$0xff]
    %v6925 = vld [vmem:[%s6910 + $0x70] sm:$0xff]
    %v6926 = vld [vmem:[%s6910 + $0x78] sm:$0xff]
    %v6927 = vld [vmem:[%s6910 + $0x80] sm:$0xff]
    %v6928 = vld [vmem:[%s6910 + $0x88] sm:$0xff]
    %v6929 = vld [vmem:[%s6910 + $0x90] sm:$0xff]
    %v6930 = vld [vmem:[%s6910 + $0x98] sm:$0xff]
    %v6931 = vld [vmem:[%s6910 + $0xa0] sm:$0xff]
    %v6932 = vld [vmem:[%s6910 + $0xa8] sm:$0xff]
    %v6933 = vld [vmem:[%s6910 + $0xb0] sm:$0xff]
    %v6934 = vld [vmem:[%s6910 + $0xb8] sm:$0xff]
    %v6935 = vld [vmem:[%s6910 + $0xc0] sm:$0xff]
    %v6936 = vld [vmem:[%s6910 + $0xc8] sm:$0xff]
    %v6937 = vld [vmem:[%s6910 + $0xd0] sm:$0xff]
    %v6938 = vld [vmem:[%s6910 + $0xd8] sm:$0xff]
    %v6939 = vld [vmem:[%s6910 + $0xe0] sm:$0xff]
    %v6940 = vld [vmem:[%s6910 + $0xe8] sm:$0xff]
    %v6941 = vld [vmem:[%s6910 + $0xf0] sm:$0xff]
    %v6942 = vld [vmem:[%s6910 + $0xf8] sm:$0xff]
    %s6943 = scalar_lea.vmem %s7, 12
    %v6944 = vld [vmem:[%s6943] sm:$0xf]
    %v6946 = vlaneseq
    %v6947 = vshrl.u32 %v6946, 7
    %v6948 = vsub.s32 0, %v6947
    %v6949 = vrot.slane %v6944, %v6948
    %v6950 = vlaneseq
    %v6951 = vshrl.u32 %v6950, 7
    %v6952 = vsub.s32 1, %v6951
    %v6953 = vrot.slane %v6944, %v6952
    %v6954 = vlaneseq
    %v6955 = vshrl.u32 %v6954, 7
    %v6956 = vsub.s32 2, %v6955
    %v6957 = vrot.slane %v6944, %v6956
    %v6958 = vlaneseq
    %v6959 = vshrl.u32 %v6958, 7
    %v6960 = vsub.s32 3, %v6959
    %v6961 = vrot.slane %v6944, %v6960
    %v6998 = vunpack.c.l.b16 %v6911
    %v6999 = vunpack.c.h.b16 %v6911
    %v7000 = vunpack.c.l.b16 %v6912
    %v7001 = vunpack.c.h.b16 %v6912
    %v7002 = vunpack.c.l.b16 %v6913
    %v7003 = vunpack.c.h.b16 %v6913
    %v7004 = vunpack.c.l.b16 %v6914
    %v7005 = vunpack.c.h.b16 %v6914
    %v7006 = vunpack.c.l.b16 %v6915
    %v7007 = vunpack.c.h.b16 %v6915
    %v7008 = vunpack.c.l.b16 %v6916
    %v7009 = vunpack.c.h.b16 %v6916
    %v7010 = vunpack.c.l.b16 %v6917
    %v7011 = vunpack.c.h.b16 %v6917
    %v7012 = vunpack.c.l.b16 %v6918
    %v7013 = vunpack.c.h.b16 %v6918
    %v7014 = vunpack.c.l.b16 %v6919
    %v7015 = vunpack.c.h.b16 %v6919
    %v7016 = vunpack.c.l.b16 %v6920
    %v7017 = vunpack.c.h.b16 %v6920
    %v7018 = vunpack.c.l.b16 %v6921
    %v7019 = vunpack.c.h.b16 %v6921
    %v7020 = vunpack.c.l.b16 %v6922
    %v7021 = vunpack.c.h.b16 %v6922
    %v7022 = vunpack.c.l.b16 %v6923
    %v7023 = vunpack.c.h.b16 %v6923
    %v7024 = vunpack.c.l.b16 %v6924
    %v7025 = vunpack.c.h.b16 %v6924
    %v7026 = vunpack.c.l.b16 %v6925
    %v7027 = vunpack.c.h.b16 %v6925
    %v7028 = vunpack.c.l.b16 %v6926
    %v7029 = vunpack.c.h.b16 %v6926
    %v7030 = vunpack.c.l.b16 %v6927
    %v7031 = vunpack.c.h.b16 %v6927
    %v7032 = vunpack.c.l.b16 %v6928
    %v7033 = vunpack.c.h.b16 %v6928
    %v7034 = vunpack.c.l.b16 %v6929
    %v7035 = vunpack.c.h.b16 %v6929
    %v7036 = vunpack.c.l.b16 %v6930
    %v7037 = vunpack.c.h.b16 %v6930
    %v7038 = vunpack.c.l.b16 %v6931
    %v7039 = vunpack.c.h.b16 %v6931
    %v7040 = vunpack.c.l.b16 %v6932
    %v7041 = vunpack.c.h.b16 %v6932
    %v7042 = vunpack.c.l.b16 %v6933
    %v7043 = vunpack.c.h.b16 %v6933
    %v7044 = vunpack.c.l.b16 %v6934
    %v7045 = vunpack.c.h.b16 %v6934
    %v7046 = vunpack.c.l.b16 %v6935
    %v7047 = vunpack.c.h.b16 %v6935
    %v7048 = vunpack.c.l.b16 %v6936
    %v7049 = vunpack.c.h.b16 %v6936
    %v7050 = vunpack.c.l.b16 %v6937
    %v7051 = vunpack.c.h.b16 %v6937
    %v7052 = vunpack.c.l.b16 %v6938
    %v7053 = vunpack.c.h.b16 %v6938
    %v7054 = vunpack.c.l.b16 %v6939
    %v7055 = vunpack.c.h.b16 %v6939
    %v7056 = vunpack.c.l.b16 %v6940
    %v7057 = vunpack.c.h.b16 %v6940
    %v7058 = vunpack.c.l.b16 %v6941
    %v7059 = vunpack.c.h.b16 %v6941
    %v7060 = vunpack.c.l.b16 %v6942
    %v7061 = vunpack.c.h.b16 %v6942
    %v7062 = vpack.c.b16 %v7002, %v6998
    %v7063 = vpack.c.b16 %v7003, %v6999
    %v7064 = vpack.c.b16 %v7004, %v7000
    %v7065 = vpack.c.b16 %v7005, %v7001
    %v7066 = vpack.c.b16 %v7010, %v7006
    %v7067 = vpack.c.b16 %v7011, %v7007
    %v7068 = vpack.c.b16 %v7012, %v7008
    %v7069 = vpack.c.b16 %v7013, %v7009
    %v7070 = vpack.c.b16 %v7018, %v7014
    %v7071 = vpack.c.b16 %v7019, %v7015
    %v7072 = vpack.c.b16 %v7020, %v7016
    %v7073 = vpack.c.b16 %v7021, %v7017
    %v7074 = vpack.c.b16 %v7026, %v7022
    %v7075 = vpack.c.b16 %v7027, %v7023
    %v7076 = vpack.c.b16 %v7028, %v7024
    %v7077 = vpack.c.b16 %v7029, %v7025
    %v7078 = vpack.c.b16 %v7034, %v7030
    %v7079 = vpack.c.b16 %v7035, %v7031
    %v7080 = vpack.c.b16 %v7036, %v7032
    %v7081 = vpack.c.b16 %v7037, %v7033
    %v7082 = vpack.c.b16 %v7042, %v7038
    %v7083 = vpack.c.b16 %v7043, %v7039
    %v7084 = vpack.c.b16 %v7044, %v7040
    %v7085 = vpack.c.b16 %v7045, %v7041
    %v7086 = vpack.c.b16 %v7050, %v7046
    %v7087 = vpack.c.b16 %v7051, %v7047
    %v7088 = vpack.c.b16 %v7052, %v7048
    %v7089 = vpack.c.b16 %v7053, %v7049
    %v7090 = vpack.c.b16 %v7058, %v7054
    %v7091 = vpack.c.b16 %v7059, %v7055
    %v7092 = vpack.c.b16 %v7060, %v7056
    %v7093 = vpack.c.b16 %v7061, %v7057
    %7126 = vmatprep.subr.bf16.mxu0 %v7063
    %7127 = vmatpush1.bf16.msra.mxu0 %v7062
    %7128 = vmatprep.subr.bf16.mxu0 %v7067
    %7129 = vmatpush1.bf16.msra.mxu0 %v7066
    %7130 = vmatprep.subr.bf16.mxu0 %v7071
    %7131 = vmatpush1.bf16.msra.mxu0 %v7070
    %7132 = vmatprep.subr.bf16.mxu0 %v7075
    %7133 = vmatpush1.bf16.msra.mxu0 %v7074
    %7134 = vmatprep.subr.bf16.mxu0 %v7079
    %7135 = vmatpush1.bf16.msra.mxu0 %v7078
    %7136 = vmatprep.subr.bf16.mxu0 %v7083
    %7137 = vmatpush1.bf16.msra.mxu0 %v7082
    %7138 = vmatprep.subr.bf16.mxu0 %v7087
    %7139 = vmatpush1.bf16.msra.mxu0 %v7086
    %7140 = vmatprep.subr.bf16.mxu0 %v7091
    %7141 = vmatpush1.bf16.msra.mxu0 %v7090
    %7142 = vmatprep.subr.bf16.mxu0 0
    %7143 = vmatpush1.bf16.msra.mxu0 0
    %7144 = vmatprep.subr.bf16.mxu0 0
    %7145 = vmatpush1.bf16.msra.mxu0 0
    %7146 = vmatprep.subr.bf16.mxu0 0
    %7147 = vmatpush1.bf16.msra.mxu0 0
    %7148 = vmatprep.subr.bf16.mxu0 0
    %7149 = vmatpush1.bf16.msra.mxu0 0
    %7150 = vmatprep.subr.bf16.mxu0 0
    %7151 = vmatpush1.bf16.msra.mxu0 0
    %7152 = vmatprep.subr.bf16.mxu0 0
    %7153 = vmatpush1.bf16.msra.mxu0 0
    %7154 = vmatprep.subr.bf16.mxu0 0
    %7155 = vmatpush1.bf16.msra.mxu0 0
    %7156 = vmatprep.subr.bf16.mxu0 0
    %7157 = vmatpush1.bf16.msra.mxu0 0
    %7158 = vmatprep.mubr.bf16.mxu0 0
    %7159 = vmatmul.mubr.bf16.gmra.mrb[0].mxu0 %v6909
    %v7160 = vpop.f32.mrb[0].mxu0
    %v7161 = vadd.f32 %v6949, %v7160
    %v7162 = vpop.f32.mrb[0].mxu0
    %v7163 = vadd.f32 %v6953, %v7162
    %v7164 = vpop.f32.mrb[0].mxu0
    %v7165 = vadd.f32 %v6949, %v7164
    %v7166 = vpop.f32.mrb[0].mxu0
    %v7167 = vadd.f32 %v6953, %v7166
    %7168 = vdwg.mxu0
    %7169 = vmatprep.subr.bf16.mxu0 %v7065
    %7170 = vmatpush1.bf16.msra.mxu0 %v7064
    %7171 = vmatprep.subr.bf16.mxu0 %v7069
    %7172 = vmatpush1.bf16.msra.mxu0 %v7068
    %7173 = vmatprep.subr.bf16.mxu0 %v7073
    %7174 = vmatpush1.bf16.msra.mxu0 %v7072
    %7175 = vmatprep.subr.bf16.mxu0 %v7077
    %7176 = vmatpush1.bf16.msra.mxu0 %v7076
    %7177 = vmatprep.subr.bf16.mxu0 %v7081
    %7178 = vmatpush1.bf16.msra.mxu0 %v7080
    %7179 = vmatprep.subr.bf16.mxu0 %v7085
    %7180 = vmatpush1.bf16.msra.mxu0 %v7084
    %7181 = vmatprep.subr.bf16.mxu0 %v7089
    %7182 = vmatpush1.bf16.msra.mxu0 %v7088
    %7183 = vmatprep.subr.bf16.mxu0 %v7093
    %7184 = vmatpush1.bf16.msra.mxu0 %v7092
    %7185 = vmatprep.subr.bf16.mxu0 0
    %7186 = vmatpush1.bf16.msra.mxu0 0
    %7187 = vmatprep.subr.bf16.mxu0 0
    %7188 = vmatpush1.bf16.msra.mxu0 0
    %7189 = vmatprep.subr.bf16.mxu0 0
    %7190 = vmatpush1.bf16.msra.mxu0 0
    %7191 = vmatprep.subr.bf16.mxu0 0
    %7192 = vmatpush1.bf16.msra.mxu0 0
    %7193 = vmatprep.subr.bf16.mxu0 0
    %7194 = vmatpush1.bf16.msra.mxu0 0
    %7195 = vmatprep.subr.bf16.mxu0 0
    %7196 = vmatpush1.bf16.msra.mxu0 0
    %7197 = vmatprep.subr.bf16.mxu0 0
    %7198 = vmatpush1.bf16.msra.mxu0 0
    %7199 = vmatprep.subr.bf16.mxu0 0
    %7200 = vmatpush1.bf16.msra.mxu0 0
    %7201 = vmatprep.mubr.bf16.mxu0 0
    %7202 = vmatmul.mubr.bf16.gmra.mrb[0].mxu0 %v6909
    %v7203 = vpop.f32.mrb[0].mxu0
    %v7204 = vadd.f32 %v6957, %v7203
    %v7205 = vpop.f32.mrb[0].mxu0
    %v7206 = vadd.f32 %v6961, %v7205
    %v7207 = vpop.f32.mrb[0].mxu0
    %v7208 = vadd.f32 %v6957, %v7207
    %v7209 = vpop.f32.mrb[0].mxu0
    %v7210 = vadd.f32 %v6961, %v7209
    %7211 = vdwg.mxu0
    %v7212 = vmul.f32 %v7161, 0.5
    %v7213 = vmul.f32 %v7163, 0.5
    %v7214 = vmul.f32 %v7204, 0.5
    %v7215 = vmul.f32 %v7206, 0.5
    %v7216 = vmul.f32 %v7165, 0.5
    %v7217 = vmul.f32 %v7167, 0.5
    %v7218 = vmul.f32 %v7208, 0.5
    %v7219 = vmul.f32 %v7210, 0.5
    %v7220 = vmul.f32 %v7161, 0.70710677
    %v7221 = vmul.f32 %v7163, 0.70710677
    %v7222 = vmul.f32 %v7204, 0.70710677
    %v7223 = vmul.f32 %v7206, 0.70710677
    %v7224 = vmul.f32 %v7165, 0.70710677
    %v7225 = vmul.f32 %v7167, 0.70710677
    %v7226 = vmul.f32 %v7208, 0.70710677
    %v7227 = vmul.f32 %v7210, 0.70710677
    %v7228 = vand.u32 2147483647, %v7220
    %v7229 = vand.u32 2147483647, %v7221
    %v7230 = vand.u32 2147483647, %v7222
    %v7231 = vand.u32 2147483647, %v7223
    %v7232 = vand.u32 2147483647, %v7224
    %v7233 = vand.u32 2147483647, %v7225
    %v7234 = vand.u32 2147483647, %v7226
    %v7235 = vand.u32 2147483647, %v7227
    %v7236 = vmul.f32 %v7228, 0.3275911
    %v7237 = vmul.f32 %v7229, 0.3275911
    %v7238 = vmul.f32 %v7230, 0.3275911
    %v7239 = vmul.f32 %v7231, 0.3275911
    %v7240 = vmul.f32 %v7232, 0.3275911
    %v7241 = vmul.f32 %v7233, 0.3275911
    %v7242 = vmul.f32 %v7234, 0.3275911
    %v7243 = vmul.f32 %v7235, 0.3275911
    %v7244 = vadd.f32 %v7236, 1.0
    %v7245 = vadd.f32 %v7237, 1.0
    %v7246 = vadd.f32 %v7238, 1.0
    %v7247 = vadd.f32 %v7239, 1.0
    %v7248 = vadd.f32 %v7240, 1.0
    %v7249 = vadd.f32 %v7241, 1.0
    %v7250 = vadd.f32 %v7242, 1.0
    %v7251 = vadd.f32 %v7243, 1.0
    %v7252 = vrcp.pop %v7244
    %v7253 = vmul.f32 1.0, %v7252
    %v7254 = vrcp.pop %v7245
    %v7255 = vmul.f32 1.0, %v7254
    %v7256 = vrcp.pop %v7246
    %v7257 = vmul.f32 1.0, %v7256
    %v7258 = vrcp.pop %v7247
    %v7259 = vmul.f32 1.0, %v7258
    %v7260 = vrcp.pop %v7248
    %v7261 = vmul.f32 1.0, %v7260
    %v7262 = vrcp.pop %v7249
    %v7263 = vmul.f32 1.0, %v7262
    %v7264 = vrcp.pop %v7250
    %v7265 = vmul.f32 1.0, %v7264
    %v7266 = vrcp.pop %v7251
    %v7267 = vmul.f32 1.0, %v7266
    %v7268 = vmul.f32 %v7253, 1.0614054
    %v7269 = vmul.f32 %v7255, 1.0614054
    %v7270 = vmul.f32 %v7257, 1.0614054
    %v7271 = vmul.f32 %v7259, 1.0614054
    %v7272 = vmul.f32 %v7261, 1.0614054
    %v7273 = vmul.f32 %v7263, 1.0614054
    %v7274 = vmul.f32 %v7265, 1.0614054
    %v7275 = vmul.f32 %v7267, 1.0614054
    %v7276 = vadd.f32 %v7268, -1.4531521
    %v7277 = vadd.f32 %v7269, -1.4531521
    %v7278 = vadd.f32 %v7270, -1.4531521
    %v7279 = vadd.f32 %v7271, -1.4531521
    %v7280 = vadd.f32 %v7272, -1.4531521
    %v7281 = vadd.f32 %v7273, -1.4531521
    %v7282 = vadd.f32 %v7274, -1.4531521
    %v7283 = vadd.f32 %v7275, -1.4531521
    %v7284 = vmul.f32 %v7276, %v7253
    %v7285 = vmul.f32 %v7277, %v7255
    %v7286 = vmul.f32 %v7278, %v7257
    %v7287 = vmul.f32 %v7279, %v7259
    %v7288 = vmul.f32 %v7280, %v7261
    %v7289 = vmul.f32 %v7281, %v7263
    %v7290 = vmul.f32 %v7282, %v7265
    %v7291 = vmul.f32 %v7283, %v7267
    %v7292 = vadd.f32 %v7284, 1.4214138
    %v7293 = vadd.f32 %v7285, 1.4214138
    %v7294 = vadd.f32 %v7286, 1.4214138
    %v7295 = vadd.f32 %v7287, 1.4214138
    %v7296 = vadd.f32 %v7288, 1.4214138
    %v7297 = vadd.f32 %v7289, 1.4214138
    %v7298 = vadd.f32 %v7290, 1.4214138
    %v7299 = vadd.f32 %v7291, 1.4214138
    %v7300 = vmul.f32 %v7292, %v7253
    %v7301 = vmul.f32 %v7293, %v7255
    %v7302 = vmul.f32 %v7294, %v7257
    %v7303 = vmul.f32 %v7295, %v7259
    %v7304 = vmul.f32 %v7296, %v7261
    %v7305 = vmul.f32 %v7297, %v7263
    %v7306 = vmul.f32 %v7298, %v7265
    %v7307 = vmul.f32 %v7299, %v7267
    %v7308 = vadd.f32 %v7300, -0.28449672
    %v7309 = vadd.f32 %v7301, -0.28449672
    %v7310 = vadd.f32 %v7302, -0.28449672
    %v7311 = vadd.f32 %v7303, -0.28449672
    %v7312 = vadd.f32 %v7304, -0.28449672
    %v7313 = vadd.f32 %v7305, -0.28449672
    %v7314 = vadd.f32 %v7306, -0.28449672
    %v7315 = vadd.f32 %v7307, -0.28449672
    %v7316 = vmul.f32 %v7308, %v7253
    %v7317 = vmul.f32 %v7309, %v7255
    %v7318 = vmul.f32 %v7310, %v7257
    %v7319 = vmul.f32 %v7311, %v7259
    %v7320 = vmul.f32 %v7312, %v7261
    %v7321 = vmul.f32 %v7313, %v7263
    %v7322 = vmul.f32 %v7314, %v7265
    %v7323 = vmul.f32 %v7315, %v7267
    %v7324 = vadd.f32 %v7316, 0.2548296
    %v7325 = vadd.f32 %v7317, 0.2548296
    %v7326 = vadd.f32 %v7318, 0.2548296
    %v7327 = vadd.f32 %v7319, 0.2548296
    %v7328 = vadd.f32 %v7320, 0.2548296
    %v7329 = vadd.f32 %v7321, 0.2548296
    %v7330 = vadd.f32 %v7322, 0.2548296
    %v7331 = vadd.f32 %v7323, 0.2548296
    %v7332 = vmul.f32 %v7324, %v7253
    %v7333 = vmul.f32 %v7325, %v7255
    %v7334 = vmul.f32 %v7326, %v7257
    %v7335 = vmul.f32 %v7327, %v7259
    %v7336 = vmul.f32 %v7328, %v7261
    %v7337 = vmul.f32 %v7329, %v7263
    %v7338 = vmul.f32 %v7330, %v7265
    %v7339 = vmul.f32 %v7331, %v7267
    %v7340 = vsub.f32 0.0, %v7228
    %v7341 = vsub.f32 0.0, %v7229
    %v7342 = vsub.f32 0.0, %v7230
    %v7343 = vsub.f32 0.0, %v7231
    %v7344 = vsub.f32 0.0, %v7232
    %v7345 = vsub.f32 0.0, %v7233
    %v7346 = vsub.f32 0.0, %v7234
    %v7347 = vsub.f32 0.0, %v7235
    %v7348 = vmul.f32 %v7340, %v7228
    %v7349 = vmul.f32 %v7341, %v7229
    %v7350 = vmul.f32 %v7342, %v7230
    %v7351 = vmul.f32 %v7343, %v7231
    %v7352 = vmul.f32 %v7344, %v7232
    %v7353 = vmul.f32 %v7345, %v7233
    %v7354 = vmul.f32 %v7346, %v7234
    %v7355 = vmul.f32 %v7347, %v7235
    %v7356 = vmul.f32 %v7348, 1.442695
    %v7357 = vpow.pop %v7356
    %v7358 = vmul.f32 %v7349, 1.442695
    %v7359 = vpow.pop %v7358
    %v7360 = vmul.f32 %v7350, 1.442695
    %v7361 = vpow.pop %v7360
    %v7362 = vmul.f32 %v7351, 1.442695
    %v7363 = vpow.pop %v7362
    %v7364 = vmul.f32 %v7352, 1.442695
    %v7365 = vpow.pop %v7364
    %v7366 = vmul.f32 %v7353, 1.442695
    %v7367 = vpow.pop %v7366
    %v7368 = vmul.f32 %v7354, 1.442695
    %v7369 = vpow.pop %v7368
    %v7370 = vmul.f32 %v7355, 1.442695
    %v7371 = vpow.pop %v7370
    %v7372 = vmul.f32 %v7332, %v7357
    %v7373 = vmul.f32 %v7333, %v7359
    %v7374 = vmul.f32 %v7334, %v7361
    %v7375 = vmul.f32 %v7335, %v7363
    %v7376 = vmul.f32 %v7336, %v7365
    %v7377 = vmul.f32 %v7337, %v7367
    %v7378 = vmul.f32 %v7338, %v7369
    %v7379 = vmul.f32 %v7339, %v7371
    %v7380 = vsub.f32 1.0, %v7372
    %v7381 = vsub.f32 1.0, %v7373
    %v7382 = vsub.f32 1.0, %v7374
    %v7383 = vsub.f32 1.0, %v7375
    %v7384 = vsub.f32 1.0, %v7376
    %v7385 = vsub.f32 1.0, %v7377
    %v7386 = vsub.f32 1.0, %v7378
    %v7387 = vsub.f32 1.0, %v7379
    %vm7388 = vcmp.ge.f32.partialorder %v7220, 0.0
    %vm7389 = vcmp.ge.f32.partialorder %v7221, 0.0
    %vm7390 = vcmp.ge.f32.partialorder %v7222, 0.0
    %vm7391 = vcmp.ge.f32.partialorder %v7223, 0.0
    %vm7392 = vcmp.ge.f32.partialorder %v7224, 0.0
    %vm7393 = vcmp.ge.f32.partialorder %v7225, 0.0
    %vm7394 = vcmp.ge.f32.partialorder %v7226, 0.0
    %vm7395 = vcmp.ge.f32.partialorder %v7227, 0.0
    %v7396 = vsub.f32 0.0, %v7380
    %v7397 = vsub.f32 0.0, %v7381
    %v7398 = vsub.f32 0.0, %v7382
    %v7399 = vsub.f32 0.0, %v7383
    %v7400 = vsub.f32 0.0, %v7384
    %v7401 = vsub.f32 0.0, %v7385
    %v7402 = vsub.f32 0.0, %v7386
    %v7403 = vsub.f32 0.0, %v7387
    %v7404 = vsel %vm7388, %v7380, %v7396
    %v7405 = vsel %vm7389, %v7381, %v7397
    %v7406 = vsel %vm7390, %v7382, %v7398
    %v7407 = vsel %vm7391, %v7383, %v7399
    %v7408 = vsel %vm7392, %v7384, %v7400
    %v7409 = vsel %vm7393, %v7385, %v7401
    %v7410 = vsel %vm7394, %v7386, %v7402
    %v7411 = vsel %vm7395, %v7387, %v7403
    %v7412 = vadd.f32 %v7404, 1.0
    %v7413 = vadd.f32 %v7405, 1.0
    %v7414 = vadd.f32 %v7406, 1.0
    %v7415 = vadd.f32 %v7407, 1.0
    %v7416 = vadd.f32 %v7408, 1.0
    %v7417 = vadd.f32 %v7409, 1.0
    %v7418 = vadd.f32 %v7410, 1.0
    %v7419 = vadd.f32 %v7411, 1.0
    %v7420 = vmul.f32 %v7212, %v7412
    %v7421 = vmul.f32 %v7213, %v7413
    %v7422 = vmul.f32 %v7214, %v7414
    %v7423 = vmul.f32 %v7215, %v7415
    %v7424 = vmul.f32 %v7216, %v7416
    %v7425 = vmul.f32 %v7217, %v7417
    %v7426 = vmul.f32 %v7218, %v7418
    %v7427 = vmul.f32 %v7219, %v7419
    %v7428 = vpack.c.bf16 %v7424, %v7420
    %v7429 = vpack.c.bf16 %v7425, %v7421
    %v7430 = vpack.c.bf16 %v7426, %v7422
    %v7431 = vpack.c.bf16 %v7427, %v7423
    %s7432 = scalar_lea.vmem [#allocation6], 768
    %v7433 = vld [vmem:[%s7432] sm:$0xf]
    %v7434 = vld [vmem:[%s7432 + $0x4] sm:$0xf]
    %v7435 = vld [vmem:[%s7432 + $0x8] sm:$0xf]
    %v7436 = vld [vmem:[%s7432 + $0xc] sm:$0xf]
    %v7437 = vld [vmem:[%s7432 + $0x10] sm:$0xf]
    %v7438 = vld [vmem:[%s7432 + $0x14] sm:$0xf]
    %v7439 = vld [vmem:[%s7432 + $0x18] sm:$0xf]
    %v7440 = vld [vmem:[%s7432 + $0x1c] sm:$0xf]
    %v7441 = vld [vmem:[%s7432 + $0x20] sm:$0xf]
    %v7442 = vld [vmem:[%s7432 + $0x24] sm:$0xf]
    %v7443 = vld [vmem:[%s7432 + $0x28] sm:$0xf]
    %v7444 = vld [vmem:[%s7432 + $0x2c] sm:$0xf]
    %v7445 = vld [vmem:[%s7432 + $0x30] sm:$0xf]
    %v7446 = vld [vmem:[%s7432 + $0x34] sm:$0xf]
    %v7447 = vld [vmem:[%s7432 + $0x38] sm:$0xf]
    %v7448 = vld [vmem:[%s7432 + $0x3c] sm:$0xf]
    %v7449 = vld [vmem:[%s7432 + $0x40] sm:$0xf]
    %v7450 = vld [vmem:[%s7432 + $0x44] sm:$0xf]
    %v7451 = vld [vmem:[%s7432 + $0x48] sm:$0xf]
    %v7452 = vld [vmem:[%s7432 + $0x4c] sm:$0xf]
    %v7453 = vld [vmem:[%s7432 + $0x50] sm:$0xf]
    %v7454 = vld [vmem:[%s7432 + $0x54] sm:$0xf]
    %v7455 = vld [vmem:[%s7432 + $0x58] sm:$0xf]
    %v7456 = vld [vmem:[%s7432 + $0x5c] sm:$0xf]
    %v7457 = vld [vmem:[%s7432 + $0x60] sm:$0xf]
    %v7458 = vld [vmem:[%s7432 + $0x64] sm:$0xf]
    %v7459 = vld [vmem:[%s7432 + $0x68] sm:$0xf]
    %v7460 = vld [vmem:[%s7432 + $0x6c] sm:$0xf]
    %v7461 = vld [vmem:[%s7432 + $0x70] sm:$0xf]
    %v7462 = vld [vmem:[%s7432 + $0x74] sm:$0xf]
    %v7463 = vld [vmem:[%s7432 + $0x78] sm:$0xf]
    %v7464 = vld [vmem:[%s7432 + $0x7c] sm:$0xf]
    %v7465 = vld [vmem:[%s7432 + $0x80] sm:$0xf]
    %v7466 = vld [vmem:[%s7432 + $0x84] sm:$0xf]
    %v7467 = vld [vmem:[%s7432 + $0x88] sm:$0xf]
    %v7468 = vld [vmem:[%s7432 + $0x8c] sm:$0xf]
    %v7469 = vld [vmem:[%s7432 + $0x90] sm:$0xf]
    %v7470 = vld [vmem:[%s7432 + $0x94] sm:$0xf]
    %v7471 = vld [vmem:[%s7432 + $0x98] sm:$0xf]
    %v7472 = vld [vmem:[%s7432 + $0x9c] sm:$0xf]
    %v7473 = vld [vmem:[%s7432 + $0xa0] sm:$0xf]
    %v7474 = vld [vmem:[%s7432 + $0xa4] sm:$0xf]
    %v7475 = vld [vmem:[%s7432 + $0xa8] sm:$0xf]
    %v7476 = vld [vmem:[%s7432 + $0xac] sm:$0xf]
    %v7477 = vld [vmem:[%s7432 + $0xb0] sm:$0xf]
    %v7478 = vld [vmem:[%s7432 + $0xb4] sm:$0xf]
    %v7479 = vld [vmem:[%s7432 + $0xb8] sm:$0xf]
    %v7480 = vld [vmem:[%s7432 + $0xbc] sm:$0xf]
    %v7481 = vld [vmem:[%s7432 + $0xc0] sm:$0xf]
    %v7482 = vld [vmem:[%s7432 + $0xc4] sm:$0xf]
    %v7483 = vld [vmem:[%s7432 + $0xc8] sm:$0xf]
    %v7484 = vld [vmem:[%s7432 + $0xcc] sm:$0xf]
    %v7485 = vld [vmem:[%s7432 + $0xd0] sm:$0xf]
    %v7486 = vld [vmem:[%s7432 + $0xd4] sm:$0xf]
    %v7487 = vld [vmem:[%s7432 + $0xd8] sm:$0xf]
    %v7488 = vld [vmem:[%s7432 + $0xdc] sm:$0xf]
    %v7489 = vld [vmem:[%s7432 + $0xe0] sm:$0xf]
    %v7490 = vld [vmem:[%s7432 + $0xe4] sm:$0xf]
    %v7491 = vld [vmem:[%s7432 + $0xe8] sm:$0xf]
    %v7492 = vld [vmem:[%s7432 + $0xec] sm:$0xf]
    %v7493 = vld [vmem:[%s7432 + $0xf0] sm:$0xf]
    %v7494 = vld [vmem:[%s7432 + $0xf4] sm:$0xf]
    %v7495 = vld [vmem:[%s7432 + $0xf8] sm:$0xf]
    %v7496 = vld [vmem:[%s7432 + $0xfc] sm:$0xf]
    %v7497 = vlaneseq
    %v7498 = vshrl.u32 %v7497, 7
    %v7499 = vsub.s32 3, %v7498
    %v7500 = vrot.slane %v5922, %v7499
    %v7565 = vunpack.c.l.b16 %v7433
    %v7566 = vunpack.c.l.b16 %v7434
    %v7567 = vunpack.c.l.b16 %v7435
    %v7568 = vunpack.c.l.b16 %v7436
    %v7569 = vunpack.c.l.b16 %v7437
    %v7570 = vunpack.c.l.b16 %v7438
    %v7571 = vunpack.c.l.b16 %v7439
    %v7572 = vunpack.c.l.b16 %v7440
    %v7573 = vunpack.c.l.b16 %v7441
    %v7574 = vunpack.c.l.b16 %v7442
    %v7575 = vunpack.c.l.b16 %v7443
    %v7576 = vunpack.c.l.b16 %v7444
    %v7577 = vunpack.c.l.b16 %v7445
    %v7578 = vunpack.c.l.b16 %v7446
    %v7579 = vunpack.c.l.b16 %v7447
    %v7580 = vunpack.c.l.b16 %v7448
    %v7581 = vunpack.c.l.b16 %v7449
    %v7582 = vunpack.c.l.b16 %v7450
    %v7583 = vunpack.c.l.b16 %v7451
    %v7584 = vunpack.c.l.b16 %v7452
    %v7585 = vunpack.c.l.b16 %v7453
    %v7586 = vunpack.c.l.b16 %v7454
    %v7587 = vunpack.c.l.b16 %v7455
    %v7588 = vunpack.c.l.b16 %v7456
    %v7589 = vunpack.c.l.b16 %v7457
    %v7590 = vunpack.c.l.b16 %v7458
    %v7591 = vunpack.c.l.b16 %v7459
    %v7592 = vunpack.c.l.b16 %v7460
    %v7593 = vunpack.c.l.b16 %v7461
    %v7594 = vunpack.c.l.b16 %v7462
    %v7595 = vunpack.c.l.b16 %v7463
    %v7596 = vunpack.c.l.b16 %v7464
    %v7597 = vunpack.c.l.b16 %v7465
    %v7598 = vunpack.c.l.b16 %v7466
    %v7599 = vunpack.c.l.b16 %v7467
    %v7600 = vunpack.c.l.b16 %v7468
    %v7601 = vunpack.c.l.b16 %v7469
    %v7602 = vunpack.c.l.b16 %v7470
    %v7603 = vunpack.c.l.b16 %v7471
    %v7604 = vunpack.c.l.b16 %v7472
    %v7605 = vunpack.c.l.b16 %v7473
    %v7606 = vunpack.c.l.b16 %v7474
    %v7607 = vunpack.c.l.b16 %v7475
    %v7608 = vunpack.c.l.b16 %v7476
    %v7609 = vunpack.c.l.b16 %v7477
    %v7610 = vunpack.c.l.b16 %v7478
    %v7611 = vunpack.c.l.b16 %v7479
    %v7612 = vunpack.c.l.b16 %v7480
    %v7613 = vunpack.c.l.b16 %v7481
    %v7614 = vunpack.c.l.b16 %v7482
    %v7615 = vunpack.c.l.b16 %v7483
    %v7616 = vunpack.c.l.b16 %v7484
    %v7617 = vunpack.c.l.b16 %v7485
    %v7618 = vunpack.c.l.b16 %v7486
    %v7619 = vunpack.c.l.b16 %v7487
    %v7620 = vunpack.c.l.b16 %v7488
    %v7621 = vunpack.c.l.b16 %v7489
    %v7622 = vunpack.c.l.b16 %v7490
    %v7623 = vunpack.c.l.b16 %v7491
    %v7624 = vunpack.c.l.b16 %v7492
    %v7625 = vunpack.c.l.b16 %v7493
    %v7626 = vunpack.c.l.b16 %v7494
    %v7627 = vunpack.c.l.b16 %v7495
    %v7628 = vunpack.c.l.b16 %v7496
    %v7629 = vpack.c.b16 %v7566, %v7565
    %v7630 = vpack.c.b16 %v7568, %v7567
    %v7631 = vpack.c.b16 %v7570, %v7569
    %v7632 = vpack.c.b16 %v7572, %v7571
    %v7633 = vpack.c.b16 %v7574, %v7573
    %v7634 = vpack.c.b16 %v7576, %v7575
    %v7635 = vpack.c.b16 %v7578, %v7577
    %v7636 = vpack.c.b16 %v7580, %v7579
    %v7637 = vpack.c.b16 %v7582, %v7581
    %v7638 = vpack.c.b16 %v7584, %v7583
    %v7639 = vpack.c.b16 %v7586, %v7585
    %v7640 = vpack.c.b16 %v7588, %v7587
    %v7641 = vpack.c.b16 %v7590, %v7589
    %v7642 = vpack.c.b16 %v7592, %v7591
    %v7643 = vpack.c.b16 %v7594, %v7593
    %v7644 = vpack.c.b16 %v7596, %v7595
    %v7645 = vpack.c.b16 %v7598, %v7597
    %v7646 = vpack.c.b16 %v7600, %v7599
    %v7647 = vpack.c.b16 %v7602, %v7601
    %v7648 = vpack.c.b16 %v7604, %v7603
    %v7649 = vpack.c.b16 %v7606, %v7605
    %v7650 = vpack.c.b16 %v7608, %v7607
    %v7651 = vpack.c.b16 %v7610, %v7609
    %v7652 = vpack.c.b16 %v7612, %v7611
    %v7653 = vpack.c.b16 %v7614, %v7613
    %v7654 = vpack.c.b16 %v7616, %v7615
    %v7655 = vpack.c.b16 %v7618, %v7617
    %v7656 = vpack.c.b16 %v7620, %v7619
    %v7657 = vpack.c.b16 %v7622, %v7621
    %v7658 = vpack.c.b16 %v7624, %v7623
    %v7659 = vpack.c.b16 %v7626, %v7625
    %v7660 = vpack.c.b16 %v7628, %v7627
    %7693 = vmatprep.subr.bf16.mxu0 0
    %7694 = vmatpush1.bf16.msra.mxu0 %v7629
    %7695 = vmatprep.subr.bf16.mxu0 0
    %7696 = vmatpush1.bf16.msra.mxu0 %v7630
    %7697 = vmatprep.subr.bf16.mxu0 0
    %7698 = vmatpush1.bf16.msra.mxu0 %v7631
    %7699 = vmatprep.subr.bf16.mxu0 0
    %7700 = vmatpush1.bf16.msra.mxu0 %v7632
    %7701 = vmatprep.subr.bf16.mxu0 0
    %7702 = vmatpush1.bf16.msra.mxu0 %v7633
    %7703 = vmatprep.subr.bf16.mxu0 0
    %7704 = vmatpush1.bf16.msra.mxu0 %v7634
    %7705 = vmatprep.subr.bf16.mxu0 0
    %7706 = vmatpush1.bf16.msra.mxu0 %v7635
    %7707 = vmatprep.subr.bf16.mxu0 0
    %7708 = vmatpush1.bf16.msra.mxu0 %v7636
    %7709 = vmatprep.subr.bf16.mxu0 0
    %7710 = vmatpush1.bf16.msra.mxu0 %v7637
    %7711 = vmatprep.subr.bf16.mxu0 0
    %7712 = vmatpush1.bf16.msra.mxu0 %v7638
    %7713 = vmatprep.subr.bf16.mxu0 0
    %7714 = vmatpush1.bf16.msra.mxu0 %v7639
    %7715 = vmatprep.subr.bf16.mxu0 0
    %7716 = vmatpush1.bf16.msra.mxu0 %v7640
    %7717 = vmatprep.subr.bf16.mxu0 0
    %7718 = vmatpush1.bf16.msra.mxu0 %v7641
    %7719 = vmatprep.subr.bf16.mxu0 0
    %7720 = vmatpush1.bf16.msra.mxu0 %v7642
    %7721 = vmatprep.subr.bf16.mxu0 0
    %7722 = vmatpush1.bf16.msra.mxu0 %v7643
    %7723 = vmatprep.subr.bf16.mxu0 0
    %7724 = vmatpush1.bf16.msra.mxu0 %v7644
    %7725 = vmatprep.mubr.bf16.mxu0 %v7429
    %7726 = vmatmul.mubr.bf16.gmra.mrb[0].mxu0 %v7428
    %v7727 = vpop.f32.mrb[0].mxu0
    %v7728 = vadd.f32 %v7500, %v7727
    %v7729 = vpop.f32.mrb[0].mxu0
    %v7730 = vpop.f32.mrb[0].mxu0
    %v7731 = vadd.f32 %v7500, %v7730
    %v7732 = vpop.f32.mrb[0].mxu0
    %7733 = vdwg.mxu0
    %7734 = vmatprep.subr.bf16.mxu0 0
    %7735 = vmatpush1.bf16.msra.mxu0 %v7645
    %7736 = vmatprep.subr.bf16.mxu0 0
    %7737 = vmatpush1.bf16.msra.mxu0 %v7646
    %7738 = vmatprep.subr.bf16.mxu0 0
    %7739 = vmatpush1.bf16.msra.mxu0 %v7647
    %7740 = vmatprep.subr.bf16.mxu0 0
    %7741 = vmatpush1.bf16.msra.mxu0 %v7648
    %7742 = vmatprep.subr.bf16.mxu0 0
    %7743 = vmatpush1.bf16.msra.mxu0 %v7649
    %7744 = vmatprep.subr.bf16.mxu0 0
    %7745 = vmatpush1.bf16.msra.mxu0 %v7650
    %7746 = vmatprep.subr.bf16.mxu0 0
    %7747 = vmatpush1.bf16.msra.mxu0 %v7651
    %7748 = vmatprep.subr.bf16.mxu0 0
    %7749 = vmatpush1.bf16.msra.mxu0 %v7652
    %7750 = vmatprep.subr.bf16.mxu0 0
    %7751 = vmatpush1.bf16.msra.mxu0 %v7653
    %7752 = vmatprep.subr.bf16.mxu0 0
    %7753 = vmatpush1.bf16.msra.mxu0 %v7654
    %7754 = vmatprep.subr.bf16.mxu0 0
    %7755 = vmatpush1.bf16.msra.mxu0 %v7655
    %7756 = vmatprep.subr.bf16.mxu0 0
    %7757 = vmatpush1.bf16.msra.mxu0 %v7656
    %7758 = vmatprep.subr.bf16.mxu0 0
    %7759 = vmatpush1.bf16.msra.mxu0 %v7657
    %7760 = vmatprep.subr.bf16.mxu0 0
    %7761 = vmatpush1.bf16.msra.mxu0 %v7658
    %7762 = vmatprep.subr.bf16.mxu0 0
    %7763 = vmatpush1.bf16.msra.mxu0 %v7659
    %7764 = vmatprep.subr.bf16.mxu0 0
    %7765 = vmatpush1.bf16.msra.mxu0 %v7660
    %7766 = vmatprep.mubr.bf16.mxu0 %v7431
    %7767 = vmatmul.mubr.bf16.gmra.mrb[0].mxu0 %v7430
    %v7768 = vpop.f32.mrb[0].mxu0
    %v7769 = vadd.f32 %v7728, %v7768
    %v7770 = vpop.f32.mrb[0].mxu0
    %v7771 = vpop.f32.mrb[0].mxu0
    %v7772 = vadd.f32 %v7731, %v7771
    %v7773 = vpop.f32.mrb[0].mxu0
    %7774 = vdwg.mxu0
    %v7775 = vadd.f32 %v7769, %v6907
    %v7776 = vadd.f32 %v7772, %v6908
    %7777 = vadd.xlane.f32.xlu0 %v7775
    %v7778 = vpop.xlane.xlu0 %7777
    %7779 = vadd.xlane.f32.xlu0 %v7776
    %v7780 = vpop.xlane.xlu0 %7779
    %v7781 = vmul.f32 %v7778, %v1211
    %v7782 = vmul.f32 %v7780, %v1211
    %v7783 = vsub.f32 %v7775, %v7781
    %v7784 = vsub.f32 %v7776, %v7782
    %v7785 = vmul.f32 %v7783, %v7783
    %v7786 = vmul.f32 %v7784, %v7784
    %7787 = vadd.xlane.f32.xlu0 %v7785
    %v7788 = vpop.xlane.xlu0 %7787
    %7789 = vadd.xlane.f32.xlu0 %v7786
    %v7790 = vpop.xlane.xlu0 %7789
    %v7791 = vmul.f32 %v7788, %v1211
    %v7792 = vmul.f32 %v7790, %v1211
    %v7793 = vadd.f32 %v7791, 1e-12
    %v7794 = vadd.f32 %v7792, 1e-12
    %v7795 = vrsqrt.pop %v7793
    %v7796 = vrsqrt.pop %v7794
    %v7797 = vmul.f32 %v7783, %v7795
    %v7798 = vmul.f32 %v7784, %v7796
    %v7799 = vlaneseq
    %v7800 = vshrl.u32 %v7799, 7
    %v7801 = vsub.s32 4, %v7800
    %v7802 = vrot.slane %v5922, %v7801
    %v7803 = vmul.f32 %v7797, %v7802
    %v7804 = vmul.f32 %v7798, %v7802
    %v7805 = vlaneseq
    %v7806 = vshrl.u32 %v7805, 7
    %v7807 = vsub.s32 5, %v7806
    %v7808 = vrot.slane %v5922, %v7807
    %v7809 = vadd.f32 %v7803, %v7808
    %v7810 = vadd.f32 %v7804, %v7808
    %v7811 = vld [vmem:[%s12] sm:$0x7]
    %v7812 = vmul.f32 %v136, 0.2
    %v7813 = vmul.f32 %v137, 0.2
    %v7814 = vadd.f32 %v7809, %v7812
    %v7815 = vadd.f32 %v7810, %v7813
    %v7816 = vlaneseq
    %v7817 = vshrl.u32 %v7816, 7
    %v7818 = vsub.s32 0, %v7817
    %v7819 = vrot.slane %v7811, %v7818
    %v7820 = vmul.f32 %v7814, %v7819
    %v7821 = vmul.f32 %v7815, %v7819
    %7822 = vadd.xlane.f32.xlu0 %v7820
    %v7823 = vpop.xlane.xlu0 %7822
    %7824 = vadd.xlane.f32.xlu0 %v7821
    %v7825 = vpop.xlane.xlu0 %7824
    %v7826 = vrot.slane %v7823, 4
    %v7827 = vmax.f32 %v7823, %v7826
    %v7828 = vrot.slane %v7827, 2
    %v7829 = vmax.f32 %v7827, %v7828
    %v7830 = vrot.slane %v7829, 1
    %v7831 = vmax.f32 %v7829, %v7830
    %v7832 = vrot.slane %v7825, 4
    %v7833 = vmax.f32 %v7825, %v7832
    %v7834 = vrot.slane %v7833, 2
    %v7835 = vmax.f32 %v7833, %v7834
    %v7836 = vrot.slane %v7835, 1
    %v7837 = vmax.f32 %v7835, %v7836
    %v7838 = vsub.f32 %v7823, %v7831
    %v7839 = vsub.f32 %v7825, %v7837
    %v7840 = vmul.f32 %v7838, 1.442695
    %v7841 = vpow.pop %v7840
    %v7842 = vmul.f32 %v7839, 1.442695
    %v7843 = vpow.pop %v7842
    %v7844 = vrot.slane %v7841, 4
    %v7845 = vadd.f32 %v7841, %v7844
    %v7846 = vrot.slane %v7845, 2
    %v7847 = vadd.f32 %v7845, %v7846
    %v7848 = vrot.slane %v7847, 1
    %v7849 = vadd.f32 %v7847, %v7848
    %v7850 = vrot.slane %v7843, 4
    %v7851 = vadd.f32 %v7843, %v7850
    %v7852 = vrot.slane %v7851, 2
    %v7853 = vadd.f32 %v7851, %v7852
    %v7854 = vrot.slane %v7853, 1
    %v7855 = vadd.f32 %v7853, %v7854
    %v7856 = vrcp.pop %v7849
    %v7857 = vrcp.pop %v7855
    %v7858 = vmul.f32 %v7841, %v7856
    %v7859 = vmul.f32 %v7843, %v7857
    %v7860 = vmul.f32 %v7858, %v7814
    %v7861 = vmul.f32 %v7859, %v7815
    %v7862 = vrot.slane %v7860, 4
    %v7863 = vadd.f32 %v7860, %v7862
    %v7864 = vrot.slane %v7863, 2
    %v7865 = vadd.f32 %v7863, %v7864
    %v7866 = vrot.slane %v7865, 1
    %v7867 = vadd.f32 %v7865, %v7866
    %v7868 = vrot.slane %v7861, 4
    %v7869 = vadd.f32 %v7861, %v7868
    %v7870 = vrot.slane %v7869, 2
    %v7871 = vadd.f32 %v7869, %v7870
    %v7872 = vrot.slane %v7871, 1
    %v7873 = vadd.f32 %v7871, %v7872
    %vm7874 = vcmp.ge.f32.partialorder %v7867, 0.0
    %vm7875 = vcmp.ge.f32.partialorder %v7873, 0.0
    %v7877 = vrot.slane %v7811, 2
    %s7878 = vtos %v7877
    %v7879 = vstv %s7878
    %v7881 = vmul.f32 %v7879, %v7867
    %v7882 = vmul.f32 %v7879, %v7873
    %v7883 = vsel %vm7874, %v7867, %v7881
    %v7884 = vsel %vm7875, %v7873, %v7882
    %v7885 = vlaneseq
    %v7886 = vshrl.u32 %v7885, 7
    %v7887 = vsub.s32 1, %v7886
    %v7888 = vrot.slane %v7811, %v7887
    %v7889 = vmul.f32 %v7883, %v7888
    %v7890 = vmul.f32 %v7884, %v7888
    %v7893 = vrot.slane %v7890, 7
    %vm7894 = vcmask 1041409
    %v7895 = vsel %vm7894, %v7893, %v7889
    %vm7897 = vcmask 1041408
    %v7898 = vsel %vm7897, %v7895, 0.0
    %7899 = vadd.xlane.f32.xlu0 %v7898
    %v7900 = vpop.xlane.xlu0 %7899
    %v7901 = vlaneseq
    %v7902 = vshrl.u32 %v7901, 7
    %v7903 = vsub.s32 2, %v7902
    %v7904 = vrot.slane %v7811, %v7903
    %v7905 = vadd.f32 %v7900, %v7904
    %7907 = vrot.lane.b32.xlu0 %v7905, 127
    %v7908 = vpop.permute.xlu0 %7907
    %vm7910 = vcmask 1024
    %7911 = vst.msk [vmem:[%s13] sm:$0x3] %vm7910, %v7908
    // Predicated region
    $region66: #{model_rt_bert_forward.1} parent=1 // pred_check
      _
    $region67: #{model_rt_bert_forward.1} parent=1 // pred_check_branch
      %7913 = sbr.rel (0) target = $region69
    $region68: #{model_rt_bert_forward.1} parent=1 // pred_region
      _
    $region69: #{model_rt_bert_forward.1} parent=1 // pred_fallthru
      _
    // Predicated region
    $region70: #{model_rt_bert_forward.1} parent=1 // pred_check
      _
    $region71: #{model_rt_bert_forward.1} parent=1 // pred_check_branch
      %7915 = sbr.rel (0) target = $region73
    $region72: #{model_rt_bert_forward.1} parent=1 // pred_region
      _
    $region73: #{model_rt_bert_forward.1} parent=1 // pred_fallthru
      _
    %7916 = vsyncpa [#allocation3], 1
    %7917 = vsyncpa [#allocation5], 1

</llo_original>
